<compile_context>
chip_gen: v7x
topology: tpu7x:2x2x1
jax: 0.10.0
libtpu: 0.0.40
codegen_flags: <defaults>
</compile_context>

<pallas_src>
import jax
import jax.numpy as jnp
from jax import lax
from jax.experimental import pallas as pl
from jax.experimental.pallas import tpu as pltpu


def _round_up(x, m):
    return ((x + m - 1) // m) * m


# ----------------------------------------------------------------------------
# Pallas kernels
# ----------------------------------------------------------------------------
def _stage1_kernel(p1_ref, w_ref, b_ref, o_ref):
    # p1_ref: (TR, 300) bf16 -- rows = (b, ph, pw); cols = 4 pool sub-positions
    #                           (q-major) x 75 patch elements.
    # w_ref : (300, 24) bf16 -- block-diagonal copies of the (75, 6) conv1 weight.
    # b_ref : (1, 6) f32      o_ref: (TR, 6) bf16
    y = jnp.dot(p1_ref[...], w_ref[...], preferred_element_type=jnp.float32)
    # relu(max_q(conv)+b) == max_q(relu(conv+b)): pool first, one bias/relu.
    z = jnp.maximum(jnp.maximum(y[:, 0:6], y[:, 6:12]),
                    jnp.maximum(y[:, 12:18], y[:, 18:24]))
    o_ref[...] = jnp.maximum(z + b_ref[...], 0.0).astype(o_ref.dtype)


def _stage2_kernel(p2_ref, w2_ref, b2_ref, fw1_ref, fb1_ref, fw2_ref, fb2_ref,
                   fw3_ref, fb3_ref, o_ref, mx_ref):
    # Grid: (batch tile i ["parallel"], pool sub-position q ["arbitrary"]).
    # p2_ref : (1, TB, 3750) bf16 -- 25 pooled positions x 150 patch elems (p-major)
    # w2_ref : (3750, 400) bf16   -- p-block-diagonal copies of the (150, 16)
    #                                conv2 weight: output lanes are (p, co),
    #                                i.e. already the fc1 input layout.
    # b2_ref : (1, 400) f32 (conv2 bias tiled over p)
    # fw*_ref: bf16 fc weights (NCHW flatten permutation folded into fw1)
    # fb*_ref: f32 fc biases; o_ref: (TB, 3) f32; mx_ref: (TB, 400) f32 scratch
    q = pl.program_id(1)
    y = jnp.dot(p2_ref[0], w2_ref[...], preferred_element_type=jnp.float32)

    @pl.when(q == 0)
    def _():
        mx_ref[...] = y

    @pl.when(q > 0)
    def _():
        mx_ref[...] = jnp.maximum(mx_ref[...], y)

    @pl.when(q == pl.num_programs(1) - 1)
    def _():
        f = jnp.maximum(mx_ref[...] + b2_ref[...], 0.0)          # (TB, 400) f32
        h = jnp.dot(f.astype(fw1_ref.dtype), fw1_ref[...],
                    preferred_element_type=jnp.float32) + fb1_ref[...]
        h = jnp.maximum(h, 0.0)
        h = jnp.dot(h.astype(fw2_ref.dtype), fw2_ref[...],
                    preferred_element_type=jnp.float32) + fb2_ref[...]
        h = jnp.maximum(h, 0.0)
        logits = jnp.dot(h.astype(fw3_ref.dtype), fw3_ref[...],
                         preferred_element_type=jnp.float32) + fb3_ref[...]
        m = jnp.max(logits, axis=-1, keepdims=True)
        e = jnp.exp(logits - m)
        s = jnp.sum(e, axis=-1, keepdims=True)
        o_ref[...] = e * pl.reciprocal(s, approx=True)


# ----------------------------------------------------------------------------
# pallas_call wrappers
# ----------------------------------------------------------------------------
def conv_pool_stage1(p1, w_big, b_row, *, tile_rows):
    rpad, kdim = p1.shape
    nco = b_row.shape[1]
    return pl.pallas_call(
        _stage1_kernel,
        out_shape=jax.ShapeDtypeStruct((rpad, nco), jnp.bfloat16),
        grid=(rpad // tile_rows,),
        in_specs=[
            pl.BlockSpec((tile_rows, kdim), lambda i: (i, 0)),
            pl.BlockSpec((kdim, 4 * nco), lambda i: (0, 0)),
            pl.BlockSpec((1, nco), lambda i: (0, 0)),
        ],
        out_specs=pl.BlockSpec((tile_rows, nco), lambda i: (i, 0)),
        compiler_params=pltpu.CompilerParams(
            dimension_semantics=("parallel",)),
    )(p1, w_big, b_row)


def fused_stage2(p2, w2_big, b2_row, fw1, fb1, fw2, fb2, fw3, fb3, *, tile_b):
    _, bpad, kdim = p2.shape
    return pl.pallas_call(
        _stage2_kernel,
        out_shape=jax.ShapeDtypeStruct((bpad, 3), jnp.float32),
        grid=(bpad // tile_b, 4),
        in_specs=[
            pl.BlockSpec((1, tile_b, kdim), lambda i, q: (q, i, 0)),
            pl.BlockSpec(w2_big.shape, lambda i, q: (0, 0)),
            pl.BlockSpec(b2_row.shape, lambda i, q: (0, 0)),
            pl.BlockSpec(fw1.shape, lambda i, q: (0, 0)),
            pl.BlockSpec(fb1.shape, lambda i, q: (0, 0)),
            pl.BlockSpec(fw2.shape, lambda i, q: (0, 0)),
            pl.BlockSpec(fb2.shape, lambda i, q: (0, 0)),
            pl.BlockSpec(fw3.shape, lambda i, q: (0, 0)),
            pl.BlockSpec(fb3.shape, lambda i, q: (0, 0)),
        ],
        out_specs=pl.BlockSpec((tile_b, 3), lambda i, q: (i, 0)),
        scratch_shapes=[pltpu.VMEM((tile_b, 400), jnp.float32)],
        compiler_params=pltpu.CompilerParams(
            dimension_semantics=("parallel", "arbitrary")),
    )(p2, w2_big, b2_row, fw1, fb1, fw2, fb2, fw3, fb3)


# ----------------------------------------------------------------------------
# JAX glue (layout only: im2col / pool-window split / weight re-layout)
# ----------------------------------------------------------------------------
def _im2col(x, k):
    # x: (B, H, W, C) -> (B, H-k+1, W-k+1, k*k*C); patch element order (kh, kw, c).
    B, H, W, C = x.shape
    oh, ow = H - k + 1, W - k + 1
    cols = [x[:, kh:kh + oh, kw:kw + ow, :] for kh in range(k) for kw in range(k)]
    return jnp.concatenate(cols, axis=-1)


def forward(x_nchw, params):
    (w1, b1, w2, b2, fw1, fb1, fw2, fb2, fw3, fb3) = params
    B = x_nchw.shape[0]
    x = jnp.transpose(x_nchw, (0, 2, 3, 1)).astype(jnp.bfloat16)     # NHWC

    # ---- stage 1: conv1 (3->6, 5x5) + relu + 2x2 maxpool ---------------------
    pf = _im2col(x, 5)                                               # (B,28,28,75)
    pf = pf.reshape(B, 14, 2, 14, 2, 75)
    pf = jnp.transpose(pf, (0, 1, 3, 2, 4, 5))                       # (B,14,14,2,2,75)
    p1 = pf.reshape(B * 196, 300)                                    # rows=(b,ph,pw)

    R = B * 196
    TR = min(_round_up(R, 8), 1024)              # adaptive row tile (1 step if small)
    Rpad = _round_up(R, TR)
    p1 = jnp.pad(p1, ((0, Rpad - R), (0, 0)))

    w1m = jnp.transpose(w1, (2, 3, 1, 0)).reshape(75, 6)             # (kh,kw,ci)->co
    w1big = jnp.einsum("qr,jc->qjrc", jnp.eye(4, dtype=jnp.float32), w1m)
    w1big = w1big.reshape(300, 24).astype(jnp.bfloat16)

    z1 = conv_pool_stage1(p1, w1big, b1.reshape(1, 6).astype(jnp.float32),
                          tile_rows=TR)
    z1 = z1[:R].reshape(B, 14, 14, 6)                                # bf16

    # ---- stage 2: conv2 + relu + pool + fc1..fc3 + softmax (one fused call) --
    pc = _im2col(z1, 5)                                              # (B,10,10,150)
    pc = pc.reshape(B, 5, 2, 5, 2, 150)
    pc = jnp.transpose(pc, (2, 4, 0, 1, 3, 5))                       # (dr,dc,B,pr,pc,150)
    p2 = pc.reshape(4, B, 3750)                                      # cols = (p, 150)

    TB = min(_round_up(B, 8), 128)
    Bpad = _round_up(B, TB)
    p2 = jnp.pad(p2, ((0, 0), (0, Bpad - B), (0, 0)))

    w2m = jnp.transpose(w2, (2, 3, 1, 0)).reshape(150, 16)
    w2big = jnp.einsum("pq,jc->pjqc", jnp.eye(25, dtype=jnp.float32), w2m)
    w2big = w2big.reshape(3750, 400).astype(jnp.bfloat16)
    b2big = jnp.tile(b2, 25).reshape(1, 400).astype(jnp.float32)

    # Fold PyTorch's NCHW flatten (index = co*25 + p) into fc1's weight so the
    # conv2 output lanes (p-major, co-minor) feed fc1 directly.
    w1fc = jnp.transpose(fw1.reshape(120, 16, 25), (2, 1, 0)).reshape(400, 120)

    probs = fused_stage2(
        p2, w2big, b2big,
        w1fc.astype(jnp.bfloat16), fb1.reshape(1, 120).astype(jnp.float32),
        fw2.T.astype(jnp.bfloat16), fb2.reshape(1, 84).astype(jnp.float32),
        fw3.T.astype(jnp.bfloat16), fb3.reshape(1, 3).astype(jnp.float32),
        tile_b=TB)
    return probs[:B]


# ----------------------------------------------------------------------------
# Deterministic parameter init (PyTorch layouts: conv OIHW, linear (out, in))
# ----------------------------------------------------------------------------
def init_params(key):
    def u(k, shape, fan_in):
        bound = 1.0 / (float(fan_in) ** 0.5)
        return jax.random.uniform(k, shape, jnp.float32, -bound, bound)

    ks = jax.random.split(key, 10)
    w1 = u(ks[0], (6, 3, 5, 5), 3 * 25);   b1 = u(ks[1], (6,), 3 * 25)
    w2 = u(ks[2], (16, 6, 5, 5), 6 * 25);  b2 = u(ks[3], (16,), 6 * 25)
    fw1 = u(ks[4], (120, 400), 400);       fb1 = u(ks[5], (120,), 400)
    fw2 = u(ks[6], (84, 120), 120);        fb2 = u(ks[7], (84,), 120)
    fw3 = u(ks[8], (3, 84), 84);           fb3 = u(ks[9], (3,), 84)
    return (w1, b1, w2, b2, fw1, fb1, fw2, fb2, fw3, fb3)


# ----------------------------------------------------------------------------
# Pure-JAX reference (mirrors the PyTorch forward; default precision)
# ----------------------------------------------------------------------------
def reference_forward(x_nchw, params):
    (w1, b1, w2, b2, fw1, fb1, fw2, fb2, fw3, fb3) = params
    dn = ("NCHW", "OIHW", "NCHW")

    def conv(x, w, b):
        y = lax.conv_general_dilated(x, w, (1, 1), "VALID", dimension_numbers=dn)
        return jax.nn.relu(y + b.reshape(1, -1, 1, 1))

    def pool(x):
        return lax.reduce_window(
            x, -jnp.inf, lax.max, (1, 1, 2, 2), (1, 1, 2, 2), "VALID")

    x = pool(conv(x_nchw, w1, b1))
    x = pool(conv(x, w2, b2))
    x = x.reshape(x.shape[0], -1)
    x = jax.nn.relu(x @ fw1.T + fb1)
    x = jax.nn.relu(x @ fw2.T + fb2)
    x = x @ fw3.T + fb3
    return jax.nn.softmax(x, axis=-1)


if __name__ == "__main__":
    key = jax.random.PRNGKey(0)
    k_params, k_x = jax.random.split(key)
    params = init_params(k_params)
    # NCHW input; 32x32 implied by fc1 = 16*5*5 after two conv5 + pool2 stages.
    x = jax.random.uniform(k_x, (2, 3, 32, 32), jnp.float32)

    out = jax.block_until_ready(jax.jit(forward)(x, params))
    ref = jax.block_until_ready(jax.jit(reference_forward)(x, params))

    assert out.shape == (2, 3)
    assert bool(jnp.all(jnp.isfinite(out)))
    assert bool(jnp.allclose(jnp.sum(out, axis=-1), 1.0, atol=5e-3))
    # bf16 storage + default-precision MXU passes vs. f32 reference.
    assert bool(jnp.allclose(out, ref, atol=2e-2, rtol=5e-2)), (out, ref)
    print("KERNEL_OK")
</pallas_src>

<mosaic_0001>
module attributes {stable_mosaic.version = 11 : i64} {
  func.func @_stage1_kernel(%arg0: i32, %arg1: memref<392x300xbf16, #tpu.memory_space<vmem>>, %arg2: memref<300x24xbf16, #tpu.memory_space<vmem>>, %arg3: memref<1x6xf32, #tpu.memory_space<vmem>>, %arg4: memref<392x6xbf16, #tpu.memory_space<vmem>>) attributes {dimension_semantics = [#tpu.dimension_semantics<parallel>], iteration_bounds = array<i64: 1>, scalar_prefetch = 0 : i64, scratch_operands = 0 : i64, tpu.core_type = #tpu.core_type<tc>, window_params = [{transform_indices = @transform_0, window_bounds = array<i64: 392, 300>}, {pipeline_mode = #tpu.pipeline_mode<synchronous>, transform_indices = @transform_1, window_bounds = array<i64: 300, 24>}, {pipeline_mode = #tpu.pipeline_mode<synchronous>, transform_indices = @transform_2, window_bounds = array<i64: 1, 6>}, {transform_indices = @transform_3, window_bounds = array<i64: 392, 6>}]} {
    %c0 = arith.constant 0 : index
    %c0_0 = arith.constant 0 : index
    %0 = vector.load %arg1[%c0, %c0_0] : memref<392x300xbf16, #tpu.memory_space<vmem>>, vector<392x300xbf16>
    %c0_1 = arith.constant 0 : index
    %c0_2 = arith.constant 0 : index
    %1 = vector.load %arg2[%c0_1, %c0_2] : memref<300x24xbf16, #tpu.memory_space<vmem>>, vector<300x24xbf16>
    %cst = arith.constant dense<0.000000e+00> : vector<392x24xf32>
    %2 = tpu.matmul %0, %1, %cst {dimension_numbers = #tpu.dot_dimension_numbers<[1], [0], [0], [1], [0, 0, 1, 1], [], []>} : vector<392x300xbf16>, vector<300x24xbf16>, vector<392x24xf32> -> vector<392x24xf32>
    %3 = vector.extract_strided_slice %2 {offsets = [0, 0], sizes = [392, 6], strides = [1, 1]} : vector<392x24xf32> to vector<392x6xf32>
    %4 = vector.extract_strided_slice %2 {offsets = [0, 6], sizes = [392, 6], strides = [1, 1]} : vector<392x24xf32> to vector<392x6xf32>
    %5 = arith.maximumf %3, %4 : vector<392x6xf32>
    %6 = vector.extract_strided_slice %2 {offsets = [0, 12], sizes = [392, 6], strides = [1, 1]} : vector<392x24xf32> to vector<392x6xf32>
    %7 = vector.extract_strided_slice %2 {offsets = [0, 18], sizes = [392, 6], strides = [1, 1]} : vector<392x24xf32> to vector<392x6xf32>
    %8 = arith.maximumf %6, %7 : vector<392x6xf32>
    %9 = arith.maximumf %5, %8 : vector<392x6xf32>
    %c0_3 = arith.constant 0 : index
    %c0_4 = arith.constant 0 : index
    %10 = vector.load %arg3[%c0_3, %c0_4] : memref<1x6xf32, #tpu.memory_space<vmem>>, vector<1x6xf32>
    %11 = vector.broadcast %10 : vector<1x6xf32> to vector<392x6xf32>
    %12 = arith.addf %9, %11 : vector<392x6xf32>
    %cst_5 = arith.constant 0.000000e+00 : f32
    %13 = vector.broadcast %cst_5 : f32 to vector<392x6xf32>
    %14 = arith.maximumf %12, %13 : vector<392x6xf32>
    %15 = arith.truncf %14 : vector<392x6xf32> to vector<392x6xbf16>
    %c0_6 = arith.constant 0 : index
    %c0_7 = arith.constant 0 : index
    %16 = vector.load %arg4[%c0_6, %c0_7] : memref<392x6xbf16, #tpu.memory_space<vmem>>, vector<392x6xbf16>
    tpu.vector_store %arg4[%c0_6, %c0_7], %15 {strides = array<i32>} : memref<392x6xbf16, #tpu.memory_space<vmem>>, vector<392x6xbf16>,
    return
  }
  func.func @transform_0(%arg0: i32) -> (i32, i32) {
    %c0_i32 = arith.constant 0 : i32
    %c0_i32_0 = arith.constant 0 : i32
    return %arg0, %c0_i32 : i32, i32
  }
  func.func @transform_1(%arg0: i32) -> (i32, i32) {
    %c0_i32 = arith.constant 0 : i32
    %c0_i32_0 = arith.constant 0 : i32
    %c0_i32_1 = arith.constant 0 : i32
    return %c0_i32, %c0_i32_0 : i32, i32
  }
  func.func @transform_2(%arg0: i32) -> (i32, i32) {
    %c0_i32 = arith.constant 0 : i32
    %c0_i32_0 = arith.constant 0 : i32
    %c0_i32_1 = arith.constant 0 : i32
    return %c0_i32, %c0_i32_0 : i32, i32
  }
  func.func @transform_3(%arg0: i32) -> (i32, i32) {
    %c0_i32 = arith.constant 0 : i32
    %c0_i32_0 = arith.constant 0 : i32
    return %arg0, %c0_i32 : i32, i32
  }
}

module attributes {stable_mosaic.version = 11 : i64} {
  func.func @_stage2_kernel(%arg0: i32, %arg1: i32, %arg2: memref<1x8x3750xbf16, #tpu.memory_space<vmem>>, %arg3: memref<3750x400xbf16, #tpu.memory_space<vmem>>, %arg4: memref<1x400xf32, #tpu.memory_space<vmem>>, %arg5: memref<400x120xbf16, #tpu.memory_space<vmem>>, %arg6: memref<1x120xf32, #tpu.memory_space<vmem>>, %arg7: memref<120x84xbf16, #tpu.memory_space<vmem>>, %arg8: memref<1x84xf32, #tpu.memory_space<vmem>>, %arg9: memref<84x3xbf16, #tpu.memory_space<vmem>>, %arg10: memref<1x3xf32, #tpu.memory_space<vmem>>, %arg11: memref<8x3xf32, #tpu.memory_space<vmem>>, %arg12: memref<8x400xf32, #tpu.memory_space<vmem>>) attributes {dimension_semantics = [#tpu.dimension_semantics<parallel>, #tpu.dimension_semantics<arbitrary>], iteration_bounds = array<i64: 1, 4>, scalar_prefetch = 0 : i64, scratch_operands = 1 : i64, tpu.core_type = #tpu.core_type<tc>, window_params = [{transform_indices = @transform_0, window_bounds = array<i64: 1, 8, 3750>}, {pipeline_mode = #tpu.pipeline_mode<synchronous>, transform_indices = @transform_1, window_bounds = array<i64: 3750, 400>}, {pipeline_mode = #tpu.pipeline_mode<synchronous>, transform_indices = @transform_2, window_bounds = array<i64: 1, 400>}, {pipeline_mode = #tpu.pipeline_mode<synchronous>, transform_indices = @transform_3, window_bounds = array<i64: 400, 120>}, {pipeline_mode = #tpu.pipeline_mode<synchronous>, transform_indices = @transform_4, window_bounds = array<i64: 1, 120>}, {pipeline_mode = #tpu.pipeline_mode<synchronous>, transform_indices = @transform_5, window_bounds = array<i64: 120, 84>}, {pipeline_mode = #tpu.pipeline_mode<synchronous>, transform_indices = @transform_6, window_bounds = array<i64: 1, 84>}, {pipeline_mode = #tpu.pipeline_mode<synchronous>, transform_indices = @transform_7, window_bounds = array<i64: 84, 3>}, {pipeline_mode = #tpu.pipeline_mode<synchronous>, transform_indices = @transform_8, window_bounds = array<i64: 1, 3>}, {transform_indices = @transform_9, window_bounds = array<i64: 8, 3>}]} {
    %c0 = arith.constant 0 : index
    %c0_0 = arith.constant 0 : index
    %c0_1 = arith.constant 0 : index
    %0 = vector.load %arg2[%c0, %c0_0, %c0_1] : memref<1x8x3750xbf16, #tpu.memory_space<vmem>>, vector<1x8x3750xbf16>
    %1 = vector.shape_cast %0 : vector<1x8x3750xbf16> to vector<8x3750xbf16>
    %c0_2 = arith.constant 0 : index
    %c0_3 = arith.constant 0 : index
    %2 = vector.load %arg3[%c0_2, %c0_3] : memref<3750x400xbf16, #tpu.memory_space<vmem>>, vector<3750x400xbf16>
    %cst = arith.constant dense<0.000000e+00> : vector<8x400xf32>
    %3 = tpu.matmul %1, %2, %cst {dimension_numbers = #tpu.dot_dimension_numbers<[1], [0], [0], [1], [0, 0, 1, 1], [], []>} : vector<8x3750xbf16>, vector<3750x400xbf16>, vector<8x400xf32> -> vector<8x400xf32>
    %c0_i32 = arith.constant 0 : i32
    %4 = arith.cmpi eq, %arg1, %c0_i32 : i32
    %5 = arith.extui %4 : i1 to i32
    %c0_i32_4 = arith.constant 0 : i32
    %6 = arith.cmpi ne, %5, %c0_i32_4 : i32
    scf.if %6 {
      %c0_8 = arith.constant 0 : index
      %c0_9 = arith.constant 0 : index
      %13 = vector.load %arg12[%c0_8, %c0_9] : memref<8x400xf32, #tpu.memory_space<vmem>>, vector<8x400xf32>
      tpu.vector_store %arg12[%c0_8, %c0_9], %3 {strides = array<i32>} : memref<8x400xf32, #tpu.memory_space<vmem>>, vector<8x400xf32>,
    } else {
    }
    %c0_i32_5 = arith.constant 0 : i32
    %7 = arith.cmpi sgt, %arg1, %c0_i32_5 : i32
    %8 = arith.extui %7 : i1 to i32
    %c0_i32_6 = arith.constant 0 : i32
    %9 = arith.cmpi ne, %8, %c0_i32_6 : i32
    scf.if %9 {
      %c0_8 = arith.constant 0 : index
      %c0_9 = arith.constant 0 : index
      %13 = vector.load %arg12[%c0_8, %c0_9] : memref<8x400xf32, #tpu.memory_space<vmem>>, vector<8x400xf32>
      %14 = arith.maximumf %13, %3 : vector<8x400xf32>
      %c0_10 = arith.constant 0 : index
      %c0_11 = arith.constant 0 : index
      %15 = vector.load %arg12[%c0_10, %c0_11] : memref<8x400xf32, #tpu.memory_space<vmem>>, vector<8x400xf32>
      tpu.vector_store %arg12[%c0_10, %c0_11], %14 {strides = array<i32>} : memref<8x400xf32, #tpu.memory_space<vmem>>, vector<8x400xf32>,
    } else {
    }
    %c3_i32 = arith.constant 3 : i32
    %10 = arith.cmpi eq, %arg1, %c3_i32 : i32
    %11 = arith.extui %10 : i1 to i32
    %c0_i32_7 = arith.constant 0 : i32
    %12 = arith.cmpi ne, %11, %c0_i32_7 : i32
    scf.if %12 {
      %c0_8 = arith.constant 0 : index
      %c0_9 = arith.constant 0 : index
      %13 = vector.load %arg12[%c0_8, %c0_9] : memref<8x400xf32, #tpu.memory_space<vmem>>, vector<8x400xf32>
      %c0_10 = arith.constant 0 : index
      %c0_11 = arith.constant 0 : index
      %14 = vector.load %arg4[%c0_10, %c0_11] : memref<1x400xf32, #tpu.memory_space<vmem>>, vector<1x400xf32>
      %15 = vector.broadcast %14 : vector<1x400xf32> to vector<8x400xf32>
      %16 = arith.addf %13, %15 : vector<8x400xf32>
      %cst_12 = arith.constant 0.000000e+00 : f32
      %17 = vector.broadcast %cst_12 : f32 to vector<8x400xf32>
      %18 = arith.maximumf %16, %17 : vector<8x400xf32>
      %19 = arith.truncf %18 : vector<8x400xf32> to vector<8x400xbf16>
      %c0_13 = arith.constant 0 : index
      %c0_14 = arith.constant 0 : index
      %20 = vector.load %arg5[%c0_13, %c0_14] : memref<400x120xbf16, #tpu.memory_space<vmem>>, vector<400x120xbf16>
      %cst_15 = arith.constant dense<0.000000e+00> : vector<8x120xf32>
      %21 = tpu.matmul %19, %20, %cst_15 {dimension_numbers = #tpu.dot_dimension_numbers<[1], [0], [0], [1], [0, 0, 1, 1], [], []>} : vector<8x400xbf16>, vector<400x120xbf16>, vector<8x120xf32> -> vector<8x120xf32>
      %c0_16 = arith.constant 0 : index
      %c0_17 = arith.constant 0 : index
      %22 = vector.load %arg6[%c0_16, %c0_17] : memref<1x120xf32, #tpu.memory_space<vmem>>, vector<1x120xf32>
      %23 = vector.broadcast %22 : vector<1x120xf32> to vector<8x120xf32>
      %24 = arith.addf %21, %23 : vector<8x120xf32>
      %cst_18 = arith.constant 0.000000e+00 : f32
      %25 = vector.broadcast %cst_18 : f32 to vector<8x120xf32>
      %26 = arith.maximumf %24, %25 : vector<8x120xf32>
      %27 = arith.truncf %26 : vector<8x120xf32> to vector<8x120xbf16>
      %c0_19 = arith.constant 0 : index
      %c0_20 = arith.constant 0 : index
      %28 = vector.load %arg7[%c0_19, %c0_20] : memref<120x84xbf16, #tpu.memory_space<vmem>>, vector<120x84xbf16>
      %cst_21 = arith.constant dense<0.000000e+00> : vector<8x84xf32>
      %29 = tpu.matmul %27, %28, %cst_21 {dimension_numbers = #tpu.dot_dimension_numbers<[1], [0], [0], [1], [0, 0, 1, 1], [], []>} : vector<8x120xbf16>, vector<120x84xbf16>, vector<8x84xf32> -> vector<8x84xf32>
      %c0_22 = arith.constant 0 : index
      %c0_23 = arith.constant 0 : index
      %30 = vector.load %arg8[%c0_22, %c0_23] : memref<1x84xf32, #tpu.memory_space<vmem>>, vector<1x84xf32>
      %31 = vector.broadcast %30 : vector<1x84xf32> to vector<8x84xf32>
      %32 = arith.addf %29, %31 : vector<8x84xf32>
      %cst_24 = arith.constant 0.000000e+00 : f32
      %33 = vector.broadcast %cst_24 : f32 to vector<8x84xf32>
      %34 = arith.maximumf %32, %33 : vector<8x84xf32>
      %35 = arith.truncf %34 : vector<8x84xf32> to vector<8x84xbf16>
      %c0_25 = arith.constant 0 : index
      %c0_26 = arith.constant 0 : index
      %36 = vector.load %arg9[%c0_25, %c0_26] : memref<84x3xbf16, #tpu.memory_space<vmem>>, vector<84x3xbf16>
      %cst_27 = arith.constant dense<0.000000e+00> : vector<8x3xf32>
      %37 = tpu.matmul %35, %36, %cst_27 {dimension_numbers = #tpu.dot_dimension_numbers<[1], [0], [0], [1], [0, 0, 1, 1], [], []>} : vector<8x84xbf16>, vector<84x3xbf16>, vector<8x3xf32> -> vector<8x3xf32>
      %c0_28 = arith.constant 0 : index
      %c0_29 = arith.constant 0 : index
      %38 = vector.load %arg10[%c0_28, %c0_29] : memref<1x3xf32, #tpu.memory_space<vmem>>, vector<1x3xf32>
      %39 = vector.broadcast %38 : vector<1x3xf32> to vector<8x3xf32>
      %40 = arith.addf %37, %39 : vector<8x3xf32>
      %cst_30 = arith.constant dense<0xFF800000> : vector<8xf32>
      %41 = vector.multi_reduction <maximumf>, %40, %cst_30 [1] : vector<8x3xf32> to vector<8xf32>
      %42 = vector.shape_cast %41 : vector<8xf32> to vector<8x1xf32>
      %43 = vector.broadcast %42 : vector<8x1xf32> to vector<8x3xf32>
      %44 = arith.subf %40, %43 : vector<8x3xf32>
      %45 = math.exp %44 : vector<8x3xf32>
      %cst_31 = arith.constant dense<0.000000e+00> : vector<8xf32>
      %46 = vector.multi_reduction <add>, %45, %cst_31 [1] : vector<8x3xf32> to vector<8xf32>
      %47 = vector.shape_cast %46 : vector<8xf32> to vector<8x1xf32>
      %48 = tpu.reciprocal %47 {approx = true} : vector<8x1xf32> -> vector<8x1xf32>
      %49 = vector.broadcast %48 : vector<8x1xf32> to vector<8x3xf32>
      %50 = arith.mulf %45, %49 : vector<8x3xf32>
      %c0_32 = arith.constant 0 : index
      %c0_33 = arith.constant 0 : index
      %51 = vector.load %arg11[%c0_32, %c0_33] : memref<8x3xf32, #tpu.memory_space<vmem>>, vector<8x3xf32>
      tpu.vector_store %arg11[%c0_32, %c0_33], %50 {strides = array<i32>} : memref<8x3xf32, #tpu.memory_space<vmem>>, vector<8x3xf32>,
    } else {
    }
    return
  }
  func.func @transform_0(%arg0: i32, %arg1: i32) -> (i32, i32, i32) {
    %c0_i32 = arith.constant 0 : i32
    %c0_i32_0 = arith.constant 0 : i32
    return %arg1, %arg0, %c0_i32 : i32, i32, i32
  }
  func.func @transform_1(%arg0: i32, %arg1: i32) -> (i32, i32) {
    %c0_i32 = arith.constant 0 : i32
    %c0_i32_0 = arith.constant 0 : i32
    %c0_i32_1 = arith.constant 0 : i32
    return %c0_i32, %c0_i32_0 : i32, i32
  }
  func.func @transform_2(%arg0: i32, %arg1: i32) -> (i32, i32) {
    %c0_i32 = arith.constant 0 : i32
    %c0_i32_0 = arith.constant 0 : i32
    %c0_i32_1 = arith.constant 0 : i32
    return %c0_i32, %c0_i32_0 : i32, i32
  }
  func.func @transform_3(%arg0: i32, %arg1: i32) -> (i32, i32) {
    %c0_i32 = arith.constant 0 : i32
    %c0_i32_0 = arith.constant 0 : i32
    %c0_i32_1 = arith.constant 0 : i32
    return %c0_i32, %c0_i32_0 : i32, i32
  }
  func.func @transform_4(%arg0: i32, %arg1: i32) -> (i32, i32) {
    %c0_i32 = arith.constant 0 : i32
    %c0_i32_0 = arith.constant 0 : i32
    %c0_i32_1 = arith.constant 0 : i32
    return %c0_i32, %c0_i32_0 : i32, i32
  }
  func.func @transform_5(%arg0: i32, %arg1: i32) -> (i32, i32) {
    %c0_i32 = arith.constant 0 : i32
    %c0_i32_0 = arith.constant 0 : i32
    %c0_i32_1 = arith.constant 0 : i32
    return %c0_i32, %c0_i32_0 : i32, i32
  }
  func.func @transform_6(%arg0: i32, %arg1: i32) -> (i32, i32) {
    %c0_i32 = arith.constant 0 : i32
    %c0_i32_0 = arith.constant 0 : i32
    %c0_i32_1 = arith.constant 0 : i32
    return %c0_i32, %c0_i32_0 : i32, i32
  }
  func.func @transform_7(%arg0: i32, %arg1: i32) -> (i32, i32) {
    %c0_i32 = arith.constant 0 : i32
    %c0_i32_0 = arith.constant 0 : i32
    %c0_i32_1 = arith.constant 0 : i32
    return %c0_i32, %c0_i32_0 : i32, i32
  }
  func.func @transform_8(%arg0: i32, %arg1: i32) -> (i32, i32) {
    %c0_i32 = arith.constant 0 : i32
    %c0_i32_0 = arith.constant 0 : i32
    %c0_i32_1 = arith.constant 0 : i32
    return %c0_i32, %c0_i32_0 : i32, i32
  }
  func.func @transform_9(%arg0: i32, %arg1: i32) -> (i32, i32) {
    %c0_i32 = arith.constant 0 : i32
    %c0_i32_0 = arith.constant 0 : i32
    return %arg0, %c0_i32 : i32, i32
  }
}

</mosaic_0001>

<llo_original>
// kernel: forward.2
$region0: #{forward.2}
  #allocation0 [shape = 'u32[]', space=smem, size = 0x4, offset = 0x4, fixed_abs, tag = 'smem constant byte address 0x4 - core index']
  #allocation1 [shape = 'u32[144,128]{1,0:T(1,128)}', space=vmem, size = 0x12000, scoped, tag = 'internal scratch']
  %s0 = inlined_call_operand.vmem [shape: bf16[392,300], index: 0, kind: input, shape index: {}]
  %s1 = inlined_call_operand.vmem [shape: bf16[300,24], index: 1, kind: input, shape index: {}]
  %s2 = inlined_call_operand.vmem [shape: f32[1,6], index: 2, kind: input, shape index: {}]
  %s3 = inlined_call_operand.vmem [shape: bf16[392,6], index: 3, kind: output, shape index: {}]
  %s4 = sld [smem:[#allocation0]]
  $region22: #{forward.2} parent=0
    _
  %s6 = ssub.s32 1, %s4
  %s7 = scalar_select 0, %s6, %s4
  // Predicated region
  $region2: #{forward.2} parent=0 // pred_check
    _
  $region3: #{forward.2} parent=0 // pred_check_branch
    %9 = sbr.rel (0) target = $region5
  $region4: #{forward.2} parent=0 // pred_region
    _
  $region5: #{forward.2} parent=0 // pred_fallthru
    _
  // Predicated region
  $region6: #{forward.2} parent=0 // pred_check
    _
  $region7: #{forward.2} parent=0 // pred_check_branch
    %11 = sbr.rel (0) target = $region9
  $region8: #{forward.2} parent=0 // pred_region
    _
  $region9: #{forward.2} parent=0 // pred_fallthru
    _
  // Predicated region
  $region10: #{forward.2} parent=0 // pred_check
    _
  $region11: #{forward.2} parent=0 // pred_check_branch
    %13 = sbr.rel (0) target = $region13
  $region12: #{forward.2} parent=0 // pred_region
    _
  $region13: #{forward.2} parent=0 // pred_fallthru
    _
  %v15 = vld [vmem:[%s0] sm:$0xff]
  %v16 = vld [vmem:[%s0 + $0x8] sm:$0xf]
  %v17 = vld [vmem:[%s0 + $0xc] sm:$0xff]
  %v18 = vld [vmem:[%s0 + $0x14] sm:$0xf]
  %v19 = vld [vmem:[%s0 + $0x18] sm:$0xff]
  %v20 = vld [vmem:[%s0 + $0x20] sm:$0xf]
  %v21 = vld [vmem:[%s0 + $0x24] sm:$0xff]
  %v22 = vld [vmem:[%s0 + $0x2c] sm:$0xf]
  %v23 = vld [vmem:[%s0 + $0x30] sm:$0xff]
  %v24 = vld [vmem:[%s0 + $0x38] sm:$0xf]
  %v25 = vld [vmem:[%s0 + $0x3c] sm:$0xff]
  %v26 = vld [vmem:[%s0 + $0x44] sm:$0xf]
  %v27 = vld [vmem:[%s0 + $0x48] sm:$0xff]
  %v28 = vld [vmem:[%s0 + $0x50] sm:$0xf]
  %v29 = vld [vmem:[%s0 + $0x54] sm:$0xff]
  %v30 = vld [vmem:[%s0 + $0x5c] sm:$0xf]
  %v31 = vld [vmem:[%s0 + $0x60] sm:$0xff]
  %v32 = vld [vmem:[%s0 + $0x68] sm:$0xf]
  %v33 = vld [vmem:[%s0 + $0x6c] sm:$0xff]
  %v34 = vld [vmem:[%s0 + $0x74] sm:$0xf]
  %v35 = vld [vmem:[%s0 + $0x78] sm:$0xff]
  %v36 = vld [vmem:[%s0 + $0x80] sm:$0xf]
  %v37 = vld [vmem:[%s0 + $0x84] sm:$0xff]
  %v38 = vld [vmem:[%s0 + $0x8c] sm:$0xf]
  %v39 = vld [vmem:[%s0 + $0x90] sm:$0xff]
  %v40 = vld [vmem:[%s0 + $0x98] sm:$0xf]
  %v41 = vld [vmem:[%s0 + $0x9c] sm:$0xff]
  %v42 = vld [vmem:[%s0 + $0xa4] sm:$0xf]
  %v43 = vld [vmem:[%s0 + $0xa8] sm:$0xff]
  %v44 = vld [vmem:[%s0 + $0xb0] sm:$0xf]
  %v45 = vld [vmem:[%s0 + $0xb4] sm:$0xff]
  %v46 = vld [vmem:[%s0 + $0xbc] sm:$0xf]
  %v47 = vld [vmem:[%s0 + $0xc0] sm:$0xff]
  %v48 = vld [vmem:[%s0 + $0xc8] sm:$0xf]
  %v49 = vld [vmem:[%s0 + $0xcc] sm:$0xff]
  %v50 = vld [vmem:[%s0 + $0xd4] sm:$0xf]
  %v51 = vld [vmem:[%s0 + $0xd8] sm:$0xff]
  %v52 = vld [vmem:[%s0 + $0xe0] sm:$0xf]
  %v53 = vld [vmem:[%s0 + $0xe4] sm:$0xff]
  %v54 = vld [vmem:[%s0 + $0xec] sm:$0xf]
  %v55 = vld [vmem:[%s0 + $0xf0] sm:$0xff]
  %v56 = vld [vmem:[%s0 + $0xf8] sm:$0xf]
  %v57 = vld [vmem:[%s0 + $0xfc] sm:$0xff]
  %v58 = vld [vmem:[%s0 + $0x104] sm:$0xf]
  %v59 = vld [vmem:[%s0 + $0x108] sm:$0xff]
  %v60 = vld [vmem:[%s0 + $0x110] sm:$0xf]
  %v61 = vld [vmem:[%s0 + $0x114] sm:$0xff]
  %v62 = vld [vmem:[%s0 + $0x11c] sm:$0xf]
  %v63 = vld [vmem:[%s0 + $0x120] sm:$0xff]
  %v64 = vld [vmem:[%s0 + $0x128] sm:$0xf]
  %v65 = vld [vmem:[%s0 + $0x12c] sm:$0xff]
  %v66 = vld [vmem:[%s0 + $0x134] sm:$0xf]
  %v67 = vld [vmem:[%s0 + $0x138] sm:$0xff]
  %v68 = vld [vmem:[%s0 + $0x140] sm:$0xf]
  %v69 = vld [vmem:[%s0 + $0x144] sm:$0xff]
  %v70 = vld [vmem:[%s0 + $0x14c] sm:$0xf]
  %v71 = vld [vmem:[%s0 + $0x150] sm:$0xff]
  %v72 = vld [vmem:[%s0 + $0x158] sm:$0xf]
  %v73 = vld [vmem:[%s0 + $0x15c] sm:$0xff]
  %v74 = vld [vmem:[%s0 + $0x164] sm:$0xf]
  %v75 = vld [vmem:[%s0 + $0x168] sm:$0xff]
  %v76 = vld [vmem:[%s0 + $0x170] sm:$0xf]
  %v77 = vld [vmem:[%s0 + $0x174] sm:$0xff]
  %v78 = vld [vmem:[%s0 + $0x17c] sm:$0xf]
  %v79 = vld [vmem:[%s0 + $0x180] sm:$0xff]
  %v80 = vld [vmem:[%s0 + $0x188] sm:$0xf]
  %v81 = vld [vmem:[%s0 + $0x18c] sm:$0xff]
  %v82 = vld [vmem:[%s0 + $0x194] sm:$0xf]
  %v83 = vld [vmem:[%s0 + $0x198] sm:$0xff]
  %v84 = vld [vmem:[%s0 + $0x1a0] sm:$0xf]
  %v85 = vld [vmem:[%s0 + $0x1a4] sm:$0xff]
  %v86 = vld [vmem:[%s0 + $0x1ac] sm:$0xf]
  %v87 = vld [vmem:[%s0 + $0x1b0] sm:$0xff]
  %v88 = vld [vmem:[%s0 + $0x1b8] sm:$0xf]
  %v89 = vld [vmem:[%s0 + $0x1bc] sm:$0xff]
  %v90 = vld [vmem:[%s0 + $0x1c4] sm:$0xf]
  %v91 = vld [vmem:[%s0 + $0x1c8] sm:$0xff]
  %v92 = vld [vmem:[%s0 + $0x1d0] sm:$0xf]
  %v93 = vld [vmem:[%s0 + $0x1d4] sm:$0xff]
  %v94 = vld [vmem:[%s0 + $0x1dc] sm:$0xf]
  %v95 = vld [vmem:[%s0 + $0x1e0] sm:$0xff]
  %v96 = vld [vmem:[%s0 + $0x1e8] sm:$0xf]
  %v97 = vld [vmem:[%s0 + $0x1ec] sm:$0xff]
  %v98 = vld [vmem:[%s0 + $0x1f4] sm:$0xf]
  %v99 = vld [vmem:[%s0 + $0x1f8] sm:$0xff]
  %v100 = vld [vmem:[%s0 + $0x200] sm:$0xf]
  %v101 = vld [vmem:[%s0 + $0x204] sm:$0xff]
  %v102 = vld [vmem:[%s0 + $0x20c] sm:$0xf]
  %v103 = vld [vmem:[%s0 + $0x210] sm:$0xff]
  %v104 = vld [vmem:[%s0 + $0x218] sm:$0xf]
  %v105 = vld [vmem:[%s0 + $0x21c] sm:$0xff]
  %v106 = vld [vmem:[%s0 + $0x224] sm:$0xf]
  %v107 = vld [vmem:[%s0 + $0x228] sm:$0xff]
  %v108 = vld [vmem:[%s0 + $0x230] sm:$0xf]
  %v109 = vld [vmem:[%s0 + $0x234] sm:$0xff]
  %v110 = vld [vmem:[%s0 + $0x23c] sm:$0xf]
  %v111 = vld [vmem:[%s0 + $0x240] sm:$0xff]
  %v112 = vld [vmem:[%s0 + $0x248] sm:$0xf]
  %v113 = vld [vmem:[%s1] sm:$0xf]
  %v114 = vld [vmem:[%s1 + $0x4] sm:$0xf]
  %v115 = vld [vmem:[%s1 + $0x8] sm:$0xf]
  %v116 = vld [vmem:[%s1 + $0xc] sm:$0xf]
  %v117 = vld [vmem:[%s1 + $0x10] sm:$0xf]
  %v118 = vld [vmem:[%s1 + $0x14] sm:$0xf]
  %v119 = vld [vmem:[%s1 + $0x18] sm:$0xf]
  %v120 = vld [vmem:[%s1 + $0x1c] sm:$0xf]
  %v121 = vld [vmem:[%s1 + $0x20] sm:$0xf]
  %v122 = vld [vmem:[%s1 + $0x24] sm:$0xf]
  %v123 = vld [vmem:[%s1 + $0x28] sm:$0xf]
  %v124 = vld [vmem:[%s1 + $0x2c] sm:$0xf]
  %v125 = vld [vmem:[%s1 + $0x30] sm:$0xf]
  %v126 = vld [vmem:[%s1 + $0x34] sm:$0xf]
  %v127 = vld [vmem:[%s1 + $0x38] sm:$0xf]
  %v128 = vld [vmem:[%s1 + $0x3c] sm:$0xf]
  %v129 = vld [vmem:[%s1 + $0x40] sm:$0xf]
  %v130 = vld [vmem:[%s1 + $0x44] sm:$0xf]
  %v131 = vld [vmem:[%s1 + $0x48] sm:$0xf]
  %v132 = vld [vmem:[%s1 + $0x4c] sm:$0xf]
  %v133 = vld [vmem:[%s1 + $0x50] sm:$0xf]
  %v134 = vld [vmem:[%s1 + $0x54] sm:$0xf]
  %v135 = vld [vmem:[%s1 + $0x58] sm:$0xf]
  %v136 = vld [vmem:[%s1 + $0x5c] sm:$0xf]
  %v137 = vld [vmem:[%s1 + $0x60] sm:$0xf]
  %v138 = vld [vmem:[%s1 + $0x64] sm:$0xf]
  %v139 = vld [vmem:[%s1 + $0x68] sm:$0xf]
  %v140 = vld [vmem:[%s1 + $0x6c] sm:$0xf]
  %v141 = vld [vmem:[%s1 + $0x70] sm:$0xf]
  %v142 = vld [vmem:[%s1 + $0x74] sm:$0xf]
  %v143 = vld [vmem:[%s1 + $0x78] sm:$0xf]
  %v144 = vld [vmem:[%s1 + $0x7c] sm:$0xf]
  %v145 = vld [vmem:[%s1 + $0x80] sm:$0xf]
  %v146 = vld [vmem:[%s1 + $0x84] sm:$0xf]
  %v147 = vld [vmem:[%s1 + $0x88] sm:$0xf]
  %v148 = vld [vmem:[%s1 + $0x8c] sm:$0xf]
  %v149 = vld [vmem:[%s1 + $0x90] sm:$0xf]
  %v150 = vld [vmem:[%s1 + $0x94] sm:$0x3]
  %v249 = vunpack.c.l.b16 %v15
  %v250 = vunpack.c.h.b16 %v15
  %v251 = vunpack.c.l.b16 %v16
  %v252 = vunpack.c.l.b16 %v17
  %v253 = vunpack.c.h.b16 %v17
  %v254 = vunpack.c.l.b16 %v18
  %v255 = vunpack.c.l.b16 %v19
  %v256 = vunpack.c.h.b16 %v19
  %v257 = vunpack.c.l.b16 %v20
  %v258 = vunpack.c.l.b16 %v21
  %v259 = vunpack.c.h.b16 %v21
  %v260 = vunpack.c.l.b16 %v22
  %v261 = vunpack.c.l.b16 %v23
  %v262 = vunpack.c.h.b16 %v23
  %v263 = vunpack.c.l.b16 %v24
  %v264 = vunpack.c.l.b16 %v25
  %v265 = vunpack.c.h.b16 %v25
  %v266 = vunpack.c.l.b16 %v26
  %v267 = vunpack.c.l.b16 %v27
  %v268 = vunpack.c.h.b16 %v27
  %v269 = vunpack.c.l.b16 %v28
  %v270 = vunpack.c.l.b16 %v29
  %v271 = vunpack.c.h.b16 %v29
  %v272 = vunpack.c.l.b16 %v30
  %v273 = vunpack.c.l.b16 %v31
  %v274 = vunpack.c.h.b16 %v31
  %v275 = vunpack.c.l.b16 %v32
  %v276 = vunpack.c.l.b16 %v33
  %v277 = vunpack.c.h.b16 %v33
  %v278 = vunpack.c.l.b16 %v34
  %v279 = vunpack.c.l.b16 %v35
  %v280 = vunpack.c.h.b16 %v35
  %v281 = vunpack.c.l.b16 %v36
  %v282 = vunpack.c.l.b16 %v37
  %v283 = vunpack.c.h.b16 %v37
  %v284 = vunpack.c.l.b16 %v38
  %v285 = vunpack.c.l.b16 %v39
  %v286 = vunpack.c.h.b16 %v39
  %v287 = vunpack.c.l.b16 %v40
  %v288 = vunpack.c.l.b16 %v41
  %v289 = vunpack.c.h.b16 %v41
  %v290 = vunpack.c.l.b16 %v42
  %v291 = vunpack.c.l.b16 %v43
  %v292 = vunpack.c.h.b16 %v43
  %v293 = vunpack.c.l.b16 %v44
  %v294 = vunpack.c.l.b16 %v45
  %v295 = vunpack.c.h.b16 %v45
  %v296 = vunpack.c.l.b16 %v46
  %v297 = vunpack.c.l.b16 %v47
  %v298 = vunpack.c.h.b16 %v47
  %v299 = vunpack.c.l.b16 %v48
  %v300 = vunpack.c.l.b16 %v49
  %v301 = vunpack.c.h.b16 %v49
  %v302 = vunpack.c.l.b16 %v50
  %v303 = vunpack.c.l.b16 %v51
  %v304 = vunpack.c.h.b16 %v51
  %v305 = vunpack.c.l.b16 %v52
  %v306 = vunpack.c.l.b16 %v53
  %v307 = vunpack.c.h.b16 %v53
  %v308 = vunpack.c.l.b16 %v54
  %v309 = vunpack.c.l.b16 %v55
  %v310 = vunpack.c.h.b16 %v55
  %v311 = vunpack.c.l.b16 %v56
  %v312 = vunpack.c.l.b16 %v57
  %v313 = vunpack.c.h.b16 %v57
  %v314 = vunpack.c.l.b16 %v58
  %v315 = vunpack.c.l.b16 %v59
  %v316 = vunpack.c.h.b16 %v59
  %v317 = vunpack.c.l.b16 %v60
  %v318 = vunpack.c.l.b16 %v61
  %v319 = vunpack.c.h.b16 %v61
  %v320 = vunpack.c.l.b16 %v62
  %v321 = vunpack.c.l.b16 %v63
  %v322 = vunpack.c.h.b16 %v63
  %v323 = vunpack.c.l.b16 %v64
  %v324 = vunpack.c.l.b16 %v65
  %v325 = vunpack.c.h.b16 %v65
  %v326 = vunpack.c.l.b16 %v66
  %v327 = vunpack.c.l.b16 %v67
  %v328 = vunpack.c.h.b16 %v67
  %v329 = vunpack.c.l.b16 %v68
  %v330 = vunpack.c.l.b16 %v69
  %v331 = vunpack.c.h.b16 %v69
  %v332 = vunpack.c.l.b16 %v70
  %v333 = vunpack.c.l.b16 %v71
  %v334 = vunpack.c.h.b16 %v71
  %v335 = vunpack.c.l.b16 %v72
  %v336 = vunpack.c.l.b16 %v73
  %v337 = vunpack.c.h.b16 %v73
  %v338 = vunpack.c.l.b16 %v74
  %v339 = vunpack.c.l.b16 %v75
  %v340 = vunpack.c.h.b16 %v75
  %v341 = vunpack.c.l.b16 %v76
  %v342 = vunpack.c.l.b16 %v77
  %v343 = vunpack.c.h.b16 %v77
  %v344 = vunpack.c.l.b16 %v78
  %v345 = vunpack.c.l.b16 %v79
  %v346 = vunpack.c.h.b16 %v79
  %v347 = vunpack.c.l.b16 %v80
  %v348 = vunpack.c.l.b16 %v81
  %v349 = vunpack.c.h.b16 %v81
  %v350 = vunpack.c.l.b16 %v82
  %v351 = vunpack.c.l.b16 %v83
  %v352 = vunpack.c.h.b16 %v83
  %v353 = vunpack.c.l.b16 %v84
  %v354 = vunpack.c.l.b16 %v85
  %v355 = vunpack.c.h.b16 %v85
  %v356 = vunpack.c.l.b16 %v86
  %v357 = vunpack.c.l.b16 %v87
  %v358 = vunpack.c.h.b16 %v87
  %v359 = vunpack.c.l.b16 %v88
  %v360 = vunpack.c.l.b16 %v89
  %v361 = vunpack.c.h.b16 %v89
  %v362 = vunpack.c.l.b16 %v90
  %v363 = vunpack.c.l.b16 %v91
  %v364 = vunpack.c.h.b16 %v91
  %v365 = vunpack.c.l.b16 %v92
  %v366 = vunpack.c.l.b16 %v93
  %v367 = vunpack.c.h.b16 %v93
  %v368 = vunpack.c.l.b16 %v94
  %v369 = vunpack.c.l.b16 %v95
  %v370 = vunpack.c.h.b16 %v95
  %v371 = vunpack.c.l.b16 %v96
  %v372 = vunpack.c.l.b16 %v97
  %v373 = vunpack.c.h.b16 %v97
  %v374 = vunpack.c.l.b16 %v98
  %v375 = vunpack.c.l.b16 %v99
  %v376 = vunpack.c.h.b16 %v99
  %v377 = vunpack.c.l.b16 %v100
  %v378 = vunpack.c.l.b16 %v101
  %v379 = vunpack.c.h.b16 %v101
  %v380 = vunpack.c.l.b16 %v102
  %v381 = vunpack.c.l.b16 %v103
  %v382 = vunpack.c.h.b16 %v103
  %v383 = vunpack.c.l.b16 %v104
  %v384 = vunpack.c.l.b16 %v105
  %v385 = vunpack.c.h.b16 %v105
  %v386 = vunpack.c.l.b16 %v106
  %v387 = vunpack.c.l.b16 %v107
  %v388 = vunpack.c.h.b16 %v107
  %v389 = vunpack.c.l.b16 %v108
  %v390 = vunpack.c.l.b16 %v109
  %v391 = vunpack.c.h.b16 %v109
  %v392 = vunpack.c.l.b16 %v110
  %v393 = vunpack.c.l.b16 %v111
  %v394 = vunpack.c.h.b16 %v111
  %v395 = vunpack.c.l.b16 %v112
  %v396 = vpack.c.b16 %v252, %v249
  %v397 = vpack.c.b16 %v253, %v250
  %v398 = vpack.c.b16 %v254, %v251
  %v399 = vpack.c.b16 %v258, %v255
  %v400 = vpack.c.b16 %v259, %v256
  %v401 = vpack.c.b16 %v260, %v257
  %v402 = vpack.c.b16 %v264, %v261
  %v403 = vpack.c.b16 %v265, %v262
  %v404 = vpack.c.b16 %v266, %v263
  %v405 = vpack.c.b16 %v270, %v267
  %v406 = vpack.c.b16 %v271, %v268
  %v407 = vpack.c.b16 %v272, %v269
  %v408 = vpack.c.b16 %v276, %v273
  %v409 = vpack.c.b16 %v277, %v274
  %v410 = vpack.c.b16 %v278, %v275
  %v411 = vpack.c.b16 %v282, %v279
  %v412 = vpack.c.b16 %v283, %v280
  %v413 = vpack.c.b16 %v284, %v281
  %v414 = vpack.c.b16 %v288, %v285
  %v415 = vpack.c.b16 %v289, %v286
  %v416 = vpack.c.b16 %v290, %v287
  %v417 = vpack.c.b16 %v294, %v291
  %v418 = vpack.c.b16 %v295, %v292
  %v419 = vpack.c.b16 %v296, %v293
  %v420 = vpack.c.b16 %v300, %v297
  %v421 = vpack.c.b16 %v301, %v298
  %v422 = vpack.c.b16 %v302, %v299
  %v423 = vpack.c.b16 %v306, %v303
  %v424 = vpack.c.b16 %v307, %v304
  %v425 = vpack.c.b16 %v308, %v305
  %v426 = vpack.c.b16 %v312, %v309
  %v427 = vpack.c.b16 %v313, %v310
  %v428 = vpack.c.b16 %v314, %v311
  %v429 = vpack.c.b16 %v318, %v315
  %v430 = vpack.c.b16 %v319, %v316
  %v431 = vpack.c.b16 %v320, %v317
  %v432 = vpack.c.b16 %v324, %v321
  %v433 = vpack.c.b16 %v325, %v322
  %v434 = vpack.c.b16 %v326, %v323
  %v435 = vpack.c.b16 %v330, %v327
  %v436 = vpack.c.b16 %v331, %v328
  %v437 = vpack.c.b16 %v332, %v329
  %v438 = vpack.c.b16 %v336, %v333
  %v439 = vpack.c.b16 %v337, %v334
  %v440 = vpack.c.b16 %v338, %v335
  %v441 = vpack.c.b16 %v342, %v339
  %v442 = vpack.c.b16 %v343, %v340
  %v443 = vpack.c.b16 %v344, %v341
  %v444 = vpack.c.b16 %v348, %v345
  %v445 = vpack.c.b16 %v349, %v346
  %v446 = vpack.c.b16 %v350, %v347
  %v447 = vpack.c.b16 %v354, %v351
  %v448 = vpack.c.b16 %v355, %v352
  %v449 = vpack.c.b16 %v356, %v353
  %v450 = vpack.c.b16 %v360, %v357
  %v451 = vpack.c.b16 %v361, %v358
  %v452 = vpack.c.b16 %v362, %v359
  %v453 = vpack.c.b16 %v366, %v363
  %v454 = vpack.c.b16 %v367, %v364
  %v455 = vpack.c.b16 %v368, %v365
  %v456 = vpack.c.b16 %v372, %v369
  %v457 = vpack.c.b16 %v373, %v370
  %v458 = vpack.c.b16 %v374, %v371
  %v459 = vpack.c.b16 %v378, %v375
  %v460 = vpack.c.b16 %v379, %v376
  %v461 = vpack.c.b16 %v380, %v377
  %v462 = vpack.c.b16 %v384, %v381
  %v463 = vpack.c.b16 %v385, %v382
  %v464 = vpack.c.b16 %v386, %v383
  %v465 = vpack.c.b16 %v390, %v387
  %v466 = vpack.c.b16 %v391, %v388
  %v467 = vpack.c.b16 %v392, %v389
  %v468 = vpack.c.b16 %v393, %v393
  %v469 = vpack.c.b16 %v394, %v394
  %v470 = vpack.c.b16 %v395, %v395
  %v559 = vunpack.c.l.b16 %v113
  %v560 = vunpack.c.l.b16 %v114
  %v561 = vunpack.c.l.b16 %v115
  %v562 = vunpack.c.l.b16 %v116
  %v563 = vunpack.c.l.b16 %v117
  %v564 = vunpack.c.l.b16 %v118
  %v565 = vunpack.c.l.b16 %v119
  %v566 = vunpack.c.l.b16 %v120
  %v567 = vunpack.c.l.b16 %v121
  %v568 = vunpack.c.l.b16 %v122
  %v569 = vunpack.c.l.b16 %v123
  %v570 = vunpack.c.l.b16 %v124
  %v571 = vunpack.c.l.b16 %v125
  %v572 = vunpack.c.l.b16 %v126
  %v573 = vunpack.c.l.b16 %v127
  %v574 = vunpack.c.l.b16 %v128
  %v575 = vunpack.c.l.b16 %v129
  %v576 = vunpack.c.l.b16 %v130
  %v577 = vunpack.c.l.b16 %v131
  %v578 = vunpack.c.l.b16 %v132
  %v579 = vunpack.c.l.b16 %v133
  %v580 = vunpack.c.l.b16 %v134
  %v581 = vunpack.c.l.b16 %v135
  %v582 = vunpack.c.l.b16 %v136
  %v583 = vunpack.c.l.b16 %v137
  %v584 = vunpack.c.l.b16 %v138
  %v585 = vunpack.c.l.b16 %v139
  %v586 = vunpack.c.l.b16 %v140
  %v587 = vunpack.c.l.b16 %v141
  %v588 = vunpack.c.l.b16 %v142
  %v589 = vunpack.c.l.b16 %v143
  %v590 = vunpack.c.l.b16 %v144
  %v591 = vunpack.c.l.b16 %v145
  %v592 = vunpack.c.l.b16 %v146
  %v593 = vunpack.c.l.b16 %v147
  %v594 = vunpack.c.l.b16 %v148
  %v595 = vunpack.c.l.b16 %v149
  %v596 = vunpack.c.l.b16 %v150
  %v597 = vpack.c.b16 %v560, %v559
  %v598 = vpack.c.b16 %v562, %v561
  %v599 = vpack.c.b16 %v564, %v563
  %v600 = vpack.c.b16 %v566, %v565
  %v601 = vpack.c.b16 %v568, %v567
  %v602 = vpack.c.b16 %v570, %v569
  %v603 = vpack.c.b16 %v572, %v571
  %v604 = vpack.c.b16 %v574, %v573
  %v605 = vpack.c.b16 %v576, %v575
  %v606 = vpack.c.b16 %v578, %v577
  %v607 = vpack.c.b16 %v580, %v579
  %v608 = vpack.c.b16 %v582, %v581
  %v609 = vpack.c.b16 %v584, %v583
  %v610 = vpack.c.b16 %v586, %v585
  %v611 = vpack.c.b16 %v588, %v587
  %v612 = vpack.c.b16 %v590, %v589
  %v613 = vpack.c.b16 %v592, %v591
  %v614 = vpack.c.b16 %v594, %v593
  %v615 = vpack.c.b16 %v596, %v595
  %vm634 = vcmask 359424
  %v636 = vsel %vm634, %v398, 0
  %v639 = vsel %vm634, %v401, 0
  %v642 = vsel %vm634, %v404, 0
  %v645 = vsel %vm634, %v407, 0
  %v648 = vsel %vm634, %v410, 0
  %v651 = vsel %vm634, %v413, 0
  %v654 = vsel %vm634, %v416, 0
  %v657 = vsel %vm634, %v419, 0
  %v660 = vsel %vm634, %v422, 0
  %v663 = vsel %vm634, %v425, 0
  %v666 = vsel %vm634, %v428, 0
  %v669 = vsel %vm634, %v431, 0
  %v672 = vsel %vm634, %v434, 0
  %v675 = vsel %vm634, %v437, 0
  %v678 = vsel %vm634, %v440, 0
  %v681 = vsel %vm634, %v443, 0
  %v684 = vsel %vm634, %v446, 0
  %v687 = vsel %vm634, %v449, 0
  %v690 = vsel %vm634, %v452, 0
  %v693 = vsel %vm634, %v455, 0
  %v696 = vsel %vm634, %v458, 0
  %v699 = vsel %vm634, %v461, 0
  %v702 = vsel %vm634, %v464, 0
  %v705 = vsel %vm634, %v467, 0
  %v708 = vsel %vm634, %v470, 0
  %vm710 = vcmask 1045504
  %v712 = vsel %vm710, %v615, 0
  %714 = vmatprep.subr.bf16.mxu0 0
  %715 = vmatpush1.bf16.msra.mxu0 %v597
  %716 = vmatprep.subr.bf16.mxu0 0
  %717 = vmatpush1.bf16.msra.mxu0 %v598
  %718 = vmatprep.subr.bf16.mxu0 0
  %719 = vmatpush1.bf16.msra.mxu0 %v599
  %720 = vmatprep.subr.bf16.mxu0 0
  %721 = vmatpush1.bf16.msra.mxu0 %v600
  %722 = vmatprep.subr.bf16.mxu0 0
  %723 = vmatpush1.bf16.msra.mxu0 %v601
  %724 = vmatprep.subr.bf16.mxu0 0
  %725 = vmatpush1.bf16.msra.mxu0 %v602
  %726 = vmatprep.subr.bf16.mxu0 0
  %727 = vmatpush1.bf16.msra.mxu0 %v603
  %728 = vmatprep.subr.bf16.mxu0 0
  %729 = vmatpush1.bf16.msra.mxu0 %v604
  %730 = vmatprep.subr.bf16.mxu0 0
  %731 = vmatpush1.bf16.msra.mxu0 %v605
  %732 = vmatprep.subr.bf16.mxu0 0
  %733 = vmatpush1.bf16.msra.mxu0 %v606
  %734 = vmatprep.subr.bf16.mxu0 0
  %735 = vmatpush1.bf16.msra.mxu0 %v607
  %736 = vmatprep.subr.bf16.mxu0 0
  %737 = vmatpush1.bf16.msra.mxu0 %v608
  %738 = vmatprep.subr.bf16.mxu0 0
  %739 = vmatpush1.bf16.msra.mxu0 %v609
  %740 = vmatprep.subr.bf16.mxu0 0
  %741 = vmatpush1.bf16.msra.mxu0 %v610
  %742 = vmatprep.subr.bf16.mxu0 0
  %743 = vmatpush1.bf16.msra.mxu0 %v611
  %744 = vmatprep.subr.bf16.mxu0 0
  %745 = vmatpush1.bf16.msra.mxu0 %v612
  %746 = vmatprep.mubr.bf16.mxu0 %v397
  %747 = vmatmul.mubr.bf16.gmra.mrb[0].mxu0 %v396
  %v748 = vpop.f32.mrb[0].mxu0
  %v749 = vadd.f32 0.0, %v748
  %v750 = vpop.f32.mrb[0].mxu0
  %v751 = vpop.f32.mrb[0].mxu0
  %v752 = vadd.f32 0.0, %v751
  %v753 = vpop.f32.mrb[0].mxu0
  %754 = vmatprep.mubr.bf16.mxu0 %v400
  %755 = vmatmul.mubr.bf16.gmra.mrb[0].mxu0 %v399
  %v756 = vpop.f32.mrb[0].mxu0
  %v757 = vadd.f32 0.0, %v756
  %v758 = vpop.f32.mrb[0].mxu0
  %v759 = vpop.f32.mrb[0].mxu0
  %v760 = vadd.f32 0.0, %v759
  %v761 = vpop.f32.mrb[0].mxu0
  %762 = vmatprep.mubr.bf16.mxu0 %v403
  %763 = vmatmul.mubr.bf16.gmra.mrb[0].mxu0 %v402
  %v764 = vpop.f32.mrb[0].mxu0
  %v765 = vadd.f32 0.0, %v764
  %v766 = vpop.f32.mrb[0].mxu0
  %v767 = vpop.f32.mrb[0].mxu0
  %v768 = vadd.f32 0.0, %v767
  %v769 = vpop.f32.mrb[0].mxu0
  %770 = vmatprep.mubr.bf16.mxu0 %v406
  %771 = vmatmul.mubr.bf16.gmra.mrb[0].mxu0 %v405
  %v772 = vpop.f32.mrb[0].mxu0
  %v773 = vadd.f32 0.0, %v772
  %v774 = vpop.f32.mrb[0].mxu0
  %v775 = vpop.f32.mrb[0].mxu0
  %v776 = vadd.f32 0.0, %v775
  %v777 = vpop.f32.mrb[0].mxu0
  %778 = vmatprep.mubr.bf16.mxu0 %v409
  %779 = vmatmul.mubr.bf16.gmra.mrb[0].mxu0 %v408
  %v780 = vpop.f32.mrb[0].mxu0
  %v781 = vadd.f32 0.0, %v780
  %v782 = vpop.f32.mrb[0].mxu0
  %v783 = vpop.f32.mrb[0].mxu0
  %v784 = vadd.f32 0.0, %v783
  %v785 = vpop.f32.mrb[0].mxu0
  %786 = vmatprep.mubr.bf16.mxu0 %v412
  %787 = vmatmul.mubr.bf16.gmra.mrb[0].mxu0 %v411
  %v788 = vpop.f32.mrb[0].mxu0
  %v789 = vadd.f32 0.0, %v788
  %v790 = vpop.f32.mrb[0].mxu0
  %v791 = vpop.f32.mrb[0].mxu0
  %v792 = vadd.f32 0.0, %v791
  %v793 = vpop.f32.mrb[0].mxu0
  %794 = vmatprep.mubr.bf16.mxu0 %v415
  %795 = vmatmul.mubr.bf16.gmra.mrb[0].mxu0 %v414
  %v796 = vpop.f32.mrb[0].mxu0
  %v797 = vadd.f32 0.0, %v796
  %v798 = vpop.f32.mrb[0].mxu0
  %v799 = vpop.f32.mrb[0].mxu0
  %v800 = vadd.f32 0.0, %v799
  %v801 = vpop.f32.mrb[0].mxu0
  %802 = vmatprep.mubr.bf16.mxu0 %v418
  %803 = vmatmul.mubr.bf16.gmra.mrb[0].mxu0 %v417
  %v804 = vpop.f32.mrb[0].mxu0
  %v805 = vadd.f32 0.0, %v804
  %v806 = vpop.f32.mrb[0].mxu0
  %v807 = vpop.f32.mrb[0].mxu0
  %v808 = vadd.f32 0.0, %v807
  %v809 = vpop.f32.mrb[0].mxu0
  %810 = vmatprep.mubr.bf16.mxu0 %v421
  %811 = vmatmul.mubr.bf16.gmra.mrb[0].mxu0 %v420
  %v812 = vpop.f32.mrb[0].mxu0
  %v813 = vadd.f32 0.0, %v812
  %v814 = vpop.f32.mrb[0].mxu0
  %v815 = vpop.f32.mrb[0].mxu0
  %v816 = vadd.f32 0.0, %v815
  %v817 = vpop.f32.mrb[0].mxu0
  %818 = vmatprep.mubr.bf16.mxu0 %v424
  %819 = vmatmul.mubr.bf16.gmra.mrb[0].mxu0 %v423
  %v820 = vpop.f32.mrb[0].mxu0
  %v821 = vadd.f32 0.0, %v820
  %v822 = vpop.f32.mrb[0].mxu0
  %v823 = vpop.f32.mrb[0].mxu0
  %v824 = vadd.f32 0.0, %v823
  %v825 = vpop.f32.mrb[0].mxu0
  %826 = vmatprep.mubr.bf16.mxu0 %v427
  %827 = vmatmul.mubr.bf16.gmra.mrb[0].mxu0 %v426
  %v828 = vpop.f32.mrb[0].mxu0
  %v829 = vadd.f32 0.0, %v828
  %v830 = vpop.f32.mrb[0].mxu0
  %v831 = vpop.f32.mrb[0].mxu0
  %v832 = vadd.f32 0.0, %v831
  %v833 = vpop.f32.mrb[0].mxu0
  %834 = vmatprep.mubr.bf16.mxu0 %v430
  %835 = vmatmul.mubr.bf16.gmra.mrb[0].mxu0 %v429
  %v836 = vpop.f32.mrb[0].mxu0
  %v837 = vadd.f32 0.0, %v836
  %v838 = vpop.f32.mrb[0].mxu0
  %v839 = vpop.f32.mrb[0].mxu0
  %v840 = vadd.f32 0.0, %v839
  %v841 = vpop.f32.mrb[0].mxu0
  %842 = vmatprep.mubr.bf16.mxu0 %v433
  %843 = vmatmul.mubr.bf16.gmra.mrb[0].mxu0 %v432
  %v844 = vpop.f32.mrb[0].mxu0
  %v845 = vadd.f32 0.0, %v844
  %v846 = vpop.f32.mrb[0].mxu0
  %v847 = vpop.f32.mrb[0].mxu0
  %v848 = vadd.f32 0.0, %v847
  %v849 = vpop.f32.mrb[0].mxu0
  %850 = vmatprep.mubr.bf16.mxu0 %v436
  %851 = vmatmul.mubr.bf16.gmra.mrb[0].mxu0 %v435
  %v852 = vpop.f32.mrb[0].mxu0
  %v853 = vadd.f32 0.0, %v852
  %v854 = vpop.f32.mrb[0].mxu0
  %v855 = vpop.f32.mrb[0].mxu0
  %v856 = vadd.f32 0.0, %v855
  %v857 = vpop.f32.mrb[0].mxu0
  %858 = vmatprep.mubr.bf16.mxu0 %v439
  %859 = vmatmul.mubr.bf16.gmra.mrb[0].mxu0 %v438
  %v860 = vpop.f32.mrb[0].mxu0
  %v861 = vadd.f32 0.0, %v860
  %v862 = vpop.f32.mrb[0].mxu0
  %v863 = vpop.f32.mrb[0].mxu0
  %v864 = vadd.f32 0.0, %v863
  %v865 = vpop.f32.mrb[0].mxu0
  %866 = vmatprep.mubr.bf16.mxu0 %v442
  %867 = vmatmul.mubr.bf16.gmra.mrb[0].mxu0 %v441
  %v868 = vpop.f32.mrb[0].mxu0
  %v869 = vadd.f32 0.0, %v868
  %v870 = vpop.f32.mrb[0].mxu0
  %v871 = vpop.f32.mrb[0].mxu0
  %v872 = vadd.f32 0.0, %v871
  %v873 = vpop.f32.mrb[0].mxu0
  %874 = vmatprep.mubr.bf16.mxu0 %v445
  %875 = vmatmul.mubr.bf16.gmra.mrb[0].mxu0 %v444
  %v876 = vpop.f32.mrb[0].mxu0
  %v877 = vadd.f32 0.0, %v876
  %v878 = vpop.f32.mrb[0].mxu0
  %v879 = vpop.f32.mrb[0].mxu0
  %v880 = vadd.f32 0.0, %v879
  %v881 = vpop.f32.mrb[0].mxu0
  %882 = vmatprep.mubr.bf16.mxu0 %v448
  %883 = vmatmul.mubr.bf16.gmra.mrb[0].mxu0 %v447
  %v884 = vpop.f32.mrb[0].mxu0
  %v885 = vadd.f32 0.0, %v884
  %v886 = vpop.f32.mrb[0].mxu0
  %v887 = vpop.f32.mrb[0].mxu0
  %v888 = vadd.f32 0.0, %v887
  %v889 = vpop.f32.mrb[0].mxu0
  %890 = vmatprep.mubr.bf16.mxu0 %v451
  %891 = vmatmul.mubr.bf16.gmra.mrb[0].mxu0 %v450
  %v892 = vpop.f32.mrb[0].mxu0
  %v893 = vadd.f32 0.0, %v892
  %v894 = vpop.f32.mrb[0].mxu0
  %v895 = vpop.f32.mrb[0].mxu0
  %v896 = vadd.f32 0.0, %v895
  %v897 = vpop.f32.mrb[0].mxu0
  %898 = vmatprep.mubr.bf16.mxu0 %v454
  %899 = vmatmul.mubr.bf16.gmra.mrb[0].mxu0 %v453
  %v900 = vpop.f32.mrb[0].mxu0
  %v901 = vadd.f32 0.0, %v900
  %v902 = vpop.f32.mrb[0].mxu0
  %v903 = vpop.f32.mrb[0].mxu0
  %v904 = vadd.f32 0.0, %v903
  %v905 = vpop.f32.mrb[0].mxu0
  %906 = vmatprep.mubr.bf16.mxu0 %v457
  %907 = vmatmul.mubr.bf16.gmra.mrb[0].mxu0 %v456
  %v908 = vpop.f32.mrb[0].mxu0
  %v909 = vadd.f32 0.0, %v908
  %v910 = vpop.f32.mrb[0].mxu0
  %v911 = vpop.f32.mrb[0].mxu0
  %v912 = vadd.f32 0.0, %v911
  %v913 = vpop.f32.mrb[0].mxu0
  %914 = vmatprep.mubr.bf16.mxu0 %v460
  %915 = vmatmul.mubr.bf16.gmra.mrb[0].mxu0 %v459
  %v916 = vpop.f32.mrb[0].mxu0
  %v917 = vadd.f32 0.0, %v916
  %v918 = vpop.f32.mrb[0].mxu0
  %v919 = vpop.f32.mrb[0].mxu0
  %v920 = vadd.f32 0.0, %v919
  %v921 = vpop.f32.mrb[0].mxu0
  %922 = vmatprep.mubr.bf16.mxu0 %v463
  %923 = vmatmul.mubr.bf16.gmra.mrb[0].mxu0 %v462
  %v924 = vpop.f32.mrb[0].mxu0
  %v925 = vadd.f32 0.0, %v924
  %v926 = vpop.f32.mrb[0].mxu0
  %v927 = vpop.f32.mrb[0].mxu0
  %v928 = vadd.f32 0.0, %v927
  %v929 = vpop.f32.mrb[0].mxu0
  %930 = vmatprep.mubr.bf16.mxu0 %v466
  %931 = vmatmul.mubr.bf16.gmra.mrb[0].mxu0 %v465
  %v932 = vpop.f32.mrb[0].mxu0
  %v933 = vadd.f32 0.0, %v932
  %v934 = vpop.f32.mrb[0].mxu0
  %v935 = vpop.f32.mrb[0].mxu0
  %v936 = vadd.f32 0.0, %v935
  %v937 = vpop.f32.mrb[0].mxu0
  %938 = vmatprep.mubr.bf16.mxu0 %v469
  %939 = vmatmul.mubr.bf16.gmra.mrb[0].mxu0 %v468
  %v940 = vpop.f32.mrb[0].mxu0
  %v941 = vadd.f32 0.0, %v940
  %v942 = vpop.f32.mrb[0].mxu0
  %v943 = vpop.f32.mrb[0].mxu0
  %v944 = vpop.f32.mrb[0].mxu0
  %945 = vdwg.mxu0
  %946 = vmatprep.subr.bf16.mxu0 0
  %947 = vmatpush1.bf16.msra.mxu0 %v613
  %948 = vmatprep.subr.bf16.mxu0 0
  %949 = vmatpush1.bf16.msra.mxu0 %v614
  %950 = vmatprep.subr.bf16.mxu0 0
  %951 = vmatpush1.bf16.msra.mxu0 %v712
  %952 = vmatprep.subr.bf16.mxu0 0
  %953 = vmatpush1.bf16.msra.mxu0 0
  %954 = vmatprep.subr.bf16.mxu0 0
  %955 = vmatpush1.bf16.msra.mxu0 0
  %956 = vmatprep.subr.bf16.mxu0 0
  %957 = vmatpush1.bf16.msra.mxu0 0
  %958 = vmatprep.subr.bf16.mxu0 0
  %959 = vmatpush1.bf16.msra.mxu0 0
  %960 = vmatprep.subr.bf16.mxu0 0
  %961 = vmatpush1.bf16.msra.mxu0 0
  %962 = vmatprep.subr.bf16.mxu0 0
  %963 = vmatpush1.bf16.msra.mxu0 0
  %964 = vmatprep.subr.bf16.mxu0 0
  %965 = vmatpush1.bf16.msra.mxu0 0
  %966 = vmatprep.subr.bf16.mxu0 0
  %967 = vmatpush1.bf16.msra.mxu0 0
  %968 = vmatprep.subr.bf16.mxu0 0
  %969 = vmatpush1.bf16.msra.mxu0 0
  %970 = vmatprep.subr.bf16.mxu0 0
  %971 = vmatpush1.bf16.msra.mxu0 0
  %972 = vmatprep.subr.bf16.mxu0 0
  %973 = vmatpush1.bf16.msra.mxu0 0
  %974 = vmatprep.subr.bf16.mxu0 0
  %975 = vmatpush1.bf16.msra.mxu0 0
  %976 = vmatprep.subr.bf16.mxu0 0
  %977 = vmatpush1.bf16.msra.mxu0 0
  %978 = vmatprep.mubr.bf16.mxu0 0
  %979 = vmatmul.mubr.bf16.gmra.mrb[0].mxu0 %v636
  %v980 = vpop.f32.mrb[0].mxu0
  %v981 = vadd.f32 %v749, %v980
  %v982 = vpop.f32.mrb[0].mxu0
  %v983 = vpop.f32.mrb[0].mxu0
  %v984 = vadd.f32 %v752, %v983
  %v985 = vpop.f32.mrb[0].mxu0
  %986 = vmatprep.mubr.bf16.mxu0 0
  %987 = vmatmul.mubr.bf16.gmra.mrb[0].mxu0 %v639
  %v988 = vpop.f32.mrb[0].mxu0
  %v989 = vadd.f32 %v757, %v988
  %v990 = vpop.f32.mrb[0].mxu0
  %v991 = vpop.f32.mrb[0].mxu0
  %v992 = vadd.f32 %v760, %v991
  %v993 = vpop.f32.mrb[0].mxu0
  %994 = vmatprep.mubr.bf16.mxu0 0
  %995 = vmatmul.mubr.bf16.gmra.mrb[0].mxu0 %v642
  %v996 = vpop.f32.mrb[0].mxu0
  %v997 = vadd.f32 %v765, %v996
  %v998 = vpop.f32.mrb[0].mxu0
  %v999 = vpop.f32.mrb[0].mxu0
  %v1000 = vadd.f32 %v768, %v999
  %v1001 = vpop.f32.mrb[0].mxu0
  %1002 = vmatprep.mubr.bf16.mxu0 0
  %1003 = vmatmul.mubr.bf16.gmra.mrb[0].mxu0 %v645
  %v1004 = vpop.f32.mrb[0].mxu0
  %v1005 = vadd.f32 %v773, %v1004
  %v1006 = vpop.f32.mrb[0].mxu0
  %v1007 = vpop.f32.mrb[0].mxu0
  %v1008 = vadd.f32 %v776, %v1007
  %v1009 = vpop.f32.mrb[0].mxu0
  %1010 = vmatprep.mubr.bf16.mxu0 0
  %1011 = vmatmul.mubr.bf16.gmra.mrb[0].mxu0 %v648
  %v1012 = vpop.f32.mrb[0].mxu0
  %v1013 = vadd.f32 %v781, %v1012
  %v1014 = vpop.f32.mrb[0].mxu0
  %v1015 = vpop.f32.mrb[0].mxu0
  %v1016 = vadd.f32 %v784, %v1015
  %v1017 = vpop.f32.mrb[0].mxu0
  %1018 = vmatprep.mubr.bf16.mxu0 0
  %1019 = vmatmul.mubr.bf16.gmra.mrb[0].mxu0 %v651
  %v1020 = vpop.f32.mrb[0].mxu0
  %v1021 = vadd.f32 %v789, %v1020
  %v1022 = vpop.f32.mrb[0].mxu0
  %v1023 = vpop.f32.mrb[0].mxu0
  %v1024 = vadd.f32 %v792, %v1023
  %v1025 = vpop.f32.mrb[0].mxu0
  %1026 = vmatprep.mubr.bf16.mxu0 0
  %1027 = vmatmul.mubr.bf16.gmra.mrb[0].mxu0 %v654
  %v1028 = vpop.f32.mrb[0].mxu0
  %v1029 = vadd.f32 %v797, %v1028
  %v1030 = vpop.f32.mrb[0].mxu0
  %v1031 = vpop.f32.mrb[0].mxu0
  %v1032 = vadd.f32 %v800, %v1031
  %v1033 = vpop.f32.mrb[0].mxu0
  %1034 = vmatprep.mubr.bf16.mxu0 0
  %1035 = vmatmul.mubr.bf16.gmra.mrb[0].mxu0 %v657
  %v1036 = vpop.f32.mrb[0].mxu0
  %v1037 = vadd.f32 %v805, %v1036
  %v1038 = vpop.f32.mrb[0].mxu0
  %v1039 = vpop.f32.mrb[0].mxu0
  %v1040 = vadd.f32 %v808, %v1039
  %v1041 = vpop.f32.mrb[0].mxu0
  %1042 = vmatprep.mubr.bf16.mxu0 0
  %1043 = vmatmul.mubr.bf16.gmra.mrb[0].mxu0 %v660
  %v1044 = vpop.f32.mrb[0].mxu0
  %v1045 = vadd.f32 %v813, %v1044
  %v1046 = vpop.f32.mrb[0].mxu0
  %v1047 = vpop.f32.mrb[0].mxu0
  %v1048 = vadd.f32 %v816, %v1047
  %v1049 = vpop.f32.mrb[0].mxu0
  %1050 = vmatprep.mubr.bf16.mxu0 0
  %1051 = vmatmul.mubr.bf16.gmra.mrb[0].mxu0 %v663
  %v1052 = vpop.f32.mrb[0].mxu0
  %v1053 = vadd.f32 %v821, %v1052
  %v1054 = vpop.f32.mrb[0].mxu0
  %v1055 = vpop.f32.mrb[0].mxu0
  %v1056 = vadd.f32 %v824, %v1055
  %v1057 = vpop.f32.mrb[0].mxu0
  %1058 = vmatprep.mubr.bf16.mxu0 0
  %1059 = vmatmul.mubr.bf16.gmra.mrb[0].mxu0 %v666
  %v1060 = vpop.f32.mrb[0].mxu0
  %v1061 = vadd.f32 %v829, %v1060
  %v1062 = vpop.f32.mrb[0].mxu0
  %v1063 = vpop.f32.mrb[0].mxu0
  %v1064 = vadd.f32 %v832, %v1063
  %v1065 = vpop.f32.mrb[0].mxu0
  %1066 = vmatprep.mubr.bf16.mxu0 0
  %1067 = vmatmul.mubr.bf16.gmra.mrb[0].mxu0 %v669
  %v1068 = vpop.f32.mrb[0].mxu0
  %v1069 = vadd.f32 %v837, %v1068
  %v1070 = vpop.f32.mrb[0].mxu0
  %v1071 = vpop.f32.mrb[0].mxu0
  %v1072 = vadd.f32 %v840, %v1071
  %v1073 = vpop.f32.mrb[0].mxu0
  %1074 = vmatprep.mubr.bf16.mxu0 0
  %1075 = vmatmul.mubr.bf16.gmra.mrb[0].mxu0 %v672
  %v1076 = vpop.f32.mrb[0].mxu0
  %v1077 = vadd.f32 %v845, %v1076
  %v1078 = vpop.f32.mrb[0].mxu0
  %v1079 = vpop.f32.mrb[0].mxu0
  %v1080 = vadd.f32 %v848, %v1079
  %v1081 = vpop.f32.mrb[0].mxu0
  %1082 = vmatprep.mubr.bf16.mxu0 0
  %1083 = vmatmul.mubr.bf16.gmra.mrb[0].mxu0 %v675
  %v1084 = vpop.f32.mrb[0].mxu0
  %v1085 = vadd.f32 %v853, %v1084
  %v1086 = vpop.f32.mrb[0].mxu0
  %v1087 = vpop.f32.mrb[0].mxu0
  %v1088 = vadd.f32 %v856, %v1087
  %v1089 = vpop.f32.mrb[0].mxu0
  %1090 = vmatprep.mubr.bf16.mxu0 0
  %1091 = vmatmul.mubr.bf16.gmra.mrb[0].mxu0 %v678
  %v1092 = vpop.f32.mrb[0].mxu0
  %v1093 = vadd.f32 %v861, %v1092
  %v1094 = vpop.f32.mrb[0].mxu0
  %v1095 = vpop.f32.mrb[0].mxu0
  %v1096 = vadd.f32 %v864, %v1095
  %v1097 = vpop.f32.mrb[0].mxu0
  %1098 = vmatprep.mubr.bf16.mxu0 0
  %1099 = vmatmul.mubr.bf16.gmra.mrb[0].mxu0 %v681
  %v1100 = vpop.f32.mrb[0].mxu0
  %v1101 = vadd.f32 %v869, %v1100
  %v1102 = vpop.f32.mrb[0].mxu0
  %v1103 = vpop.f32.mrb[0].mxu0
  %v1104 = vadd.f32 %v872, %v1103
  %v1105 = vpop.f32.mrb[0].mxu0
  %1106 = vmatprep.mubr.bf16.mxu0 0
  %1107 = vmatmul.mubr.bf16.gmra.mrb[0].mxu0 %v684
  %v1108 = vpop.f32.mrb[0].mxu0
  %v1109 = vadd.f32 %v877, %v1108
  %v1110 = vpop.f32.mrb[0].mxu0
  %v1111 = vpop.f32.mrb[0].mxu0
  %v1112 = vadd.f32 %v880, %v1111
  %v1113 = vpop.f32.mrb[0].mxu0
  %1114 = vmatprep.mubr.bf16.mxu0 0
  %1115 = vmatmul.mubr.bf16.gmra.mrb[0].mxu0 %v687
  %v1116 = vpop.f32.mrb[0].mxu0
  %v1117 = vadd.f32 %v885, %v1116
  %v1118 = vpop.f32.mrb[0].mxu0
  %v1119 = vpop.f32.mrb[0].mxu0
  %v1120 = vadd.f32 %v888, %v1119
  %v1121 = vpop.f32.mrb[0].mxu0
  %1122 = vmatprep.mubr.bf16.mxu0 0
  %1123 = vmatmul.mubr.bf16.gmra.mrb[0].mxu0 %v690
  %v1124 = vpop.f32.mrb[0].mxu0
  %v1125 = vadd.f32 %v893, %v1124
  %v1126 = vpop.f32.mrb[0].mxu0
  %v1127 = vpop.f32.mrb[0].mxu0
  %v1128 = vadd.f32 %v896, %v1127
  %v1129 = vpop.f32.mrb[0].mxu0
  %1130 = vmatprep.mubr.bf16.mxu0 0
  %1131 = vmatmul.mubr.bf16.gmra.mrb[0].mxu0 %v693
  %v1132 = vpop.f32.mrb[0].mxu0
  %v1133 = vadd.f32 %v901, %v1132
  %v1134 = vpop.f32.mrb[0].mxu0
  %v1135 = vpop.f32.mrb[0].mxu0
  %v1136 = vadd.f32 %v904, %v1135
  %v1137 = vpop.f32.mrb[0].mxu0
  %1138 = vmatprep.mubr.bf16.mxu0 0
  %1139 = vmatmul.mubr.bf16.gmra.mrb[0].mxu0 %v696
  %v1140 = vpop.f32.mrb[0].mxu0
  %v1141 = vadd.f32 %v909, %v1140
  %v1142 = vpop.f32.mrb[0].mxu0
  %v1143 = vpop.f32.mrb[0].mxu0
  %v1144 = vadd.f32 %v912, %v1143
  %v1145 = vpop.f32.mrb[0].mxu0
  %1146 = vmatprep.mubr.bf16.mxu0 0
  %1147 = vmatmul.mubr.bf16.gmra.mrb[0].mxu0 %v699
  %v1148 = vpop.f32.mrb[0].mxu0
  %v1149 = vadd.f32 %v917, %v1148
  %v1150 = vpop.f32.mrb[0].mxu0
  %v1151 = vpop.f32.mrb[0].mxu0
  %v1152 = vadd.f32 %v920, %v1151
  %v1153 = vpop.f32.mrb[0].mxu0
  %1154 = vmatprep.mubr.bf16.mxu0 0
  %1155 = vmatmul.mubr.bf16.gmra.mrb[0].mxu0 %v702
  %v1156 = vpop.f32.mrb[0].mxu0
  %v1157 = vadd.f32 %v925, %v1156
  %v1158 = vpop.f32.mrb[0].mxu0
  %v1159 = vpop.f32.mrb[0].mxu0
  %v1160 = vadd.f32 %v928, %v1159
  %v1161 = vpop.f32.mrb[0].mxu0
  %1162 = vmatprep.mubr.bf16.mxu0 0
  %1163 = vmatmul.mubr.bf16.gmra.mrb[0].mxu0 %v705
  %v1164 = vpop.f32.mrb[0].mxu0
  %v1165 = vadd.f32 %v933, %v1164
  %v1166 = vpop.f32.mrb[0].mxu0
  %v1167 = vpop.f32.mrb[0].mxu0
  %v1168 = vadd.f32 %v936, %v1167
  %v1169 = vpop.f32.mrb[0].mxu0
  %1170 = vmatprep.mubr.bf16.mxu0 0
  %1171 = vmatmul.mubr.bf16.gmra.mrb[0].mxu0 %v708
  %v1172 = vpop.f32.mrb[0].mxu0
  %v1173 = vadd.f32 %v941, %v1172
  %v1174 = vpop.f32.mrb[0].mxu0
  %v1175 = vpop.f32.mrb[0].mxu0
  %v1176 = vpop.f32.mrb[0].mxu0
  %1177 = vdwg.mxu0
  %1227 = vrot.lane.b32.xlu0 %v981, 122
  %v1228 = vpop.permute.xlu0 %1227
  %1229 = vrot.lane.b32.xlu0 %v984, 122
  %v1230 = vpop.permute.xlu0 %1229
  %1231 = vrot.lane.b32.xlu0 %v989, 122
  %v1232 = vpop.permute.xlu0 %1231
  %1233 = vrot.lane.b32.xlu0 %v992, 122
  %v1234 = vpop.permute.xlu0 %1233
  %1235 = vrot.lane.b32.xlu0 %v997, 122
  %v1236 = vpop.permute.xlu0 %1235
  %1237 = vrot.lane.b32.xlu0 %v1000, 122
  %v1238 = vpop.permute.xlu0 %1237
  %1239 = vrot.lane.b32.xlu0 %v1005, 122
  %v1240 = vpop.permute.xlu0 %1239
  %1241 = vrot.lane.b32.xlu0 %v1008, 122
  %v1242 = vpop.permute.xlu0 %1241
  %1243 = vrot.lane.b32.xlu0 %v1013, 122
  %v1244 = vpop.permute.xlu0 %1243
  %1245 = vrot.lane.b32.xlu0 %v1016, 122
  %v1246 = vpop.permute.xlu0 %1245
  %1247 = vrot.lane.b32.xlu0 %v1021, 122
  %v1248 = vpop.permute.xlu0 %1247
  %1249 = vrot.lane.b32.xlu0 %v1024, 122
  %v1250 = vpop.permute.xlu0 %1249
  %1251 = vrot.lane.b32.xlu0 %v1029, 122
  %v1252 = vpop.permute.xlu0 %1251
  %1253 = vrot.lane.b32.xlu0 %v1032, 122
  %v1254 = vpop.permute.xlu0 %1253
  %1255 = vrot.lane.b32.xlu0 %v1037, 122
  %v1256 = vpop.permute.xlu0 %1255
  %1257 = vrot.lane.b32.xlu0 %v1040, 122
  %v1258 = vpop.permute.xlu0 %1257
  %1259 = vrot.lane.b32.xlu0 %v1045, 122
  %v1260 = vpop.permute.xlu0 %1259
  %1261 = vrot.lane.b32.xlu0 %v1048, 122
  %v1262 = vpop.permute.xlu0 %1261
  %1263 = vrot.lane.b32.xlu0 %v1053, 122
  %v1264 = vpop.permute.xlu0 %1263
  %1265 = vrot.lane.b32.xlu0 %v1056, 122
  %v1266 = vpop.permute.xlu0 %1265
  %1267 = vrot.lane.b32.xlu0 %v1061, 122
  %v1268 = vpop.permute.xlu0 %1267
  %1269 = vrot.lane.b32.xlu0 %v1064, 122
  %v1270 = vpop.permute.xlu0 %1269
  %1271 = vrot.lane.b32.xlu0 %v1069, 122
  %v1272 = vpop.permute.xlu0 %1271
  %1273 = vrot.lane.b32.xlu0 %v1072, 122
  %v1274 = vpop.permute.xlu0 %1273
  %1275 = vrot.lane.b32.xlu0 %v1077, 122
  %v1276 = vpop.permute.xlu0 %1275
  %1277 = vrot.lane.b32.xlu0 %v1080, 122
  %v1278 = vpop.permute.xlu0 %1277
  %1279 = vrot.lane.b32.xlu0 %v1085, 122
  %v1280 = vpop.permute.xlu0 %1279
  %1281 = vrot.lane.b32.xlu0 %v1088, 122
  %v1282 = vpop.permute.xlu0 %1281
  %1283 = vrot.lane.b32.xlu0 %v1093, 122
  %v1284 = vpop.permute.xlu0 %1283
  %1285 = vrot.lane.b32.xlu0 %v1096, 122
  %v1286 = vpop.permute.xlu0 %1285
  %1287 = vrot.lane.b32.xlu0 %v1101, 122
  %v1288 = vpop.permute.xlu0 %1287
  %1289 = vrot.lane.b32.xlu0 %v1104, 122
  %v1290 = vpop.permute.xlu0 %1289
  %1291 = vrot.lane.b32.xlu0 %v1109, 122
  %v1292 = vpop.permute.xlu0 %1291
  %1293 = vrot.lane.b32.xlu0 %v1112, 122
  %v1294 = vpop.permute.xlu0 %1293
  %1295 = vrot.lane.b32.xlu0 %v1117, 122
  %v1296 = vpop.permute.xlu0 %1295
  %1297 = vrot.lane.b32.xlu0 %v1120, 122
  %v1298 = vpop.permute.xlu0 %1297
  %1299 = vrot.lane.b32.xlu0 %v1125, 122
  %v1300 = vpop.permute.xlu0 %1299
  %1301 = vrot.lane.b32.xlu0 %v1128, 122
  %v1302 = vpop.permute.xlu0 %1301
  %1303 = vrot.lane.b32.xlu0 %v1133, 122
  %v1304 = vpop.permute.xlu0 %1303
  %1305 = vrot.lane.b32.xlu0 %v1136, 122
  %v1306 = vpop.permute.xlu0 %1305
  %1307 = vrot.lane.b32.xlu0 %v1141, 122
  %v1308 = vpop.permute.xlu0 %1307
  %1309 = vrot.lane.b32.xlu0 %v1144, 122
  %v1310 = vpop.permute.xlu0 %1309
  %1311 = vrot.lane.b32.xlu0 %v1149, 122
  %v1312 = vpop.permute.xlu0 %1311
  %1313 = vrot.lane.b32.xlu0 %v1152, 122
  %v1314 = vpop.permute.xlu0 %1313
  %1315 = vrot.lane.b32.xlu0 %v1157, 122
  %v1316 = vpop.permute.xlu0 %1315
  %1317 = vrot.lane.b32.xlu0 %v1160, 122
  %v1318 = vpop.permute.xlu0 %1317
  %1319 = vrot.lane.b32.xlu0 %v1165, 122
  %v1320 = vpop.permute.xlu0 %1319
  %1321 = vrot.lane.b32.xlu0 %v1168, 122
  %v1322 = vpop.permute.xlu0 %1321
  %1323 = vrot.lane.b32.xlu0 %v1173, 122
  %v1324 = vpop.permute.xlu0 %1323
  %v1374 = vmax.f32 %v981, %v1228
  %v1375 = vmax.f32 %v984, %v1230
  %v1376 = vmax.f32 %v989, %v1232
  %v1377 = vmax.f32 %v992, %v1234
  %v1378 = vmax.f32 %v997, %v1236
  %v1379 = vmax.f32 %v1000, %v1238
  %v1380 = vmax.f32 %v1005, %v1240
  %v1381 = vmax.f32 %v1008, %v1242
  %v1382 = vmax.f32 %v1013, %v1244
  %v1383 = vmax.f32 %v1016, %v1246
  %v1384 = vmax.f32 %v1021, %v1248
  %v1385 = vmax.f32 %v1024, %v1250
  %v1386 = vmax.f32 %v1029, %v1252
  %v1387 = vmax.f32 %v1032, %v1254
  %v1388 = vmax.f32 %v1037, %v1256
  %v1389 = vmax.f32 %v1040, %v1258
  %v1390 = vmax.f32 %v1045, %v1260
  %v1391 = vmax.f32 %v1048, %v1262
  %v1392 = vmax.f32 %v1053, %v1264
  %v1393 = vmax.f32 %v1056, %v1266
  %v1394 = vmax.f32 %v1061, %v1268
  %v1395 = vmax.f32 %v1064, %v1270
  %v1396 = vmax.f32 %v1069, %v1272
  %v1397 = vmax.f32 %v1072, %v1274
  %v1398 = vmax.f32 %v1077, %v1276
  %v1399 = vmax.f32 %v1080, %v1278
  %v1400 = vmax.f32 %v1085, %v1280
  %v1401 = vmax.f32 %v1088, %v1282
  %v1402 = vmax.f32 %v1093, %v1284
  %v1403 = vmax.f32 %v1096, %v1286
  %v1404 = vmax.f32 %v1101, %v1288
  %v1405 = vmax.f32 %v1104, %v1290
  %v1406 = vmax.f32 %v1109, %v1292
  %v1407 = vmax.f32 %v1112, %v1294
  %v1408 = vmax.f32 %v1117, %v1296
  %v1409 = vmax.f32 %v1120, %v1298
  %v1410 = vmax.f32 %v1125, %v1300
  %v1411 = vmax.f32 %v1128, %v1302
  %v1412 = vmax.f32 %v1133, %v1304
  %v1413 = vmax.f32 %v1136, %v1306
  %v1414 = vmax.f32 %v1141, %v1308
  %v1415 = vmax.f32 %v1144, %v1310
  %v1416 = vmax.f32 %v1149, %v1312
  %v1417 = vmax.f32 %v1152, %v1314
  %v1418 = vmax.f32 %v1157, %v1316
  %v1419 = vmax.f32 %v1160, %v1318
  %v1420 = vmax.f32 %v1165, %v1320
  %v1421 = vmax.f32 %v1168, %v1322
  %v1422 = vmax.f32 %v1173, %v1324
  %1472 = vrot.lane.b32.xlu0 %v1374, 116
  %v1473 = vpop.permute.xlu0 %1472
  %1474 = vrot.lane.b32.xlu0 %v1375, 116
  %v1475 = vpop.permute.xlu0 %1474
  %1476 = vrot.lane.b32.xlu0 %v1376, 116
  %v1477 = vpop.permute.xlu0 %1476
  %1478 = vrot.lane.b32.xlu0 %v1377, 116
  %v1479 = vpop.permute.xlu0 %1478
  %1480 = vrot.lane.b32.xlu0 %v1378, 116
  %v1481 = vpop.permute.xlu0 %1480
  %1482 = vrot.lane.b32.xlu0 %v1379, 116
  %v1483 = vpop.permute.xlu0 %1482
  %1484 = vrot.lane.b32.xlu0 %v1380, 116
  %v1485 = vpop.permute.xlu0 %1484
  %1486 = vrot.lane.b32.xlu0 %v1381, 116
  %v1487 = vpop.permute.xlu0 %1486
  %1488 = vrot.lane.b32.xlu0 %v1382, 116
  %v1489 = vpop.permute.xlu0 %1488
  %1490 = vrot.lane.b32.xlu0 %v1383, 116
  %v1491 = vpop.permute.xlu0 %1490
  %1492 = vrot.lane.b32.xlu0 %v1384, 116
  %v1493 = vpop.permute.xlu0 %1492
  %1494 = vrot.lane.b32.xlu0 %v1385, 116
  %v1495 = vpop.permute.xlu0 %1494
  %1496 = vrot.lane.b32.xlu0 %v1386, 116
  %v1497 = vpop.permute.xlu0 %1496
  %1498 = vrot.lane.b32.xlu0 %v1387, 116
  %v1499 = vpop.permute.xlu0 %1498
  %1500 = vrot.lane.b32.xlu0 %v1388, 116
  %v1501 = vpop.permute.xlu0 %1500
  %1502 = vrot.lane.b32.xlu0 %v1389, 116
  %v1503 = vpop.permute.xlu0 %1502
  %1504 = vrot.lane.b32.xlu0 %v1390, 116
  %v1505 = vpop.permute.xlu0 %1504
  %1506 = vrot.lane.b32.xlu0 %v1391, 116
  %v1507 = vpop.permute.xlu0 %1506
  %1508 = vrot.lane.b32.xlu0 %v1392, 116
  %v1509 = vpop.permute.xlu0 %1508
  %1510 = vrot.lane.b32.xlu0 %v1393, 116
  %v1511 = vpop.permute.xlu0 %1510
  %1512 = vrot.lane.b32.xlu0 %v1394, 116
  %v1513 = vpop.permute.xlu0 %1512
  %1514 = vrot.lane.b32.xlu0 %v1395, 116
  %v1515 = vpop.permute.xlu0 %1514
  %1516 = vrot.lane.b32.xlu0 %v1396, 116
  %v1517 = vpop.permute.xlu0 %1516
  %1518 = vrot.lane.b32.xlu0 %v1397, 116
  %v1519 = vpop.permute.xlu0 %1518
  %1520 = vrot.lane.b32.xlu0 %v1398, 116
  %v1521 = vpop.permute.xlu0 %1520
  %1522 = vrot.lane.b32.xlu0 %v1399, 116
  %v1523 = vpop.permute.xlu0 %1522
  %1524 = vrot.lane.b32.xlu0 %v1400, 116
  %v1525 = vpop.permute.xlu0 %1524
  %1526 = vrot.lane.b32.xlu0 %v1401, 116
  %v1527 = vpop.permute.xlu0 %1526
  %1528 = vrot.lane.b32.xlu0 %v1402, 116
  %v1529 = vpop.permute.xlu0 %1528
  %1530 = vrot.lane.b32.xlu0 %v1403, 116
  %v1531 = vpop.permute.xlu0 %1530
  %1532 = vrot.lane.b32.xlu0 %v1404, 116
  %v1533 = vpop.permute.xlu0 %1532
  %1534 = vrot.lane.b32.xlu0 %v1405, 116
  %v1535 = vpop.permute.xlu0 %1534
  %1536 = vrot.lane.b32.xlu0 %v1406, 116
  %v1537 = vpop.permute.xlu0 %1536
  %1538 = vrot.lane.b32.xlu0 %v1407, 116
  %v1539 = vpop.permute.xlu0 %1538
  %1540 = vrot.lane.b32.xlu0 %v1408, 116
  %v1541 = vpop.permute.xlu0 %1540
  %1542 = vrot.lane.b32.xlu0 %v1409, 116
  %v1543 = vpop.permute.xlu0 %1542
  %1544 = vrot.lane.b32.xlu0 %v1410, 116
  %v1545 = vpop.permute.xlu0 %1544
  %1546 = vrot.lane.b32.xlu0 %v1411, 116
  %v1547 = vpop.permute.xlu0 %1546
  %1548 = vrot.lane.b32.xlu0 %v1412, 116
  %v1549 = vpop.permute.xlu0 %1548
  %1550 = vrot.lane.b32.xlu0 %v1413, 116
  %v1551 = vpop.permute.xlu0 %1550
  %1552 = vrot.lane.b32.xlu0 %v1414, 116
  %v1553 = vpop.permute.xlu0 %1552
  %1554 = vrot.lane.b32.xlu0 %v1415, 116
  %v1555 = vpop.permute.xlu0 %1554
  %1556 = vrot.lane.b32.xlu0 %v1416, 116
  %v1557 = vpop.permute.xlu0 %1556
  %1558 = vrot.lane.b32.xlu0 %v1417, 116
  %v1559 = vpop.permute.xlu0 %1558
  %1560 = vrot.lane.b32.xlu0 %v1418, 116
  %v1561 = vpop.permute.xlu0 %1560
  %1562 = vrot.lane.b32.xlu0 %v1419, 116
  %v1563 = vpop.permute.xlu0 %1562
  %1564 = vrot.lane.b32.xlu0 %v1420, 116
  %v1565 = vpop.permute.xlu0 %1564
  %1566 = vrot.lane.b32.xlu0 %v1421, 116
  %v1567 = vpop.permute.xlu0 %1566
  %1568 = vrot.lane.b32.xlu0 %v1422, 116
  %v1569 = vpop.permute.xlu0 %1568
  %v1619 = vmax.f32 %v1374, %v1473
  %v1620 = vmax.f32 %v1375, %v1475
  %v1621 = vmax.f32 %v1376, %v1477
  %v1622 = vmax.f32 %v1377, %v1479
  %v1623 = vmax.f32 %v1378, %v1481
  %v1624 = vmax.f32 %v1379, %v1483
  %v1625 = vmax.f32 %v1380, %v1485
  %v1626 = vmax.f32 %v1381, %v1487
  %v1627 = vmax.f32 %v1382, %v1489
  %v1628 = vmax.f32 %v1383, %v1491
  %v1629 = vmax.f32 %v1384, %v1493
  %v1630 = vmax.f32 %v1385, %v1495
  %v1631 = vmax.f32 %v1386, %v1497
  %v1632 = vmax.f32 %v1387, %v1499
  %v1633 = vmax.f32 %v1388, %v1501
  %v1634 = vmax.f32 %v1389, %v1503
  %v1635 = vmax.f32 %v1390, %v1505
  %v1636 = vmax.f32 %v1391, %v1507
  %v1637 = vmax.f32 %v1392, %v1509
  %v1638 = vmax.f32 %v1393, %v1511
  %v1639 = vmax.f32 %v1394, %v1513
  %v1640 = vmax.f32 %v1395, %v1515
  %v1641 = vmax.f32 %v1396, %v1517
  %v1642 = vmax.f32 %v1397, %v1519
  %v1643 = vmax.f32 %v1398, %v1521
  %v1644 = vmax.f32 %v1399, %v1523
  %v1645 = vmax.f32 %v1400, %v1525
  %v1646 = vmax.f32 %v1401, %v1527
  %v1647 = vmax.f32 %v1402, %v1529
  %v1648 = vmax.f32 %v1403, %v1531
  %v1649 = vmax.f32 %v1404, %v1533
  %v1650 = vmax.f32 %v1405, %v1535
  %v1651 = vmax.f32 %v1406, %v1537
  %v1652 = vmax.f32 %v1407, %v1539
  %v1653 = vmax.f32 %v1408, %v1541
  %v1654 = vmax.f32 %v1409, %v1543
  %v1655 = vmax.f32 %v1410, %v1545
  %v1656 = vmax.f32 %v1411, %v1547
  %v1657 = vmax.f32 %v1412, %v1549
  %v1658 = vmax.f32 %v1413, %v1551
  %v1659 = vmax.f32 %v1414, %v1553
  %v1660 = vmax.f32 %v1415, %v1555
  %v1661 = vmax.f32 %v1416, %v1557
  %v1662 = vmax.f32 %v1417, %v1559
  %v1663 = vmax.f32 %v1418, %v1561
  %v1664 = vmax.f32 %v1419, %v1563
  %v1665 = vmax.f32 %v1420, %v1565
  %v1666 = vmax.f32 %v1421, %v1567
  %v1667 = vmax.f32 %v1422, %v1569
  %v1668 = vld [vmem:[%s2] sm:$0x1]
  %v1670 = vlaneseq
  %v1671 = vshrl.u32 %v1670, 7
  %v1672 = vsub.s32 0, %v1671
  %v1673 = vrot.slane %v1668, %v1672
  %v1675 = vadd.f32 %v1619, %v1673
  %v1676 = vadd.f32 %v1620, %v1673
  %v1677 = vadd.f32 %v1621, %v1673
  %v1678 = vadd.f32 %v1622, %v1673
  %v1679 = vadd.f32 %v1623, %v1673
  %v1680 = vadd.f32 %v1624, %v1673
  %v1681 = vadd.f32 %v1625, %v1673
  %v1682 = vadd.f32 %v1626, %v1673
  %v1683 = vadd.f32 %v1627, %v1673
  %v1684 = vadd.f32 %v1628, %v1673
  %v1685 = vadd.f32 %v1629, %v1673
  %v1686 = vadd.f32 %v1630, %v1673
  %v1687 = vadd.f32 %v1631, %v1673
  %v1688 = vadd.f32 %v1632, %v1673
  %v1689 = vadd.f32 %v1633, %v1673
  %v1690 = vadd.f32 %v1634, %v1673
  %v1691 = vadd.f32 %v1635, %v1673
  %v1692 = vadd.f32 %v1636, %v1673
  %v1693 = vadd.f32 %v1637, %v1673
  %v1694 = vadd.f32 %v1638, %v1673
  %v1695 = vadd.f32 %v1639, %v1673
  %v1696 = vadd.f32 %v1640, %v1673
  %v1697 = vadd.f32 %v1641, %v1673
  %v1698 = vadd.f32 %v1642, %v1673
  %v1699 = vadd.f32 %v1643, %v1673
  %v1700 = vadd.f32 %v1644, %v1673
  %v1701 = vadd.f32 %v1645, %v1673
  %v1702 = vadd.f32 %v1646, %v1673
  %v1703 = vadd.f32 %v1647, %v1673
  %v1704 = vadd.f32 %v1648, %v1673
  %v1705 = vadd.f32 %v1649, %v1673
  %v1706 = vadd.f32 %v1650, %v1673
  %v1707 = vadd.f32 %v1651, %v1673
  %v1708 = vadd.f32 %v1652, %v1673
  %v1709 = vadd.f32 %v1653, %v1673
  %v1710 = vadd.f32 %v1654, %v1673
  %v1711 = vadd.f32 %v1655, %v1673
  %v1712 = vadd.f32 %v1656, %v1673
  %v1713 = vadd.f32 %v1657, %v1673
  %v1714 = vadd.f32 %v1658, %v1673
  %v1715 = vadd.f32 %v1659, %v1673
  %v1716 = vadd.f32 %v1660, %v1673
  %v1717 = vadd.f32 %v1661, %v1673
  %v1718 = vadd.f32 %v1662, %v1673
  %v1719 = vadd.f32 %v1663, %v1673
  %v1720 = vadd.f32 %v1664, %v1673
  %v1721 = vadd.f32 %v1665, %v1673
  %v1722 = vadd.f32 %v1666, %v1673
  %v1723 = vadd.f32 %v1667, %v1673
  %v1724 = vmax.f32 %v1675, 0.0
  %v1725 = vmax.f32 %v1676, 0.0
  %v1726 = vmax.f32 %v1677, 0.0
  %v1727 = vmax.f32 %v1678, 0.0
  %v1728 = vmax.f32 %v1679, 0.0
  %v1729 = vmax.f32 %v1680, 0.0
  %v1730 = vmax.f32 %v1681, 0.0
  %v1731 = vmax.f32 %v1682, 0.0
  %v1732 = vmax.f32 %v1683, 0.0
  %v1733 = vmax.f32 %v1684, 0.0
  %v1734 = vmax.f32 %v1685, 0.0
  %v1735 = vmax.f32 %v1686, 0.0
  %v1736 = vmax.f32 %v1687, 0.0
  %v1737 = vmax.f32 %v1688, 0.0
  %v1738 = vmax.f32 %v1689, 0.0
  %v1739 = vmax.f32 %v1690, 0.0
  %v1740 = vmax.f32 %v1691, 0.0
  %v1741 = vmax.f32 %v1692, 0.0
  %v1742 = vmax.f32 %v1693, 0.0
  %v1743 = vmax.f32 %v1694, 0.0
  %v1744 = vmax.f32 %v1695, 0.0
  %v1745 = vmax.f32 %v1696, 0.0
  %v1746 = vmax.f32 %v1697, 0.0
  %v1747 = vmax.f32 %v1698, 0.0
  %v1748 = vmax.f32 %v1699, 0.0
  %v1749 = vmax.f32 %v1700, 0.0
  %v1750 = vmax.f32 %v1701, 0.0
  %v1751 = vmax.f32 %v1702, 0.0
  %v1752 = vmax.f32 %v1703, 0.0
  %v1753 = vmax.f32 %v1704, 0.0
  %v1754 = vmax.f32 %v1705, 0.0
  %v1755 = vmax.f32 %v1706, 0.0
  %v1756 = vmax.f32 %v1707, 0.0
  %v1757 = vmax.f32 %v1708, 0.0
  %v1758 = vmax.f32 %v1709, 0.0
  %v1759 = vmax.f32 %v1710, 0.0
  %v1760 = vmax.f32 %v1711, 0.0
  %v1761 = vmax.f32 %v1712, 0.0
  %v1762 = vmax.f32 %v1713, 0.0
  %v1763 = vmax.f32 %v1714, 0.0
  %v1764 = vmax.f32 %v1715, 0.0
  %v1765 = vmax.f32 %v1716, 0.0
  %v1766 = vmax.f32 %v1717, 0.0
  %v1767 = vmax.f32 %v1718, 0.0
  %v1768 = vmax.f32 %v1719, 0.0
  %v1769 = vmax.f32 %v1720, 0.0
  %v1770 = vmax.f32 %v1721, 0.0
  %v1771 = vmax.f32 %v1722, 0.0
  %v1772 = vmax.f32 %v1723, 0.0
  %v1773 = vpack.c.bf16 %v1725, %v1724
  %v1774 = vpack.c.bf16 %v1727, %v1726
  %v1775 = vpack.c.bf16 %v1729, %v1728
  %v1776 = vpack.c.bf16 %v1731, %v1730
  %v1777 = vpack.c.bf16 %v1733, %v1732
  %v1778 = vpack.c.bf16 %v1735, %v1734
  %v1779 = vpack.c.bf16 %v1737, %v1736
  %v1780 = vpack.c.bf16 %v1739, %v1738
  %v1781 = vpack.c.bf16 %v1741, %v1740
  %v1782 = vpack.c.bf16 %v1743, %v1742
  %v1783 = vpack.c.bf16 %v1745, %v1744
  %v1784 = vpack.c.bf16 %v1747, %v1746
  %v1785 = vpack.c.bf16 %v1749, %v1748
  %v1786 = vpack.c.bf16 %v1751, %v1750
  %v1787 = vpack.c.bf16 %v1753, %v1752
  %v1788 = vpack.c.bf16 %v1755, %v1754
  %v1789 = vpack.c.bf16 %v1757, %v1756
  %v1790 = vpack.c.bf16 %v1759, %v1758
  %v1791 = vpack.c.bf16 %v1761, %v1760
  %v1792 = vpack.c.bf16 %v1763, %v1762
  %v1793 = vpack.c.bf16 %v1765, %v1764
  %v1794 = vpack.c.bf16 %v1767, %v1766
  %v1795 = vpack.c.bf16 %v1769, %v1768
  %v1796 = vpack.c.bf16 %v1771, %v1770
  %v1797 = vpack.c.bf16 %v1772, %v1772
  %v1823 = vunpack.c.l.b16 %v1773
  %v1824 = vunpack.c.h.b16 %v1773
  %v1825 = vunpack.c.l.b16 %v1774
  %v1826 = vunpack.c.h.b16 %v1774
  %v1827 = vunpack.c.l.b16 %v1775
  %v1828 = vunpack.c.h.b16 %v1775
  %v1829 = vunpack.c.l.b16 %v1776
  %v1830 = vunpack.c.h.b16 %v1776
  %v1831 = vunpack.c.l.b16 %v1777
  %v1832 = vunpack.c.h.b16 %v1777
  %v1833 = vunpack.c.l.b16 %v1778
  %v1834 = vunpack.c.h.b16 %v1778
  %v1835 = vunpack.c.l.b16 %v1779
  %v1836 = vunpack.c.h.b16 %v1779
  %v1837 = vunpack.c.l.b16 %v1780
  %v1838 = vunpack.c.h.b16 %v1780
  %v1839 = vunpack.c.l.b16 %v1781
  %v1840 = vunpack.c.h.b16 %v1781
  %v1841 = vunpack.c.l.b16 %v1782
  %v1842 = vunpack.c.h.b16 %v1782
  %v1843 = vunpack.c.l.b16 %v1783
  %v1844 = vunpack.c.h.b16 %v1783
  %v1845 = vunpack.c.l.b16 %v1784
  %v1846 = vunpack.c.h.b16 %v1784
  %v1847 = vunpack.c.l.b16 %v1785
  %v1848 = vunpack.c.h.b16 %v1785
  %v1849 = vunpack.c.l.b16 %v1786
  %v1850 = vunpack.c.h.b16 %v1786
  %v1851 = vunpack.c.l.b16 %v1787
  %v1852 = vunpack.c.h.b16 %v1787
  %v1853 = vunpack.c.l.b16 %v1788
  %v1854 = vunpack.c.h.b16 %v1788
  %v1855 = vunpack.c.l.b16 %v1789
  %v1856 = vunpack.c.h.b16 %v1789
  %v1857 = vunpack.c.l.b16 %v1790
  %v1858 = vunpack.c.h.b16 %v1790
  %v1859 = vunpack.c.l.b16 %v1791
  %v1860 = vunpack.c.h.b16 %v1791
  %v1861 = vunpack.c.l.b16 %v1792
  %v1862 = vunpack.c.h.b16 %v1792
  %v1863 = vunpack.c.l.b16 %v1793
  %v1864 = vunpack.c.h.b16 %v1793
  %v1865 = vunpack.c.l.b16 %v1794
  %v1866 = vunpack.c.h.b16 %v1794
  %v1867 = vunpack.c.l.b16 %v1795
  %v1868 = vunpack.c.h.b16 %v1795
  %v1869 = vunpack.c.l.b16 %v1796
  %v1870 = vunpack.c.h.b16 %v1796
  %v1871 = vunpack.c.l.b16 %v1797
  %v1872 = vpack.c.b16 %v1823, %v1823
  %v1873 = vpack.c.b16 %v1824, %v1824
  %v1874 = vpack.c.b16 %v1825, %v1825
  %v1875 = vpack.c.b16 %v1826, %v1826
  %v1876 = vpack.c.b16 %v1827, %v1827
  %v1877 = vpack.c.b16 %v1828, %v1828
  %v1878 = vpack.c.b16 %v1829, %v1829
  %v1879 = vpack.c.b16 %v1830, %v1830
  %v1880 = vpack.c.b16 %v1831, %v1831
  %v1881 = vpack.c.b16 %v1832, %v1832
  %v1882 = vpack.c.b16 %v1833, %v1833
  %v1883 = vpack.c.b16 %v1834, %v1834
  %v1884 = vpack.c.b16 %v1835, %v1835
  %v1885 = vpack.c.b16 %v1836, %v1836
  %v1886 = vpack.c.b16 %v1837, %v1837
  %v1887 = vpack.c.b16 %v1838, %v1838
  %v1888 = vpack.c.b16 %v1839, %v1839
  %v1889 = vpack.c.b16 %v1840, %v1840
  %v1890 = vpack.c.b16 %v1841, %v1841
  %v1891 = vpack.c.b16 %v1842, %v1842
  %v1892 = vpack.c.b16 %v1843, %v1843
  %v1893 = vpack.c.b16 %v1844, %v1844
  %v1894 = vpack.c.b16 %v1845, %v1845
  %v1895 = vpack.c.b16 %v1846, %v1846
  %v1896 = vpack.c.b16 %v1847, %v1847
  %v1897 = vpack.c.b16 %v1848, %v1848
  %v1898 = vpack.c.b16 %v1849, %v1849
  %v1899 = vpack.c.b16 %v1850, %v1850
  %v1900 = vpack.c.b16 %v1851, %v1851
  %v1901 = vpack.c.b16 %v1852, %v1852
  %v1902 = vpack.c.b16 %v1853, %v1853
  %v1903 = vpack.c.b16 %v1854, %v1854
  %v1904 = vpack.c.b16 %v1855, %v1855
  %v1905 = vpack.c.b16 %v1856, %v1856
  %v1906 = vpack.c.b16 %v1857, %v1857
  %v1907 = vpack.c.b16 %v1858, %v1858
  %v1908 = vpack.c.b16 %v1859, %v1859
  %v1909 = vpack.c.b16 %v1860, %v1860
  %v1910 = vpack.c.b16 %v1861, %v1861
  %v1911 = vpack.c.b16 %v1862, %v1862
  %v1912 = vpack.c.b16 %v1863, %v1863
  %v1913 = vpack.c.b16 %v1864, %v1864
  %v1914 = vpack.c.b16 %v1865, %v1865
  %v1915 = vpack.c.b16 %v1866, %v1866
  %v1916 = vpack.c.b16 %v1867, %v1867
  %v1917 = vpack.c.b16 %v1868, %v1868
  %v1918 = vpack.c.b16 %v1869, %v1869
  %v1919 = vpack.c.b16 %v1870, %v1870
  %v1920 = vpack.c.b16 %v1871, %v1871
  %vm1970 = vcmask 44032
  %1971 = vst.msk [vmem:[%s3] sm:$0xf] %vm1970, %v1872
  %1972 = vst.msk [vmem:[%s3 + $0x4] sm:$0xf] %vm1970, %v1873
  %1973 = vst.msk [vmem:[%s3 + $0x8] sm:$0xf] %vm1970, %v1874
  %1974 = vst.msk [vmem:[%s3 + $0xc] sm:$0xf] %vm1970, %v1875
  %1975 = vst.msk [vmem:[%s3 + $0x10] sm:$0xf] %vm1970, %v1876
  %1976 = vst.msk [vmem:[%s3 + $0x14] sm:$0xf] %vm1970, %v1877
  %1977 = vst.msk [vmem:[%s3 + $0x18] sm:$0xf] %vm1970, %v1878
  %1978 = vst.msk [vmem:[%s3 + $0x1c] sm:$0xf] %vm1970, %v1879
  %1979 = vst.msk [vmem:[%s3 + $0x20] sm:$0xf] %vm1970, %v1880
  %1980 = vst.msk [vmem:[%s3 + $0x24] sm:$0xf] %vm1970, %v1881
  %1981 = vst.msk [vmem:[%s3 + $0x28] sm:$0xf] %vm1970, %v1882
  %1982 = vst.msk [vmem:[%s3 + $0x2c] sm:$0xf] %vm1970, %v1883
  %1983 = vst.msk [vmem:[%s3 + $0x30] sm:$0xf] %vm1970, %v1884
  %1984 = vst.msk [vmem:[%s3 + $0x34] sm:$0xf] %vm1970, %v1885
  %1985 = vst.msk [vmem:[%s3 + $0x38] sm:$0xf] %vm1970, %v1886
  %1986 = vst.msk [vmem:[%s3 + $0x3c] sm:$0xf] %vm1970, %v1887
  %1987 = vst.msk [vmem:[%s3 + $0x40] sm:$0xf] %vm1970, %v1888
  %1988 = vst.msk [vmem:[%s3 + $0x44] sm:$0xf] %vm1970, %v1889
  %1989 = vst.msk [vmem:[%s3 + $0x48] sm:$0xf] %vm1970, %v1890
  %1990 = vst.msk [vmem:[%s3 + $0x4c] sm:$0xf] %vm1970, %v1891
  %1991 = vst.msk [vmem:[%s3 + $0x50] sm:$0xf] %vm1970, %v1892
  %1992 = vst.msk [vmem:[%s3 + $0x54] sm:$0xf] %vm1970, %v1893
  %1993 = vst.msk [vmem:[%s3 + $0x58] sm:$0xf] %vm1970, %v1894
  %1994 = vst.msk [vmem:[%s3 + $0x5c] sm:$0xf] %vm1970, %v1895
  %1995 = vst.msk [vmem:[%s3 + $0x60] sm:$0xf] %vm1970, %v1896
  %1996 = vst.msk [vmem:[%s3 + $0x64] sm:$0xf] %vm1970, %v1897
  %1997 = vst.msk [vmem:[%s3 + $0x68] sm:$0xf] %vm1970, %v1898
  %1998 = vst.msk [vmem:[%s3 + $0x6c] sm:$0xf] %vm1970, %v1899
  %1999 = vst.msk [vmem:[%s3 + $0x70] sm:$0xf] %vm1970, %v1900
  %2000 = vst.msk [vmem:[%s3 + $0x74] sm:$0xf] %vm1970, %v1901
  %2001 = vst.msk [vmem:[%s3 + $0x78] sm:$0xf] %vm1970, %v1902
  %2002 = vst.msk [vmem:[%s3 + $0x7c] sm:$0xf] %vm1970, %v1903
  %2003 = vst.msk [vmem:[%s3 + $0x80] sm:$0xf] %vm1970, %v1904
  %2004 = vst.msk [vmem:[%s3 + $0x84] sm:$0xf] %vm1970, %v1905
  %2005 = vst.msk [vmem:[%s3 + $0x88] sm:$0xf] %vm1970, %v1906
  %2006 = vst.msk [vmem:[%s3 + $0x8c] sm:$0xf] %vm1970, %v1907
  %2007 = vst.msk [vmem:[%s3 + $0x90] sm:$0xf] %vm1970, %v1908
  %2008 = vst.msk [vmem:[%s3 + $0x94] sm:$0xf] %vm1970, %v1909
  %2009 = vst.msk [vmem:[%s3 + $0x98] sm:$0xf] %vm1970, %v1910
  %2010 = vst.msk [vmem:[%s3 + $0x9c] sm:$0xf] %vm1970, %v1911
  %2011 = vst.msk [vmem:[%s3 + $0xa0] sm:$0xf] %vm1970, %v1912
  %2012 = vst.msk [vmem:[%s3 + $0xa4] sm:$0xf] %vm1970, %v1913
  %2013 = vst.msk [vmem:[%s3 + $0xa8] sm:$0xf] %vm1970, %v1914
  %2014 = vst.msk [vmem:[%s3 + $0xac] sm:$0xf] %vm1970, %v1915
  %2015 = vst.msk [vmem:[%s3 + $0xb0] sm:$0xf] %vm1970, %v1916
  %2016 = vst.msk [vmem:[%s3 + $0xb4] sm:$0xf] %vm1970, %v1917
  %2017 = vst.msk [vmem:[%s3 + $0xb8] sm:$0xf] %vm1970, %v1918
  %2018 = vst.msk [vmem:[%s3 + $0xbc] sm:$0xf] %vm1970, %v1919
  %2019 = vst.msk [vmem:[%s3 + $0xc0] sm:$0xf] %vm1970, %v1920
  // Predicated region
  $region14: #{forward.2} parent=0 // pred_check
    _
  $region15: #{forward.2} parent=0 // pred_check_branch
    %2021 = sbr.rel (0) target = $region17
  $region16: #{forward.2} parent=0 // pred_region
    _
  $region17: #{forward.2} parent=0 // pred_fallthru
    _
  // Predicated region
  $region18: #{forward.2} parent=0 // pred_check
    _
  $region19: #{forward.2} parent=0 // pred_check_branch
    %2023 = sbr.rel (0) target = $region21
  $region20: #{forward.2} parent=0 // pred_region
    _
  $region21: #{forward.2} parent=0 // pred_fallthru
    _

// kernel: tile.8
$region0: #{tile.8}
  #allocation0 [shape = 's32[1]{0}', space=sflag, size = 0x4, scoped, tag = 'scoped memory for tile.8']
  %s0 = inlined_call_operand.vmem [shape: f32[16], index: 0, kind: input, shape index: {}]
  %s1 = inlined_call_operand.vmem [shape: f32[25,16], index: 1, kind: output, shape index: {}]
  // Predicated region
  $region2: #{tile.8} parent=0 // pred_check
    _
  $region3: #{tile.8} parent=0 // pred_check_branch
    %3 = sbr.rel (0) target = $region5
  $region4: #{tile.8} parent=0 // pred_region
    _
  $region5: #{tile.8} parent=0 // pred_fallthru
    _
  %v4 = vld [vmem:[%s0] ss:$0 sm:$0xff]
  %5 = vst [vmem:[%s1] sm:$0xff] %v4
  %s6 = scalar_lea.vmem %s1, 8
  %7 = vst [vmem:[%s6] sm:$0xff] %v4
  %s8 = scalar_lea.vmem %s1, 16
  %9 = vst [vmem:[%s8] sm:$0xff] %v4
  %s10 = scalar_lea.vmem %s1, 24
  %11 = vst [vmem:[%s10] sm:$0xff] %v4

// kernel: tile.9
$region0: #{tile.9}
  %s0 = inlined_call_operand.vmem [shape: f32[25,16], index: 0, kind: input, shape index: {}]
  %s1 = inlined_call_operand.vmem [shape: f32[1,400], index: 1, kind: output, shape index: {}]
  $region1: #{tile.9} parent=0
    #allocation0 [shape = 'u8[16384]{0}', space=vmem, size = 0x4000, scoped, tag = 'scoped mem for output reshape']
    %v2 = vld [vmem:[%s0] ss:$8 sm:$0xf]
    %vm3 = vcmask 130048
    %4 = vst.msk [vmem:[#allocation0] ss:$8 sm:$0xf] %vm3, %v2
    %s5 = scalar_lea.vmem %s0, 7
    %v6 = vld [vmem:[%s5] ss:$8 sm:$0x7]
    %7 = vrot.lane.b32.xlu0 %v6, 112
    %v8 = vpop.permute.xlu0 %7
    %vm9 = vcmask 1048448
    %10 = vst.msk [vmem:[#allocation0] ss:$8 sm:$0x7] %vm9, %v8
    %s11 = scalar_lea.vmem %s0, 6
    %v12 = vld [vmem:[%s11] ss:$8 sm:$0x7]
    %13 = vrot.lane.b32.xlu0 %v12, 96
    %v14 = vpop.permute.xlu0 %13
    %vm15 = vcmask 917248
    %16 = vst.msk [vmem:[#allocation0] ss:$8 sm:$0x7] %vm15, %v14
    %s17 = scalar_lea.vmem %s0, 5
    %v18 = vld [vmem:[%s17] ss:$8 sm:$0x7]
    %19 = vrot.lane.b32.xlu0 %v18, 80
    %v20 = vpop.permute.xlu0 %19
    %vm21 = vcmask 786048
    %22 = vst.msk [vmem:[#allocation0] ss:$8 sm:$0x7] %vm21, %v20
    %s23 = scalar_lea.vmem %s0, 4
    %v24 = vld [vmem:[%s23] ss:$8 sm:$0x7]
    %25 = vrot.lane.b32.xlu0 %v24, 64
    %v26 = vpop.permute.xlu0 %25
    %vm27 = vcmask 654848
    %28 = vst.msk [vmem:[#allocation0] ss:$8 sm:$0x7] %vm27, %v26
    %s29 = scalar_lea.vmem %s0, 3
    %v30 = vld [vmem:[%s29] ss:$8 sm:$0x7]
    %31 = vrot.lane.b32.xlu0 %v30, 48
    %v32 = vpop.permute.xlu0 %31
    %vm33 = vcmask 523648
    %34 = vst.msk [vmem:[#allocation0] ss:$8 sm:$0x7] %vm33, %v32
    %s35 = scalar_lea.vmem %s0, 2
    %v36 = vld [vmem:[%s35] ss:$8 sm:$0x7]
    %37 = vrot.lane.b32.xlu0 %v36, 32
    %v38 = vpop.permute.xlu0 %37
    %vm39 = vcmask 392448
    %40 = vst.msk [vmem:[#allocation0] ss:$8 sm:$0x7] %vm39, %v38
    %s41 = scalar_lea.vmem %s0, 1
    %v42 = vld [vmem:[%s41] ss:$8 sm:$0x7]
    %43 = vrot.lane.b32.xlu0 %v42, 16
    %v44 = vpop.permute.xlu0 %43
    %vm45 = vcmask 261248
    %46 = vst.msk [vmem:[#allocation0] ss:$8 sm:$0x7] %vm45, %v44
    %s48 = sshllo.u32 0, 1
    %v50 = vld [vmem:[#allocation0] sm:%s48]
    %s51 = sshllo.u32 0, 1
    %52 = vst [vmem:[%s1] sm:%s51] %v50
    %s53 = scalar_lea.vmem [#allocation0], 8
    %v54 = vld [vmem:[%s53] sm:%s48]
    %s55 = sshllo.u32 0, 1
    %s56 = scalar_lea.vmem %s1, 1
    %57 = vst [vmem:[%s56] sm:%s55] %v54
    %s58 = scalar_lea.vmem [#allocation0], 16
    %v59 = vld [vmem:[%s58] sm:%s48]
    %s60 = sshllo.u32 0, 1
    %s61 = smul.addr 1, 2
    %s62 = scalar_lea.vmem %s1, %s61
    %63 = vst [vmem:[%s62] sm:%s60] %v59
    %s64 = scalar_lea.vmem [#allocation0], 24
    %v65 = vld [vmem:[%s64] sm:%s48]
    %s66 = sshllo.u32 0, 1
    %s67 = smul.addr 1, 3
    %s68 = scalar_lea.vmem %s1, %s67
    %69 = vst [vmem:[%s68] sm:%s66] %v65

// kernel: forward.3
$region0: #{forward.3}
  #allocation0 [shape = 'u32[]', space=smem, size = 0x4, offset = 0x4, fixed_abs, tag = 'smem constant byte address 0x4 - core index']
  #allocation1 [shape = 'u32[144,128]{1,0:T(1,128)}', space=vmem, size = 0x12000, scoped, tag = 'internal scratch']
  #allocation2 [shape = 'f32[8,400]{1,0:T(8,128)}', space=vmem, size = 0x4000, scoped, tag = 'scratch operand']
  %s0 = inlined_call_operand.vmem [shape: bf16[4,8,3750], index: 0, kind: input, shape index: {}]
  %s1 = inlined_call_operand.vmem [shape: bf16[3750,400], index: 1, kind: input, shape index: {}]
  %s2 = inlined_call_operand.vmem [shape: f32[1,400], index: 2, kind: input, shape index: {}]
  %s3 = inlined_call_operand.vmem [shape: bf16[400,120], index: 3, kind: input, shape index: {}]
  %s4 = inlined_call_operand.vmem [shape: f32[1,120], index: 4, kind: input, shape index: {}]
  %s5 = inlined_call_operand.vmem [shape: bf16[120,84], index: 5, kind: input, shape index: {}]
  %s6 = inlined_call_operand.vmem [shape: f32[1,84], index: 6, kind: input, shape index: {}]
  %s7 = inlined_call_operand.vmem [shape: bf16[84,3], index: 7, kind: input, shape index: {}]
  %s8 = inlined_call_operand.vmem [shape: f32[1,3], index: 8, kind: input, shape index: {}]
  %s9 = inlined_call_operand.vmem [shape: f32[8,3], index: 9, kind: output, shape index: {}]
  %s10 = sld [smem:[#allocation0]]
  $region81: #{forward.3} parent=0
    _
  %s12 = ssub.s32 1, %s10
  %s13 = scalar_select 0, %s12, %s10
  loop: start=0, step=1, limit=6
  $region2: #{forward.3} parent=0 // loop_pre_header
    _
  $region3: #{forward.3} parent=0 // loop_header
    %s15 = sphi 0, %s19
    %p16 = scmp.ge.s32.totalorder %s15, 6
    %s22 = sphi 0, %s34
    %s23 = sphi 0, %s30
    %s24 = sphi 0, %s22
    %s25 = sphi 0, %s23
    %s26 = sphi 0, %s24
    %s27 = sphi 0, %s25
    %s39 = sphi 0, %s41
    %s42 = sphi 0, %s39
    %s43 = sphi 0, %s42
    %s59 = sphi 0, %s43
    %s63 = sphi 0, %s63
    %s65 = sphi 0, %s63
    %s66 = sphi 0, %s65
    %s80 = sphi 0, %s66
    %s84 = sphi 0, %s84
    %s86 = sphi 0, %s84
    %s87 = sphi 0, %s86
    %s101 = sphi 0, %s87
    %s105 = sphi 0, %s105
    %s107 = sphi 0, %s105
    %s108 = sphi 0, %s107
    %s122 = sphi 0, %s108
    %s126 = sphi 0, %s126
    %s128 = sphi 0, %s126
    %s129 = sphi 0, %s128
    %s143 = sphi 0, %s129
    %s147 = sphi 0, %s147
    %s149 = sphi 0, %s147
    %s150 = sphi 0, %s149
    %s164 = sphi 0, %s150
    %s168 = sphi 0, %s168
    %s170 = sphi 0, %s168
    %s171 = sphi 0, %s170
    %s185 = sphi 0, %s171
    %s189 = sphi 0, %s189
    %s191 = sphi 0, %s189
    %s192 = sphi 0, %s191
    %s206 = sphi 0, %s192
    %s210 = sphi 0, %s210
    %s212 = sphi 0, %s210
    %s213 = sphi 0, %s212
    %s227 = sphi 0, %s213
    %s233 = sphi 0, %s235
    %s236 = sphi 0, %s233
    %s237 = sphi 0, %s236
    %s253 = sphi 0, %s237
  $region4: #{forward.3} parent=0 // loop_header_branch
    %18 = sbr.rel (%p16) target = $region8
  $region5: #{forward.3} parent=0 // loop_body
    %s20 = ssub.s32 %s15, 1
    %s21 = ssub.s32 %s15, 2
    %s28 = sadd.s32 1, %s23
    %p29 = scmp.ge.s32.totalorder %s28, 4
    %s30 = scalar_select %p29, 0, %s28
    %s31 = sadd.s32 1, %s22
    %s32 = scalar_select %p29, %s31, %s22
    %p33 = scmp.ge.s32.totalorder %s32, 1
    %s34 = scalar_select %p33, 0, %s32
    %s35 = ssub.s32 %s23, %s30
    %s36 = ssub.s32 %s22, %s34
    %s37 = sor.u32 %s35, %s36
    %p38 = scmp.eq.s32.totalorder %s37, 0
    %s40 = sadd.s32 %s39, 1
    %s41 = scalar_select %p38, %s39, %s40
    %p44 = pneg %p38
    %p45 = scmp.eq.s32.totalorder %s15, 3
    %p46 = por %p44, %p45
    %p47 = scmp.ne.s32.totalorder %s39, %s42
    %p48 = scmp.eq.s32.totalorder %s15, 0
    %p49 = por %p47, %p48
    %p50 = scmp.ne.s32.totalorder %s39, %s42
    %p51 = scmp.eq.s32.totalorder %s20, 3
    %p52 = por %p50, %p51
    %p53 = scmp.ne.s32.totalorder %s42, %s43
    %p54 = scmp.eq.s32.totalorder %s20, 0
    %p55 = por %p53, %p54
    %p56 = scmp.ne.s32.totalorder %s42, %s43
    %p57 = scmp.eq.s32.totalorder %s21, 3
    %p58 = por %p56, %p57
    %p60 = scmp.ne.s32.totalorder %s43, %s59
    %p61 = scmp.eq.s32.totalorder %s21, 0
    %p62 = por %p60, %p61
    %s64 = sadd.s32 %s63, 1
    %p67 = scmp.eq.s32.totalorder %s15, 3
    %p68 = scmp.ne.s32.totalorder %s63, %s65
    %p69 = scmp.eq.s32.totalorder %s15, 0
    %p70 = por %p68, %p69
    %p71 = scmp.ne.s32.totalorder %s63, %s65
    %p72 = scmp.eq.s32.totalorder %s20, 3
    %p73 = por %p71, %p72
    %p74 = scmp.ne.s32.totalorder %s65, %s66
    %p75 = scmp.eq.s32.totalorder %s20, 0
    %p76 = por %p74, %p75
    %p77 = scmp.ne.s32.totalorder %s65, %s66
    %p78 = scmp.eq.s32.totalorder %s21, 3
    %p79 = por %p77, %p78
    %p81 = scmp.ne.s32.totalorder %s66, %s80
    %p82 = scmp.eq.s32.totalorder %s21, 0
    %p83 = por %p81, %p82
    %s85 = sadd.s32 %s84, 1
    %p88 = scmp.eq.s32.totalorder %s15, 3
    %p89 = scmp.ne.s32.totalorder %s84, %s86
    %p90 = scmp.eq.s32.totalorder %s15, 0
    %p91 = por %p89, %p90
    %p92 = scmp.ne.s32.totalorder %s84, %s86
    %p93 = scmp.eq.s32.totalorder %s20, 3
    %p94 = por %p92, %p93
    %p95 = scmp.ne.s32.totalorder %s86, %s87
    %p96 = scmp.eq.s32.totalorder %s20, 0
    %p97 = por %p95, %p96
    %p98 = scmp.ne.s32.totalorder %s86, %s87
    %p99 = scmp.eq.s32.totalorder %s21, 3
    %p100 = por %p98, %p99
    %p102 = scmp.ne.s32.totalorder %s87, %s101
    %p103 = scmp.eq.s32.totalorder %s21, 0
    %p104 = por %p102, %p103
    %s106 = sadd.s32 %s105, 1
    %p109 = scmp.eq.s32.totalorder %s15, 3
    %p110 = scmp.ne.s32.totalorder %s105, %s107
    %p111 = scmp.eq.s32.totalorder %s15, 0
    %p112 = por %p110, %p111
    %p113 = scmp.ne.s32.totalorder %s105, %s107
    %p114 = scmp.eq.s32.totalorder %s20, 3
    %p115 = por %p113, %p114
    %p116 = scmp.ne.s32.totalorder %s107, %s108
    %p117 = scmp.eq.s32.totalorder %s20, 0
    %p118 = por %p116, %p117
    %p119 = scmp.ne.s32.totalorder %s107, %s108
    %p120 = scmp.eq.s32.totalorder %s21, 3
    %p121 = por %p119, %p120
    %p123 = scmp.ne.s32.totalorder %s108, %s122
    %p124 = scmp.eq.s32.totalorder %s21, 0
    %p125 = por %p123, %p124
    %s127 = sadd.s32 %s126, 1
    %p130 = scmp.eq.s32.totalorder %s15, 3
    %p131 = scmp.ne.s32.totalorder %s126, %s128
    %p132 = scmp.eq.s32.totalorder %s15, 0
    %p133 = por %p131, %p132
    %p134 = scmp.ne.s32.totalorder %s126, %s128
    %p135 = scmp.eq.s32.totalorder %s20, 3
    %p136 = por %p134, %p135
    %p137 = scmp.ne.s32.totalorder %s128, %s129
    %p138 = scmp.eq.s32.totalorder %s20, 0
    %p139 = por %p137, %p138
    %p140 = scmp.ne.s32.totalorder %s128, %s129
    %p141 = scmp.eq.s32.totalorder %s21, 3
    %p142 = por %p140, %p141
    %p144 = scmp.ne.s32.totalorder %s129, %s143
    %p145 = scmp.eq.s32.totalorder %s21, 0
    %p146 = por %p144, %p145
    %s148 = sadd.s32 %s147, 1
    %p151 = scmp.eq.s32.totalorder %s15, 3
    %p152 = scmp.ne.s32.totalorder %s147, %s149
    %p153 = scmp.eq.s32.totalorder %s15, 0
    %p154 = por %p152, %p153
    %p155 = scmp.ne.s32.totalorder %s147, %s149
    %p156 = scmp.eq.s32.totalorder %s20, 3
    %p157 = por %p155, %p156
    %p158 = scmp.ne.s32.totalorder %s149, %s150
    %p159 = scmp.eq.s32.totalorder %s20, 0
    %p160 = por %p158, %p159
    %p161 = scmp.ne.s32.totalorder %s149, %s150
    %p162 = scmp.eq.s32.totalorder %s21, 3
    %p163 = por %p161, %p162
    %p165 = scmp.ne.s32.totalorder %s150, %s164
    %p166 = scmp.eq.s32.totalorder %s21, 0
    %p167 = por %p165, %p166
    %s169 = sadd.s32 %s168, 1
    %p172 = scmp.eq.s32.totalorder %s15, 3
    %p173 = scmp.ne.s32.totalorder %s168, %s170
    %p174 = scmp.eq.s32.totalorder %s15, 0
    %p175 = por %p173, %p174
    %p176 = scmp.ne.s32.totalorder %s168, %s170
    %p177 = scmp.eq.s32.totalorder %s20, 3
    %p178 = por %p176, %p177
    %p179 = scmp.ne.s32.totalorder %s170, %s171
    %p180 = scmp.eq.s32.totalorder %s20, 0
    %p181 = por %p179, %p180
    %p182 = scmp.ne.s32.totalorder %s170, %s171
    %p183 = scmp.eq.s32.totalorder %s21, 3
    %p184 = por %p182, %p183
    %p186 = scmp.ne.s32.totalorder %s171, %s185
    %p187 = scmp.eq.s32.totalorder %s21, 0
    %p188 = por %p186, %p187
    %s190 = sadd.s32 %s189, 1
    %p193 = scmp.eq.s32.totalorder %s15, 3
    %p194 = scmp.ne.s32.totalorder %s189, %s191
    %p195 = scmp.eq.s32.totalorder %s15, 0
    %p196 = por %p194, %p195
    %p197 = scmp.ne.s32.totalorder %s189, %s191
    %p198 = scmp.eq.s32.totalorder %s20, 3
    %p199 = por %p197, %p198
    %p200 = scmp.ne.s32.totalorder %s191, %s192
    %p201 = scmp.eq.s32.totalorder %s20, 0
    %p202 = por %p200, %p201
    %p203 = scmp.ne.s32.totalorder %s191, %s192
    %p204 = scmp.eq.s32.totalorder %s21, 3
    %p205 = por %p203, %p204
    %p207 = scmp.ne.s32.totalorder %s192, %s206
    %p208 = scmp.eq.s32.totalorder %s21, 0
    %p209 = por %p207, %p208
    %s211 = sadd.s32 %s210, 1
    %p214 = scmp.eq.s32.totalorder %s15, 3
    %p215 = scmp.ne.s32.totalorder %s210, %s212
    %p216 = scmp.eq.s32.totalorder %s15, 0
    %p217 = por %p215, %p216
    %p218 = scmp.ne.s32.totalorder %s210, %s212
    %p219 = scmp.eq.s32.totalorder %s20, 3
    %p220 = por %p218, %p219
    %p221 = scmp.ne.s32.totalorder %s212, %s213
    %p222 = scmp.eq.s32.totalorder %s20, 0
    %p223 = por %p221, %p222
    %p224 = scmp.ne.s32.totalorder %s212, %s213
    %p225 = scmp.eq.s32.totalorder %s21, 3
    %p226 = por %p224, %p225
    %p228 = scmp.ne.s32.totalorder %s213, %s227
    %p229 = scmp.eq.s32.totalorder %s21, 0
    %p230 = por %p228, %p229
    %s231 = ssub.s32 %s22, %s34
    %p232 = scmp.eq.s32.totalorder %s231, 0
    %s234 = sadd.s32 %s233, 1
    %s235 = scalar_select %p232, %s233, %s234
    %p238 = pneg %p232
    %p239 = scmp.eq.s32.totalorder %s15, 3
    %p240 = por %p238, %p239
    %p241 = scmp.ne.s32.totalorder %s233, %s236
    %p242 = scmp.eq.s32.totalorder %s15, 0
    %p243 = por %p241, %p242
    %p244 = scmp.ne.s32.totalorder %s233, %s236
    %p245 = scmp.eq.s32.totalorder %s20, 3
    %p246 = por %p244, %p245
    %p247 = scmp.ne.s32.totalorder %s236, %s237
    %p248 = scmp.eq.s32.totalorder %s20, 0
    %p249 = por %p247, %p248
    %p250 = scmp.ne.s32.totalorder %s236, %s237
    %p251 = scmp.eq.s32.totalorder %s21, 3
    %p252 = por %p250, %p251
    %p254 = scmp.ne.s32.totalorder %s237, %s253
    %p255 = scmp.eq.s32.totalorder %s21, 0
    %p256 = por %p254, %p255
    %p257 = scmp.le.s32.totalorder 1, %s15
    %p258 = scmp.lt.s32.totalorder %s15, 5
    %p259 = pnand %p257, %p258
    %p260 = pneg %p259
    // Predicated region
    $region9: #{forward.3} parent=5 // pred_check
      _
    $region10: #{forward.3} parent=5 // pred_check_branch
      %262 = sbr.rel (%p259) target = $region12
    $region11: #{forward.3} parent=5 // pred_region
      %s263 = ssub.s32 %s15, 1
      // Predicated region
      $region13: #{forward.3} parent=11 // pred_check
        %p264 = pneg %p76
      $region14: #{forward.3} parent=11 // pred_check_branch
        %266 = sbr.rel (%p264) target = $region16
      $region15: #{forward.3} parent=11 // pred_region
        _
      $region16: #{forward.3} parent=11 // pred_fallthru
        _
      // Predicated region
      $region17: #{forward.3} parent=11 // pred_check
        %p267 = pneg %p97
      $region18: #{forward.3} parent=11 // pred_check_branch
        %269 = sbr.rel (%p267) target = $region20
      $region19: #{forward.3} parent=11 // pred_region
        _
      $region20: #{forward.3} parent=11 // pred_fallthru
        _
      // Predicated region
      $region21: #{forward.3} parent=11 // pred_check
        %p270 = pneg %p118
      $region22: #{forward.3} parent=11 // pred_check_branch
        %272 = sbr.rel (%p270) target = $region24
      $region23: #{forward.3} parent=11 // pred_region
        _
      $region24: #{forward.3} parent=11 // pred_fallthru
        _
      // Predicated region
      $region25: #{forward.3} parent=11 // pred_check
        %p273 = pneg %p139
      $region26: #{forward.3} parent=11 // pred_check_branch
        %275 = sbr.rel (%p273) target = $region28
      $region27: #{forward.3} parent=11 // pred_region
        _
      $region28: #{forward.3} parent=11 // pred_fallthru
        _
      // Predicated region
      $region29: #{forward.3} parent=11 // pred_check
        %p276 = pneg %p160
      $region30: #{forward.3} parent=11 // pred_check_branch
        %278 = sbr.rel (%p276) target = $region32
      $region31: #{forward.3} parent=11 // pred_region
        _
      $region32: #{forward.3} parent=11 // pred_fallthru
        _
      // Predicated region
      $region33: #{forward.3} parent=11 // pred_check
        %p279 = pneg %p181
      $region34: #{forward.3} parent=11 // pred_check_branch
        %281 = sbr.rel (%p279) target = $region36
      $region35: #{forward.3} parent=11 // pred_region
        _
      $region36: #{forward.3} parent=11 // pred_fallthru
        _
      // Predicated region
      $region37: #{forward.3} parent=11 // pred_check
        %p282 = pneg %p202
      $region38: #{forward.3} parent=11 // pred_check_branch
        %284 = sbr.rel (%p282) target = $region40
      $region39: #{forward.3} parent=11 // pred_region
        _
      $region40: #{forward.3} parent=11 // pred_fallthru
        _
      // Predicated region
      $region41: #{forward.3} parent=11 // pred_check
        %p285 = pneg %p223
      $region42: #{forward.3} parent=11 // pred_check_branch
        %287 = sbr.rel (%p285) target = $region44
      $region43: #{forward.3} parent=11 // pred_region
        _
      $region44: #{forward.3} parent=11 // pred_fallthru
        _
    $region12: #{forward.3} parent=5 // pred_fallthru
      _
    %p288 = scmp.lt.s32.totalorder %s15, 4
    // Predicated region
    $region45: #{forward.3} parent=5 // pred_check
      %p289 = pneg %p288
    $region46: #{forward.3} parent=5 // pred_check_branch
      %291 = sbr.rel (%p289) target = $region48
    $region47: #{forward.3} parent=5 // pred_region
      // Predicated region
      $region49: #{forward.3} parent=47 // pred_check
        %p292 = pneg %p49
      $region50: #{forward.3} parent=47 // pred_check_branch
        %294 = sbr.rel (%p292) target = $region52
      $region51: #{forward.3} parent=47 // pred_region
        %p295 = scmp.lt.s32.totalorder %s23, 3
        %s296 = scalar_select %p295, %s23, 3
        %p297 = scmp.lt.s32.totalorder %s22, 0
        %s298 = scalar_select %p297, %s22, 0
        %s299 = smul.addr %s298, 30
        %s300 = smul.addr %s296, 30
        %s301 = sadd.s32 %s299, %s300
        %s302 = smul.addr %s301, 4
        %s303 = scalar_lea.vmem %s0, %s302
      $region52: #{forward.3} parent=47 // pred_fallthru
        _
    $region48: #{forward.3} parent=5 // pred_fallthru
      _
    %p304 = scmp.le.s32.totalorder 1, %s15
    %p305 = scmp.lt.s32.totalorder %s15, 5
    %p306 = pnand %p304, %p305
    %p307 = pneg %p306
    // Predicated region
    $region53: #{forward.3} parent=5 // pred_check
      _
    $region54: #{forward.3} parent=5 // pred_check_branch
      %309 = sbr.rel (%p306) target = $region56
    $region55: #{forward.3} parent=5 // pred_region
      %s310 = ssub.s32 %s15, 1
      %p311 = scmp.lt.s32.totalorder %s25, 3
      %s312 = scalar_select %p311, %s25, 3
      %p313 = scmp.lt.s32.totalorder %s24, 0
      %s314 = scalar_select %p313, %s24, 0
      %s315 = smul.addr %s314, 30
      %s316 = smul.addr %s312, 30
      %s317 = sadd.s32 %s315, %s316
      %s318 = smul.addr %s317, 4
      %s319 = scalar_lea.vmem %s0, %s318
      %p320 = pneg %p55
      %p321 = pneg %p52
      %p322 = pneg %p76
      %p323 = pneg %p73
      %p324 = pneg %p97
      %p325 = pneg %p94
      %p326 = pneg %p118
      %p327 = pneg %p115
      %p328 = pneg %p139
      %p329 = pneg %p136
      %p330 = pneg %p160
      %p331 = pneg %p157
      %p332 = pneg %p181
      %p333 = pneg %p178
      %p334 = pneg %p202
      %p335 = pneg %p199
      %p336 = pneg %p223
      %p337 = pneg %p220
      %p338 = pneg %p249
      %p339 = pneg %p246
      %p340 = scmp.lt.s32.totalorder %s24, 0
      %s341 = scalar_select %p340, %s24, 0
      %s342 = smul.addr %s341, 8
      %s343 = scalar_lea.vmem %s9, %s342
      %p344 = scmp.lt.s32.totalorder %s25, 3
      %s345 = scalar_select %p344, %s25, 3
      %p346 = scmp.lt.s32.totalorder %s24, 0
      %s347 = scalar_select %p346, %s24, 0
      %s348 = smul.addr %s347, 30
      %s349 = smul.addr %s345, 30
      %s350 = sadd.s32 %s348, %s349
      %s351 = smul.addr %s350, 4
      %s352 = scalar_lea.vmem %s0, %s351
      %p353 = scmp.lt.s32.totalorder %s24, 0
      %s354 = scalar_select %p353, %s24, 0
      %s355 = smul.addr %s354, 8
      %s356 = scalar_lea.vmem %s9, %s355
      %v358 = vld [vmem:[%s352] sm:$0xff]
      %v359 = vld [vmem:[%s352 + $0x8] sm:$0xff]
      %v360 = vld [vmem:[%s352 + $0x10] sm:$0xff]
      %v361 = vld [vmem:[%s352 + $0x18] sm:$0xff]
      %v362 = vld [vmem:[%s352 + $0x20] sm:$0xff]
      %v363 = vld [vmem:[%s352 + $0x28] sm:$0xff]
      %v364 = vld [vmem:[%s352 + $0x30] sm:$0xff]
      %v365 = vld [vmem:[%s352 + $0x38] sm:$0xff]
      %v366 = vld [vmem:[%s352 + $0x40] sm:$0xff]
      %v367 = vld [vmem:[%s352 + $0x48] sm:$0xff]
      %v368 = vld [vmem:[%s352 + $0x50] sm:$0xff]
      %v369 = vld [vmem:[%s352 + $0x58] sm:$0xff]
      %v370 = vld [vmem:[%s352 + $0x60] sm:$0xff]
      %v371 = vld [vmem:[%s352 + $0x68] sm:$0xff]
      %v372 = vld [vmem:[%s352 + $0x70] sm:$0xff]
      %v373 = vld [vmem:[%s1] sm:$0xff]
      %v374 = vld [vmem:[%s1 + $0x8] sm:$0xff]
      %v375 = vld [vmem:[%s1 + $0x10] sm:$0xff]
      %v376 = vld [vmem:[%s1 + $0x18] sm:$0xff]
      %v377 = vld [vmem:[%s1 + $0x20] sm:$0xff]
      %v378 = vld [vmem:[%s1 + $0x28] sm:$0xff]
      %v379 = vld [vmem:[%s1 + $0x30] sm:$0xff]
      %v380 = vld [vmem:[%s1 + $0x38] sm:$0xff]
      %v381 = vld [vmem:[%s1 + $0x40] sm:$0xff]
      %v382 = vld [vmem:[%s1 + $0x48] sm:$0xff]
      %v383 = vld [vmem:[%s1 + $0x50] sm:$0xff]
      %v384 = vld [vmem:[%s1 + $0x58] sm:$0xff]
      %v385 = vld [vmem:[%s1 + $0x60] sm:$0xff]
      %v386 = vld [vmem:[%s1 + $0x68] sm:$0xff]
      %v387 = vld [vmem:[%s1 + $0x70] sm:$0xff]
      %v388 = vld [vmem:[%s1 + $0x78] sm:$0xff]
      %v389 = vld [vmem:[%s1 + $0x80] sm:$0xff]
      %v390 = vld [vmem:[%s1 + $0x88] sm:$0xff]
      %v391 = vld [vmem:[%s1 + $0x90] sm:$0xff]
      %v392 = vld [vmem:[%s1 + $0x98] sm:$0xff]
      %v393 = vld [vmem:[%s1 + $0xa0] sm:$0xff]
      %v394 = vld [vmem:[%s1 + $0xa8] sm:$0xff]
      %v395 = vld [vmem:[%s1 + $0xb0] sm:$0xff]
      %v396 = vld [vmem:[%s1 + $0xb8] sm:$0xff]
      %v397 = vld [vmem:[%s1 + $0xc0] sm:$0xff]
      %v398 = vld [vmem:[%s1 + $0xc8] sm:$0xff]
      %v399 = vld [vmem:[%s1 + $0xd0] sm:$0xff]
      %v400 = vld [vmem:[%s1 + $0xd8] sm:$0xff]
      %v401 = vld [vmem:[%s1 + $0xe0] sm:$0xff]
      %v402 = vld [vmem:[%s1 + $0xe8] sm:$0xff]
      %v403 = vld [vmem:[%s1 + $0xf0] sm:$0xff]
      %v404 = vld [vmem:[%s1 + $0xf8] sm:$0xff]
      %v405 = vld [vmem:[%s1 + $0x100] sm:$0xff]
      %v406 = vld [vmem:[%s1 + $0x108] sm:$0xff]
      %v407 = vld [vmem:[%s1 + $0x110] sm:$0xff]
      %v408 = vld [vmem:[%s1 + $0x118] sm:$0xff]
      %v409 = vld [vmem:[%s1 + $0x120] sm:$0xff]
      %v410 = vld [vmem:[%s1 + $0x128] sm:$0xff]
      %v411 = vld [vmem:[%s1 + $0x130] sm:$0xff]
      %v412 = vld [vmem:[%s1 + $0x138] sm:$0xff]
      %v413 = vld [vmem:[%s1 + $0x140] sm:$0xff]
      %v414 = vld [vmem:[%s1 + $0x148] sm:$0xff]
      %v415 = vld [vmem:[%s1 + $0x150] sm:$0xff]
      %v416 = vld [vmem:[%s1 + $0x158] sm:$0xff]
      %v417 = vld [vmem:[%s1 + $0x160] sm:$0xff]
      %v418 = vld [vmem:[%s1 + $0x168] sm:$0xff]
      %v419 = vld [vmem:[%s1 + $0x170] sm:$0xff]
      %v420 = vld [vmem:[%s1 + $0x178] sm:$0xff]
      %v421 = vld [vmem:[%s1 + $0x180] sm:$0xff]
      %v422 = vld [vmem:[%s1 + $0x188] sm:$0xff]
      %v423 = vld [vmem:[%s1 + $0x190] sm:$0xff]
      %v424 = vld [vmem:[%s1 + $0x198] sm:$0xff]
      %v425 = vld [vmem:[%s1 + $0x1a0] sm:$0xff]
      %v426 = vld [vmem:[%s1 + $0x1a8] sm:$0xff]
      %v427 = vld [vmem:[%s1 + $0x1b0] sm:$0xff]
      %v428 = vld [vmem:[%s1 + $0x1b8] sm:$0xff]
      %v429 = vld [vmem:[%s1 + $0x1c0] sm:$0xff]
      %v430 = vld [vmem:[%s1 + $0x1c8] sm:$0xff]
      %v431 = vld [vmem:[%s1 + $0x1d0] sm:$0xff]
      %v432 = vld [vmem:[%s1 + $0x1d8] sm:$0xff]
      %v433 = vld [vmem:[%s1 + $0x1e0] sm:$0xff]
      %v434 = vld [vmem:[%s1 + $0x1e8] sm:$0xff]
      %v435 = vld [vmem:[%s1 + $0x1f0] sm:$0xff]
      %v436 = vld [vmem:[%s1 + $0x1f8] sm:$0xff]
      %v437 = vld [vmem:[%s1 + $0x200] sm:$0xff]
      %v438 = vld [vmem:[%s1 + $0x208] sm:$0xff]
      %v439 = vld [vmem:[%s1 + $0x210] sm:$0xff]
      %v440 = vld [vmem:[%s1 + $0x218] sm:$0xff]
      %v441 = vld [vmem:[%s1 + $0x220] sm:$0xff]
      %v442 = vld [vmem:[%s1 + $0x228] sm:$0xff]
      %v443 = vld [vmem:[%s1 + $0x230] sm:$0xff]
      %v444 = vld [vmem:[%s1 + $0x238] sm:$0xff]
      %v445 = vld [vmem:[%s1 + $0x240] sm:$0xff]
      %v446 = vld [vmem:[%s1 + $0x248] sm:$0xff]
      %v447 = vld [vmem:[%s1 + $0x250] sm:$0xff]
      %v448 = vld [vmem:[%s1 + $0x258] sm:$0xff]
      %v449 = vld [vmem:[%s1 + $0x260] sm:$0xff]
      %v450 = vld [vmem:[%s1 + $0x268] sm:$0xff]
      %v451 = vld [vmem:[%s1 + $0x270] sm:$0xff]
      %v452 = vld [vmem:[%s1 + $0x278] sm:$0xff]
      %v453 = vld [vmem:[%s1 + $0x280] sm:$0xff]
      %v454 = vld [vmem:[%s1 + $0x288] sm:$0xff]
      %v455 = vld [vmem:[%s1 + $0x290] sm:$0xff]
      %v456 = vld [vmem:[%s1 + $0x298] sm:$0xff]
      %v457 = vld [vmem:[%s1 + $0x2a0] sm:$0xff]
      %v458 = vld [vmem:[%s1 + $0x2a8] sm:$0xff]
      %v459 = vld [vmem:[%s1 + $0x2b0] sm:$0xff]
      %v460 = vld [vmem:[%s1 + $0x2b8] sm:$0xff]
      %v461 = vld [vmem:[%s1 + $0x2c0] sm:$0xff]
      %v462 = vld [vmem:[%s1 + $0x2c8] sm:$0xff]
      %v463 = vld [vmem:[%s1 + $0x2d0] sm:$0xff]
      %v464 = vld [vmem:[%s1 + $0x2d8] sm:$0xff]
      %v465 = vld [vmem:[%s1 + $0x2e0] sm:$0xff]
      %v466 = vld [vmem:[%s1 + $0x2e8] sm:$0xff]
      %v467 = vld [vmem:[%s1 + $0x2f0] sm:$0xff]
      %v468 = vld [vmem:[%s1 + $0x2f8] sm:$0xff]
      %v469 = vld [vmem:[%s1 + $0x300] sm:$0xff]
      %v470 = vld [vmem:[%s1 + $0x308] sm:$0xff]
      %v471 = vld [vmem:[%s1 + $0x310] sm:$0xff]
      %v472 = vld [vmem:[%s1 + $0x318] sm:$0xff]
      %v473 = vld [vmem:[%s1 + $0x320] sm:$0xff]
      %v474 = vld [vmem:[%s1 + $0x328] sm:$0xff]
      %v475 = vld [vmem:[%s1 + $0x330] sm:$0xff]
      %v476 = vld [vmem:[%s1 + $0x338] sm:$0xff]
      %v477 = vld [vmem:[%s1 + $0x340] sm:$0xff]
      %v478 = vld [vmem:[%s1 + $0x348] sm:$0xff]
      %v479 = vld [vmem:[%s1 + $0x350] sm:$0xff]
      %v480 = vld [vmem:[%s1 + $0x358] sm:$0xff]
      %v481 = vld [vmem:[%s1 + $0x360] sm:$0xff]
      %v482 = vld [vmem:[%s1 + $0x368] sm:$0xff]
      %v483 = vld [vmem:[%s1 + $0x370] sm:$0xff]
      %v484 = vld [vmem:[%s1 + $0x378] sm:$0xff]
      %v485 = vld [vmem:[%s1 + $0x380] sm:$0xff]
      %v486 = vld [vmem:[%s1 + $0x388] sm:$0xff]
      %v487 = vld [vmem:[%s1 + $0x390] sm:$0xff]
      %v488 = vld [vmem:[%s1 + $0x398] sm:$0xff]
      %v489 = vld [vmem:[%s1 + $0x3a0] sm:$0xff]
      %v490 = vld [vmem:[%s1 + $0x3a8] sm:$0xff]
      %v491 = vld [vmem:[%s1 + $0x3b0] sm:$0xff]
      %v492 = vld [vmem:[%s1 + $0x3b8] sm:$0xff]
      %v493 = vld [vmem:[%s1 + $0x3c0] sm:$0xff]
      %v494 = vld [vmem:[%s1 + $0x3c8] sm:$0xff]
      %v495 = vld [vmem:[%s1 + $0x3d0] sm:$0xff]
      %v496 = vld [vmem:[%s1 + $0x3d8] sm:$0xff]
      %v497 = vld [vmem:[%s1 + $0x3e0] sm:$0xff]
      %v498 = vld [vmem:[%s1 + $0x3e8] sm:$0xff]
      %v499 = vld [vmem:[%s1 + $0x3f0] sm:$0xff]
      %v500 = vld [vmem:[%s1 + $0x3f8] sm:$0xff]
      %v501 = vld [vmem:[%s1 + $0x400] sm:$0xff]
      %v502 = vld [vmem:[%s1 + $0x408] sm:$0xff]
      %v503 = vld [vmem:[%s1 + $0x410] sm:$0xff]
      %v504 = vld [vmem:[%s1 + $0x418] sm:$0xff]
      %v505 = vld [vmem:[%s1 + $0x420] sm:$0xff]
      %v506 = vld [vmem:[%s1 + $0x428] sm:$0xff]
      %v507 = vld [vmem:[%s1 + $0x430] sm:$0xff]
      %v508 = vld [vmem:[%s1 + $0x438] sm:$0xff]
      %v509 = vld [vmem:[%s1 + $0x440] sm:$0xff]
      %v510 = vld [vmem:[%s1 + $0x448] sm:$0xff]
      %v511 = vld [vmem:[%s1 + $0x450] sm:$0xff]
      %v512 = vld [vmem:[%s1 + $0x458] sm:$0xff]
      %v513 = vld [vmem:[%s1 + $0x460] sm:$0xff]
      %v514 = vld [vmem:[%s1 + $0x468] sm:$0xff]
      %v515 = vld [vmem:[%s1 + $0x470] sm:$0xff]
      %v516 = vld [vmem:[%s1 + $0x478] sm:$0xff]
      %v517 = vld [vmem:[%s1 + $0x480] sm:$0xff]
      %v518 = vld [vmem:[%s1 + $0x488] sm:$0xff]
      %v519 = vld [vmem:[%s1 + $0x490] sm:$0xff]
      %v520 = vld [vmem:[%s1 + $0x498] sm:$0xff]
      %v521 = vld [vmem:[%s1 + $0x4a0] sm:$0xff]
      %v522 = vld [vmem:[%s1 + $0x4a8] sm:$0xff]
      %v523 = vld [vmem:[%s1 + $0x4b0] sm:$0xff]
      %v524 = vld [vmem:[%s1 + $0x4b8] sm:$0xff]
      %v525 = vld [vmem:[%s1 + $0x4c0] sm:$0xff]
      %v526 = vld [vmem:[%s1 + $0x4c8] sm:$0xff]
      %v527 = vld [vmem:[%s1 + $0x4d0] sm:$0xff]
      %v528 = vld [vmem:[%s1 + $0x4d8] sm:$0xff]
      %v529 = vld [vmem:[%s1 + $0x4e0] sm:$0xff]
      %v530 = vld [vmem:[%s1 + $0x4e8] sm:$0xff]
      %v531 = vld [vmem:[%s1 + $0x4f0] sm:$0xff]
      %v532 = vld [vmem:[%s1 + $0x4f8] sm:$0xff]
      %v533 = vld [vmem:[%s1 + $0x500] sm:$0xff]
      %v534 = vld [vmem:[%s1 + $0x508] sm:$0xff]
      %v535 = vld [vmem:[%s1 + $0x510] sm:$0xff]
      %v536 = vld [vmem:[%s1 + $0x518] sm:$0xff]
      %v537 = vld [vmem:[%s1 + $0x520] sm:$0xff]
      %v538 = vld [vmem:[%s1 + $0x528] sm:$0xff]
      %v539 = vld [vmem:[%s1 + $0x530] sm:$0xff]
      %v540 = vld [vmem:[%s1 + $0x538] sm:$0xff]
      %v541 = vld [vmem:[%s1 + $0x540] sm:$0xff]
      %v542 = vld [vmem:[%s1 + $0x548] sm:$0xff]
      %v543 = vld [vmem:[%s1 + $0x550] sm:$0xff]
      %v544 = vld [vmem:[%s1 + $0x558] sm:$0xff]
      %v545 = vld [vmem:[%s1 + $0x560] sm:$0xff]
      %v546 = vld [vmem:[%s1 + $0x568] sm:$0xff]
      %v547 = vld [vmem:[%s1 + $0x570] sm:$0xff]
      %v548 = vld [vmem:[%s1 + $0x578] sm:$0xff]
      %v549 = vld [vmem:[%s1 + $0x580] sm:$0xff]
      %v550 = vld [vmem:[%s1 + $0x588] sm:$0xff]
      %v551 = vld [vmem:[%s1 + $0x590] sm:$0xff]
      %v552 = vld [vmem:[%s1 + $0x598] sm:$0xff]
      %v553 = vld [vmem:[%s1 + $0x5a0] sm:$0xff]
      %v554 = vld [vmem:[%s1 + $0x5a8] sm:$0xff]
      %v555 = vld [vmem:[%s1 + $0x5b0] sm:$0xff]
      %v556 = vld [vmem:[%s1 + $0x5b8] sm:$0xff]
      %v557 = vld [vmem:[%s1 + $0x5c0] sm:$0xff]
      %v558 = vld [vmem:[%s1 + $0x5c8] sm:$0xff]
      %v559 = vld [vmem:[%s1 + $0x5d0] sm:$0xff]
      %v560 = vld [vmem:[%s1 + $0x5d8] sm:$0xff]
      %v561 = vld [vmem:[%s1 + $0x5e0] sm:$0xff]
      %v562 = vld [vmem:[%s1 + $0x5e8] sm:$0xff]
      %v563 = vld [vmem:[%s1 + $0x5f0] sm:$0xff]
      %v564 = vld [vmem:[%s1 + $0x5f8] sm:$0xff]
      %v565 = vld [vmem:[%s1 + $0x600] sm:$0xff]
      %v566 = vld [vmem:[%s1 + $0x608] sm:$0xff]
      %v567 = vld [vmem:[%s1 + $0x610] sm:$0xff]
      %v568 = vld [vmem:[%s1 + $0x618] sm:$0xff]
      %v569 = vld [vmem:[%s1 + $0x620] sm:$0xff]
      %v570 = vld [vmem:[%s1 + $0x628] sm:$0xff]
      %v571 = vld [vmem:[%s1 + $0x630] sm:$0xff]
      %v572 = vld [vmem:[%s1 + $0x638] sm:$0xff]
      %v573 = vld [vmem:[%s1 + $0x640] sm:$0xff]
      %v574 = vld [vmem:[%s1 + $0x648] sm:$0xff]
      %v575 = vld [vmem:[%s1 + $0x650] sm:$0xff]
      %v576 = vld [vmem:[%s1 + $0x658] sm:$0xff]
      %v577 = vld [vmem:[%s1 + $0x660] sm:$0xff]
      %v578 = vld [vmem:[%s1 + $0x668] sm:$0xff]
      %v579 = vld [vmem:[%s1 + $0x670] sm:$0xff]
      %v580 = vld [vmem:[%s1 + $0x678] sm:$0xff]
      %v581 = vld [vmem:[%s1 + $0x680] sm:$0xff]
      %v582 = vld [vmem:[%s1 + $0x688] sm:$0xff]
      %v583 = vld [vmem:[%s1 + $0x690] sm:$0xff]
      %v584 = vld [vmem:[%s1 + $0x698] sm:$0xff]
      %v585 = vld [vmem:[%s1 + $0x6a0] sm:$0xff]
      %v586 = vld [vmem:[%s1 + $0x6a8] sm:$0xff]
      %v587 = vld [vmem:[%s1 + $0x6b0] sm:$0xff]
      %v588 = vld [vmem:[%s1 + $0x6b8] sm:$0xff]
      %v589 = vld [vmem:[%s1 + $0x6c0] sm:$0xff]
      %v590 = vld [vmem:[%s1 + $0x6c8] sm:$0xff]
      %v591 = vld [vmem:[%s1 + $0x6d0] sm:$0xff]
      %v592 = vld [vmem:[%s1 + $0x6d8] sm:$0xff]
      %v593 = vld [vmem:[%s1 + $0x6e0] sm:$0xff]
      %v594 = vld [vmem:[%s1 + $0x6e8] sm:$0xff]
      %v595 = vld [vmem:[%s1 + $0x6f0] sm:$0xff]
      %v596 = vld [vmem:[%s1 + $0x6f8] sm:$0xff]
      %v597 = vld [vmem:[%s1 + $0x700] sm:$0xff]
      %v598 = vld [vmem:[%s1 + $0x708] sm:$0xff]
      %v599 = vld [vmem:[%s1 + $0x710] sm:$0xff]
      %v600 = vld [vmem:[%s1 + $0x718] sm:$0xff]
      %v601 = vld [vmem:[%s1 + $0x720] sm:$0xff]
      %v602 = vld [vmem:[%s1 + $0x728] sm:$0xff]
      %v603 = vld [vmem:[%s1 + $0x730] sm:$0xff]
      %v604 = vld [vmem:[%s1 + $0x738] sm:$0xff]
      %v605 = vld [vmem:[%s1 + $0x740] sm:$0xff]
      %v606 = vld [vmem:[%s1 + $0x748] sm:$0xff]
      %v607 = vld [vmem:[%s1 + $0x750] sm:$0xff]
      %v608 = vld [vmem:[%s1 + $0x758] sm:$0xff]
      %v609 = vld [vmem:[%s1 + $0x760] sm:$0xff]
      %v610 = vld [vmem:[%s1 + $0x768] sm:$0xff]
      %v611 = vld [vmem:[%s1 + $0x770] sm:$0xff]
      %v612 = vld [vmem:[%s1 + $0x778] sm:$0xff]
      %v613 = vld [vmem:[%s1 + $0x780] sm:$0xff]
      %v614 = vld [vmem:[%s1 + $0x788] sm:$0xff]
      %v615 = vld [vmem:[%s1 + $0x790] sm:$0xff]
      %v616 = vld [vmem:[%s1 + $0x798] sm:$0xff]
      %v617 = vld [vmem:[%s1 + $0x7a0] sm:$0xff]
      %v618 = vld [vmem:[%s1 + $0x7a8] sm:$0xff]
      %v619 = vld [vmem:[%s1 + $0x7b0] sm:$0xff]
      %v620 = vld [vmem:[%s1 + $0x7b8] sm:$0xff]
      %v621 = vld [vmem:[%s1 + $0x7c0] sm:$0xff]
      %v622 = vld [vmem:[%s1 + $0x7c8] sm:$0xff]
      %v623 = vld [vmem:[%s1 + $0x7d0] sm:$0xff]
      %v624 = vld [vmem:[%s1 + $0x7d8] sm:$0xff]
      %v625 = vld [vmem:[%s1 + $0x7e0] sm:$0xff]
      %v626 = vld [vmem:[%s1 + $0x7e8] sm:$0xff]
      %v627 = vld [vmem:[%s1 + $0x7f0] sm:$0xff]
      %v628 = vld [vmem:[%s1 + $0x7f8] sm:$0xff]
      %v629 = vld [vmem:[%s1 + $0x800] sm:$0xff]
      %v630 = vld [vmem:[%s1 + $0x808] sm:$0xff]
      %v631 = vld [vmem:[%s1 + $0x810] sm:$0xff]
      %v632 = vld [vmem:[%s1 + $0x818] sm:$0xff]
      %v633 = vld [vmem:[%s1 + $0x820] sm:$0xff]
      %v634 = vld [vmem:[%s1 + $0x828] sm:$0xff]
      %v635 = vld [vmem:[%s1 + $0x830] sm:$0xff]
      %v636 = vld [vmem:[%s1 + $0x838] sm:$0xff]
      %v637 = vld [vmem:[%s1 + $0x840] sm:$0xff]
      %v638 = vld [vmem:[%s1 + $0x848] sm:$0xff]
      %v639 = vld [vmem:[%s1 + $0x850] sm:$0xff]
      %v640 = vld [vmem:[%s1 + $0x858] sm:$0xff]
      %v641 = vld [vmem:[%s1 + $0x860] sm:$0xff]
      %v642 = vld [vmem:[%s1 + $0x868] sm:$0xff]
      %v643 = vld [vmem:[%s1 + $0x870] sm:$0xff]
      %v644 = vld [vmem:[%s1 + $0x878] sm:$0xff]
      %v645 = vld [vmem:[%s1 + $0x880] sm:$0xff]
      %v646 = vld [vmem:[%s1 + $0x888] sm:$0xff]
      %v647 = vld [vmem:[%s1 + $0x890] sm:$0xff]
      %v648 = vld [vmem:[%s1 + $0x898] sm:$0xff]
      %v649 = vld [vmem:[%s1 + $0x8a0] sm:$0xff]
      %v650 = vld [vmem:[%s1 + $0x8a8] sm:$0xff]
      %v651 = vld [vmem:[%s1 + $0x8b0] sm:$0xff]
      %v652 = vld [vmem:[%s1 + $0x8b8] sm:$0xff]
      %v653 = vld [vmem:[%s1 + $0x8c0] sm:$0xff]
      %v654 = vld [vmem:[%s1 + $0x8c8] sm:$0xff]
      %v655 = vld [vmem:[%s1 + $0x8d0] sm:$0xff]
      %v656 = vld [vmem:[%s1 + $0x8d8] sm:$0xff]
      %v657 = vld [vmem:[%s1 + $0x8e0] sm:$0xff]
      %v658 = vld [vmem:[%s1 + $0x8e8] sm:$0xff]
      %v659 = vld [vmem:[%s1 + $0x8f0] sm:$0xff]
      %v660 = vld [vmem:[%s1 + $0x8f8] sm:$0xff]
      %v661 = vld [vmem:[%s1 + $0x900] sm:$0xff]
      %v662 = vld [vmem:[%s1 + $0x908] sm:$0xff]
      %v663 = vld [vmem:[%s1 + $0x910] sm:$0xff]
      %v664 = vld [vmem:[%s1 + $0x918] sm:$0xff]
      %v665 = vld [vmem:[%s1 + $0x920] sm:$0xff]
      %v666 = vld [vmem:[%s1 + $0x928] sm:$0xff]
      %v667 = vld [vmem:[%s1 + $0x930] sm:$0xff]
      %v668 = vld [vmem:[%s1 + $0x938] sm:$0xff]
      %v669 = vld [vmem:[%s1 + $0x940] sm:$0xff]
      %v670 = vld [vmem:[%s1 + $0x948] sm:$0xff]
      %v671 = vld [vmem:[%s1 + $0x950] sm:$0xff]
      %v672 = vld [vmem:[%s1 + $0x958] sm:$0xff]
      %v673 = vld [vmem:[%s1 + $0x960] sm:$0xff]
      %v674 = vld [vmem:[%s1 + $0x968] sm:$0xff]
      %v675 = vld [vmem:[%s1 + $0x970] sm:$0xff]
      %v676 = vld [vmem:[%s1 + $0x978] sm:$0xff]
      %v677 = vld [vmem:[%s1 + $0x980] sm:$0xff]
      %v678 = vld [vmem:[%s1 + $0x988] sm:$0xff]
      %v679 = vld [vmem:[%s1 + $0x990] sm:$0xff]
      %v680 = vld [vmem:[%s1 + $0x998] sm:$0xff]
      %v681 = vld [vmem:[%s1 + $0x9a0] sm:$0xff]
      %v682 = vld [vmem:[%s1 + $0x9a8] sm:$0xff]
      %v683 = vld [vmem:[%s1 + $0x9b0] sm:$0xff]
      %v684 = vld [vmem:[%s1 + $0x9b8] sm:$0xff]
      %v685 = vld [vmem:[%s1 + $0x9c0] sm:$0xff]
      %v686 = vld [vmem:[%s1 + $0x9c8] sm:$0xff]
      %v687 = vld [vmem:[%s1 + $0x9d0] sm:$0xff]
      %v688 = vld [vmem:[%s1 + $0x9d8] sm:$0xff]
      %v689 = vld [vmem:[%s1 + $0x9e0] sm:$0xff]
      %v690 = vld [vmem:[%s1 + $0x9e8] sm:$0xff]
      %v691 = vld [vmem:[%s1 + $0x9f0] sm:$0xff]
      %v692 = vld [vmem:[%s1 + $0x9f8] sm:$0xff]
      %v693 = vld [vmem:[%s1 + $0xa00] sm:$0xff]
      %v694 = vld [vmem:[%s1 + $0xa08] sm:$0xff]
      %v695 = vld [vmem:[%s1 + $0xa10] sm:$0xff]
      %v696 = vld [vmem:[%s1 + $0xa18] sm:$0xff]
      %v697 = vld [vmem:[%s1 + $0xa20] sm:$0xff]
      %v698 = vld [vmem:[%s1 + $0xa28] sm:$0xff]
      %v699 = vld [vmem:[%s1 + $0xa30] sm:$0xff]
      %v700 = vld [vmem:[%s1 + $0xa38] sm:$0xff]
      %v701 = vld [vmem:[%s1 + $0xa40] sm:$0xff]
      %v702 = vld [vmem:[%s1 + $0xa48] sm:$0xff]
      %v703 = vld [vmem:[%s1 + $0xa50] sm:$0xff]
      %v704 = vld [vmem:[%s1 + $0xa58] sm:$0xff]
      %v705 = vld [vmem:[%s1 + $0xa60] sm:$0xff]
      %v706 = vld [vmem:[%s1 + $0xa68] sm:$0xff]
      %v707 = vld [vmem:[%s1 + $0xa70] sm:$0xff]
      %v708 = vld [vmem:[%s1 + $0xa78] sm:$0xff]
      %v709 = vld [vmem:[%s1 + $0xa80] sm:$0xff]
      %v710 = vld [vmem:[%s1 + $0xa88] sm:$0xff]
      %v711 = vld [vmem:[%s1 + $0xa90] sm:$0xff]
      %v712 = vld [vmem:[%s1 + $0xa98] sm:$0xff]
      %v713 = vld [vmem:[%s1 + $0xaa0] sm:$0xff]
      %v714 = vld [vmem:[%s1 + $0xaa8] sm:$0xff]
      %v715 = vld [vmem:[%s1 + $0xab0] sm:$0xff]
      %v716 = vld [vmem:[%s1 + $0xab8] sm:$0xff]
      %v717 = vld [vmem:[%s1 + $0xac0] sm:$0xff]
      %v718 = vld [vmem:[%s1 + $0xac8] sm:$0xff]
      %v719 = vld [vmem:[%s1 + $0xad0] sm:$0xff]
      %v720 = vld [vmem:[%s1 + $0xad8] sm:$0xff]
      %v721 = vld [vmem:[%s1 + $0xae0] sm:$0xff]
      %v722 = vld [vmem:[%s1 + $0xae8] sm:$0xff]
      %v723 = vld [vmem:[%s1 + $0xaf0] sm:$0xff]
      %v724 = vld [vmem:[%s1 + $0xaf8] sm:$0xff]
      %v725 = vld [vmem:[%s1 + $0xb00] sm:$0xff]
      %v726 = vld [vmem:[%s1 + $0xb08] sm:$0xff]
      %v727 = vld [vmem:[%s1 + $0xb10] sm:$0xff]
      %v728 = vld [vmem:[%s1 + $0xb18] sm:$0xff]
      %v729 = vld [vmem:[%s1 + $0xb20] sm:$0xff]
      %v730 = vld [vmem:[%s1 + $0xb28] sm:$0xff]
      %v731 = vld [vmem:[%s1 + $0xb30] sm:$0xff]
      %v732 = vld [vmem:[%s1 + $0xb38] sm:$0xff]
      %v733 = vld [vmem:[%s1 + $0xb40] sm:$0xff]
      %v734 = vld [vmem:[%s1 + $0xb48] sm:$0xff]
      %v735 = vld [vmem:[%s1 + $0xb50] sm:$0xff]
      %v736 = vld [vmem:[%s1 + $0xb58] sm:$0xff]
      %v737 = vld [vmem:[%s1 + $0xb60] sm:$0xff]
      %v738 = vld [vmem:[%s1 + $0xb68] sm:$0xff]
      %v739 = vld [vmem:[%s1 + $0xb70] sm:$0xff]
      %v740 = vld [vmem:[%s1 + $0xb78] sm:$0xff]
      %v741 = vld [vmem:[%s1 + $0xb80] sm:$0xff]
      %v742 = vld [vmem:[%s1 + $0xb88] sm:$0xff]
      %v743 = vld [vmem:[%s1 + $0xb90] sm:$0xff]
      %v744 = vld [vmem:[%s1 + $0xb98] sm:$0xff]
      %v745 = vld [vmem:[%s1 + $0xba0] sm:$0xff]
      %v746 = vld [vmem:[%s1 + $0xba8] sm:$0xff]
      %v747 = vld [vmem:[%s1 + $0xbb0] sm:$0xff]
      %v748 = vld [vmem:[%s1 + $0xbb8] sm:$0xff]
      %v749 = vld [vmem:[%s1 + $0xbc0] sm:$0xff]
      %v750 = vld [vmem:[%s1 + $0xbc8] sm:$0xff]
      %v751 = vld [vmem:[%s1 + $0xbd0] sm:$0xff]
      %v752 = vld [vmem:[%s1 + $0xbd8] sm:$0xff]
      %v753 = vld [vmem:[%s1 + $0xbe0] sm:$0xff]
      %v754 = vld [vmem:[%s1 + $0xbe8] sm:$0xff]
      %v755 = vld [vmem:[%s1 + $0xbf0] sm:$0xff]
      %v756 = vld [vmem:[%s1 + $0xbf8] sm:$0xff]
      %v757 = vld [vmem:[%s1 + $0xc00] sm:$0xff]
      %v758 = vld [vmem:[%s1 + $0xc08] sm:$0xff]
      %v759 = vld [vmem:[%s1 + $0xc10] sm:$0xff]
      %v760 = vld [vmem:[%s1 + $0xc18] sm:$0xff]
      %v761 = vld [vmem:[%s1 + $0xc20] sm:$0xff]
      %v762 = vld [vmem:[%s1 + $0xc28] sm:$0xff]
      %v763 = vld [vmem:[%s1 + $0xc30] sm:$0xff]
      %v764 = vld [vmem:[%s1 + $0xc38] sm:$0xff]
      %v765 = vld [vmem:[%s1 + $0xc40] sm:$0xff]
      %v766 = vld [vmem:[%s1 + $0xc48] sm:$0xff]
      %v767 = vld [vmem:[%s1 + $0xc50] sm:$0xff]
      %v768 = vld [vmem:[%s1 + $0xc58] sm:$0xff]
      %v769 = vld [vmem:[%s1 + $0xc60] sm:$0xff]
      %v770 = vld [vmem:[%s1 + $0xc68] sm:$0xff]
      %v771 = vld [vmem:[%s1 + $0xc70] sm:$0xff]
      %v772 = vld [vmem:[%s1 + $0xc78] sm:$0xff]
      %v773 = vld [vmem:[%s1 + $0xc80] sm:$0xff]
      %v774 = vld [vmem:[%s1 + $0xc88] sm:$0xff]
      %v775 = vld [vmem:[%s1 + $0xc90] sm:$0xff]
      %v776 = vld [vmem:[%s1 + $0xc98] sm:$0xff]
      %v777 = vld [vmem:[%s1 + $0xca0] sm:$0xff]
      %v778 = vld [vmem:[%s1 + $0xca8] sm:$0xff]
      %v779 = vld [vmem:[%s1 + $0xcb0] sm:$0xff]
      %v780 = vld [vmem:[%s1 + $0xcb8] sm:$0xff]
      %v781 = vld [vmem:[%s1 + $0xcc0] sm:$0xff]
      %v782 = vld [vmem:[%s1 + $0xcc8] sm:$0xff]
      %v783 = vld [vmem:[%s1 + $0xcd0] sm:$0xff]
      %v784 = vld [vmem:[%s1 + $0xcd8] sm:$0xff]
      %v785 = vld [vmem:[%s1 + $0xce0] sm:$0xff]
      %v786 = vld [vmem:[%s1 + $0xce8] sm:$0xff]
      %v787 = vld [vmem:[%s1 + $0xcf0] sm:$0xff]
      %v788 = vld [vmem:[%s1 + $0xcf8] sm:$0xff]
      %v789 = vld [vmem:[%s1 + $0xd00] sm:$0xff]
      %v790 = vld [vmem:[%s1 + $0xd08] sm:$0xff]
      %v791 = vld [vmem:[%s1 + $0xd10] sm:$0xff]
      %v792 = vld [vmem:[%s1 + $0xd18] sm:$0xff]
      %v793 = vld [vmem:[%s1 + $0xd20] sm:$0xff]
      %v794 = vld [vmem:[%s1 + $0xd28] sm:$0xff]
      %v795 = vld [vmem:[%s1 + $0xd30] sm:$0xff]
      %v796 = vld [vmem:[%s1 + $0xd38] sm:$0xff]
      %v797 = vld [vmem:[%s1 + $0xd40] sm:$0xff]
      %v798 = vld [vmem:[%s1 + $0xd48] sm:$0xff]
      %v799 = vld [vmem:[%s1 + $0xd50] sm:$0xff]
      %v800 = vld [vmem:[%s1 + $0xd58] sm:$0xff]
      %v801 = vld [vmem:[%s1 + $0xd60] sm:$0xff]
      %v802 = vld [vmem:[%s1 + $0xd68] sm:$0xff]
      %v803 = vld [vmem:[%s1 + $0xd70] sm:$0xff]
      %v804 = vld [vmem:[%s1 + $0xd78] sm:$0xff]
      %v805 = vld [vmem:[%s1 + $0xd80] sm:$0xff]
      %v806 = vld [vmem:[%s1 + $0xd88] sm:$0xff]
      %v807 = vld [vmem:[%s1 + $0xd90] sm:$0xff]
      %v808 = vld [vmem:[%s1 + $0xd98] sm:$0xff]
      %v809 = vld [vmem:[%s1 + $0xda0] sm:$0xff]
      %v810 = vld [vmem:[%s1 + $0xda8] sm:$0xff]
      %v811 = vld [vmem:[%s1 + $0xdb0] sm:$0xff]
      %v812 = vld [vmem:[%s1 + $0xdb8] sm:$0xff]
      %v813 = vld [vmem:[%s1 + $0xdc0] sm:$0xff]
      %v814 = vld [vmem:[%s1 + $0xdc8] sm:$0xff]
      %v815 = vld [vmem:[%s1 + $0xdd0] sm:$0xff]
      %v816 = vld [vmem:[%s1 + $0xdd8] sm:$0xff]
      %v817 = vld [vmem:[%s1 + $0xde0] sm:$0xff]
      %v818 = vld [vmem:[%s1 + $0xde8] sm:$0xff]
      %v819 = vld [vmem:[%s1 + $0xdf0] sm:$0xff]
      %v820 = vld [vmem:[%s1 + $0xdf8] sm:$0xff]
      %v821 = vld [vmem:[%s1 + $0xe00] sm:$0xff]
      %v822 = vld [vmem:[%s1 + $0xe08] sm:$0xff]
      %v823 = vld [vmem:[%s1 + $0xe10] sm:$0xff]
      %v824 = vld [vmem:[%s1 + $0xe18] sm:$0xff]
      %v825 = vld [vmem:[%s1 + $0xe20] sm:$0xff]
      %v826 = vld [vmem:[%s1 + $0xe28] sm:$0xff]
      %v827 = vld [vmem:[%s1 + $0xe30] sm:$0xff]
      %v828 = vld [vmem:[%s1 + $0xe38] sm:$0xff]
      %v829 = vld [vmem:[%s1 + $0xe40] sm:$0xff]
      %v830 = vld [vmem:[%s1 + $0xe48] sm:$0xff]
      %v831 = vld [vmem:[%s1 + $0xe50] sm:$0xff]
      %v832 = vld [vmem:[%s1 + $0xe58] sm:$0xff]
      %v833 = vld [vmem:[%s1 + $0xe60] sm:$0xff]
      %v834 = vld [vmem:[%s1 + $0xe68] sm:$0xff]
      %v835 = vld [vmem:[%s1 + $0xe70] sm:$0xff]
      %v836 = vld [vmem:[%s1 + $0xe78] sm:$0xff]
      %v837 = vld [vmem:[%s1 + $0xe80] sm:$0xff]
      %v838 = vld [vmem:[%s1 + $0xe88] sm:$0xff]
      %v839 = vld [vmem:[%s1 + $0xe90] sm:$0xff]
      %v840 = vld [vmem:[%s1 + $0xe98] sm:$0xff]
      %v841 = vld [vmem:[%s1 + $0xea0] sm:$0xff]
      %v842 = vld [vmem:[%s1 + $0xea8] sm:$0xff]
      %v843 = vld [vmem:[%s1 + $0xeb0] sm:$0xff]
      %v844 = vld [vmem:[%s1 + $0xeb8] sm:$0xff]
      %v845 = vld [vmem:[%s1 + $0xec0] sm:$0xff]
      %v846 = vld [vmem:[%s1 + $0xec8] sm:$0xff]
      %v847 = vld [vmem:[%s1 + $0xed0] sm:$0xff]
      %v848 = vld [vmem:[%s1 + $0xed8] sm:$0xff]
      %v849 = vld [vmem:[%s1 + $0xee0] sm:$0xff]
      %v850 = vld [vmem:[%s1 + $0xee8] sm:$0xff]
      %v851 = vld [vmem:[%s1 + $0xef0] sm:$0xff]
      %v852 = vld [vmem:[%s1 + $0xef8] sm:$0xff]
      %v853 = vld [vmem:[%s1 + $0xf00] sm:$0xff]
      %v854 = vld [vmem:[%s1 + $0xf08] sm:$0xff]
      %v855 = vld [vmem:[%s1 + $0xf10] sm:$0xff]
      %v856 = vld [vmem:[%s1 + $0xf18] sm:$0xff]
      %v857 = vld [vmem:[%s1 + $0xf20] sm:$0xff]
      %v858 = vld [vmem:[%s1 + $0xf28] sm:$0xff]
      %v859 = vld [vmem:[%s1 + $0xf30] sm:$0xff]
      %v860 = vld [vmem:[%s1 + $0xf38] sm:$0xff]
      %v861 = vld [vmem:[%s1 + $0xf40] sm:$0xff]
      %v862 = vld [vmem:[%s1 + $0xf48] sm:$0xff]
      %v863 = vld [vmem:[%s1 + $0xf50] sm:$0xff]
      %v864 = vld [vmem:[%s1 + $0xf58] sm:$0xff]
      %v865 = vld [vmem:[%s1 + $0xf60] sm:$0xff]
      %v866 = vld [vmem:[%s1 + $0xf68] sm:$0xff]
      %v867 = vld [vmem:[%s1 + $0xf70] sm:$0xff]
      %v868 = vld [vmem:[%s1 + $0xf78] sm:$0xff]
      %v869 = vld [vmem:[%s1 + $0xf80] sm:$0xff]
      %v870 = vld [vmem:[%s1 + $0xf88] sm:$0xff]
      %v871 = vld [vmem:[%s1 + $0xf90] sm:$0xff]
      %v872 = vld [vmem:[%s1 + $0xf98] sm:$0xff]
      %v873 = vld [vmem:[%s1 + $0xfa0] sm:$0xff]
      %v874 = vld [vmem:[%s1 + $0xfa8] sm:$0xff]
      %v875 = vld [vmem:[%s1 + $0xfb0] sm:$0xff]
      %v876 = vld [vmem:[%s1 + $0xfb8] sm:$0xff]
      %v877 = vld [vmem:[%s1 + $0xfc0] sm:$0xff]
      %v878 = vld [vmem:[%s1 + $0xfc8] sm:$0xff]
      %v879 = vld [vmem:[%s1 + $0xfd0] sm:$0xff]
      %v880 = vld [vmem:[%s1 + $0xfd8] sm:$0xff]
      %v881 = vld [vmem:[%s1 + $0xfe0] sm:$0xff]
      %v882 = vld [vmem:[%s1 + $0xfe8] sm:$0xff]
      %v883 = vld [vmem:[%s1 + $0xff0] sm:$0xff]
      %v884 = vld [vmem:[%s1 + $0xff8] sm:$0xff]
      %v885 = vld [vmem:[%s1 + $0x1000] sm:$0xff]
      %v886 = vld [vmem:[%s1 + $0x1008] sm:$0xff]
      %v887 = vld [vmem:[%s1 + $0x1010] sm:$0xff]
      %v888 = vld [vmem:[%s1 + $0x1018] sm:$0xff]
      %v889 = vld [vmem:[%s1 + $0x1020] sm:$0xff]
      %v890 = vld [vmem:[%s1 + $0x1028] sm:$0xff]
      %v891 = vld [vmem:[%s1 + $0x1030] sm:$0xff]
      %v892 = vld [vmem:[%s1 + $0x1038] sm:$0xff]
      %v893 = vld [vmem:[%s1 + $0x1040] sm:$0xff]
      %v894 = vld [vmem:[%s1 + $0x1048] sm:$0xff]
      %v895 = vld [vmem:[%s1 + $0x1050] sm:$0xff]
      %v896 = vld [vmem:[%s1 + $0x1058] sm:$0xff]
      %v897 = vld [vmem:[%s1 + $0x1060] sm:$0xff]
      %v898 = vld [vmem:[%s1 + $0x1068] sm:$0xff]
      %v899 = vld [vmem:[%s1 + $0x1070] sm:$0xff]
      %v900 = vld [vmem:[%s1 + $0x1078] sm:$0xff]
      %v901 = vld [vmem:[%s1 + $0x1080] sm:$0xff]
      %v902 = vld [vmem:[%s1 + $0x1088] sm:$0xff]
      %v903 = vld [vmem:[%s1 + $0x1090] sm:$0xff]
      %v904 = vld [vmem:[%s1 + $0x1098] sm:$0xff]
      %v905 = vld [vmem:[%s1 + $0x10a0] sm:$0xff]
      %v906 = vld [vmem:[%s1 + $0x10a8] sm:$0xff]
      %v907 = vld [vmem:[%s1 + $0x10b0] sm:$0xff]
      %v908 = vld [vmem:[%s1 + $0x10b8] sm:$0xff]
      %v909 = vld [vmem:[%s1 + $0x10c0] sm:$0xff]
      %v910 = vld [vmem:[%s1 + $0x10c8] sm:$0xff]
      %v911 = vld [vmem:[%s1 + $0x10d0] sm:$0xff]
      %v912 = vld [vmem:[%s1 + $0x10d8] sm:$0xff]
      %v913 = vld [vmem:[%s1 + $0x10e0] sm:$0xff]
      %v914 = vld [vmem:[%s1 + $0x10e8] sm:$0xff]
      %v915 = vld [vmem:[%s1 + $0x10f0] sm:$0xff]
      %v916 = vld [vmem:[%s1 + $0x10f8] sm:$0xff]
      %v917 = vld [vmem:[%s1 + $0x1100] sm:$0xff]
      %v918 = vld [vmem:[%s1 + $0x1108] sm:$0xff]
      %v919 = vld [vmem:[%s1 + $0x1110] sm:$0xff]
      %v920 = vld [vmem:[%s1 + $0x1118] sm:$0xff]
      %v921 = vld [vmem:[%s1 + $0x1120] sm:$0xff]
      %v922 = vld [vmem:[%s1 + $0x1128] sm:$0xff]
      %v923 = vld [vmem:[%s1 + $0x1130] sm:$0xff]
      %v924 = vld [vmem:[%s1 + $0x1138] sm:$0xff]
      %v925 = vld [vmem:[%s1 + $0x1140] sm:$0xff]
      %v926 = vld [vmem:[%s1 + $0x1148] sm:$0xff]
      %v927 = vld [vmem:[%s1 + $0x1150] sm:$0xff]
      %v928 = vld [vmem:[%s1 + $0x1158] sm:$0xff]
      %v929 = vld [vmem:[%s1 + $0x1160] sm:$0xff]
      %v930 = vld [vmem:[%s1 + $0x1168] sm:$0xff]
      %v931 = vld [vmem:[%s1 + $0x1170] sm:$0xff]
      %v932 = vld [vmem:[%s1 + $0x1178] sm:$0xff]
      %v933 = vld [vmem:[%s1 + $0x1180] sm:$0xff]
      %v934 = vld [vmem:[%s1 + $0x1188] sm:$0xff]
      %v935 = vld [vmem:[%s1 + $0x1190] sm:$0xff]
      %v936 = vld [vmem:[%s1 + $0x1198] sm:$0xff]
      %v937 = vld [vmem:[%s1 + $0x11a0] sm:$0xff]
      %v938 = vld [vmem:[%s1 + $0x11a8] sm:$0xff]
      %v939 = vld [vmem:[%s1 + $0x11b0] sm:$0xff]
      %v940 = vld [vmem:[%s1 + $0x11b8] sm:$0xff]
      %v941 = vld [vmem:[%s1 + $0x11c0] sm:$0xff]
      %v942 = vld [vmem:[%s1 + $0x11c8] sm:$0xff]
      %v943 = vld [vmem:[%s1 + $0x11d0] sm:$0xff]
      %v944 = vld [vmem:[%s1 + $0x11d8] sm:$0xff]
      %v945 = vld [vmem:[%s1 + $0x11e0] sm:$0xff]
      %v946 = vld [vmem:[%s1 + $0x11e8] sm:$0xff]
      %v947 = vld [vmem:[%s1 + $0x11f0] sm:$0xff]
      %v948 = vld [vmem:[%s1 + $0x11f8] sm:$0xff]
      %v949 = vld [vmem:[%s1 + $0x1200] sm:$0xff]
      %v950 = vld [vmem:[%s1 + $0x1208] sm:$0xff]
      %v951 = vld [vmem:[%s1 + $0x1210] sm:$0xff]
      %v952 = vld [vmem:[%s1 + $0x1218] sm:$0xff]
      %v953 = vld [vmem:[%s1 + $0x1220] sm:$0xff]
      %v954 = vld [vmem:[%s1 + $0x1228] sm:$0xff]
      %v955 = vld [vmem:[%s1 + $0x1230] sm:$0xff]
      %v956 = vld [vmem:[%s1 + $0x1238] sm:$0xff]
      %v957 = vld [vmem:[%s1 + $0x1240] sm:$0xff]
      %v958 = vld [vmem:[%s1 + $0x1248] sm:$0xff]
      %v959 = vld [vmem:[%s1 + $0x1250] sm:$0xff]
      %v960 = vld [vmem:[%s1 + $0x1258] sm:$0xff]
      %v961 = vld [vmem:[%s1 + $0x1260] sm:$0xff]
      %v962 = vld [vmem:[%s1 + $0x1268] sm:$0xff]
      %v963 = vld [vmem:[%s1 + $0x1270] sm:$0xff]
      %v964 = vld [vmem:[%s1 + $0x1278] sm:$0xff]
      %v965 = vld [vmem:[%s1 + $0x1280] sm:$0xff]
      %v966 = vld [vmem:[%s1 + $0x1288] sm:$0xff]
      %v967 = vld [vmem:[%s1 + $0x1290] sm:$0xff]
      %v968 = vld [vmem:[%s1 + $0x1298] sm:$0xff]
      %v969 = vld [vmem:[%s1 + $0x12a0] sm:$0xff]
      %v970 = vld [vmem:[%s1 + $0x12a8] sm:$0xff]
      %v971 = vld [vmem:[%s1 + $0x12b0] sm:$0xff]
      %v972 = vld [vmem:[%s1 + $0x12b8] sm:$0xff]
      %v973 = vld [vmem:[%s1 + $0x12c0] sm:$0xff]
      %v974 = vld [vmem:[%s1 + $0x12c8] sm:$0xff]
      %v975 = vld [vmem:[%s1 + $0x12d0] sm:$0xff]
      %v976 = vld [vmem:[%s1 + $0x12d8] sm:$0xff]
      %v977 = vld [vmem:[%s1 + $0x12e0] sm:$0xff]
      %v978 = vld [vmem:[%s1 + $0x12e8] sm:$0xff]
      %v979 = vld [vmem:[%s1 + $0x12f0] sm:$0xff]
      %v980 = vld [vmem:[%s1 + $0x12f8] sm:$0xff]
      %v981 = vld [vmem:[%s1 + $0x1300] sm:$0xff]
      %v982 = vld [vmem:[%s1 + $0x1308] sm:$0xff]
      %v983 = vld [vmem:[%s1 + $0x1310] sm:$0xff]
      %v984 = vld [vmem:[%s1 + $0x1318] sm:$0xff]
      %v985 = vld [vmem:[%s1 + $0x1320] sm:$0xff]
      %v986 = vld [vmem:[%s1 + $0x1328] sm:$0xff]
      %v987 = vld [vmem:[%s1 + $0x1330] sm:$0xff]
      %v988 = vld [vmem:[%s1 + $0x1338] sm:$0xff]
      %v989 = vld [vmem:[%s1 + $0x1340] sm:$0xff]
      %v990 = vld [vmem:[%s1 + $0x1348] sm:$0xff]
      %v991 = vld [vmem:[%s1 + $0x1350] sm:$0xff]
      %v992 = vld [vmem:[%s1 + $0x1358] sm:$0xff]
      %v993 = vld [vmem:[%s1 + $0x1360] sm:$0xff]
      %v994 = vld [vmem:[%s1 + $0x1368] sm:$0xff]
      %v995 = vld [vmem:[%s1 + $0x1370] sm:$0xff]
      %v996 = vld [vmem:[%s1 + $0x1378] sm:$0xff]
      %v997 = vld [vmem:[%s1 + $0x1380] sm:$0xff]
      %v998 = vld [vmem:[%s1 + $0x1388] sm:$0xff]
      %v999 = vld [vmem:[%s1 + $0x1390] sm:$0xff]
      %v1000 = vld [vmem:[%s1 + $0x1398] sm:$0xff]
      %v1001 = vld [vmem:[%s1 + $0x13a0] sm:$0xff]
      %v1002 = vld [vmem:[%s1 + $0x13a8] sm:$0xff]
      %v1003 = vld [vmem:[%s1 + $0x13b0] sm:$0xff]
      %v1004 = vld [vmem:[%s1 + $0x13b8] sm:$0xff]
      %v1005 = vld [vmem:[%s1 + $0x13c0] sm:$0xff]
      %v1006 = vld [vmem:[%s1 + $0x13c8] sm:$0xff]
      %v1007 = vld [vmem:[%s1 + $0x13d0] sm:$0xff]
      %v1008 = vld [vmem:[%s1 + $0x13d8] sm:$0xff]
      %v1009 = vld [vmem:[%s1 + $0x13e0] sm:$0xff]
      %v1010 = vld [vmem:[%s1 + $0x13e8] sm:$0xff]
      %v1011 = vld [vmem:[%s1 + $0x13f0] sm:$0xff]
      %v1012 = vld [vmem:[%s1 + $0x13f8] sm:$0xff]
      %v1013 = vld [vmem:[%s1 + $0x1400] sm:$0xff]
      %v1014 = vld [vmem:[%s1 + $0x1408] sm:$0xff]
      %v1015 = vld [vmem:[%s1 + $0x1410] sm:$0xff]
      %v1016 = vld [vmem:[%s1 + $0x1418] sm:$0xff]
      %v1017 = vld [vmem:[%s1 + $0x1420] sm:$0xff]
      %v1018 = vld [vmem:[%s1 + $0x1428] sm:$0xff]
      %v1019 = vld [vmem:[%s1 + $0x1430] sm:$0xff]
      %v1020 = vld [vmem:[%s1 + $0x1438] sm:$0xff]
      %v1021 = vld [vmem:[%s1 + $0x1440] sm:$0xff]
      %v1022 = vld [vmem:[%s1 + $0x1448] sm:$0xff]
      %v1023 = vld [vmem:[%s1 + $0x1450] sm:$0xff]
      %v1024 = vld [vmem:[%s1 + $0x1458] sm:$0xff]
      %v1025 = vld [vmem:[%s1 + $0x1460] sm:$0xff]
      %v1026 = vld [vmem:[%s1 + $0x1468] sm:$0xff]
      %v1027 = vld [vmem:[%s1 + $0x1470] sm:$0xff]
      %v1028 = vld [vmem:[%s1 + $0x1478] sm:$0xff]
      %v1029 = vld [vmem:[%s1 + $0x1480] sm:$0xff]
      %v1030 = vld [vmem:[%s1 + $0x1488] sm:$0xff]
      %v1031 = vld [vmem:[%s1 + $0x1490] sm:$0xff]
      %v1032 = vld [vmem:[%s1 + $0x1498] sm:$0xff]
      %v1033 = vld [vmem:[%s1 + $0x14a0] sm:$0xff]
      %v1034 = vld [vmem:[%s1 + $0x14a8] sm:$0xff]
      %v1035 = vld [vmem:[%s1 + $0x14b0] sm:$0xff]
      %v1036 = vld [vmem:[%s1 + $0x14b8] sm:$0xff]
      %v1037 = vld [vmem:[%s1 + $0x14c0] sm:$0xff]
      %v1038 = vld [vmem:[%s1 + $0x14c8] sm:$0xff]
      %v1039 = vld [vmem:[%s1 + $0x14d0] sm:$0xff]
      %v1040 = vld [vmem:[%s1 + $0x14d8] sm:$0xff]
      %v1041 = vld [vmem:[%s1 + $0x14e0] sm:$0xff]
      %v1042 = vld [vmem:[%s1 + $0x14e8] sm:$0xff]
      %v1043 = vld [vmem:[%s1 + $0x14f0] sm:$0xff]
      %v1044 = vld [vmem:[%s1 + $0x14f8] sm:$0xff]
      %v1045 = vld [vmem:[%s1 + $0x1500] sm:$0xff]
      %v1046 = vld [vmem:[%s1 + $0x1508] sm:$0xff]
      %v1047 = vld [vmem:[%s1 + $0x1510] sm:$0xff]
      %v1048 = vld [vmem:[%s1 + $0x1518] sm:$0xff]
      %v1049 = vld [vmem:[%s1 + $0x1520] sm:$0xff]
      %v1050 = vld [vmem:[%s1 + $0x1528] sm:$0xff]
      %v1051 = vld [vmem:[%s1 + $0x1530] sm:$0xff]
      %v1052 = vld [vmem:[%s1 + $0x1538] sm:$0xff]
      %v1053 = vld [vmem:[%s1 + $0x1540] sm:$0xff]
      %v1054 = vld [vmem:[%s1 + $0x1548] sm:$0xff]
      %v1055 = vld [vmem:[%s1 + $0x1550] sm:$0xff]
      %v1056 = vld [vmem:[%s1 + $0x1558] sm:$0xff]
      %v1057 = vld [vmem:[%s1 + $0x1560] sm:$0xff]
      %v1058 = vld [vmem:[%s1 + $0x1568] sm:$0xff]
      %v1059 = vld [vmem:[%s1 + $0x1570] sm:$0xff]
      %v1060 = vld [vmem:[%s1 + $0x1578] sm:$0xff]
      %v1061 = vld [vmem:[%s1 + $0x1580] sm:$0xff]
      %v1062 = vld [vmem:[%s1 + $0x1588] sm:$0xff]
      %v1063 = vld [vmem:[%s1 + $0x1590] sm:$0xff]
      %v1064 = vld [vmem:[%s1 + $0x1598] sm:$0xff]
      %v1065 = vld [vmem:[%s1 + $0x15a0] sm:$0xff]
      %v1066 = vld [vmem:[%s1 + $0x15a8] sm:$0xff]
      %v1067 = vld [vmem:[%s1 + $0x15b0] sm:$0xff]
      %v1068 = vld [vmem:[%s1 + $0x15b8] sm:$0xff]
      %v1069 = vld [vmem:[%s1 + $0x15c0] sm:$0xff]
      %v1070 = vld [vmem:[%s1 + $0x15c8] sm:$0xff]
      %v1071 = vld [vmem:[%s1 + $0x15d0] sm:$0xff]
      %v1072 = vld [vmem:[%s1 + $0x15d8] sm:$0xff]
      %v1073 = vld [vmem:[%s1 + $0x15e0] sm:$0xff]
      %v1074 = vld [vmem:[%s1 + $0x15e8] sm:$0xff]
      %v1075 = vld [vmem:[%s1 + $0x15f0] sm:$0xff]
      %v1076 = vld [vmem:[%s1 + $0x15f8] sm:$0xff]
      %v1077 = vld [vmem:[%s1 + $0x1600] sm:$0xff]
      %v1078 = vld [vmem:[%s1 + $0x1608] sm:$0xff]
      %v1079 = vld [vmem:[%s1 + $0x1610] sm:$0xff]
      %v1080 = vld [vmem:[%s1 + $0x1618] sm:$0xff]
      %v1081 = vld [vmem:[%s1 + $0x1620] sm:$0xff]
      %v1082 = vld [vmem:[%s1 + $0x1628] sm:$0xff]
      %v1083 = vld [vmem:[%s1 + $0x1630] sm:$0xff]
      %v1084 = vld [vmem:[%s1 + $0x1638] sm:$0xff]
      %v1085 = vld [vmem:[%s1 + $0x1640] sm:$0xff]
      %v1086 = vld [vmem:[%s1 + $0x1648] sm:$0xff]
      %v1087 = vld [vmem:[%s1 + $0x1650] sm:$0xff]
      %v1088 = vld [vmem:[%s1 + $0x1658] sm:$0xff]
      %v1089 = vld [vmem:[%s1 + $0x1660] sm:$0xff]
      %v1090 = vld [vmem:[%s1 + $0x1668] sm:$0xff]
      %v1091 = vld [vmem:[%s1 + $0x1670] sm:$0xff]
      %v1092 = vld [vmem:[%s1 + $0x1678] sm:$0xff]
      %v1093 = vld [vmem:[%s1 + $0x1680] sm:$0xff]
      %v1094 = vld [vmem:[%s1 + $0x1688] sm:$0xff]
      %v1095 = vld [vmem:[%s1 + $0x1690] sm:$0xff]
      %v1096 = vld [vmem:[%s1 + $0x1698] sm:$0xff]
      %v1097 = vld [vmem:[%s1 + $0x16a0] sm:$0xff]
      %v1098 = vld [vmem:[%s1 + $0x16a8] sm:$0xff]
      %v1099 = vld [vmem:[%s1 + $0x16b0] sm:$0xff]
      %v1100 = vld [vmem:[%s1 + $0x16b8] sm:$0xff]
      %v1101 = vld [vmem:[%s1 + $0x16c0] sm:$0xff]
      %v1102 = vld [vmem:[%s1 + $0x16c8] sm:$0xff]
      %v1103 = vld [vmem:[%s1 + $0x16d0] sm:$0xff]
      %v1104 = vld [vmem:[%s1 + $0x16d8] sm:$0xff]
      %v1105 = vld [vmem:[%s1 + $0x16e0] sm:$0xff]
      %v1106 = vld [vmem:[%s1 + $0x16e8] sm:$0xff]
      %v1107 = vld [vmem:[%s1 + $0x16f0] sm:$0xff]
      %v1108 = vld [vmem:[%s1 + $0x16f8] sm:$0xff]
      %v1109 = vld [vmem:[%s1 + $0x1700] sm:$0xff]
      %v1110 = vld [vmem:[%s1 + $0x1708] sm:$0xff]
      %v1111 = vld [vmem:[%s1 + $0x1710] sm:$0xff]
      %v1112 = vld [vmem:[%s1 + $0x1718] sm:$0xff]
      %v1113 = vld [vmem:[%s1 + $0x1720] sm:$0xff]
      %v1114 = vld [vmem:[%s1 + $0x1728] sm:$0xff]
      %v1115 = vld [vmem:[%s1 + $0x1730] sm:$0xff]
      %v1116 = vld [vmem:[%s1 + $0x1738] sm:$0xff]
      %v1117 = vld [vmem:[%s1 + $0x1740] sm:$0xff]
      %v1118 = vld [vmem:[%s1 + $0x1748] sm:$0xff]
      %v1119 = vld [vmem:[%s1 + $0x1750] sm:$0xff]
      %v1120 = vld [vmem:[%s1 + $0x1758] sm:$0xff]
      %v1121 = vld [vmem:[%s1 + $0x1760] sm:$0xff]
      %v1122 = vld [vmem:[%s1 + $0x1768] sm:$0xff]
      %v1123 = vld [vmem:[%s1 + $0x1770] sm:$0xff]
      %v1124 = vld [vmem:[%s1 + $0x1778] sm:$0xff]
      %v1125 = vld [vmem:[%s1 + $0x1780] sm:$0xff]
      %v1126 = vld [vmem:[%s1 + $0x1788] sm:$0xff]
      %v1127 = vld [vmem:[%s1 + $0x1790] sm:$0xff]
      %v1128 = vld [vmem:[%s1 + $0x1798] sm:$0xff]
      %v1129 = vld [vmem:[%s1 + $0x17a0] sm:$0xff]
      %v1130 = vld [vmem:[%s1 + $0x17a8] sm:$0xff]
      %v1131 = vld [vmem:[%s1 + $0x17b0] sm:$0xff]
      %v1132 = vld [vmem:[%s1 + $0x17b8] sm:$0xff]
      %v1133 = vld [vmem:[%s1 + $0x17c0] sm:$0xff]
      %v1134 = vld [vmem:[%s1 + $0x17c8] sm:$0xff]
      %v1135 = vld [vmem:[%s1 + $0x17d0] sm:$0xff]
      %v1136 = vld [vmem:[%s1 + $0x17d8] sm:$0xff]
      %v1137 = vld [vmem:[%s1 + $0x17e0] sm:$0xff]
      %v1138 = vld [vmem:[%s1 + $0x17e8] sm:$0xff]
      %v1139 = vld [vmem:[%s1 + $0x17f0] sm:$0xff]
      %v1140 = vld [vmem:[%s1 + $0x17f8] sm:$0xff]
      %v1141 = vld [vmem:[%s1 + $0x1800] sm:$0xff]
      %v1142 = vld [vmem:[%s1 + $0x1808] sm:$0xff]
      %v1143 = vld [vmem:[%s1 + $0x1810] sm:$0xff]
      %v1144 = vld [vmem:[%s1 + $0x1818] sm:$0xff]
      %v1145 = vld [vmem:[%s1 + $0x1820] sm:$0xff]
      %v1146 = vld [vmem:[%s1 + $0x1828] sm:$0xff]
      %v1147 = vld [vmem:[%s1 + $0x1830] sm:$0xff]
      %v1148 = vld [vmem:[%s1 + $0x1838] sm:$0xff]
      %v1149 = vld [vmem:[%s1 + $0x1840] sm:$0xff]
      %v1150 = vld [vmem:[%s1 + $0x1848] sm:$0xff]
      %v1151 = vld [vmem:[%s1 + $0x1850] sm:$0xff]
      %v1152 = vld [vmem:[%s1 + $0x1858] sm:$0xff]
      %v1153 = vld [vmem:[%s1 + $0x1860] sm:$0xff]
      %v1154 = vld [vmem:[%s1 + $0x1868] sm:$0xff]
      %v1155 = vld [vmem:[%s1 + $0x1870] sm:$0xff]
      %v1156 = vld [vmem:[%s1 + $0x1878] sm:$0xff]
      %v1157 = vld [vmem:[%s1 + $0x1880] sm:$0xff]
      %v1158 = vld [vmem:[%s1 + $0x1888] sm:$0xff]
      %v1159 = vld [vmem:[%s1 + $0x1890] sm:$0xff]
      %v1160 = vld [vmem:[%s1 + $0x1898] sm:$0xff]
      %v1161 = vld [vmem:[%s1 + $0x18a0] sm:$0xff]
      %v1162 = vld [vmem:[%s1 + $0x18a8] sm:$0xff]
      %v1163 = vld [vmem:[%s1 + $0x18b0] sm:$0xff]
      %v1164 = vld [vmem:[%s1 + $0x18b8] sm:$0xff]
      %v1165 = vld [vmem:[%s1 + $0x18c0] sm:$0xff]
      %v1166 = vld [vmem:[%s1 + $0x18c8] sm:$0xff]
      %v1167 = vld [vmem:[%s1 + $0x18d0] sm:$0xff]
      %v1168 = vld [vmem:[%s1 + $0x18d8] sm:$0xff]
      %v1169 = vld [vmem:[%s1 + $0x18e0] sm:$0xff]
      %v1170 = vld [vmem:[%s1 + $0x18e8] sm:$0xff]
      %v1171 = vld [vmem:[%s1 + $0x18f0] sm:$0xff]
      %v1172 = vld [vmem:[%s1 + $0x18f8] sm:$0xff]
      %v1173 = vld [vmem:[%s1 + $0x1900] sm:$0xff]
      %v1174 = vld [vmem:[%s1 + $0x1908] sm:$0xff]
      %v1175 = vld [vmem:[%s1 + $0x1910] sm:$0xff]
      %v1176 = vld [vmem:[%s1 + $0x1918] sm:$0xff]
      %v1177 = vld [vmem:[%s1 + $0x1920] sm:$0xff]
      %v1178 = vld [vmem:[%s1 + $0x1928] sm:$0xff]
      %v1179 = vld [vmem:[%s1 + $0x1930] sm:$0xff]
      %v1180 = vld [vmem:[%s1 + $0x1938] sm:$0xff]
      %v1181 = vld [vmem:[%s1 + $0x1940] sm:$0xff]
      %v1182 = vld [vmem:[%s1 + $0x1948] sm:$0xff]
      %v1183 = vld [vmem:[%s1 + $0x1950] sm:$0xff]
      %v1184 = vld [vmem:[%s1 + $0x1958] sm:$0xff]
      %v1185 = vld [vmem:[%s1 + $0x1960] sm:$0xff]
      %v1186 = vld [vmem:[%s1 + $0x1968] sm:$0xff]
      %v1187 = vld [vmem:[%s1 + $0x1970] sm:$0xff]
      %v1188 = vld [vmem:[%s1 + $0x1978] sm:$0xff]
      %v1189 = vld [vmem:[%s1 + $0x1980] sm:$0xff]
      %v1190 = vld [vmem:[%s1 + $0x1988] sm:$0xff]
      %v1191 = vld [vmem:[%s1 + $0x1990] sm:$0xff]
      %v1192 = vld [vmem:[%s1 + $0x1998] sm:$0xff]
      %v1193 = vld [vmem:[%s1 + $0x19a0] sm:$0xff]
      %v1194 = vld [vmem:[%s1 + $0x19a8] sm:$0xff]
      %v1195 = vld [vmem:[%s1 + $0x19b0] sm:$0xff]
      %v1196 = vld [vmem:[%s1 + $0x19b8] sm:$0xff]
      %v1197 = vld [vmem:[%s1 + $0x19c0] sm:$0xff]
      %v1198 = vld [vmem:[%s1 + $0x19c8] sm:$0xff]
      %v1199 = vld [vmem:[%s1 + $0x19d0] sm:$0xff]
      %v1200 = vld [vmem:[%s1 + $0x19d8] sm:$0xff]
      %v1201 = vld [vmem:[%s1 + $0x19e0] sm:$0xff]
      %v1202 = vld [vmem:[%s1 + $0x19e8] sm:$0xff]
      %v1203 = vld [vmem:[%s1 + $0x19f0] sm:$0xff]
      %v1204 = vld [vmem:[%s1 + $0x19f8] sm:$0xff]
      %v1205 = vld [vmem:[%s1 + $0x1a00] sm:$0xff]
      %v1206 = vld [vmem:[%s1 + $0x1a08] sm:$0xff]
      %v1207 = vld [vmem:[%s1 + $0x1a10] sm:$0xff]
      %v1208 = vld [vmem:[%s1 + $0x1a18] sm:$0xff]
      %v1209 = vld [vmem:[%s1 + $0x1a20] sm:$0xff]
      %v1210 = vld [vmem:[%s1 + $0x1a28] sm:$0xff]
      %v1211 = vld [vmem:[%s1 + $0x1a30] sm:$0xff]
      %v1212 = vld [vmem:[%s1 + $0x1a38] sm:$0xff]
      %v1213 = vld [vmem:[%s1 + $0x1a40] sm:$0xff]
      %v1214 = vld [vmem:[%s1 + $0x1a48] sm:$0xff]
      %v1215 = vld [vmem:[%s1 + $0x1a50] sm:$0xff]
      %v1216 = vld [vmem:[%s1 + $0x1a58] sm:$0xff]
      %v1217 = vld [vmem:[%s1 + $0x1a60] sm:$0xff]
      %v1218 = vld [vmem:[%s1 + $0x1a68] sm:$0xff]
      %v1219 = vld [vmem:[%s1 + $0x1a70] sm:$0xff]
      %v1220 = vld [vmem:[%s1 + $0x1a78] sm:$0xff]
      %v1221 = vld [vmem:[%s1 + $0x1a80] sm:$0xff]
      %v1222 = vld [vmem:[%s1 + $0x1a88] sm:$0xff]
      %v1223 = vld [vmem:[%s1 + $0x1a90] sm:$0xff]
      %v1224 = vld [vmem:[%s1 + $0x1a98] sm:$0xff]
      %v1225 = vld [vmem:[%s1 + $0x1aa0] sm:$0xff]
      %v1226 = vld [vmem:[%s1 + $0x1aa8] sm:$0xff]
      %v1227 = vld [vmem:[%s1 + $0x1ab0] sm:$0xff]
      %v1228 = vld [vmem:[%s1 + $0x1ab8] sm:$0xff]
      %v1229 = vld [vmem:[%s1 + $0x1ac0] sm:$0xff]
      %v1230 = vld [vmem:[%s1 + $0x1ac8] sm:$0xff]
      %v1231 = vld [vmem:[%s1 + $0x1ad0] sm:$0xff]
      %v1232 = vld [vmem:[%s1 + $0x1ad8] sm:$0xff]
      %v1233 = vld [vmem:[%s1 + $0x1ae0] sm:$0xff]
      %v1234 = vld [vmem:[%s1 + $0x1ae8] sm:$0xff]
      %v1235 = vld [vmem:[%s1 + $0x1af0] sm:$0xff]
      %v1236 = vld [vmem:[%s1 + $0x1af8] sm:$0xff]
      %v1237 = vld [vmem:[%s1 + $0x1b00] sm:$0xff]
      %v1238 = vld [vmem:[%s1 + $0x1b08] sm:$0xff]
      %v1239 = vld [vmem:[%s1 + $0x1b10] sm:$0xff]
      %v1240 = vld [vmem:[%s1 + $0x1b18] sm:$0xff]
      %v1241 = vld [vmem:[%s1 + $0x1b20] sm:$0xff]
      %v1242 = vld [vmem:[%s1 + $0x1b28] sm:$0xff]
      %v1243 = vld [vmem:[%s1 + $0x1b30] sm:$0xff]
      %v1244 = vld [vmem:[%s1 + $0x1b38] sm:$0xff]
      %v1245 = vld [vmem:[%s1 + $0x1b40] sm:$0xff]
      %v1246 = vld [vmem:[%s1 + $0x1b48] sm:$0xff]
      %v1247 = vld [vmem:[%s1 + $0x1b50] sm:$0xff]
      %v1248 = vld [vmem:[%s1 + $0x1b58] sm:$0xff]
      %v1249 = vld [vmem:[%s1 + $0x1b60] sm:$0xff]
      %v1250 = vld [vmem:[%s1 + $0x1b68] sm:$0xff]
      %v1251 = vld [vmem:[%s1 + $0x1b70] sm:$0xff]
      %v1252 = vld [vmem:[%s1 + $0x1b78] sm:$0xff]
      %v1253 = vld [vmem:[%s1 + $0x1b80] sm:$0xff]
      %v1254 = vld [vmem:[%s1 + $0x1b88] sm:$0xff]
      %v1255 = vld [vmem:[%s1 + $0x1b90] sm:$0xff]
      %v1256 = vld [vmem:[%s1 + $0x1b98] sm:$0xff]
      %v1257 = vld [vmem:[%s1 + $0x1ba0] sm:$0xff]
      %v1258 = vld [vmem:[%s1 + $0x1ba8] sm:$0xff]
      %v1259 = vld [vmem:[%s1 + $0x1bb0] sm:$0xff]
      %v1260 = vld [vmem:[%s1 + $0x1bb8] sm:$0xff]
      %v1261 = vld [vmem:[%s1 + $0x1bc0] sm:$0xff]
      %v1262 = vld [vmem:[%s1 + $0x1bc8] sm:$0xff]
      %v1263 = vld [vmem:[%s1 + $0x1bd0] sm:$0xff]
      %v1264 = vld [vmem:[%s1 + $0x1bd8] sm:$0xff]
      %v1265 = vld [vmem:[%s1 + $0x1be0] sm:$0xff]
      %v1266 = vld [vmem:[%s1 + $0x1be8] sm:$0xff]
      %v1267 = vld [vmem:[%s1 + $0x1bf0] sm:$0xff]
      %v1268 = vld [vmem:[%s1 + $0x1bf8] sm:$0xff]
      %v1269 = vld [vmem:[%s1 + $0x1c00] sm:$0xff]
      %v1270 = vld [vmem:[%s1 + $0x1c08] sm:$0xff]
      %v1271 = vld [vmem:[%s1 + $0x1c10] sm:$0xff]
      %v1272 = vld [vmem:[%s1 + $0x1c18] sm:$0xff]
      %v1273 = vld [vmem:[%s1 + $0x1c20] sm:$0xff]
      %v1274 = vld [vmem:[%s1 + $0x1c28] sm:$0xff]
      %v1275 = vld [vmem:[%s1 + $0x1c30] sm:$0xff]
      %v1276 = vld [vmem:[%s1 + $0x1c38] sm:$0xff]
      %v1277 = vld [vmem:[%s1 + $0x1c40] sm:$0xff]
      %v1278 = vld [vmem:[%s1 + $0x1c48] sm:$0xff]
      %v1279 = vld [vmem:[%s1 + $0x1c50] sm:$0xff]
      %v1280 = vld [vmem:[%s1 + $0x1c58] sm:$0xff]
      %v1281 = vld [vmem:[%s1 + $0x1c60] sm:$0xff]
      %v1282 = vld [vmem:[%s1 + $0x1c68] sm:$0xff]
      %v1283 = vld [vmem:[%s1 + $0x1c70] sm:$0xff]
      %v1284 = vld [vmem:[%s1 + $0x1c78] sm:$0xff]
      %v1285 = vld [vmem:[%s1 + $0x1c80] sm:$0xff]
      %v1286 = vld [vmem:[%s1 + $0x1c88] sm:$0xff]
      %v1287 = vld [vmem:[%s1 + $0x1c90] sm:$0xff]
      %v1288 = vld [vmem:[%s1 + $0x1c98] sm:$0xff]
      %v1289 = vld [vmem:[%s1 + $0x1ca0] sm:$0xff]
      %v1290 = vld [vmem:[%s1 + $0x1ca8] sm:$0xff]
      %v1291 = vld [vmem:[%s1 + $0x1cb0] sm:$0xff]
      %v1292 = vld [vmem:[%s1 + $0x1cb8] sm:$0xff]
      %v1293 = vld [vmem:[%s1 + $0x1cc0] sm:$0xff]
      %v1294 = vld [vmem:[%s1 + $0x1cc8] sm:$0xff]
      %v1295 = vld [vmem:[%s1 + $0x1cd0] sm:$0xff]
      %v1296 = vld [vmem:[%s1 + $0x1cd8] sm:$0xff]
      %v1297 = vld [vmem:[%s1 + $0x1ce0] sm:$0xff]
      %v1298 = vld [vmem:[%s1 + $0x1ce8] sm:$0xff]
      %v1299 = vld [vmem:[%s1 + $0x1cf0] sm:$0xff]
      %v1300 = vld [vmem:[%s1 + $0x1cf8] sm:$0xff]
      %v1301 = vld [vmem:[%s1 + $0x1d00] sm:$0xff]
      %v1302 = vld [vmem:[%s1 + $0x1d08] sm:$0xff]
      %v1303 = vld [vmem:[%s1 + $0x1d10] sm:$0xff]
      %v1304 = vld [vmem:[%s1 + $0x1d18] sm:$0xff]
      %v1305 = vld [vmem:[%s1 + $0x1d20] sm:$0xff]
      %v1306 = vld [vmem:[%s1 + $0x1d28] sm:$0xff]
      %v1307 = vld [vmem:[%s1 + $0x1d30] sm:$0xff]
      %v1308 = vld [vmem:[%s1 + $0x1d38] sm:$0xff]
      %v1309 = vld [vmem:[%s1 + $0x1d40] sm:$0x77]
      %v1310 = vld [vmem:[%s1 + $0x1d48] sm:$0x77]
      %v1326 = vunpack.c.l.b16 %v358
      %v1327 = vunpack.c.h.b16 %v358
      %v1328 = vunpack.c.l.b16 %v359
      %v1329 = vunpack.c.h.b16 %v359
      %v1330 = vunpack.c.l.b16 %v360
      %v1331 = vunpack.c.h.b16 %v360
      %v1332 = vunpack.c.l.b16 %v361
      %v1333 = vunpack.c.h.b16 %v361
      %v1334 = vunpack.c.l.b16 %v362
      %v1335 = vunpack.c.h.b16 %v362
      %v1336 = vunpack.c.l.b16 %v363
      %v1337 = vunpack.c.h.b16 %v363
      %v1338 = vunpack.c.l.b16 %v364
      %v1339 = vunpack.c.h.b16 %v364
      %v1340 = vunpack.c.l.b16 %v365
      %v1341 = vunpack.c.h.b16 %v365
      %v1342 = vunpack.c.l.b16 %v366
      %v1343 = vunpack.c.h.b16 %v366
      %v1344 = vunpack.c.l.b16 %v367
      %v1345 = vunpack.c.h.b16 %v367
      %v1346 = vunpack.c.l.b16 %v368
      %v1347 = vunpack.c.h.b16 %v368
      %v1348 = vunpack.c.l.b16 %v369
      %v1349 = vunpack.c.h.b16 %v369
      %v1350 = vunpack.c.l.b16 %v370
      %v1351 = vunpack.c.h.b16 %v370
      %v1352 = vunpack.c.l.b16 %v371
      %v1353 = vunpack.c.h.b16 %v371
      %v1354 = vunpack.c.l.b16 %v372
      %v1355 = vunpack.c.h.b16 %v372
      %v1356 = vpack.c.b16 %v1326, %v1326
      %v1357 = vpack.c.b16 %v1327, %v1327
      %v1358 = vpack.c.b16 %v1328, %v1328
      %v1359 = vpack.c.b16 %v1329, %v1329
      %v1360 = vpack.c.b16 %v1330, %v1330
      %v1361 = vpack.c.b16 %v1331, %v1331
      %v1362 = vpack.c.b16 %v1332, %v1332
      %v1363 = vpack.c.b16 %v1333, %v1333
      %v1364 = vpack.c.b16 %v1334, %v1334
      %v1365 = vpack.c.b16 %v1335, %v1335
      %v1366 = vpack.c.b16 %v1336, %v1336
      %v1367 = vpack.c.b16 %v1337, %v1337
      %v1368 = vpack.c.b16 %v1338, %v1338
      %v1369 = vpack.c.b16 %v1339, %v1339
      %v1370 = vpack.c.b16 %v1340, %v1340
      %v1371 = vpack.c.b16 %v1341, %v1341
      %v1372 = vpack.c.b16 %v1342, %v1342
      %v1373 = vpack.c.b16 %v1343, %v1343
      %v1374 = vpack.c.b16 %v1344, %v1344
      %v1375 = vpack.c.b16 %v1345, %v1345
      %v1376 = vpack.c.b16 %v1346, %v1346
      %v1377 = vpack.c.b16 %v1347, %v1347
      %v1378 = vpack.c.b16 %v1348, %v1348
      %v1379 = vpack.c.b16 %v1349, %v1349
      %v1380 = vpack.c.b16 %v1350, %v1350
      %v1381 = vpack.c.b16 %v1351, %v1351
      %v1382 = vpack.c.b16 %v1352, %v1352
      %v1383 = vpack.c.b16 %v1353, %v1353
      %v1384 = vpack.c.b16 %v1354, %v1354
      %v1385 = vpack.c.b16 %v1355, %v1355
      %v2353 = vunpack.c.l.b16 %v373
      %v2354 = vunpack.c.h.b16 %v373
      %v2355 = vunpack.c.l.b16 %v374
      %v2356 = vunpack.c.h.b16 %v374
      %v2357 = vunpack.c.l.b16 %v375
      %v2358 = vunpack.c.h.b16 %v375
      %v2359 = vunpack.c.l.b16 %v376
      %v2360 = vunpack.c.h.b16 %v376
      %v2361 = vunpack.c.l.b16 %v377
      %v2362 = vunpack.c.h.b16 %v377
      %v2363 = vunpack.c.l.b16 %v378
      %v2364 = vunpack.c.h.b16 %v378
      %v2365 = vunpack.c.l.b16 %v379
      %v2366 = vunpack.c.h.b16 %v379
      %v2367 = vunpack.c.l.b16 %v380
      %v2368 = vunpack.c.h.b16 %v380
      %v2369 = vunpack.c.l.b16 %v381
      %v2370 = vunpack.c.h.b16 %v381
      %v2371 = vunpack.c.l.b16 %v382
      %v2372 = vunpack.c.h.b16 %v382
      %v2373 = vunpack.c.l.b16 %v383
      %v2374 = vunpack.c.h.b16 %v383
      %v2375 = vunpack.c.l.b16 %v384
      %v2376 = vunpack.c.h.b16 %v384
      %v2377 = vunpack.c.l.b16 %v385
      %v2378 = vunpack.c.h.b16 %v385
      %v2379 = vunpack.c.l.b16 %v386
      %v2380 = vunpack.c.h.b16 %v386
      %v2381 = vunpack.c.l.b16 %v387
      %v2382 = vunpack.c.h.b16 %v387
      %v2383 = vunpack.c.l.b16 %v388
      %v2384 = vunpack.c.h.b16 %v388
      %v2385 = vunpack.c.l.b16 %v389
      %v2386 = vunpack.c.h.b16 %v389
      %v2387 = vunpack.c.l.b16 %v390
      %v2388 = vunpack.c.h.b16 %v390
      %v2389 = vunpack.c.l.b16 %v391
      %v2390 = vunpack.c.h.b16 %v391
      %v2391 = vunpack.c.l.b16 %v392
      %v2392 = vunpack.c.h.b16 %v392
      %v2393 = vunpack.c.l.b16 %v393
      %v2394 = vunpack.c.h.b16 %v393
      %v2395 = vunpack.c.l.b16 %v394
      %v2396 = vunpack.c.h.b16 %v394
      %v2397 = vunpack.c.l.b16 %v395
      %v2398 = vunpack.c.h.b16 %v395
      %v2399 = vunpack.c.l.b16 %v396
      %v2400 = vunpack.c.h.b16 %v396
      %v2401 = vunpack.c.l.b16 %v397
      %v2402 = vunpack.c.h.b16 %v397
      %v2403 = vunpack.c.l.b16 %v398
      %v2404 = vunpack.c.h.b16 %v398
      %v2405 = vunpack.c.l.b16 %v399
      %v2406 = vunpack.c.h.b16 %v399
      %v2407 = vunpack.c.l.b16 %v400
      %v2408 = vunpack.c.h.b16 %v400
      %v2409 = vunpack.c.l.b16 %v401
      %v2410 = vunpack.c.h.b16 %v401
      %v2411 = vunpack.c.l.b16 %v402
      %v2412 = vunpack.c.h.b16 %v402
      %v2413 = vunpack.c.l.b16 %v403
      %v2414 = vunpack.c.h.b16 %v403
      %v2415 = vunpack.c.l.b16 %v404
      %v2416 = vunpack.c.h.b16 %v404
      %v2417 = vunpack.c.l.b16 %v405
      %v2418 = vunpack.c.h.b16 %v405
      %v2419 = vunpack.c.l.b16 %v406
      %v2420 = vunpack.c.h.b16 %v406
      %v2421 = vunpack.c.l.b16 %v407
      %v2422 = vunpack.c.h.b16 %v407
      %v2423 = vunpack.c.l.b16 %v408
      %v2424 = vunpack.c.h.b16 %v408
      %v2425 = vunpack.c.l.b16 %v409
      %v2426 = vunpack.c.h.b16 %v409
      %v2427 = vunpack.c.l.b16 %v410
      %v2428 = vunpack.c.h.b16 %v410
      %v2429 = vunpack.c.l.b16 %v411
      %v2430 = vunpack.c.h.b16 %v411
      %v2431 = vunpack.c.l.b16 %v412
      %v2432 = vunpack.c.h.b16 %v412
      %v2433 = vunpack.c.l.b16 %v413
      %v2434 = vunpack.c.h.b16 %v413
      %v2435 = vunpack.c.l.b16 %v414
      %v2436 = vunpack.c.h.b16 %v414
      %v2437 = vunpack.c.l.b16 %v415
      %v2438 = vunpack.c.h.b16 %v415
      %v2439 = vunpack.c.l.b16 %v416
      %v2440 = vunpack.c.h.b16 %v416
      %v2441 = vunpack.c.l.b16 %v417
      %v2442 = vunpack.c.h.b16 %v417
      %v2443 = vunpack.c.l.b16 %v418
      %v2444 = vunpack.c.h.b16 %v418
      %v2445 = vunpack.c.l.b16 %v419
      %v2446 = vunpack.c.h.b16 %v419
      %v2447 = vunpack.c.l.b16 %v420
      %v2448 = vunpack.c.h.b16 %v420
      %v2449 = vunpack.c.l.b16 %v421
      %v2450 = vunpack.c.h.b16 %v421
      %v2451 = vunpack.c.l.b16 %v422
      %v2452 = vunpack.c.h.b16 %v422
      %v2453 = vunpack.c.l.b16 %v423
      %v2454 = vunpack.c.h.b16 %v423
      %v2455 = vunpack.c.l.b16 %v424
      %v2456 = vunpack.c.h.b16 %v424
      %v2457 = vunpack.c.l.b16 %v425
      %v2458 = vunpack.c.h.b16 %v425
      %v2459 = vunpack.c.l.b16 %v426
      %v2460 = vunpack.c.h.b16 %v426
      %v2461 = vunpack.c.l.b16 %v427
      %v2462 = vunpack.c.h.b16 %v427
      %v2463 = vunpack.c.l.b16 %v428
      %v2464 = vunpack.c.h.b16 %v428
      %v2465 = vunpack.c.l.b16 %v429
      %v2466 = vunpack.c.h.b16 %v429
      %v2467 = vunpack.c.l.b16 %v430
      %v2468 = vunpack.c.h.b16 %v430
      %v2469 = vunpack.c.l.b16 %v431
      %v2470 = vunpack.c.h.b16 %v431
      %v2471 = vunpack.c.l.b16 %v432
      %v2472 = vunpack.c.h.b16 %v432
      %v2473 = vunpack.c.l.b16 %v433
      %v2474 = vunpack.c.h.b16 %v433
      %v2475 = vunpack.c.l.b16 %v434
      %v2476 = vunpack.c.h.b16 %v434
      %v2477 = vunpack.c.l.b16 %v435
      %v2478 = vunpack.c.h.b16 %v435
      %v2479 = vunpack.c.l.b16 %v436
      %v2480 = vunpack.c.h.b16 %v436
      %v2481 = vunpack.c.l.b16 %v437
      %v2482 = vunpack.c.h.b16 %v437
      %v2483 = vunpack.c.l.b16 %v438
      %v2484 = vunpack.c.h.b16 %v438
      %v2485 = vunpack.c.l.b16 %v439
      %v2486 = vunpack.c.h.b16 %v439
      %v2487 = vunpack.c.l.b16 %v440
      %v2488 = vunpack.c.h.b16 %v440
      %v2489 = vunpack.c.l.b16 %v441
      %v2490 = vunpack.c.h.b16 %v441
      %v2491 = vunpack.c.l.b16 %v442
      %v2492 = vunpack.c.h.b16 %v442
      %v2493 = vunpack.c.l.b16 %v443
      %v2494 = vunpack.c.h.b16 %v443
      %v2495 = vunpack.c.l.b16 %v444
      %v2496 = vunpack.c.h.b16 %v444
      %v2497 = vunpack.c.l.b16 %v445
      %v2498 = vunpack.c.h.b16 %v445
      %v2499 = vunpack.c.l.b16 %v446
      %v2500 = vunpack.c.h.b16 %v446
      %v2501 = vunpack.c.l.b16 %v447
      %v2502 = vunpack.c.h.b16 %v447
      %v2503 = vunpack.c.l.b16 %v448
      %v2504 = vunpack.c.h.b16 %v448
      %v2505 = vunpack.c.l.b16 %v449
      %v2506 = vunpack.c.h.b16 %v449
      %v2507 = vunpack.c.l.b16 %v450
      %v2508 = vunpack.c.h.b16 %v450
      %v2509 = vunpack.c.l.b16 %v451
      %v2510 = vunpack.c.h.b16 %v451
      %v2511 = vunpack.c.l.b16 %v452
      %v2512 = vunpack.c.h.b16 %v452
      %v2513 = vunpack.c.l.b16 %v453
      %v2514 = vunpack.c.h.b16 %v453
      %v2515 = vunpack.c.l.b16 %v454
      %v2516 = vunpack.c.h.b16 %v454
      %v2517 = vunpack.c.l.b16 %v455
      %v2518 = vunpack.c.h.b16 %v455
      %v2519 = vunpack.c.l.b16 %v456
      %v2520 = vunpack.c.h.b16 %v456
      %v2521 = vunpack.c.l.b16 %v457
      %v2522 = vunpack.c.h.b16 %v457
      %v2523 = vunpack.c.l.b16 %v458
      %v2524 = vunpack.c.h.b16 %v458
      %v2525 = vunpack.c.l.b16 %v459
      %v2526 = vunpack.c.h.b16 %v459
      %v2527 = vunpack.c.l.b16 %v460
      %v2528 = vunpack.c.h.b16 %v460
      %v2529 = vunpack.c.l.b16 %v461
      %v2530 = vunpack.c.h.b16 %v461
      %v2531 = vunpack.c.l.b16 %v462
      %v2532 = vunpack.c.h.b16 %v462
      %v2533 = vunpack.c.l.b16 %v463
      %v2534 = vunpack.c.h.b16 %v463
      %v2535 = vunpack.c.l.b16 %v464
      %v2536 = vunpack.c.h.b16 %v464
      %v2537 = vunpack.c.l.b16 %v465
      %v2538 = vunpack.c.h.b16 %v465
      %v2539 = vunpack.c.l.b16 %v466
      %v2540 = vunpack.c.h.b16 %v466
      %v2541 = vunpack.c.l.b16 %v467
      %v2542 = vunpack.c.h.b16 %v467
      %v2543 = vunpack.c.l.b16 %v468
      %v2544 = vunpack.c.h.b16 %v468
      %v2545 = vunpack.c.l.b16 %v469
      %v2546 = vunpack.c.h.b16 %v469
      %v2547 = vunpack.c.l.b16 %v470
      %v2548 = vunpack.c.h.b16 %v470
      %v2549 = vunpack.c.l.b16 %v471
      %v2550 = vunpack.c.h.b16 %v471
      %v2551 = vunpack.c.l.b16 %v472
      %v2552 = vunpack.c.h.b16 %v472
      %v2553 = vunpack.c.l.b16 %v473
      %v2554 = vunpack.c.h.b16 %v473
      %v2555 = vunpack.c.l.b16 %v474
      %v2556 = vunpack.c.h.b16 %v474
      %v2557 = vunpack.c.l.b16 %v475
      %v2558 = vunpack.c.h.b16 %v475
      %v2559 = vunpack.c.l.b16 %v476
      %v2560 = vunpack.c.h.b16 %v476
      %v2561 = vunpack.c.l.b16 %v477
      %v2562 = vunpack.c.h.b16 %v477
      %v2563 = vunpack.c.l.b16 %v478
      %v2564 = vunpack.c.h.b16 %v478
      %v2565 = vunpack.c.l.b16 %v479
      %v2566 = vunpack.c.h.b16 %v479
      %v2567 = vunpack.c.l.b16 %v480
      %v2568 = vunpack.c.h.b16 %v480
      %v2569 = vunpack.c.l.b16 %v481
      %v2570 = vunpack.c.h.b16 %v481
      %v2571 = vunpack.c.l.b16 %v482
      %v2572 = vunpack.c.h.b16 %v482
      %v2573 = vunpack.c.l.b16 %v483
      %v2574 = vunpack.c.h.b16 %v483
      %v2575 = vunpack.c.l.b16 %v484
      %v2576 = vunpack.c.h.b16 %v484
      %v2577 = vunpack.c.l.b16 %v485
      %v2578 = vunpack.c.h.b16 %v485
      %v2579 = vunpack.c.l.b16 %v486
      %v2580 = vunpack.c.h.b16 %v486
      %v2581 = vunpack.c.l.b16 %v487
      %v2582 = vunpack.c.h.b16 %v487
      %v2583 = vunpack.c.l.b16 %v488
      %v2584 = vunpack.c.h.b16 %v488
      %v2585 = vunpack.c.l.b16 %v489
      %v2586 = vunpack.c.h.b16 %v489
      %v2587 = vunpack.c.l.b16 %v490
      %v2588 = vunpack.c.h.b16 %v490
      %v2589 = vunpack.c.l.b16 %v491
      %v2590 = vunpack.c.h.b16 %v491
      %v2591 = vunpack.c.l.b16 %v492
      %v2592 = vunpack.c.h.b16 %v492
      %v2593 = vunpack.c.l.b16 %v493
      %v2594 = vunpack.c.h.b16 %v493
      %v2595 = vunpack.c.l.b16 %v494
      %v2596 = vunpack.c.h.b16 %v494
      %v2597 = vunpack.c.l.b16 %v495
      %v2598 = vunpack.c.h.b16 %v495
      %v2599 = vunpack.c.l.b16 %v496
      %v2600 = vunpack.c.h.b16 %v496
      %v2601 = vunpack.c.l.b16 %v497
      %v2602 = vunpack.c.h.b16 %v497
      %v2603 = vunpack.c.l.b16 %v498
      %v2604 = vunpack.c.h.b16 %v498
      %v2605 = vunpack.c.l.b16 %v499
      %v2606 = vunpack.c.h.b16 %v499
      %v2607 = vunpack.c.l.b16 %v500
      %v2608 = vunpack.c.h.b16 %v500
      %v2609 = vunpack.c.l.b16 %v501
      %v2610 = vunpack.c.h.b16 %v501
      %v2611 = vunpack.c.l.b16 %v502
      %v2612 = vunpack.c.h.b16 %v502
      %v2613 = vunpack.c.l.b16 %v503
      %v2614 = vunpack.c.h.b16 %v503
      %v2615 = vunpack.c.l.b16 %v504
      %v2616 = vunpack.c.h.b16 %v504
      %v2617 = vunpack.c.l.b16 %v505
      %v2618 = vunpack.c.h.b16 %v505
      %v2619 = vunpack.c.l.b16 %v506
      %v2620 = vunpack.c.h.b16 %v506
      %v2621 = vunpack.c.l.b16 %v507
      %v2622 = vunpack.c.h.b16 %v507
      %v2623 = vunpack.c.l.b16 %v508
      %v2624 = vunpack.c.h.b16 %v508
      %v2625 = vunpack.c.l.b16 %v509
      %v2626 = vunpack.c.h.b16 %v509
      %v2627 = vunpack.c.l.b16 %v510
      %v2628 = vunpack.c.h.b16 %v510
      %v2629 = vunpack.c.l.b16 %v511
      %v2630 = vunpack.c.h.b16 %v511
      %v2631 = vunpack.c.l.b16 %v512
      %v2632 = vunpack.c.h.b16 %v512
      %v2633 = vunpack.c.l.b16 %v513
      %v2634 = vunpack.c.h.b16 %v513
      %v2635 = vunpack.c.l.b16 %v514
      %v2636 = vunpack.c.h.b16 %v514
      %v2637 = vunpack.c.l.b16 %v515
      %v2638 = vunpack.c.h.b16 %v515
      %v2639 = vunpack.c.l.b16 %v516
      %v2640 = vunpack.c.h.b16 %v516
      %v2641 = vunpack.c.l.b16 %v517
      %v2642 = vunpack.c.h.b16 %v517
      %v2643 = vunpack.c.l.b16 %v518
      %v2644 = vunpack.c.h.b16 %v518
      %v2645 = vunpack.c.l.b16 %v519
      %v2646 = vunpack.c.h.b16 %v519
      %v2647 = vunpack.c.l.b16 %v520
      %v2648 = vunpack.c.h.b16 %v520
      %v2649 = vunpack.c.l.b16 %v521
      %v2650 = vunpack.c.h.b16 %v521
      %v2651 = vunpack.c.l.b16 %v522
      %v2652 = vunpack.c.h.b16 %v522
      %v2653 = vunpack.c.l.b16 %v523
      %v2654 = vunpack.c.h.b16 %v523
      %v2655 = vunpack.c.l.b16 %v524
      %v2656 = vunpack.c.h.b16 %v524
      %v2657 = vunpack.c.l.b16 %v525
      %v2658 = vunpack.c.h.b16 %v525
      %v2659 = vunpack.c.l.b16 %v526
      %v2660 = vunpack.c.h.b16 %v526
      %v2661 = vunpack.c.l.b16 %v527
      %v2662 = vunpack.c.h.b16 %v527
      %v2663 = vunpack.c.l.b16 %v528
      %v2664 = vunpack.c.h.b16 %v528
      %v2665 = vunpack.c.l.b16 %v529
      %v2666 = vunpack.c.h.b16 %v529
      %v2667 = vunpack.c.l.b16 %v530
      %v2668 = vunpack.c.h.b16 %v530
      %v2669 = vunpack.c.l.b16 %v531
      %v2670 = vunpack.c.h.b16 %v531
      %v2671 = vunpack.c.l.b16 %v532
      %v2672 = vunpack.c.h.b16 %v532
      %v2673 = vunpack.c.l.b16 %v533
      %v2674 = vunpack.c.h.b16 %v533
      %v2675 = vunpack.c.l.b16 %v534
      %v2676 = vunpack.c.h.b16 %v534
      %v2677 = vunpack.c.l.b16 %v535
      %v2678 = vunpack.c.h.b16 %v535
      %v2679 = vunpack.c.l.b16 %v536
      %v2680 = vunpack.c.h.b16 %v536
      %v2681 = vunpack.c.l.b16 %v537
      %v2682 = vunpack.c.h.b16 %v537
      %v2683 = vunpack.c.l.b16 %v538
      %v2684 = vunpack.c.h.b16 %v538
      %v2685 = vunpack.c.l.b16 %v539
      %v2686 = vunpack.c.h.b16 %v539
      %v2687 = vunpack.c.l.b16 %v540
      %v2688 = vunpack.c.h.b16 %v540
      %v2689 = vunpack.c.l.b16 %v541
      %v2690 = vunpack.c.h.b16 %v541
      %v2691 = vunpack.c.l.b16 %v542
      %v2692 = vunpack.c.h.b16 %v542
      %v2693 = vunpack.c.l.b16 %v543
      %v2694 = vunpack.c.h.b16 %v543
      %v2695 = vunpack.c.l.b16 %v544
      %v2696 = vunpack.c.h.b16 %v544
      %v2697 = vunpack.c.l.b16 %v545
      %v2698 = vunpack.c.h.b16 %v545
      %v2699 = vunpack.c.l.b16 %v546
      %v2700 = vunpack.c.h.b16 %v546
      %v2701 = vunpack.c.l.b16 %v547
      %v2702 = vunpack.c.h.b16 %v547
      %v2703 = vunpack.c.l.b16 %v548
      %v2704 = vunpack.c.h.b16 %v548
      %v2705 = vunpack.c.l.b16 %v549
      %v2706 = vunpack.c.h.b16 %v549
      %v2707 = vunpack.c.l.b16 %v550
      %v2708 = vunpack.c.h.b16 %v550
      %v2709 = vunpack.c.l.b16 %v551
      %v2710 = vunpack.c.h.b16 %v551
      %v2711 = vunpack.c.l.b16 %v552
      %v2712 = vunpack.c.h.b16 %v552
      %v2713 = vunpack.c.l.b16 %v553
      %v2714 = vunpack.c.h.b16 %v553
      %v2715 = vunpack.c.l.b16 %v554
      %v2716 = vunpack.c.h.b16 %v554
      %v2717 = vunpack.c.l.b16 %v555
      %v2718 = vunpack.c.h.b16 %v555
      %v2719 = vunpack.c.l.b16 %v556
      %v2720 = vunpack.c.h.b16 %v556
      %v2721 = vunpack.c.l.b16 %v557
      %v2722 = vunpack.c.h.b16 %v557
      %v2723 = vunpack.c.l.b16 %v558
      %v2724 = vunpack.c.h.b16 %v558
      %v2725 = vunpack.c.l.b16 %v559
      %v2726 = vunpack.c.h.b16 %v559
      %v2727 = vunpack.c.l.b16 %v560
      %v2728 = vunpack.c.h.b16 %v560
      %v2729 = vunpack.c.l.b16 %v561
      %v2730 = vunpack.c.h.b16 %v561
      %v2731 = vunpack.c.l.b16 %v562
      %v2732 = vunpack.c.h.b16 %v562
      %v2733 = vunpack.c.l.b16 %v563
      %v2734 = vunpack.c.h.b16 %v563
      %v2735 = vunpack.c.l.b16 %v564
      %v2736 = vunpack.c.h.b16 %v564
      %v2737 = vunpack.c.l.b16 %v565
      %v2738 = vunpack.c.h.b16 %v565
      %v2739 = vunpack.c.l.b16 %v566
      %v2740 = vunpack.c.h.b16 %v566
      %v2741 = vunpack.c.l.b16 %v567
      %v2742 = vunpack.c.h.b16 %v567
      %v2743 = vunpack.c.l.b16 %v568
      %v2744 = vunpack.c.h.b16 %v568
      %v2745 = vunpack.c.l.b16 %v569
      %v2746 = vunpack.c.h.b16 %v569
      %v2747 = vunpack.c.l.b16 %v570
      %v2748 = vunpack.c.h.b16 %v570
      %v2749 = vunpack.c.l.b16 %v571
      %v2750 = vunpack.c.h.b16 %v571
      %v2751 = vunpack.c.l.b16 %v572
      %v2752 = vunpack.c.h.b16 %v572
      %v2753 = vunpack.c.l.b16 %v573
      %v2754 = vunpack.c.h.b16 %v573
      %v2755 = vunpack.c.l.b16 %v574
      %v2756 = vunpack.c.h.b16 %v574
      %v2757 = vunpack.c.l.b16 %v575
      %v2758 = vunpack.c.h.b16 %v575
      %v2759 = vunpack.c.l.b16 %v576
      %v2760 = vunpack.c.h.b16 %v576
      %v2761 = vunpack.c.l.b16 %v577
      %v2762 = vunpack.c.h.b16 %v577
      %v2763 = vunpack.c.l.b16 %v578
      %v2764 = vunpack.c.h.b16 %v578
      %v2765 = vunpack.c.l.b16 %v579
      %v2766 = vunpack.c.h.b16 %v579
      %v2767 = vunpack.c.l.b16 %v580
      %v2768 = vunpack.c.h.b16 %v580
      %v2769 = vunpack.c.l.b16 %v581
      %v2770 = vunpack.c.h.b16 %v581
      %v2771 = vunpack.c.l.b16 %v582
      %v2772 = vunpack.c.h.b16 %v582
      %v2773 = vunpack.c.l.b16 %v583
      %v2774 = vunpack.c.h.b16 %v583
      %v2775 = vunpack.c.l.b16 %v584
      %v2776 = vunpack.c.h.b16 %v584
      %v2777 = vunpack.c.l.b16 %v585
      %v2778 = vunpack.c.h.b16 %v585
      %v2779 = vunpack.c.l.b16 %v586
      %v2780 = vunpack.c.h.b16 %v586
      %v2781 = vunpack.c.l.b16 %v587
      %v2782 = vunpack.c.h.b16 %v587
      %v2783 = vunpack.c.l.b16 %v588
      %v2784 = vunpack.c.h.b16 %v588
      %v2785 = vunpack.c.l.b16 %v589
      %v2786 = vunpack.c.h.b16 %v589
      %v2787 = vunpack.c.l.b16 %v590
      %v2788 = vunpack.c.h.b16 %v590
      %v2789 = vunpack.c.l.b16 %v591
      %v2790 = vunpack.c.h.b16 %v591
      %v2791 = vunpack.c.l.b16 %v592
      %v2792 = vunpack.c.h.b16 %v592
      %v2793 = vunpack.c.l.b16 %v593
      %v2794 = vunpack.c.h.b16 %v593
      %v2795 = vunpack.c.l.b16 %v594
      %v2796 = vunpack.c.h.b16 %v594
      %v2797 = vunpack.c.l.b16 %v595
      %v2798 = vunpack.c.h.b16 %v595
      %v2799 = vunpack.c.l.b16 %v596
      %v2800 = vunpack.c.h.b16 %v596
      %v2801 = vunpack.c.l.b16 %v597
      %v2802 = vunpack.c.h.b16 %v597
      %v2803 = vunpack.c.l.b16 %v598
      %v2804 = vunpack.c.h.b16 %v598
      %v2805 = vunpack.c.l.b16 %v599
      %v2806 = vunpack.c.h.b16 %v599
      %v2807 = vunpack.c.l.b16 %v600
      %v2808 = vunpack.c.h.b16 %v600
      %v2809 = vunpack.c.l.b16 %v601
      %v2810 = vunpack.c.h.b16 %v601
      %v2811 = vunpack.c.l.b16 %v602
      %v2812 = vunpack.c.h.b16 %v602
      %v2813 = vunpack.c.l.b16 %v603
      %v2814 = vunpack.c.h.b16 %v603
      %v2815 = vunpack.c.l.b16 %v604
      %v2816 = vunpack.c.h.b16 %v604
      %v2817 = vunpack.c.l.b16 %v605
      %v2818 = vunpack.c.h.b16 %v605
      %v2819 = vunpack.c.l.b16 %v606
      %v2820 = vunpack.c.h.b16 %v606
      %v2821 = vunpack.c.l.b16 %v607
      %v2822 = vunpack.c.h.b16 %v607
      %v2823 = vunpack.c.l.b16 %v608
      %v2824 = vunpack.c.h.b16 %v608
      %v2825 = vunpack.c.l.b16 %v609
      %v2826 = vunpack.c.h.b16 %v609
      %v2827 = vunpack.c.l.b16 %v610
      %v2828 = vunpack.c.h.b16 %v610
      %v2829 = vunpack.c.l.b16 %v611
      %v2830 = vunpack.c.h.b16 %v611
      %v2831 = vunpack.c.l.b16 %v612
      %v2832 = vunpack.c.h.b16 %v612
      %v2833 = vunpack.c.l.b16 %v613
      %v2834 = vunpack.c.h.b16 %v613
      %v2835 = vunpack.c.l.b16 %v614
      %v2836 = vunpack.c.h.b16 %v614
      %v2837 = vunpack.c.l.b16 %v615
      %v2838 = vunpack.c.h.b16 %v615
      %v2839 = vunpack.c.l.b16 %v616
      %v2840 = vunpack.c.h.b16 %v616
      %v2841 = vunpack.c.l.b16 %v617
      %v2842 = vunpack.c.h.b16 %v617
      %v2843 = vunpack.c.l.b16 %v618
      %v2844 = vunpack.c.h.b16 %v618
      %v2845 = vunpack.c.l.b16 %v619
      %v2846 = vunpack.c.h.b16 %v619
      %v2847 = vunpack.c.l.b16 %v620
      %v2848 = vunpack.c.h.b16 %v620
      %v2849 = vunpack.c.l.b16 %v621
      %v2850 = vunpack.c.h.b16 %v621
      %v2851 = vunpack.c.l.b16 %v622
      %v2852 = vunpack.c.h.b16 %v622
      %v2853 = vunpack.c.l.b16 %v623
      %v2854 = vunpack.c.h.b16 %v623
      %v2855 = vunpack.c.l.b16 %v624
      %v2856 = vunpack.c.h.b16 %v624
      %v2857 = vunpack.c.l.b16 %v625
      %v2858 = vunpack.c.h.b16 %v625
      %v2859 = vunpack.c.l.b16 %v626
      %v2860 = vunpack.c.h.b16 %v626
      %v2861 = vunpack.c.l.b16 %v627
      %v2862 = vunpack.c.h.b16 %v627
      %v2863 = vunpack.c.l.b16 %v628
      %v2864 = vunpack.c.h.b16 %v628
      %v2865 = vunpack.c.l.b16 %v629
      %v2866 = vunpack.c.h.b16 %v629
      %v2867 = vunpack.c.l.b16 %v630
      %v2868 = vunpack.c.h.b16 %v630
      %v2869 = vunpack.c.l.b16 %v631
      %v2870 = vunpack.c.h.b16 %v631
      %v2871 = vunpack.c.l.b16 %v632
      %v2872 = vunpack.c.h.b16 %v632
      %v2873 = vunpack.c.l.b16 %v633
      %v2874 = vunpack.c.h.b16 %v633
      %v2875 = vunpack.c.l.b16 %v634
      %v2876 = vunpack.c.h.b16 %v634
      %v2877 = vunpack.c.l.b16 %v635
      %v2878 = vunpack.c.h.b16 %v635
      %v2879 = vunpack.c.l.b16 %v636
      %v2880 = vunpack.c.h.b16 %v636
      %v2881 = vunpack.c.l.b16 %v637
      %v2882 = vunpack.c.h.b16 %v637
      %v2883 = vunpack.c.l.b16 %v638
      %v2884 = vunpack.c.h.b16 %v638
      %v2885 = vunpack.c.l.b16 %v639
      %v2886 = vunpack.c.h.b16 %v639
      %v2887 = vunpack.c.l.b16 %v640
      %v2888 = vunpack.c.h.b16 %v640
      %v2889 = vunpack.c.l.b16 %v641
      %v2890 = vunpack.c.h.b16 %v641
      %v2891 = vunpack.c.l.b16 %v642
      %v2892 = vunpack.c.h.b16 %v642
      %v2893 = vunpack.c.l.b16 %v643
      %v2894 = vunpack.c.h.b16 %v643
      %v2895 = vunpack.c.l.b16 %v644
      %v2896 = vunpack.c.h.b16 %v644
      %v2897 = vunpack.c.l.b16 %v645
      %v2898 = vunpack.c.h.b16 %v645
      %v2899 = vunpack.c.l.b16 %v646
      %v2900 = vunpack.c.h.b16 %v646
      %v2901 = vunpack.c.l.b16 %v647
      %v2902 = vunpack.c.h.b16 %v647
      %v2903 = vunpack.c.l.b16 %v648
      %v2904 = vunpack.c.h.b16 %v648
      %v2905 = vunpack.c.l.b16 %v649
      %v2906 = vunpack.c.h.b16 %v649
      %v2907 = vunpack.c.l.b16 %v650
      %v2908 = vunpack.c.h.b16 %v650
      %v2909 = vunpack.c.l.b16 %v651
      %v2910 = vunpack.c.h.b16 %v651
      %v2911 = vunpack.c.l.b16 %v652
      %v2912 = vunpack.c.h.b16 %v652
      %v2913 = vunpack.c.l.b16 %v653
      %v2914 = vunpack.c.h.b16 %v653
      %v2915 = vunpack.c.l.b16 %v654
      %v2916 = vunpack.c.h.b16 %v654
      %v2917 = vunpack.c.l.b16 %v655
      %v2918 = vunpack.c.h.b16 %v655
      %v2919 = vunpack.c.l.b16 %v656
      %v2920 = vunpack.c.h.b16 %v656
      %v2921 = vunpack.c.l.b16 %v657
      %v2922 = vunpack.c.h.b16 %v657
      %v2923 = vunpack.c.l.b16 %v658
      %v2924 = vunpack.c.h.b16 %v658
      %v2925 = vunpack.c.l.b16 %v659
      %v2926 = vunpack.c.h.b16 %v659
      %v2927 = vunpack.c.l.b16 %v660
      %v2928 = vunpack.c.h.b16 %v660
      %v2929 = vunpack.c.l.b16 %v661
      %v2930 = vunpack.c.h.b16 %v661
      %v2931 = vunpack.c.l.b16 %v662
      %v2932 = vunpack.c.h.b16 %v662
      %v2933 = vunpack.c.l.b16 %v663
      %v2934 = vunpack.c.h.b16 %v663
      %v2935 = vunpack.c.l.b16 %v664
      %v2936 = vunpack.c.h.b16 %v664
      %v2937 = vunpack.c.l.b16 %v665
      %v2938 = vunpack.c.h.b16 %v665
      %v2939 = vunpack.c.l.b16 %v666
      %v2940 = vunpack.c.h.b16 %v666
      %v2941 = vunpack.c.l.b16 %v667
      %v2942 = vunpack.c.h.b16 %v667
      %v2943 = vunpack.c.l.b16 %v668
      %v2944 = vunpack.c.h.b16 %v668
      %v2945 = vunpack.c.l.b16 %v669
      %v2946 = vunpack.c.h.b16 %v669
      %v2947 = vunpack.c.l.b16 %v670
      %v2948 = vunpack.c.h.b16 %v670
      %v2949 = vunpack.c.l.b16 %v671
      %v2950 = vunpack.c.h.b16 %v671
      %v2951 = vunpack.c.l.b16 %v672
      %v2952 = vunpack.c.h.b16 %v672
      %v2953 = vunpack.c.l.b16 %v673
      %v2954 = vunpack.c.h.b16 %v673
      %v2955 = vunpack.c.l.b16 %v674
      %v2956 = vunpack.c.h.b16 %v674
      %v2957 = vunpack.c.l.b16 %v675
      %v2958 = vunpack.c.h.b16 %v675
      %v2959 = vunpack.c.l.b16 %v676
      %v2960 = vunpack.c.h.b16 %v676
      %v2961 = vunpack.c.l.b16 %v677
      %v2962 = vunpack.c.h.b16 %v677
      %v2963 = vunpack.c.l.b16 %v678
      %v2964 = vunpack.c.h.b16 %v678
      %v2965 = vunpack.c.l.b16 %v679
      %v2966 = vunpack.c.h.b16 %v679
      %v2967 = vunpack.c.l.b16 %v680
      %v2968 = vunpack.c.h.b16 %v680
      %v2969 = vunpack.c.l.b16 %v681
      %v2970 = vunpack.c.h.b16 %v681
      %v2971 = vunpack.c.l.b16 %v682
      %v2972 = vunpack.c.h.b16 %v682
      %v2973 = vunpack.c.l.b16 %v683
      %v2974 = vunpack.c.h.b16 %v683
      %v2975 = vunpack.c.l.b16 %v684
      %v2976 = vunpack.c.h.b16 %v684
      %v2977 = vunpack.c.l.b16 %v685
      %v2978 = vunpack.c.h.b16 %v685
      %v2979 = vunpack.c.l.b16 %v686
      %v2980 = vunpack.c.h.b16 %v686
      %v2981 = vunpack.c.l.b16 %v687
      %v2982 = vunpack.c.h.b16 %v687
      %v2983 = vunpack.c.l.b16 %v688
      %v2984 = vunpack.c.h.b16 %v688
      %v2985 = vunpack.c.l.b16 %v689
      %v2986 = vunpack.c.h.b16 %v689
      %v2987 = vunpack.c.l.b16 %v690
      %v2988 = vunpack.c.h.b16 %v690
      %v2989 = vunpack.c.l.b16 %v691
      %v2990 = vunpack.c.h.b16 %v691
      %v2991 = vunpack.c.l.b16 %v692
      %v2992 = vunpack.c.h.b16 %v692
      %v2993 = vunpack.c.l.b16 %v693
      %v2994 = vunpack.c.h.b16 %v693
      %v2995 = vunpack.c.l.b16 %v694
      %v2996 = vunpack.c.h.b16 %v694
      %v2997 = vunpack.c.l.b16 %v695
      %v2998 = vunpack.c.h.b16 %v695
      %v2999 = vunpack.c.l.b16 %v696
      %v3000 = vunpack.c.h.b16 %v696
      %v3001 = vunpack.c.l.b16 %v697
      %v3002 = vunpack.c.h.b16 %v697
      %v3003 = vunpack.c.l.b16 %v698
      %v3004 = vunpack.c.h.b16 %v698
      %v3005 = vunpack.c.l.b16 %v699
      %v3006 = vunpack.c.h.b16 %v699
      %v3007 = vunpack.c.l.b16 %v700
      %v3008 = vunpack.c.h.b16 %v700
      %v3009 = vunpack.c.l.b16 %v701
      %v3010 = vunpack.c.h.b16 %v701
      %v3011 = vunpack.c.l.b16 %v702
      %v3012 = vunpack.c.h.b16 %v702
      %v3013 = vunpack.c.l.b16 %v703
      %v3014 = vunpack.c.h.b16 %v703
      %v3015 = vunpack.c.l.b16 %v704
      %v3016 = vunpack.c.h.b16 %v704
      %v3017 = vunpack.c.l.b16 %v705
      %v3018 = vunpack.c.h.b16 %v705
      %v3019 = vunpack.c.l.b16 %v706
      %v3020 = vunpack.c.h.b16 %v706
      %v3021 = vunpack.c.l.b16 %v707
      %v3022 = vunpack.c.h.b16 %v707
      %v3023 = vunpack.c.l.b16 %v708
      %v3024 = vunpack.c.h.b16 %v708
      %v3025 = vunpack.c.l.b16 %v709
      %v3026 = vunpack.c.h.b16 %v709
      %v3027 = vunpack.c.l.b16 %v710
      %v3028 = vunpack.c.h.b16 %v710
      %v3029 = vunpack.c.l.b16 %v711
      %v3030 = vunpack.c.h.b16 %v711
      %v3031 = vunpack.c.l.b16 %v712
      %v3032 = vunpack.c.h.b16 %v712
      %v3033 = vunpack.c.l.b16 %v713
      %v3034 = vunpack.c.h.b16 %v713
      %v3035 = vunpack.c.l.b16 %v714
      %v3036 = vunpack.c.h.b16 %v714
      %v3037 = vunpack.c.l.b16 %v715
      %v3038 = vunpack.c.h.b16 %v715
      %v3039 = vunpack.c.l.b16 %v716
      %v3040 = vunpack.c.h.b16 %v716
      %v3041 = vunpack.c.l.b16 %v717
      %v3042 = vunpack.c.h.b16 %v717
      %v3043 = vunpack.c.l.b16 %v718
      %v3044 = vunpack.c.h.b16 %v718
      %v3045 = vunpack.c.l.b16 %v719
      %v3046 = vunpack.c.h.b16 %v719
      %v3047 = vunpack.c.l.b16 %v720
      %v3048 = vunpack.c.h.b16 %v720
      %v3049 = vunpack.c.l.b16 %v721
      %v3050 = vunpack.c.h.b16 %v721
      %v3051 = vunpack.c.l.b16 %v722
      %v3052 = vunpack.c.h.b16 %v722
      %v3053 = vunpack.c.l.b16 %v723
      %v3054 = vunpack.c.h.b16 %v723
      %v3055 = vunpack.c.l.b16 %v724
      %v3056 = vunpack.c.h.b16 %v724
      %v3057 = vunpack.c.l.b16 %v725
      %v3058 = vunpack.c.h.b16 %v725
      %v3059 = vunpack.c.l.b16 %v726
      %v3060 = vunpack.c.h.b16 %v726
      %v3061 = vunpack.c.l.b16 %v727
      %v3062 = vunpack.c.h.b16 %v727
      %v3063 = vunpack.c.l.b16 %v728
      %v3064 = vunpack.c.h.b16 %v728
      %v3065 = vunpack.c.l.b16 %v729
      %v3066 = vunpack.c.h.b16 %v729
      %v3067 = vunpack.c.l.b16 %v730
      %v3068 = vunpack.c.h.b16 %v730
      %v3069 = vunpack.c.l.b16 %v731
      %v3070 = vunpack.c.h.b16 %v731
      %v3071 = vunpack.c.l.b16 %v732
      %v3072 = vunpack.c.h.b16 %v732
      %v3073 = vunpack.c.l.b16 %v733
      %v3074 = vunpack.c.h.b16 %v733
      %v3075 = vunpack.c.l.b16 %v734
      %v3076 = vunpack.c.h.b16 %v734
      %v3077 = vunpack.c.l.b16 %v735
      %v3078 = vunpack.c.h.b16 %v735
      %v3079 = vunpack.c.l.b16 %v736
      %v3080 = vunpack.c.h.b16 %v736
      %v3081 = vunpack.c.l.b16 %v737
      %v3082 = vunpack.c.h.b16 %v737
      %v3083 = vunpack.c.l.b16 %v738
      %v3084 = vunpack.c.h.b16 %v738
      %v3085 = vunpack.c.l.b16 %v739
      %v3086 = vunpack.c.h.b16 %v739
      %v3087 = vunpack.c.l.b16 %v740
      %v3088 = vunpack.c.h.b16 %v740
      %v3089 = vunpack.c.l.b16 %v741
      %v3090 = vunpack.c.h.b16 %v741
      %v3091 = vunpack.c.l.b16 %v742
      %v3092 = vunpack.c.h.b16 %v742
      %v3093 = vunpack.c.l.b16 %v743
      %v3094 = vunpack.c.h.b16 %v743
      %v3095 = vunpack.c.l.b16 %v744
      %v3096 = vunpack.c.h.b16 %v744
      %v3097 = vunpack.c.l.b16 %v745
      %v3098 = vunpack.c.h.b16 %v745
      %v3099 = vunpack.c.l.b16 %v746
      %v3100 = vunpack.c.h.b16 %v746
      %v3101 = vunpack.c.l.b16 %v747
      %v3102 = vunpack.c.h.b16 %v747
      %v3103 = vunpack.c.l.b16 %v748
      %v3104 = vunpack.c.h.b16 %v748
      %v3105 = vunpack.c.l.b16 %v749
      %v3106 = vunpack.c.h.b16 %v749
      %v3107 = vunpack.c.l.b16 %v750
      %v3108 = vunpack.c.h.b16 %v750
      %v3109 = vunpack.c.l.b16 %v751
      %v3110 = vunpack.c.h.b16 %v751
      %v3111 = vunpack.c.l.b16 %v752
      %v3112 = vunpack.c.h.b16 %v752
      %v3113 = vunpack.c.l.b16 %v753
      %v3114 = vunpack.c.h.b16 %v753
      %v3115 = vunpack.c.l.b16 %v754
      %v3116 = vunpack.c.h.b16 %v754
      %v3117 = vunpack.c.l.b16 %v755
      %v3118 = vunpack.c.h.b16 %v755
      %v3119 = vunpack.c.l.b16 %v756
      %v3120 = vunpack.c.h.b16 %v756
      %v3121 = vunpack.c.l.b16 %v757
      %v3122 = vunpack.c.h.b16 %v757
      %v3123 = vunpack.c.l.b16 %v758
      %v3124 = vunpack.c.h.b16 %v758
      %v3125 = vunpack.c.l.b16 %v759
      %v3126 = vunpack.c.h.b16 %v759
      %v3127 = vunpack.c.l.b16 %v760
      %v3128 = vunpack.c.h.b16 %v760
      %v3129 = vunpack.c.l.b16 %v761
      %v3130 = vunpack.c.h.b16 %v761
      %v3131 = vunpack.c.l.b16 %v762
      %v3132 = vunpack.c.h.b16 %v762
      %v3133 = vunpack.c.l.b16 %v763
      %v3134 = vunpack.c.h.b16 %v763
      %v3135 = vunpack.c.l.b16 %v764
      %v3136 = vunpack.c.h.b16 %v764
      %v3137 = vunpack.c.l.b16 %v765
      %v3138 = vunpack.c.h.b16 %v765
      %v3139 = vunpack.c.l.b16 %v766
      %v3140 = vunpack.c.h.b16 %v766
      %v3141 = vunpack.c.l.b16 %v767
      %v3142 = vunpack.c.h.b16 %v767
      %v3143 = vunpack.c.l.b16 %v768
      %v3144 = vunpack.c.h.b16 %v768
      %v3145 = vunpack.c.l.b16 %v769
      %v3146 = vunpack.c.h.b16 %v769
      %v3147 = vunpack.c.l.b16 %v770
      %v3148 = vunpack.c.h.b16 %v770
      %v3149 = vunpack.c.l.b16 %v771
      %v3150 = vunpack.c.h.b16 %v771
      %v3151 = vunpack.c.l.b16 %v772
      %v3152 = vunpack.c.h.b16 %v772
      %v3153 = vunpack.c.l.b16 %v773
      %v3154 = vunpack.c.h.b16 %v773
      %v3155 = vunpack.c.l.b16 %v774
      %v3156 = vunpack.c.h.b16 %v774
      %v3157 = vunpack.c.l.b16 %v775
      %v3158 = vunpack.c.h.b16 %v775
      %v3159 = vunpack.c.l.b16 %v776
      %v3160 = vunpack.c.h.b16 %v776
      %v3161 = vunpack.c.l.b16 %v777
      %v3162 = vunpack.c.h.b16 %v777
      %v3163 = vunpack.c.l.b16 %v778
      %v3164 = vunpack.c.h.b16 %v778
      %v3165 = vunpack.c.l.b16 %v779
      %v3166 = vunpack.c.h.b16 %v779
      %v3167 = vunpack.c.l.b16 %v780
      %v3168 = vunpack.c.h.b16 %v780
      %v3169 = vunpack.c.l.b16 %v781
      %v3170 = vunpack.c.h.b16 %v781
      %v3171 = vunpack.c.l.b16 %v782
      %v3172 = vunpack.c.h.b16 %v782
      %v3173 = vunpack.c.l.b16 %v783
      %v3174 = vunpack.c.h.b16 %v783
      %v3175 = vunpack.c.l.b16 %v784
      %v3176 = vunpack.c.h.b16 %v784
      %v3177 = vunpack.c.l.b16 %v785
      %v3178 = vunpack.c.h.b16 %v785
      %v3179 = vunpack.c.l.b16 %v786
      %v3180 = vunpack.c.h.b16 %v786
      %v3181 = vunpack.c.l.b16 %v787
      %v3182 = vunpack.c.h.b16 %v787
      %v3183 = vunpack.c.l.b16 %v788
      %v3184 = vunpack.c.h.b16 %v788
      %v3185 = vunpack.c.l.b16 %v789
      %v3186 = vunpack.c.h.b16 %v789
      %v3187 = vunpack.c.l.b16 %v790
      %v3188 = vunpack.c.h.b16 %v790
      %v3189 = vunpack.c.l.b16 %v791
      %v3190 = vunpack.c.h.b16 %v791
      %v3191 = vunpack.c.l.b16 %v792
      %v3192 = vunpack.c.h.b16 %v792
      %v3193 = vunpack.c.l.b16 %v793
      %v3194 = vunpack.c.h.b16 %v793
      %v3195 = vunpack.c.l.b16 %v794
      %v3196 = vunpack.c.h.b16 %v794
      %v3197 = vunpack.c.l.b16 %v795
      %v3198 = vunpack.c.h.b16 %v795
      %v3199 = vunpack.c.l.b16 %v796
      %v3200 = vunpack.c.h.b16 %v796
      %v3201 = vunpack.c.l.b16 %v797
      %v3202 = vunpack.c.h.b16 %v797
      %v3203 = vunpack.c.l.b16 %v798
      %v3204 = vunpack.c.h.b16 %v798
      %v3205 = vunpack.c.l.b16 %v799
      %v3206 = vunpack.c.h.b16 %v799
      %v3207 = vunpack.c.l.b16 %v800
      %v3208 = vunpack.c.h.b16 %v800
      %v3209 = vunpack.c.l.b16 %v801
      %v3210 = vunpack.c.h.b16 %v801
      %v3211 = vunpack.c.l.b16 %v802
      %v3212 = vunpack.c.h.b16 %v802
      %v3213 = vunpack.c.l.b16 %v803
      %v3214 = vunpack.c.h.b16 %v803
      %v3215 = vunpack.c.l.b16 %v804
      %v3216 = vunpack.c.h.b16 %v804
      %v3217 = vunpack.c.l.b16 %v805
      %v3218 = vunpack.c.h.b16 %v805
      %v3219 = vunpack.c.l.b16 %v806
      %v3220 = vunpack.c.h.b16 %v806
      %v3221 = vunpack.c.l.b16 %v807
      %v3222 = vunpack.c.h.b16 %v807
      %v3223 = vunpack.c.l.b16 %v808
      %v3224 = vunpack.c.h.b16 %v808
      %v3225 = vunpack.c.l.b16 %v809
      %v3226 = vunpack.c.h.b16 %v809
      %v3227 = vunpack.c.l.b16 %v810
      %v3228 = vunpack.c.h.b16 %v810
      %v3229 = vunpack.c.l.b16 %v811
      %v3230 = vunpack.c.h.b16 %v811
      %v3231 = vunpack.c.l.b16 %v812
      %v3232 = vunpack.c.h.b16 %v812
      %v3233 = vunpack.c.l.b16 %v813
      %v3234 = vunpack.c.h.b16 %v813
      %v3235 = vunpack.c.l.b16 %v814
      %v3236 = vunpack.c.h.b16 %v814
      %v3237 = vunpack.c.l.b16 %v815
      %v3238 = vunpack.c.h.b16 %v815
      %v3239 = vunpack.c.l.b16 %v816
      %v3240 = vunpack.c.h.b16 %v816
      %v3241 = vunpack.c.l.b16 %v817
      %v3242 = vunpack.c.h.b16 %v817
      %v3243 = vunpack.c.l.b16 %v818
      %v3244 = vunpack.c.h.b16 %v818
      %v3245 = vunpack.c.l.b16 %v819
      %v3246 = vunpack.c.h.b16 %v819
      %v3247 = vunpack.c.l.b16 %v820
      %v3248 = vunpack.c.h.b16 %v820
      %v3249 = vunpack.c.l.b16 %v821
      %v3250 = vunpack.c.h.b16 %v821
      %v3251 = vunpack.c.l.b16 %v822
      %v3252 = vunpack.c.h.b16 %v822
      %v3253 = vunpack.c.l.b16 %v823
      %v3254 = vunpack.c.h.b16 %v823
      %v3255 = vunpack.c.l.b16 %v824
      %v3256 = vunpack.c.h.b16 %v824
      %v3257 = vunpack.c.l.b16 %v825
      %v3258 = vunpack.c.h.b16 %v825
      %v3259 = vunpack.c.l.b16 %v826
      %v3260 = vunpack.c.h.b16 %v826
      %v3261 = vunpack.c.l.b16 %v827
      %v3262 = vunpack.c.h.b16 %v827
      %v3263 = vunpack.c.l.b16 %v828
      %v3264 = vunpack.c.h.b16 %v828
      %v3265 = vunpack.c.l.b16 %v829
      %v3266 = vunpack.c.h.b16 %v829
      %v3267 = vunpack.c.l.b16 %v830
      %v3268 = vunpack.c.h.b16 %v830
      %v3269 = vunpack.c.l.b16 %v831
      %v3270 = vunpack.c.h.b16 %v831
      %v3271 = vunpack.c.l.b16 %v832
      %v3272 = vunpack.c.h.b16 %v832
      %v3273 = vunpack.c.l.b16 %v833
      %v3274 = vunpack.c.h.b16 %v833
      %v3275 = vunpack.c.l.b16 %v834
      %v3276 = vunpack.c.h.b16 %v834
      %v3277 = vunpack.c.l.b16 %v835
      %v3278 = vunpack.c.h.b16 %v835
      %v3279 = vunpack.c.l.b16 %v836
      %v3280 = vunpack.c.h.b16 %v836
      %v3281 = vunpack.c.l.b16 %v837
      %v3282 = vunpack.c.h.b16 %v837
      %v3283 = vunpack.c.l.b16 %v838
      %v3284 = vunpack.c.h.b16 %v838
      %v3285 = vunpack.c.l.b16 %v839
      %v3286 = vunpack.c.h.b16 %v839
      %v3287 = vunpack.c.l.b16 %v840
      %v3288 = vunpack.c.h.b16 %v840
      %v3289 = vunpack.c.l.b16 %v841
      %v3290 = vunpack.c.h.b16 %v841
      %v3291 = vunpack.c.l.b16 %v842
      %v3292 = vunpack.c.h.b16 %v842
      %v3293 = vunpack.c.l.b16 %v843
      %v3294 = vunpack.c.h.b16 %v843
      %v3295 = vunpack.c.l.b16 %v844
      %v3296 = vunpack.c.h.b16 %v844
      %v3297 = vunpack.c.l.b16 %v845
      %v3298 = vunpack.c.h.b16 %v845
      %v3299 = vunpack.c.l.b16 %v846
      %v3300 = vunpack.c.h.b16 %v846
      %v3301 = vunpack.c.l.b16 %v847
      %v3302 = vunpack.c.h.b16 %v847
      %v3303 = vunpack.c.l.b16 %v848
      %v3304 = vunpack.c.h.b16 %v848
      %v3305 = vunpack.c.l.b16 %v849
      %v3306 = vunpack.c.h.b16 %v849
      %v3307 = vunpack.c.l.b16 %v850
      %v3308 = vunpack.c.h.b16 %v850
      %v3309 = vunpack.c.l.b16 %v851
      %v3310 = vunpack.c.h.b16 %v851
      %v3311 = vunpack.c.l.b16 %v852
      %v3312 = vunpack.c.h.b16 %v852
      %v3313 = vunpack.c.l.b16 %v853
      %v3314 = vunpack.c.h.b16 %v853
      %v3315 = vunpack.c.l.b16 %v854
      %v3316 = vunpack.c.h.b16 %v854
      %v3317 = vunpack.c.l.b16 %v855
      %v3318 = vunpack.c.h.b16 %v855
      %v3319 = vunpack.c.l.b16 %v856
      %v3320 = vunpack.c.h.b16 %v856
      %v3321 = vunpack.c.l.b16 %v857
      %v3322 = vunpack.c.h.b16 %v857
      %v3323 = vunpack.c.l.b16 %v858
      %v3324 = vunpack.c.h.b16 %v858
      %v3325 = vunpack.c.l.b16 %v859
      %v3326 = vunpack.c.h.b16 %v859
      %v3327 = vunpack.c.l.b16 %v860
      %v3328 = vunpack.c.h.b16 %v860
      %v3329 = vunpack.c.l.b16 %v861
      %v3330 = vunpack.c.h.b16 %v861
      %v3331 = vunpack.c.l.b16 %v862
      %v3332 = vunpack.c.h.b16 %v862
      %v3333 = vunpack.c.l.b16 %v863
      %v3334 = vunpack.c.h.b16 %v863
      %v3335 = vunpack.c.l.b16 %v864
      %v3336 = vunpack.c.h.b16 %v864
      %v3337 = vunpack.c.l.b16 %v865
      %v3338 = vunpack.c.h.b16 %v865
      %v3339 = vunpack.c.l.b16 %v866
      %v3340 = vunpack.c.h.b16 %v866
      %v3341 = vunpack.c.l.b16 %v867
      %v3342 = vunpack.c.h.b16 %v867
      %v3343 = vunpack.c.l.b16 %v868
      %v3344 = vunpack.c.h.b16 %v868
      %v3345 = vunpack.c.l.b16 %v869
      %v3346 = vunpack.c.h.b16 %v869
      %v3347 = vunpack.c.l.b16 %v870
      %v3348 = vunpack.c.h.b16 %v870
      %v3349 = vunpack.c.l.b16 %v871
      %v3350 = vunpack.c.h.b16 %v871
      %v3351 = vunpack.c.l.b16 %v872
      %v3352 = vunpack.c.h.b16 %v872
      %v3353 = vunpack.c.l.b16 %v873
      %v3354 = vunpack.c.h.b16 %v873
      %v3355 = vunpack.c.l.b16 %v874
      %v3356 = vunpack.c.h.b16 %v874
      %v3357 = vunpack.c.l.b16 %v875
      %v3358 = vunpack.c.h.b16 %v875
      %v3359 = vunpack.c.l.b16 %v876
      %v3360 = vunpack.c.h.b16 %v876
      %v3361 = vunpack.c.l.b16 %v877
      %v3362 = vunpack.c.h.b16 %v877
      %v3363 = vunpack.c.l.b16 %v878
      %v3364 = vunpack.c.h.b16 %v878
      %v3365 = vunpack.c.l.b16 %v879
      %v3366 = vunpack.c.h.b16 %v879
      %v3367 = vunpack.c.l.b16 %v880
      %v3368 = vunpack.c.h.b16 %v880
      %v3369 = vunpack.c.l.b16 %v881
      %v3370 = vunpack.c.h.b16 %v881
      %v3371 = vunpack.c.l.b16 %v882
      %v3372 = vunpack.c.h.b16 %v882
      %v3373 = vunpack.c.l.b16 %v883
      %v3374 = vunpack.c.h.b16 %v883
      %v3375 = vunpack.c.l.b16 %v884
      %v3376 = vunpack.c.h.b16 %v884
      %v3377 = vunpack.c.l.b16 %v885
      %v3378 = vunpack.c.h.b16 %v885
      %v3379 = vunpack.c.l.b16 %v886
      %v3380 = vunpack.c.h.b16 %v886
      %v3381 = vunpack.c.l.b16 %v887
      %v3382 = vunpack.c.h.b16 %v887
      %v3383 = vunpack.c.l.b16 %v888
      %v3384 = vunpack.c.h.b16 %v888
      %v3385 = vunpack.c.l.b16 %v889
      %v3386 = vunpack.c.h.b16 %v889
      %v3387 = vunpack.c.l.b16 %v890
      %v3388 = vunpack.c.h.b16 %v890
      %v3389 = vunpack.c.l.b16 %v891
      %v3390 = vunpack.c.h.b16 %v891
      %v3391 = vunpack.c.l.b16 %v892
      %v3392 = vunpack.c.h.b16 %v892
      %v3393 = vunpack.c.l.b16 %v893
      %v3394 = vunpack.c.h.b16 %v893
      %v3395 = vunpack.c.l.b16 %v894
      %v3396 = vunpack.c.h.b16 %v894
      %v3397 = vunpack.c.l.b16 %v895
      %v3398 = vunpack.c.h.b16 %v895
      %v3399 = vunpack.c.l.b16 %v896
      %v3400 = vunpack.c.h.b16 %v896
      %v3401 = vunpack.c.l.b16 %v897
      %v3402 = vunpack.c.h.b16 %v897
      %v3403 = vunpack.c.l.b16 %v898
      %v3404 = vunpack.c.h.b16 %v898
      %v3405 = vunpack.c.l.b16 %v899
      %v3406 = vunpack.c.h.b16 %v899
      %v3407 = vunpack.c.l.b16 %v900
      %v3408 = vunpack.c.h.b16 %v900
      %v3409 = vunpack.c.l.b16 %v901
      %v3410 = vunpack.c.h.b16 %v901
      %v3411 = vunpack.c.l.b16 %v902
      %v3412 = vunpack.c.h.b16 %v902
      %v3413 = vunpack.c.l.b16 %v903
      %v3414 = vunpack.c.h.b16 %v903
      %v3415 = vunpack.c.l.b16 %v904
      %v3416 = vunpack.c.h.b16 %v904
      %v3417 = vunpack.c.l.b16 %v905
      %v3418 = vunpack.c.h.b16 %v905
      %v3419 = vunpack.c.l.b16 %v906
      %v3420 = vunpack.c.h.b16 %v906
      %v3421 = vunpack.c.l.b16 %v907
      %v3422 = vunpack.c.h.b16 %v907
      %v3423 = vunpack.c.l.b16 %v908
      %v3424 = vunpack.c.h.b16 %v908
      %v3425 = vunpack.c.l.b16 %v909
      %v3426 = vunpack.c.h.b16 %v909
      %v3427 = vunpack.c.l.b16 %v910
      %v3428 = vunpack.c.h.b16 %v910
      %v3429 = vunpack.c.l.b16 %v911
      %v3430 = vunpack.c.h.b16 %v911
      %v3431 = vunpack.c.l.b16 %v912
      %v3432 = vunpack.c.h.b16 %v912
      %v3433 = vunpack.c.l.b16 %v913
      %v3434 = vunpack.c.h.b16 %v913
      %v3435 = vunpack.c.l.b16 %v914
      %v3436 = vunpack.c.h.b16 %v914
      %v3437 = vunpack.c.l.b16 %v915
      %v3438 = vunpack.c.h.b16 %v915
      %v3439 = vunpack.c.l.b16 %v916
      %v3440 = vunpack.c.h.b16 %v916
      %v3441 = vunpack.c.l.b16 %v917
      %v3442 = vunpack.c.h.b16 %v917
      %v3443 = vunpack.c.l.b16 %v918
      %v3444 = vunpack.c.h.b16 %v918
      %v3445 = vunpack.c.l.b16 %v919
      %v3446 = vunpack.c.h.b16 %v919
      %v3447 = vunpack.c.l.b16 %v920
      %v3448 = vunpack.c.h.b16 %v920
      %v3449 = vunpack.c.l.b16 %v921
      %v3450 = vunpack.c.h.b16 %v921
      %v3451 = vunpack.c.l.b16 %v922
      %v3452 = vunpack.c.h.b16 %v922
      %v3453 = vunpack.c.l.b16 %v923
      %v3454 = vunpack.c.h.b16 %v923
      %v3455 = vunpack.c.l.b16 %v924
      %v3456 = vunpack.c.h.b16 %v924
      %v3457 = vunpack.c.l.b16 %v925
      %v3458 = vunpack.c.h.b16 %v925
      %v3459 = vunpack.c.l.b16 %v926
      %v3460 = vunpack.c.h.b16 %v926
      %v3461 = vunpack.c.l.b16 %v927
      %v3462 = vunpack.c.h.b16 %v927
      %v3463 = vunpack.c.l.b16 %v928
      %v3464 = vunpack.c.h.b16 %v928
      %v3465 = vunpack.c.l.b16 %v929
      %v3466 = vunpack.c.h.b16 %v929
      %v3467 = vunpack.c.l.b16 %v930
      %v3468 = vunpack.c.h.b16 %v930
      %v3469 = vunpack.c.l.b16 %v931
      %v3470 = vunpack.c.h.b16 %v931
      %v3471 = vunpack.c.l.b16 %v932
      %v3472 = vunpack.c.h.b16 %v932
      %v3473 = vunpack.c.l.b16 %v933
      %v3474 = vunpack.c.h.b16 %v933
      %v3475 = vunpack.c.l.b16 %v934
      %v3476 = vunpack.c.h.b16 %v934
      %v3477 = vunpack.c.l.b16 %v935
      %v3478 = vunpack.c.h.b16 %v935
      %v3479 = vunpack.c.l.b16 %v936
      %v3480 = vunpack.c.h.b16 %v936
      %v3481 = vunpack.c.l.b16 %v937
      %v3482 = vunpack.c.h.b16 %v937
      %v3483 = vunpack.c.l.b16 %v938
      %v3484 = vunpack.c.h.b16 %v938
      %v3485 = vunpack.c.l.b16 %v939
      %v3486 = vunpack.c.h.b16 %v939
      %v3487 = vunpack.c.l.b16 %v940
      %v3488 = vunpack.c.h.b16 %v940
      %v3489 = vunpack.c.l.b16 %v941
      %v3490 = vunpack.c.h.b16 %v941
      %v3491 = vunpack.c.l.b16 %v942
      %v3492 = vunpack.c.h.b16 %v942
      %v3493 = vunpack.c.l.b16 %v943
      %v3494 = vunpack.c.h.b16 %v943
      %v3495 = vunpack.c.l.b16 %v944
      %v3496 = vunpack.c.h.b16 %v944
      %v3497 = vunpack.c.l.b16 %v945
      %v3498 = vunpack.c.h.b16 %v945
      %v3499 = vunpack.c.l.b16 %v946
      %v3500 = vunpack.c.h.b16 %v946
      %v3501 = vunpack.c.l.b16 %v947
      %v3502 = vunpack.c.h.b16 %v947
      %v3503 = vunpack.c.l.b16 %v948
      %v3504 = vunpack.c.h.b16 %v948
      %v3505 = vunpack.c.l.b16 %v949
      %v3506 = vunpack.c.h.b16 %v949
      %v3507 = vunpack.c.l.b16 %v950
      %v3508 = vunpack.c.h.b16 %v950
      %v3509 = vunpack.c.l.b16 %v951
      %v3510 = vunpack.c.h.b16 %v951
      %v3511 = vunpack.c.l.b16 %v952
      %v3512 = vunpack.c.h.b16 %v952
      %v3513 = vunpack.c.l.b16 %v953
      %v3514 = vunpack.c.h.b16 %v953
      %v3515 = vunpack.c.l.b16 %v954
      %v3516 = vunpack.c.h.b16 %v954
      %v3517 = vunpack.c.l.b16 %v955
      %v3518 = vunpack.c.h.b16 %v955
      %v3519 = vunpack.c.l.b16 %v956
      %v3520 = vunpack.c.h.b16 %v956
      %v3521 = vunpack.c.l.b16 %v957
      %v3522 = vunpack.c.h.b16 %v957
      %v3523 = vunpack.c.l.b16 %v958
      %v3524 = vunpack.c.h.b16 %v958
      %v3525 = vunpack.c.l.b16 %v959
      %v3526 = vunpack.c.h.b16 %v959
      %v3527 = vunpack.c.l.b16 %v960
      %v3528 = vunpack.c.h.b16 %v960
      %v3529 = vunpack.c.l.b16 %v961
      %v3530 = vunpack.c.h.b16 %v961
      %v3531 = vunpack.c.l.b16 %v962
      %v3532 = vunpack.c.h.b16 %v962
      %v3533 = vunpack.c.l.b16 %v963
      %v3534 = vunpack.c.h.b16 %v963
      %v3535 = vunpack.c.l.b16 %v964
      %v3536 = vunpack.c.h.b16 %v964
      %v3537 = vunpack.c.l.b16 %v965
      %v3538 = vunpack.c.h.b16 %v965
      %v3539 = vunpack.c.l.b16 %v966
      %v3540 = vunpack.c.h.b16 %v966
      %v3541 = vunpack.c.l.b16 %v967
      %v3542 = vunpack.c.h.b16 %v967
      %v3543 = vunpack.c.l.b16 %v968
      %v3544 = vunpack.c.h.b16 %v968
      %v3545 = vunpack.c.l.b16 %v969
      %v3546 = vunpack.c.h.b16 %v969
      %v3547 = vunpack.c.l.b16 %v970
      %v3548 = vunpack.c.h.b16 %v970
      %v3549 = vunpack.c.l.b16 %v971
      %v3550 = vunpack.c.h.b16 %v971
      %v3551 = vunpack.c.l.b16 %v972
      %v3552 = vunpack.c.h.b16 %v972
      %v3553 = vunpack.c.l.b16 %v973
      %v3554 = vunpack.c.h.b16 %v973
      %v3555 = vunpack.c.l.b16 %v974
      %v3556 = vunpack.c.h.b16 %v974
      %v3557 = vunpack.c.l.b16 %v975
      %v3558 = vunpack.c.h.b16 %v975
      %v3559 = vunpack.c.l.b16 %v976
      %v3560 = vunpack.c.h.b16 %v976
      %v3561 = vunpack.c.l.b16 %v977
      %v3562 = vunpack.c.h.b16 %v977
      %v3563 = vunpack.c.l.b16 %v978
      %v3564 = vunpack.c.h.b16 %v978
      %v3565 = vunpack.c.l.b16 %v979
      %v3566 = vunpack.c.h.b16 %v979
      %v3567 = vunpack.c.l.b16 %v980
      %v3568 = vunpack.c.h.b16 %v980
      %v3569 = vunpack.c.l.b16 %v981
      %v3570 = vunpack.c.h.b16 %v981
      %v3571 = vunpack.c.l.b16 %v982
      %v3572 = vunpack.c.h.b16 %v982
      %v3573 = vunpack.c.l.b16 %v983
      %v3574 = vunpack.c.h.b16 %v983
      %v3575 = vunpack.c.l.b16 %v984
      %v3576 = vunpack.c.h.b16 %v984
      %v3577 = vunpack.c.l.b16 %v985
      %v3578 = vunpack.c.h.b16 %v985
      %v3579 = vunpack.c.l.b16 %v986
      %v3580 = vunpack.c.h.b16 %v986
      %v3581 = vunpack.c.l.b16 %v987
      %v3582 = vunpack.c.h.b16 %v987
      %v3583 = vunpack.c.l.b16 %v988
      %v3584 = vunpack.c.h.b16 %v988
      %v3585 = vunpack.c.l.b16 %v989
      %v3586 = vunpack.c.h.b16 %v989
      %v3587 = vunpack.c.l.b16 %v990
      %v3588 = vunpack.c.h.b16 %v990
      %v3589 = vunpack.c.l.b16 %v991
      %v3590 = vunpack.c.h.b16 %v991
      %v3591 = vunpack.c.l.b16 %v992
      %v3592 = vunpack.c.h.b16 %v992
      %v3593 = vunpack.c.l.b16 %v993
      %v3594 = vunpack.c.h.b16 %v993
      %v3595 = vunpack.c.l.b16 %v994
      %v3596 = vunpack.c.h.b16 %v994
      %v3597 = vunpack.c.l.b16 %v995
      %v3598 = vunpack.c.h.b16 %v995
      %v3599 = vunpack.c.l.b16 %v996
      %v3600 = vunpack.c.h.b16 %v996
      %v3601 = vunpack.c.l.b16 %v997
      %v3602 = vunpack.c.h.b16 %v997
      %v3603 = vunpack.c.l.b16 %v998
      %v3604 = vunpack.c.h.b16 %v998
      %v3605 = vunpack.c.l.b16 %v999
      %v3606 = vunpack.c.h.b16 %v999
      %v3607 = vunpack.c.l.b16 %v1000
      %v3608 = vunpack.c.h.b16 %v1000
      %v3609 = vunpack.c.l.b16 %v1001
      %v3610 = vunpack.c.h.b16 %v1001
      %v3611 = vunpack.c.l.b16 %v1002
      %v3612 = vunpack.c.h.b16 %v1002
      %v3613 = vunpack.c.l.b16 %v1003
      %v3614 = vunpack.c.h.b16 %v1003
      %v3615 = vunpack.c.l.b16 %v1004
      %v3616 = vunpack.c.h.b16 %v1004
      %v3617 = vunpack.c.l.b16 %v1005
      %v3618 = vunpack.c.h.b16 %v1005
      %v3619 = vunpack.c.l.b16 %v1006
      %v3620 = vunpack.c.h.b16 %v1006
      %v3621 = vunpack.c.l.b16 %v1007
      %v3622 = vunpack.c.h.b16 %v1007
      %v3623 = vunpack.c.l.b16 %v1008
      %v3624 = vunpack.c.h.b16 %v1008
      %v3625 = vunpack.c.l.b16 %v1009
      %v3626 = vunpack.c.h.b16 %v1009
      %v3627 = vunpack.c.l.b16 %v1010
      %v3628 = vunpack.c.h.b16 %v1010
      %v3629 = vunpack.c.l.b16 %v1011
      %v3630 = vunpack.c.h.b16 %v1011
      %v3631 = vunpack.c.l.b16 %v1012
      %v3632 = vunpack.c.h.b16 %v1012
      %v3633 = vunpack.c.l.b16 %v1013
      %v3634 = vunpack.c.h.b16 %v1013
      %v3635 = vunpack.c.l.b16 %v1014
      %v3636 = vunpack.c.h.b16 %v1014
      %v3637 = vunpack.c.l.b16 %v1015
      %v3638 = vunpack.c.h.b16 %v1015
      %v3639 = vunpack.c.l.b16 %v1016
      %v3640 = vunpack.c.h.b16 %v1016
      %v3641 = vunpack.c.l.b16 %v1017
      %v3642 = vunpack.c.h.b16 %v1017
      %v3643 = vunpack.c.l.b16 %v1018
      %v3644 = vunpack.c.h.b16 %v1018
      %v3645 = vunpack.c.l.b16 %v1019
      %v3646 = vunpack.c.h.b16 %v1019
      %v3647 = vunpack.c.l.b16 %v1020
      %v3648 = vunpack.c.h.b16 %v1020
      %v3649 = vunpack.c.l.b16 %v1021
      %v3650 = vunpack.c.h.b16 %v1021
      %v3651 = vunpack.c.l.b16 %v1022
      %v3652 = vunpack.c.h.b16 %v1022
      %v3653 = vunpack.c.l.b16 %v1023
      %v3654 = vunpack.c.h.b16 %v1023
      %v3655 = vunpack.c.l.b16 %v1024
      %v3656 = vunpack.c.h.b16 %v1024
      %v3657 = vunpack.c.l.b16 %v1025
      %v3658 = vunpack.c.h.b16 %v1025
      %v3659 = vunpack.c.l.b16 %v1026
      %v3660 = vunpack.c.h.b16 %v1026
      %v3661 = vunpack.c.l.b16 %v1027
      %v3662 = vunpack.c.h.b16 %v1027
      %v3663 = vunpack.c.l.b16 %v1028
      %v3664 = vunpack.c.h.b16 %v1028
      %v3665 = vunpack.c.l.b16 %v1029
      %v3666 = vunpack.c.h.b16 %v1029
      %v3667 = vunpack.c.l.b16 %v1030
      %v3668 = vunpack.c.h.b16 %v1030
      %v3669 = vunpack.c.l.b16 %v1031
      %v3670 = vunpack.c.h.b16 %v1031
      %v3671 = vunpack.c.l.b16 %v1032
      %v3672 = vunpack.c.h.b16 %v1032
      %v3673 = vunpack.c.l.b16 %v1033
      %v3674 = vunpack.c.h.b16 %v1033
      %v3675 = vunpack.c.l.b16 %v1034
      %v3676 = vunpack.c.h.b16 %v1034
      %v3677 = vunpack.c.l.b16 %v1035
      %v3678 = vunpack.c.h.b16 %v1035
      %v3679 = vunpack.c.l.b16 %v1036
      %v3680 = vunpack.c.h.b16 %v1036
      %v3681 = vunpack.c.l.b16 %v1037
      %v3682 = vunpack.c.h.b16 %v1037
      %v3683 = vunpack.c.l.b16 %v1038
      %v3684 = vunpack.c.h.b16 %v1038
      %v3685 = vunpack.c.l.b16 %v1039
      %v3686 = vunpack.c.h.b16 %v1039
      %v3687 = vunpack.c.l.b16 %v1040
      %v3688 = vunpack.c.h.b16 %v1040
      %v3689 = vunpack.c.l.b16 %v1041
      %v3690 = vunpack.c.h.b16 %v1041
      %v3691 = vunpack.c.l.b16 %v1042
      %v3692 = vunpack.c.h.b16 %v1042
      %v3693 = vunpack.c.l.b16 %v1043
      %v3694 = vunpack.c.h.b16 %v1043
      %v3695 = vunpack.c.l.b16 %v1044
      %v3696 = vunpack.c.h.b16 %v1044
      %v3697 = vunpack.c.l.b16 %v1045
      %v3698 = vunpack.c.h.b16 %v1045
      %v3699 = vunpack.c.l.b16 %v1046
      %v3700 = vunpack.c.h.b16 %v1046
      %v3701 = vunpack.c.l.b16 %v1047
      %v3702 = vunpack.c.h.b16 %v1047
      %v3703 = vunpack.c.l.b16 %v1048
      %v3704 = vunpack.c.h.b16 %v1048
      %v3705 = vunpack.c.l.b16 %v1049
      %v3706 = vunpack.c.h.b16 %v1049
      %v3707 = vunpack.c.l.b16 %v1050
      %v3708 = vunpack.c.h.b16 %v1050
      %v3709 = vunpack.c.l.b16 %v1051
      %v3710 = vunpack.c.h.b16 %v1051
      %v3711 = vunpack.c.l.b16 %v1052
      %v3712 = vunpack.c.h.b16 %v1052
      %v3713 = vunpack.c.l.b16 %v1053
      %v3714 = vunpack.c.h.b16 %v1053
      %v3715 = vunpack.c.l.b16 %v1054
      %v3716 = vunpack.c.h.b16 %v1054
      %v3717 = vunpack.c.l.b16 %v1055
      %v3718 = vunpack.c.h.b16 %v1055
      %v3719 = vunpack.c.l.b16 %v1056
      %v3720 = vunpack.c.h.b16 %v1056
      %v3721 = vunpack.c.l.b16 %v1057
      %v3722 = vunpack.c.h.b16 %v1057
      %v3723 = vunpack.c.l.b16 %v1058
      %v3724 = vunpack.c.h.b16 %v1058
      %v3725 = vunpack.c.l.b16 %v1059
      %v3726 = vunpack.c.h.b16 %v1059
      %v3727 = vunpack.c.l.b16 %v1060
      %v3728 = vunpack.c.h.b16 %v1060
      %v3729 = vunpack.c.l.b16 %v1061
      %v3730 = vunpack.c.h.b16 %v1061
      %v3731 = vunpack.c.l.b16 %v1062
      %v3732 = vunpack.c.h.b16 %v1062
      %v3733 = vunpack.c.l.b16 %v1063
      %v3734 = vunpack.c.h.b16 %v1063
      %v3735 = vunpack.c.l.b16 %v1064
      %v3736 = vunpack.c.h.b16 %v1064
      %v3737 = vunpack.c.l.b16 %v1065
      %v3738 = vunpack.c.h.b16 %v1065
      %v3739 = vunpack.c.l.b16 %v1066
      %v3740 = vunpack.c.h.b16 %v1066
      %v3741 = vunpack.c.l.b16 %v1067
      %v3742 = vunpack.c.h.b16 %v1067
      %v3743 = vunpack.c.l.b16 %v1068
      %v3744 = vunpack.c.h.b16 %v1068
      %v3745 = vunpack.c.l.b16 %v1069
      %v3746 = vunpack.c.h.b16 %v1069
      %v3747 = vunpack.c.l.b16 %v1070
      %v3748 = vunpack.c.h.b16 %v1070
      %v3749 = vunpack.c.l.b16 %v1071
      %v3750 = vunpack.c.h.b16 %v1071
      %v3751 = vunpack.c.l.b16 %v1072
      %v3752 = vunpack.c.h.b16 %v1072
      %v3753 = vunpack.c.l.b16 %v1073
      %v3754 = vunpack.c.h.b16 %v1073
      %v3755 = vunpack.c.l.b16 %v1074
      %v3756 = vunpack.c.h.b16 %v1074
      %v3757 = vunpack.c.l.b16 %v1075
      %v3758 = vunpack.c.h.b16 %v1075
      %v3759 = vunpack.c.l.b16 %v1076
      %v3760 = vunpack.c.h.b16 %v1076
      %v3761 = vunpack.c.l.b16 %v1077
      %v3762 = vunpack.c.h.b16 %v1077
      %v3763 = vunpack.c.l.b16 %v1078
      %v3764 = vunpack.c.h.b16 %v1078
      %v3765 = vunpack.c.l.b16 %v1079
      %v3766 = vunpack.c.h.b16 %v1079
      %v3767 = vunpack.c.l.b16 %v1080
      %v3768 = vunpack.c.h.b16 %v1080
      %v3769 = vunpack.c.l.b16 %v1081
      %v3770 = vunpack.c.h.b16 %v1081
      %v3771 = vunpack.c.l.b16 %v1082
      %v3772 = vunpack.c.h.b16 %v1082
      %v3773 = vunpack.c.l.b16 %v1083
      %v3774 = vunpack.c.h.b16 %v1083
      %v3775 = vunpack.c.l.b16 %v1084
      %v3776 = vunpack.c.h.b16 %v1084
      %v3777 = vunpack.c.l.b16 %v1085
      %v3778 = vunpack.c.h.b16 %v1085
      %v3779 = vunpack.c.l.b16 %v1086
      %v3780 = vunpack.c.h.b16 %v1086
      %v3781 = vunpack.c.l.b16 %v1087
      %v3782 = vunpack.c.h.b16 %v1087
      %v3783 = vunpack.c.l.b16 %v1088
      %v3784 = vunpack.c.h.b16 %v1088
      %v3785 = vunpack.c.l.b16 %v1089
      %v3786 = vunpack.c.h.b16 %v1089
      %v3787 = vunpack.c.l.b16 %v1090
      %v3788 = vunpack.c.h.b16 %v1090
      %v3789 = vunpack.c.l.b16 %v1091
      %v3790 = vunpack.c.h.b16 %v1091
      %v3791 = vunpack.c.l.b16 %v1092
      %v3792 = vunpack.c.h.b16 %v1092
      %v3793 = vunpack.c.l.b16 %v1093
      %v3794 = vunpack.c.h.b16 %v1093
      %v3795 = vunpack.c.l.b16 %v1094
      %v3796 = vunpack.c.h.b16 %v1094
      %v3797 = vunpack.c.l.b16 %v1095
      %v3798 = vunpack.c.h.b16 %v1095
      %v3799 = vunpack.c.l.b16 %v1096
      %v3800 = vunpack.c.h.b16 %v1096
      %v3801 = vunpack.c.l.b16 %v1097
      %v3802 = vunpack.c.h.b16 %v1097
      %v3803 = vunpack.c.l.b16 %v1098
      %v3804 = vunpack.c.h.b16 %v1098
      %v3805 = vunpack.c.l.b16 %v1099
      %v3806 = vunpack.c.h.b16 %v1099
      %v3807 = vunpack.c.l.b16 %v1100
      %v3808 = vunpack.c.h.b16 %v1100
      %v3809 = vunpack.c.l.b16 %v1101
      %v3810 = vunpack.c.h.b16 %v1101
      %v3811 = vunpack.c.l.b16 %v1102
      %v3812 = vunpack.c.h.b16 %v1102
      %v3813 = vunpack.c.l.b16 %v1103
      %v3814 = vunpack.c.h.b16 %v1103
      %v3815 = vunpack.c.l.b16 %v1104
      %v3816 = vunpack.c.h.b16 %v1104
      %v3817 = vunpack.c.l.b16 %v1105
      %v3818 = vunpack.c.h.b16 %v1105
      %v3819 = vunpack.c.l.b16 %v1106
      %v3820 = vunpack.c.h.b16 %v1106
      %v3821 = vunpack.c.l.b16 %v1107
      %v3822 = vunpack.c.h.b16 %v1107
      %v3823 = vunpack.c.l.b16 %v1108
      %v3824 = vunpack.c.h.b16 %v1108
      %v3825 = vunpack.c.l.b16 %v1109
      %v3826 = vunpack.c.h.b16 %v1109
      %v3827 = vunpack.c.l.b16 %v1110
      %v3828 = vunpack.c.h.b16 %v1110
      %v3829 = vunpack.c.l.b16 %v1111
      %v3830 = vunpack.c.h.b16 %v1111
      %v3831 = vunpack.c.l.b16 %v1112
      %v3832 = vunpack.c.h.b16 %v1112
      %v3833 = vunpack.c.l.b16 %v1113
      %v3834 = vunpack.c.h.b16 %v1113
      %v3835 = vunpack.c.l.b16 %v1114
      %v3836 = vunpack.c.h.b16 %v1114
      %v3837 = vunpack.c.l.b16 %v1115
      %v3838 = vunpack.c.h.b16 %v1115
      %v3839 = vunpack.c.l.b16 %v1116
      %v3840 = vunpack.c.h.b16 %v1116
      %v3841 = vunpack.c.l.b16 %v1117
      %v3842 = vunpack.c.h.b16 %v1117
      %v3843 = vunpack.c.l.b16 %v1118
      %v3844 = vunpack.c.h.b16 %v1118
      %v3845 = vunpack.c.l.b16 %v1119
      %v3846 = vunpack.c.h.b16 %v1119
      %v3847 = vunpack.c.l.b16 %v1120
      %v3848 = vunpack.c.h.b16 %v1120
      %v3849 = vunpack.c.l.b16 %v1121
      %v3850 = vunpack.c.h.b16 %v1121
      %v3851 = vunpack.c.l.b16 %v1122
      %v3852 = vunpack.c.h.b16 %v1122
      %v3853 = vunpack.c.l.b16 %v1123
      %v3854 = vunpack.c.h.b16 %v1123
      %v3855 = vunpack.c.l.b16 %v1124
      %v3856 = vunpack.c.h.b16 %v1124
      %v3857 = vunpack.c.l.b16 %v1125
      %v3858 = vunpack.c.h.b16 %v1125
      %v3859 = vunpack.c.l.b16 %v1126
      %v3860 = vunpack.c.h.b16 %v1126
      %v3861 = vunpack.c.l.b16 %v1127
      %v3862 = vunpack.c.h.b16 %v1127
      %v3863 = vunpack.c.l.b16 %v1128
      %v3864 = vunpack.c.h.b16 %v1128
      %v3865 = vunpack.c.l.b16 %v1129
      %v3866 = vunpack.c.h.b16 %v1129
      %v3867 = vunpack.c.l.b16 %v1130
      %v3868 = vunpack.c.h.b16 %v1130
      %v3869 = vunpack.c.l.b16 %v1131
      %v3870 = vunpack.c.h.b16 %v1131
      %v3871 = vunpack.c.l.b16 %v1132
      %v3872 = vunpack.c.h.b16 %v1132
      %v3873 = vunpack.c.l.b16 %v1133
      %v3874 = vunpack.c.h.b16 %v1133
      %v3875 = vunpack.c.l.b16 %v1134
      %v3876 = vunpack.c.h.b16 %v1134
      %v3877 = vunpack.c.l.b16 %v1135
      %v3878 = vunpack.c.h.b16 %v1135
      %v3879 = vunpack.c.l.b16 %v1136
      %v3880 = vunpack.c.h.b16 %v1136
      %v3881 = vunpack.c.l.b16 %v1137
      %v3882 = vunpack.c.h.b16 %v1137
      %v3883 = vunpack.c.l.b16 %v1138
      %v3884 = vunpack.c.h.b16 %v1138
      %v3885 = vunpack.c.l.b16 %v1139
      %v3886 = vunpack.c.h.b16 %v1139
      %v3887 = vunpack.c.l.b16 %v1140
      %v3888 = vunpack.c.h.b16 %v1140
      %v3889 = vunpack.c.l.b16 %v1141
      %v3890 = vunpack.c.h.b16 %v1141
      %v3891 = vunpack.c.l.b16 %v1142
      %v3892 = vunpack.c.h.b16 %v1142
      %v3893 = vunpack.c.l.b16 %v1143
      %v3894 = vunpack.c.h.b16 %v1143
      %v3895 = vunpack.c.l.b16 %v1144
      %v3896 = vunpack.c.h.b16 %v1144
      %v3897 = vunpack.c.l.b16 %v1145
      %v3898 = vunpack.c.h.b16 %v1145
      %v3899 = vunpack.c.l.b16 %v1146
      %v3900 = vunpack.c.h.b16 %v1146
      %v3901 = vunpack.c.l.b16 %v1147
      %v3902 = vunpack.c.h.b16 %v1147
      %v3903 = vunpack.c.l.b16 %v1148
      %v3904 = vunpack.c.h.b16 %v1148
      %v3905 = vunpack.c.l.b16 %v1149
      %v3906 = vunpack.c.h.b16 %v1149
      %v3907 = vunpack.c.l.b16 %v1150
      %v3908 = vunpack.c.h.b16 %v1150
      %v3909 = vunpack.c.l.b16 %v1151
      %v3910 = vunpack.c.h.b16 %v1151
      %v3911 = vunpack.c.l.b16 %v1152
      %v3912 = vunpack.c.h.b16 %v1152
      %v3913 = vunpack.c.l.b16 %v1153
      %v3914 = vunpack.c.h.b16 %v1153
      %v3915 = vunpack.c.l.b16 %v1154
      %v3916 = vunpack.c.h.b16 %v1154
      %v3917 = vunpack.c.l.b16 %v1155
      %v3918 = vunpack.c.h.b16 %v1155
      %v3919 = vunpack.c.l.b16 %v1156
      %v3920 = vunpack.c.h.b16 %v1156
      %v3921 = vunpack.c.l.b16 %v1157
      %v3922 = vunpack.c.h.b16 %v1157
      %v3923 = vunpack.c.l.b16 %v1158
      %v3924 = vunpack.c.h.b16 %v1158
      %v3925 = vunpack.c.l.b16 %v1159
      %v3926 = vunpack.c.h.b16 %v1159
      %v3927 = vunpack.c.l.b16 %v1160
      %v3928 = vunpack.c.h.b16 %v1160
      %v3929 = vunpack.c.l.b16 %v1161
      %v3930 = vunpack.c.h.b16 %v1161
      %v3931 = vunpack.c.l.b16 %v1162
      %v3932 = vunpack.c.h.b16 %v1162
      %v3933 = vunpack.c.l.b16 %v1163
      %v3934 = vunpack.c.h.b16 %v1163
      %v3935 = vunpack.c.l.b16 %v1164
      %v3936 = vunpack.c.h.b16 %v1164
      %v3937 = vunpack.c.l.b16 %v1165
      %v3938 = vunpack.c.h.b16 %v1165
      %v3939 = vunpack.c.l.b16 %v1166
      %v3940 = vunpack.c.h.b16 %v1166
      %v3941 = vunpack.c.l.b16 %v1167
      %v3942 = vunpack.c.h.b16 %v1167
      %v3943 = vunpack.c.l.b16 %v1168
      %v3944 = vunpack.c.h.b16 %v1168
      %v3945 = vunpack.c.l.b16 %v1169
      %v3946 = vunpack.c.h.b16 %v1169
      %v3947 = vunpack.c.l.b16 %v1170
      %v3948 = vunpack.c.h.b16 %v1170
      %v3949 = vunpack.c.l.b16 %v1171
      %v3950 = vunpack.c.h.b16 %v1171
      %v3951 = vunpack.c.l.b16 %v1172
      %v3952 = vunpack.c.h.b16 %v1172
      %v3953 = vunpack.c.l.b16 %v1173
      %v3954 = vunpack.c.h.b16 %v1173
      %v3955 = vunpack.c.l.b16 %v1174
      %v3956 = vunpack.c.h.b16 %v1174
      %v3957 = vunpack.c.l.b16 %v1175
      %v3958 = vunpack.c.h.b16 %v1175
      %v3959 = vunpack.c.l.b16 %v1176
      %v3960 = vunpack.c.h.b16 %v1176
      %v3961 = vunpack.c.l.b16 %v1177
      %v3962 = vunpack.c.h.b16 %v1177
      %v3963 = vunpack.c.l.b16 %v1178
      %v3964 = vunpack.c.h.b16 %v1178
      %v3965 = vunpack.c.l.b16 %v1179
      %v3966 = vunpack.c.h.b16 %v1179
      %v3967 = vunpack.c.l.b16 %v1180
      %v3968 = vunpack.c.h.b16 %v1180
      %v3969 = vunpack.c.l.b16 %v1181
      %v3970 = vunpack.c.h.b16 %v1181
      %v3971 = vunpack.c.l.b16 %v1182
      %v3972 = vunpack.c.h.b16 %v1182
      %v3973 = vunpack.c.l.b16 %v1183
      %v3974 = vunpack.c.h.b16 %v1183
      %v3975 = vunpack.c.l.b16 %v1184
      %v3976 = vunpack.c.h.b16 %v1184
      %v3977 = vunpack.c.l.b16 %v1185
      %v3978 = vunpack.c.h.b16 %v1185
      %v3979 = vunpack.c.l.b16 %v1186
      %v3980 = vunpack.c.h.b16 %v1186
      %v3981 = vunpack.c.l.b16 %v1187
      %v3982 = vunpack.c.h.b16 %v1187
      %v3983 = vunpack.c.l.b16 %v1188
      %v3984 = vunpack.c.h.b16 %v1188
      %v3985 = vunpack.c.l.b16 %v1189
      %v3986 = vunpack.c.h.b16 %v1189
      %v3987 = vunpack.c.l.b16 %v1190
      %v3988 = vunpack.c.h.b16 %v1190
      %v3989 = vunpack.c.l.b16 %v1191
      %v3990 = vunpack.c.h.b16 %v1191
      %v3991 = vunpack.c.l.b16 %v1192
      %v3992 = vunpack.c.h.b16 %v1192
      %v3993 = vunpack.c.l.b16 %v1193
      %v3994 = vunpack.c.h.b16 %v1193
      %v3995 = vunpack.c.l.b16 %v1194
      %v3996 = vunpack.c.h.b16 %v1194
      %v3997 = vunpack.c.l.b16 %v1195
      %v3998 = vunpack.c.h.b16 %v1195
      %v3999 = vunpack.c.l.b16 %v1196
      %v4000 = vunpack.c.h.b16 %v1196
      %v4001 = vunpack.c.l.b16 %v1197
      %v4002 = vunpack.c.h.b16 %v1197
      %v4003 = vunpack.c.l.b16 %v1198
      %v4004 = vunpack.c.h.b16 %v1198
      %v4005 = vunpack.c.l.b16 %v1199
      %v4006 = vunpack.c.h.b16 %v1199
      %v4007 = vunpack.c.l.b16 %v1200
      %v4008 = vunpack.c.h.b16 %v1200
      %v4009 = vunpack.c.l.b16 %v1201
      %v4010 = vunpack.c.h.b16 %v1201
      %v4011 = vunpack.c.l.b16 %v1202
      %v4012 = vunpack.c.h.b16 %v1202
      %v4013 = vunpack.c.l.b16 %v1203
      %v4014 = vunpack.c.h.b16 %v1203
      %v4015 = vunpack.c.l.b16 %v1204
      %v4016 = vunpack.c.h.b16 %v1204
      %v4017 = vunpack.c.l.b16 %v1205
      %v4018 = vunpack.c.h.b16 %v1205
      %v4019 = vunpack.c.l.b16 %v1206
      %v4020 = vunpack.c.h.b16 %v1206
      %v4021 = vunpack.c.l.b16 %v1207
      %v4022 = vunpack.c.h.b16 %v1207
      %v4023 = vunpack.c.l.b16 %v1208
      %v4024 = vunpack.c.h.b16 %v1208
      %v4025 = vunpack.c.l.b16 %v1209
      %v4026 = vunpack.c.h.b16 %v1209
      %v4027 = vunpack.c.l.b16 %v1210
      %v4028 = vunpack.c.h.b16 %v1210
      %v4029 = vunpack.c.l.b16 %v1211
      %v4030 = vunpack.c.h.b16 %v1211
      %v4031 = vunpack.c.l.b16 %v1212
      %v4032 = vunpack.c.h.b16 %v1212
      %v4033 = vunpack.c.l.b16 %v1213
      %v4034 = vunpack.c.h.b16 %v1213
      %v4035 = vunpack.c.l.b16 %v1214
      %v4036 = vunpack.c.h.b16 %v1214
      %v4037 = vunpack.c.l.b16 %v1215
      %v4038 = vunpack.c.h.b16 %v1215
      %v4039 = vunpack.c.l.b16 %v1216
      %v4040 = vunpack.c.h.b16 %v1216
      %v4041 = vunpack.c.l.b16 %v1217
      %v4042 = vunpack.c.h.b16 %v1217
      %v4043 = vunpack.c.l.b16 %v1218
      %v4044 = vunpack.c.h.b16 %v1218
      %v4045 = vunpack.c.l.b16 %v1219
      %v4046 = vunpack.c.h.b16 %v1219
      %v4047 = vunpack.c.l.b16 %v1220
      %v4048 = vunpack.c.h.b16 %v1220
      %v4049 = vunpack.c.l.b16 %v1221
      %v4050 = vunpack.c.h.b16 %v1221
      %v4051 = vunpack.c.l.b16 %v1222
      %v4052 = vunpack.c.h.b16 %v1222
      %v4053 = vunpack.c.l.b16 %v1223
      %v4054 = vunpack.c.h.b16 %v1223
      %v4055 = vunpack.c.l.b16 %v1224
      %v4056 = vunpack.c.h.b16 %v1224
      %v4057 = vunpack.c.l.b16 %v1225
      %v4058 = vunpack.c.h.b16 %v1225
      %v4059 = vunpack.c.l.b16 %v1226
      %v4060 = vunpack.c.h.b16 %v1226
      %v4061 = vunpack.c.l.b16 %v1227
      %v4062 = vunpack.c.h.b16 %v1227
      %v4063 = vunpack.c.l.b16 %v1228
      %v4064 = vunpack.c.h.b16 %v1228
      %v4065 = vunpack.c.l.b16 %v1229
      %v4066 = vunpack.c.h.b16 %v1229
      %v4067 = vunpack.c.l.b16 %v1230
      %v4068 = vunpack.c.h.b16 %v1230
      %v4069 = vunpack.c.l.b16 %v1231
      %v4070 = vunpack.c.h.b16 %v1231
      %v4071 = vunpack.c.l.b16 %v1232
      %v4072 = vunpack.c.h.b16 %v1232
      %v4073 = vunpack.c.l.b16 %v1233
      %v4074 = vunpack.c.h.b16 %v1233
      %v4075 = vunpack.c.l.b16 %v1234
      %v4076 = vunpack.c.h.b16 %v1234
      %v4077 = vunpack.c.l.b16 %v1235
      %v4078 = vunpack.c.h.b16 %v1235
      %v4079 = vunpack.c.l.b16 %v1236
      %v4080 = vunpack.c.h.b16 %v1236
      %v4081 = vunpack.c.l.b16 %v1237
      %v4082 = vunpack.c.h.b16 %v1237
      %v4083 = vunpack.c.l.b16 %v1238
      %v4084 = vunpack.c.h.b16 %v1238
      %v4085 = vunpack.c.l.b16 %v1239
      %v4086 = vunpack.c.h.b16 %v1239
      %v4087 = vunpack.c.l.b16 %v1240
      %v4088 = vunpack.c.h.b16 %v1240
      %v4089 = vunpack.c.l.b16 %v1241
      %v4090 = vunpack.c.h.b16 %v1241
      %v4091 = vunpack.c.l.b16 %v1242
      %v4092 = vunpack.c.h.b16 %v1242
      %v4093 = vunpack.c.l.b16 %v1243
      %v4094 = vunpack.c.h.b16 %v1243
      %v4095 = vunpack.c.l.b16 %v1244
      %v4096 = vunpack.c.h.b16 %v1244
      %v4097 = vunpack.c.l.b16 %v1245
      %v4098 = vunpack.c.h.b16 %v1245
      %v4099 = vunpack.c.l.b16 %v1246
      %v4100 = vunpack.c.h.b16 %v1246
      %v4101 = vunpack.c.l.b16 %v1247
      %v4102 = vunpack.c.h.b16 %v1247
      %v4103 = vunpack.c.l.b16 %v1248
      %v4104 = vunpack.c.h.b16 %v1248
      %v4105 = vunpack.c.l.b16 %v1249
      %v4106 = vunpack.c.h.b16 %v1249
      %v4107 = vunpack.c.l.b16 %v1250
      %v4108 = vunpack.c.h.b16 %v1250
      %v4109 = vunpack.c.l.b16 %v1251
      %v4110 = vunpack.c.h.b16 %v1251
      %v4111 = vunpack.c.l.b16 %v1252
      %v4112 = vunpack.c.h.b16 %v1252
      %v4113 = vunpack.c.l.b16 %v1253
      %v4114 = vunpack.c.h.b16 %v1253
      %v4115 = vunpack.c.l.b16 %v1254
      %v4116 = vunpack.c.h.b16 %v1254
      %v4117 = vunpack.c.l.b16 %v1255
      %v4118 = vunpack.c.h.b16 %v1255
      %v4119 = vunpack.c.l.b16 %v1256
      %v4120 = vunpack.c.h.b16 %v1256
      %v4121 = vunpack.c.l.b16 %v1257
      %v4122 = vunpack.c.h.b16 %v1257
      %v4123 = vunpack.c.l.b16 %v1258
      %v4124 = vunpack.c.h.b16 %v1258
      %v4125 = vunpack.c.l.b16 %v1259
      %v4126 = vunpack.c.h.b16 %v1259
      %v4127 = vunpack.c.l.b16 %v1260
      %v4128 = vunpack.c.h.b16 %v1260
      %v4129 = vunpack.c.l.b16 %v1261
      %v4130 = vunpack.c.h.b16 %v1261
      %v4131 = vunpack.c.l.b16 %v1262
      %v4132 = vunpack.c.h.b16 %v1262
      %v4133 = vunpack.c.l.b16 %v1263
      %v4134 = vunpack.c.h.b16 %v1263
      %v4135 = vunpack.c.l.b16 %v1264
      %v4136 = vunpack.c.h.b16 %v1264
      %v4137 = vunpack.c.l.b16 %v1265
      %v4138 = vunpack.c.h.b16 %v1265
      %v4139 = vunpack.c.l.b16 %v1266
      %v4140 = vunpack.c.h.b16 %v1266
      %v4141 = vunpack.c.l.b16 %v1267
      %v4142 = vunpack.c.h.b16 %v1267
      %v4143 = vunpack.c.l.b16 %v1268
      %v4144 = vunpack.c.h.b16 %v1268
      %v4145 = vunpack.c.l.b16 %v1269
      %v4146 = vunpack.c.h.b16 %v1269
      %v4147 = vunpack.c.l.b16 %v1270
      %v4148 = vunpack.c.h.b16 %v1270
      %v4149 = vunpack.c.l.b16 %v1271
      %v4150 = vunpack.c.h.b16 %v1271
      %v4151 = vunpack.c.l.b16 %v1272
      %v4152 = vunpack.c.h.b16 %v1272
      %v4153 = vunpack.c.l.b16 %v1273
      %v4154 = vunpack.c.h.b16 %v1273
      %v4155 = vunpack.c.l.b16 %v1274
      %v4156 = vunpack.c.h.b16 %v1274
      %v4157 = vunpack.c.l.b16 %v1275
      %v4158 = vunpack.c.h.b16 %v1275
      %v4159 = vunpack.c.l.b16 %v1276
      %v4160 = vunpack.c.h.b16 %v1276
      %v4161 = vunpack.c.l.b16 %v1277
      %v4162 = vunpack.c.h.b16 %v1277
      %v4163 = vunpack.c.l.b16 %v1278
      %v4164 = vunpack.c.h.b16 %v1278
      %v4165 = vunpack.c.l.b16 %v1279
      %v4166 = vunpack.c.h.b16 %v1279
      %v4167 = vunpack.c.l.b16 %v1280
      %v4168 = vunpack.c.h.b16 %v1280
      %v4169 = vunpack.c.l.b16 %v1281
      %v4170 = vunpack.c.h.b16 %v1281
      %v4171 = vunpack.c.l.b16 %v1282
      %v4172 = vunpack.c.h.b16 %v1282
      %v4173 = vunpack.c.l.b16 %v1283
      %v4174 = vunpack.c.h.b16 %v1283
      %v4175 = vunpack.c.l.b16 %v1284
      %v4176 = vunpack.c.h.b16 %v1284
      %v4177 = vunpack.c.l.b16 %v1285
      %v4178 = vunpack.c.h.b16 %v1285
      %v4179 = vunpack.c.l.b16 %v1286
      %v4180 = vunpack.c.h.b16 %v1286
      %v4181 = vunpack.c.l.b16 %v1287
      %v4182 = vunpack.c.h.b16 %v1287
      %v4183 = vunpack.c.l.b16 %v1288
      %v4184 = vunpack.c.h.b16 %v1288
      %v4185 = vunpack.c.l.b16 %v1289
      %v4186 = vunpack.c.h.b16 %v1289
      %v4187 = vunpack.c.l.b16 %v1290
      %v4188 = vunpack.c.h.b16 %v1290
      %v4189 = vunpack.c.l.b16 %v1291
      %v4190 = vunpack.c.h.b16 %v1291
      %v4191 = vunpack.c.l.b16 %v1292
      %v4192 = vunpack.c.h.b16 %v1292
      %v4193 = vunpack.c.l.b16 %v1293
      %v4194 = vunpack.c.h.b16 %v1293
      %v4195 = vunpack.c.l.b16 %v1294
      %v4196 = vunpack.c.h.b16 %v1294
      %v4197 = vunpack.c.l.b16 %v1295
      %v4198 = vunpack.c.h.b16 %v1295
      %v4199 = vunpack.c.l.b16 %v1296
      %v4200 = vunpack.c.h.b16 %v1296
      %v4201 = vunpack.c.l.b16 %v1297
      %v4202 = vunpack.c.h.b16 %v1297
      %v4203 = vunpack.c.l.b16 %v1298
      %v4204 = vunpack.c.h.b16 %v1298
      %v4205 = vunpack.c.l.b16 %v1299
      %v4206 = vunpack.c.h.b16 %v1299
      %v4207 = vunpack.c.l.b16 %v1300
      %v4208 = vunpack.c.h.b16 %v1300
      %v4209 = vunpack.c.l.b16 %v1301
      %v4210 = vunpack.c.h.b16 %v1301
      %v4211 = vunpack.c.l.b16 %v1302
      %v4212 = vunpack.c.h.b16 %v1302
      %v4213 = vunpack.c.l.b16 %v1303
      %v4214 = vunpack.c.h.b16 %v1303
      %v4215 = vunpack.c.l.b16 %v1304
      %v4216 = vunpack.c.h.b16 %v1304
      %v4217 = vunpack.c.l.b16 %v1305
      %v4218 = vunpack.c.h.b16 %v1305
      %v4219 = vunpack.c.l.b16 %v1306
      %v4220 = vunpack.c.h.b16 %v1306
      %v4221 = vunpack.c.l.b16 %v1307
      %v4222 = vunpack.c.h.b16 %v1307
      %v4223 = vunpack.c.l.b16 %v1308
      %v4224 = vunpack.c.h.b16 %v1308
      %v4225 = vunpack.c.l.b16 %v1309
      %v4226 = vunpack.c.h.b16 %v1309
      %v4227 = vunpack.c.l.b16 %v1310
      %v4228 = vunpack.c.h.b16 %v1310
      %v4229 = vpack.c.b16 %v2357, %v2353
      %v4230 = vpack.c.b16 %v2358, %v2354
      %v4231 = vpack.c.b16 %v2359, %v2355
      %v4232 = vpack.c.b16 %v2360, %v2356
      %v4233 = vpack.c.b16 %v2365, %v2361
      %v4234 = vpack.c.b16 %v2366, %v2362
      %v4235 = vpack.c.b16 %v2367, %v2363
      %v4236 = vpack.c.b16 %v2368, %v2364
      %v4237 = vpack.c.b16 %v2373, %v2369
      %v4238 = vpack.c.b16 %v2374, %v2370
      %v4239 = vpack.c.b16 %v2375, %v2371
      %v4240 = vpack.c.b16 %v2376, %v2372
      %v4241 = vpack.c.b16 %v2381, %v2377
      %v4242 = vpack.c.b16 %v2382, %v2378
      %v4243 = vpack.c.b16 %v2383, %v2379
      %v4244 = vpack.c.b16 %v2384, %v2380
      %v4245 = vpack.c.b16 %v2389, %v2385
      %v4246 = vpack.c.b16 %v2390, %v2386
      %v4247 = vpack.c.b16 %v2391, %v2387
      %v4248 = vpack.c.b16 %v2392, %v2388
      %v4249 = vpack.c.b16 %v2397, %v2393
      %v4250 = vpack.c.b16 %v2398, %v2394
      %v4251 = vpack.c.b16 %v2399, %v2395
      %v4252 = vpack.c.b16 %v2400, %v2396
      %v4253 = vpack.c.b16 %v2405, %v2401
      %v4254 = vpack.c.b16 %v2406, %v2402
      %v4255 = vpack.c.b16 %v2407, %v2403
      %v4256 = vpack.c.b16 %v2408, %v2404
      %v4257 = vpack.c.b16 %v2413, %v2409
      %v4258 = vpack.c.b16 %v2414, %v2410
      %v4259 = vpack.c.b16 %v2415, %v2411
      %v4260 = vpack.c.b16 %v2416, %v2412
      %v4261 = vpack.c.b16 %v2421, %v2417
      %v4262 = vpack.c.b16 %v2422, %v2418
      %v4263 = vpack.c.b16 %v2423, %v2419
      %v4264 = vpack.c.b16 %v2424, %v2420
      %v4265 = vpack.c.b16 %v2429, %v2425
      %v4266 = vpack.c.b16 %v2430, %v2426
      %v4267 = vpack.c.b16 %v2431, %v2427
      %v4268 = vpack.c.b16 %v2432, %v2428
      %v4269 = vpack.c.b16 %v2437, %v2433
      %v4270 = vpack.c.b16 %v2438, %v2434
      %v4271 = vpack.c.b16 %v2439, %v2435
      %v4272 = vpack.c.b16 %v2440, %v2436
      %v4273 = vpack.c.b16 %v2445, %v2441
      %v4274 = vpack.c.b16 %v2446, %v2442
      %v4275 = vpack.c.b16 %v2447, %v2443
      %v4276 = vpack.c.b16 %v2448, %v2444
      %v4277 = vpack.c.b16 %v2453, %v2449
      %v4278 = vpack.c.b16 %v2454, %v2450
      %v4279 = vpack.c.b16 %v2455, %v2451
      %v4280 = vpack.c.b16 %v2456, %v2452
      %v4281 = vpack.c.b16 %v2461, %v2457
      %v4282 = vpack.c.b16 %v2462, %v2458
      %v4283 = vpack.c.b16 %v2463, %v2459
      %v4284 = vpack.c.b16 %v2464, %v2460
      %v4285 = vpack.c.b16 %v2469, %v2465
      %v4286 = vpack.c.b16 %v2470, %v2466
      %v4287 = vpack.c.b16 %v2471, %v2467
      %v4288 = vpack.c.b16 %v2472, %v2468
      %v4289 = vpack.c.b16 %v2477, %v2473
      %v4290 = vpack.c.b16 %v2478, %v2474
      %v4291 = vpack.c.b16 %v2479, %v2475
      %v4292 = vpack.c.b16 %v2480, %v2476
      %v4293 = vpack.c.b16 %v2485, %v2481
      %v4294 = vpack.c.b16 %v2486, %v2482
      %v4295 = vpack.c.b16 %v2487, %v2483
      %v4296 = vpack.c.b16 %v2488, %v2484
      %v4297 = vpack.c.b16 %v2493, %v2489
      %v4298 = vpack.c.b16 %v2494, %v2490
      %v4299 = vpack.c.b16 %v2495, %v2491
      %v4300 = vpack.c.b16 %v2496, %v2492
      %v4301 = vpack.c.b16 %v2501, %v2497
      %v4302 = vpack.c.b16 %v2502, %v2498
      %v4303 = vpack.c.b16 %v2503, %v2499
      %v4304 = vpack.c.b16 %v2504, %v2500
      %v4305 = vpack.c.b16 %v2509, %v2505
      %v4306 = vpack.c.b16 %v2510, %v2506
      %v4307 = vpack.c.b16 %v2511, %v2507
      %v4308 = vpack.c.b16 %v2512, %v2508
      %v4309 = vpack.c.b16 %v2517, %v2513
      %v4310 = vpack.c.b16 %v2518, %v2514
      %v4311 = vpack.c.b16 %v2519, %v2515
      %v4312 = vpack.c.b16 %v2520, %v2516
      %v4313 = vpack.c.b16 %v2525, %v2521
      %v4314 = vpack.c.b16 %v2526, %v2522
      %v4315 = vpack.c.b16 %v2527, %v2523
      %v4316 = vpack.c.b16 %v2528, %v2524
      %v4317 = vpack.c.b16 %v2533, %v2529
      %v4318 = vpack.c.b16 %v2534, %v2530
      %v4319 = vpack.c.b16 %v2535, %v2531
      %v4320 = vpack.c.b16 %v2536, %v2532
      %v4321 = vpack.c.b16 %v2541, %v2537
      %v4322 = vpack.c.b16 %v2542, %v2538
      %v4323 = vpack.c.b16 %v2543, %v2539
      %v4324 = vpack.c.b16 %v2544, %v2540
      %v4325 = vpack.c.b16 %v2549, %v2545
      %v4326 = vpack.c.b16 %v2550, %v2546
      %v4327 = vpack.c.b16 %v2551, %v2547
      %v4328 = vpack.c.b16 %v2552, %v2548
      %v4329 = vpack.c.b16 %v2557, %v2553
      %v4330 = vpack.c.b16 %v2558, %v2554
      %v4331 = vpack.c.b16 %v2559, %v2555
      %v4332 = vpack.c.b16 %v2560, %v2556
      %v4333 = vpack.c.b16 %v2565, %v2561
      %v4334 = vpack.c.b16 %v2566, %v2562
      %v4335 = vpack.c.b16 %v2567, %v2563
      %v4336 = vpack.c.b16 %v2568, %v2564
      %v4337 = vpack.c.b16 %v2573, %v2569
      %v4338 = vpack.c.b16 %v2574, %v2570
      %v4339 = vpack.c.b16 %v2575, %v2571
      %v4340 = vpack.c.b16 %v2576, %v2572
      %v4341 = vpack.c.b16 %v2581, %v2577
      %v4342 = vpack.c.b16 %v2582, %v2578
      %v4343 = vpack.c.b16 %v2583, %v2579
      %v4344 = vpack.c.b16 %v2584, %v2580
      %v4345 = vpack.c.b16 %v2589, %v2585
      %v4346 = vpack.c.b16 %v2590, %v2586
      %v4347 = vpack.c.b16 %v2591, %v2587
      %v4348 = vpack.c.b16 %v2592, %v2588
      %v4349 = vpack.c.b16 %v2597, %v2593
      %v4350 = vpack.c.b16 %v2598, %v2594
      %v4351 = vpack.c.b16 %v2599, %v2595
      %v4352 = vpack.c.b16 %v2600, %v2596
      %v4353 = vpack.c.b16 %v2605, %v2601
      %v4354 = vpack.c.b16 %v2606, %v2602
      %v4355 = vpack.c.b16 %v2607, %v2603
      %v4356 = vpack.c.b16 %v2608, %v2604
      %v4357 = vpack.c.b16 %v2613, %v2609
      %v4358 = vpack.c.b16 %v2614, %v2610
      %v4359 = vpack.c.b16 %v2615, %v2611
      %v4360 = vpack.c.b16 %v2616, %v2612
      %v4361 = vpack.c.b16 %v2621, %v2617
      %v4362 = vpack.c.b16 %v2622, %v2618
      %v4363 = vpack.c.b16 %v2623, %v2619
      %v4364 = vpack.c.b16 %v2624, %v2620
      %v4365 = vpack.c.b16 %v2629, %v2625
      %v4366 = vpack.c.b16 %v2630, %v2626
      %v4367 = vpack.c.b16 %v2631, %v2627
      %v4368 = vpack.c.b16 %v2632, %v2628
      %v4369 = vpack.c.b16 %v2637, %v2633
      %v4370 = vpack.c.b16 %v2638, %v2634
      %v4371 = vpack.c.b16 %v2639, %v2635
      %v4372 = vpack.c.b16 %v2640, %v2636
      %v4373 = vpack.c.b16 %v2645, %v2641
      %v4374 = vpack.c.b16 %v2646, %v2642
      %v4375 = vpack.c.b16 %v2647, %v2643
      %v4376 = vpack.c.b16 %v2648, %v2644
      %v4377 = vpack.c.b16 %v2653, %v2649
      %v4378 = vpack.c.b16 %v2654, %v2650
      %v4379 = vpack.c.b16 %v2655, %v2651
      %v4380 = vpack.c.b16 %v2656, %v2652
      %v4381 = vpack.c.b16 %v2661, %v2657
      %v4382 = vpack.c.b16 %v2662, %v2658
      %v4383 = vpack.c.b16 %v2663, %v2659
      %v4384 = vpack.c.b16 %v2664, %v2660
      %v4385 = vpack.c.b16 %v2669, %v2665
      %v4386 = vpack.c.b16 %v2670, %v2666
      %v4387 = vpack.c.b16 %v2671, %v2667
      %v4388 = vpack.c.b16 %v2672, %v2668
      %v4389 = vpack.c.b16 %v2677, %v2673
      %v4390 = vpack.c.b16 %v2678, %v2674
      %v4391 = vpack.c.b16 %v2679, %v2675
      %v4392 = vpack.c.b16 %v2680, %v2676
      %v4393 = vpack.c.b16 %v2685, %v2681
      %v4394 = vpack.c.b16 %v2686, %v2682
      %v4395 = vpack.c.b16 %v2687, %v2683
      %v4396 = vpack.c.b16 %v2688, %v2684
      %v4397 = vpack.c.b16 %v2693, %v2689
      %v4398 = vpack.c.b16 %v2694, %v2690
      %v4399 = vpack.c.b16 %v2695, %v2691
      %v4400 = vpack.c.b16 %v2696, %v2692
      %v4401 = vpack.c.b16 %v2701, %v2697
      %v4402 = vpack.c.b16 %v2702, %v2698
      %v4403 = vpack.c.b16 %v2703, %v2699
      %v4404 = vpack.c.b16 %v2704, %v2700
      %v4405 = vpack.c.b16 %v2709, %v2705
      %v4406 = vpack.c.b16 %v2710, %v2706
      %v4407 = vpack.c.b16 %v2711, %v2707
      %v4408 = vpack.c.b16 %v2712, %v2708
      %v4409 = vpack.c.b16 %v2717, %v2713
      %v4410 = vpack.c.b16 %v2718, %v2714
      %v4411 = vpack.c.b16 %v2719, %v2715
      %v4412 = vpack.c.b16 %v2720, %v2716
      %v4413 = vpack.c.b16 %v2725, %v2721
      %v4414 = vpack.c.b16 %v2726, %v2722
      %v4415 = vpack.c.b16 %v2727, %v2723
      %v4416 = vpack.c.b16 %v2728, %v2724
      %v4417 = vpack.c.b16 %v2733, %v2729
      %v4418 = vpack.c.b16 %v2734, %v2730
      %v4419 = vpack.c.b16 %v2735, %v2731
      %v4420 = vpack.c.b16 %v2736, %v2732
      %v4421 = vpack.c.b16 %v2741, %v2737
      %v4422 = vpack.c.b16 %v2742, %v2738
      %v4423 = vpack.c.b16 %v2743, %v2739
      %v4424 = vpack.c.b16 %v2744, %v2740
      %v4425 = vpack.c.b16 %v2749, %v2745
      %v4426 = vpack.c.b16 %v2750, %v2746
      %v4427 = vpack.c.b16 %v2751, %v2747
      %v4428 = vpack.c.b16 %v2752, %v2748
      %v4429 = vpack.c.b16 %v2757, %v2753
      %v4430 = vpack.c.b16 %v2758, %v2754
      %v4431 = vpack.c.b16 %v2759, %v2755
      %v4432 = vpack.c.b16 %v2760, %v2756
      %v4433 = vpack.c.b16 %v2765, %v2761
      %v4434 = vpack.c.b16 %v2766, %v2762
      %v4435 = vpack.c.b16 %v2767, %v2763
      %v4436 = vpack.c.b16 %v2768, %v2764
      %v4437 = vpack.c.b16 %v2773, %v2769
      %v4438 = vpack.c.b16 %v2774, %v2770
      %v4439 = vpack.c.b16 %v2775, %v2771
      %v4440 = vpack.c.b16 %v2776, %v2772
      %v4441 = vpack.c.b16 %v2781, %v2777
      %v4442 = vpack.c.b16 %v2782, %v2778
      %v4443 = vpack.c.b16 %v2783, %v2779
      %v4444 = vpack.c.b16 %v2784, %v2780
      %v4445 = vpack.c.b16 %v2789, %v2785
      %v4446 = vpack.c.b16 %v2790, %v2786
      %v4447 = vpack.c.b16 %v2791, %v2787
      %v4448 = vpack.c.b16 %v2792, %v2788
      %v4449 = vpack.c.b16 %v2797, %v2793
      %v4450 = vpack.c.b16 %v2798, %v2794
      %v4451 = vpack.c.b16 %v2799, %v2795
      %v4452 = vpack.c.b16 %v2800, %v2796
      %v4453 = vpack.c.b16 %v2805, %v2801
      %v4454 = vpack.c.b16 %v2806, %v2802
      %v4455 = vpack.c.b16 %v2807, %v2803
      %v4456 = vpack.c.b16 %v2808, %v2804
      %v4457 = vpack.c.b16 %v2813, %v2809
      %v4458 = vpack.c.b16 %v2814, %v2810
      %v4459 = vpack.c.b16 %v2815, %v2811
      %v4460 = vpack.c.b16 %v2816, %v2812
      %v4461 = vpack.c.b16 %v2821, %v2817
      %v4462 = vpack.c.b16 %v2822, %v2818
      %v4463 = vpack.c.b16 %v2823, %v2819
      %v4464 = vpack.c.b16 %v2824, %v2820
      %v4465 = vpack.c.b16 %v2829, %v2825
      %v4466 = vpack.c.b16 %v2830, %v2826
      %v4467 = vpack.c.b16 %v2831, %v2827
      %v4468 = vpack.c.b16 %v2832, %v2828
      %v4469 = vpack.c.b16 %v2837, %v2833
      %v4470 = vpack.c.b16 %v2838, %v2834
      %v4471 = vpack.c.b16 %v2839, %v2835
      %v4472 = vpack.c.b16 %v2840, %v2836
      %v4473 = vpack.c.b16 %v2845, %v2841
      %v4474 = vpack.c.b16 %v2846, %v2842
      %v4475 = vpack.c.b16 %v2847, %v2843
      %v4476 = vpack.c.b16 %v2848, %v2844
      %v4477 = vpack.c.b16 %v2853, %v2849
      %v4478 = vpack.c.b16 %v2854, %v2850
      %v4479 = vpack.c.b16 %v2855, %v2851
      %v4480 = vpack.c.b16 %v2856, %v2852
      %v4481 = vpack.c.b16 %v2861, %v2857
      %v4482 = vpack.c.b16 %v2862, %v2858
      %v4483 = vpack.c.b16 %v2863, %v2859
      %v4484 = vpack.c.b16 %v2864, %v2860
      %v4485 = vpack.c.b16 %v2869, %v2865
      %v4486 = vpack.c.b16 %v2870, %v2866
      %v4487 = vpack.c.b16 %v2871, %v2867
      %v4488 = vpack.c.b16 %v2872, %v2868
      %v4489 = vpack.c.b16 %v2877, %v2873
      %v4490 = vpack.c.b16 %v2878, %v2874
      %v4491 = vpack.c.b16 %v2879, %v2875
      %v4492 = vpack.c.b16 %v2880, %v2876
      %v4493 = vpack.c.b16 %v2885, %v2881
      %v4494 = vpack.c.b16 %v2886, %v2882
      %v4495 = vpack.c.b16 %v2887, %v2883
      %v4496 = vpack.c.b16 %v2888, %v2884
      %v4497 = vpack.c.b16 %v2893, %v2889
      %v4498 = vpack.c.b16 %v2894, %v2890
      %v4499 = vpack.c.b16 %v2895, %v2891
      %v4500 = vpack.c.b16 %v2896, %v2892
      %v4501 = vpack.c.b16 %v2901, %v2897
      %v4502 = vpack.c.b16 %v2902, %v2898
      %v4503 = vpack.c.b16 %v2903, %v2899
      %v4504 = vpack.c.b16 %v2904, %v2900
      %v4505 = vpack.c.b16 %v2909, %v2905
      %v4506 = vpack.c.b16 %v2910, %v2906
      %v4507 = vpack.c.b16 %v2911, %v2907
      %v4508 = vpack.c.b16 %v2912, %v2908
      %v4509 = vpack.c.b16 %v2917, %v2913
      %v4510 = vpack.c.b16 %v2918, %v2914
      %v4511 = vpack.c.b16 %v2919, %v2915
      %v4512 = vpack.c.b16 %v2920, %v2916
      %v4513 = vpack.c.b16 %v2925, %v2921
      %v4514 = vpack.c.b16 %v2926, %v2922
      %v4515 = vpack.c.b16 %v2927, %v2923
      %v4516 = vpack.c.b16 %v2928, %v2924
      %v4517 = vpack.c.b16 %v2933, %v2929
      %v4518 = vpack.c.b16 %v2934, %v2930
      %v4519 = vpack.c.b16 %v2935, %v2931
      %v4520 = vpack.c.b16 %v2936, %v2932
      %v4521 = vpack.c.b16 %v2941, %v2937
      %v4522 = vpack.c.b16 %v2942, %v2938
      %v4523 = vpack.c.b16 %v2943, %v2939
      %v4524 = vpack.c.b16 %v2944, %v2940
      %v4525 = vpack.c.b16 %v2949, %v2945
      %v4526 = vpack.c.b16 %v2950, %v2946
      %v4527 = vpack.c.b16 %v2951, %v2947
      %v4528 = vpack.c.b16 %v2952, %v2948
      %v4529 = vpack.c.b16 %v2957, %v2953
      %v4530 = vpack.c.b16 %v2958, %v2954
      %v4531 = vpack.c.b16 %v2959, %v2955
      %v4532 = vpack.c.b16 %v2960, %v2956
      %v4533 = vpack.c.b16 %v2965, %v2961
      %v4534 = vpack.c.b16 %v2966, %v2962
      %v4535 = vpack.c.b16 %v2967, %v2963
      %v4536 = vpack.c.b16 %v2968, %v2964
      %v4537 = vpack.c.b16 %v2973, %v2969
      %v4538 = vpack.c.b16 %v2974, %v2970
      %v4539 = vpack.c.b16 %v2975, %v2971
      %v4540 = vpack.c.b16 %v2976, %v2972
      %v4541 = vpack.c.b16 %v2981, %v2977
      %v4542 = vpack.c.b16 %v2982, %v2978
      %v4543 = vpack.c.b16 %v2983, %v2979
      %v4544 = vpack.c.b16 %v2984, %v2980
      %v4545 = vpack.c.b16 %v2989, %v2985
      %v4546 = vpack.c.b16 %v2990, %v2986
      %v4547 = vpack.c.b16 %v2991, %v2987
      %v4548 = vpack.c.b16 %v2992, %v2988
      %v4549 = vpack.c.b16 %v2997, %v2993
      %v4550 = vpack.c.b16 %v2998, %v2994
      %v4551 = vpack.c.b16 %v2999, %v2995
      %v4552 = vpack.c.b16 %v3000, %v2996
      %v4553 = vpack.c.b16 %v3005, %v3001
      %v4554 = vpack.c.b16 %v3006, %v3002
      %v4555 = vpack.c.b16 %v3007, %v3003
      %v4556 = vpack.c.b16 %v3008, %v3004
      %v4557 = vpack.c.b16 %v3013, %v3009
      %v4558 = vpack.c.b16 %v3014, %v3010
      %v4559 = vpack.c.b16 %v3015, %v3011
      %v4560 = vpack.c.b16 %v3016, %v3012
      %v4561 = vpack.c.b16 %v3021, %v3017
      %v4562 = vpack.c.b16 %v3022, %v3018
      %v4563 = vpack.c.b16 %v3023, %v3019
      %v4564 = vpack.c.b16 %v3024, %v3020
      %v4565 = vpack.c.b16 %v3029, %v3025
      %v4566 = vpack.c.b16 %v3030, %v3026
      %v4567 = vpack.c.b16 %v3031, %v3027
      %v4568 = vpack.c.b16 %v3032, %v3028
      %v4569 = vpack.c.b16 %v3037, %v3033
      %v4570 = vpack.c.b16 %v3038, %v3034
      %v4571 = vpack.c.b16 %v3039, %v3035
      %v4572 = vpack.c.b16 %v3040, %v3036
      %v4573 = vpack.c.b16 %v3045, %v3041
      %v4574 = vpack.c.b16 %v3046, %v3042
      %v4575 = vpack.c.b16 %v3047, %v3043
      %v4576 = vpack.c.b16 %v3048, %v3044
      %v4577 = vpack.c.b16 %v3053, %v3049
      %v4578 = vpack.c.b16 %v3054, %v3050
      %v4579 = vpack.c.b16 %v3055, %v3051
      %v4580 = vpack.c.b16 %v3056, %v3052
      %v4581 = vpack.c.b16 %v3061, %v3057
      %v4582 = vpack.c.b16 %v3062, %v3058
      %v4583 = vpack.c.b16 %v3063, %v3059
      %v4584 = vpack.c.b16 %v3064, %v3060
      %v4585 = vpack.c.b16 %v3069, %v3065
      %v4586 = vpack.c.b16 %v3070, %v3066
      %v4587 = vpack.c.b16 %v3071, %v3067
      %v4588 = vpack.c.b16 %v3072, %v3068
      %v4589 = vpack.c.b16 %v3077, %v3073
      %v4590 = vpack.c.b16 %v3078, %v3074
      %v4591 = vpack.c.b16 %v3079, %v3075
      %v4592 = vpack.c.b16 %v3080, %v3076
      %v4593 = vpack.c.b16 %v3085, %v3081
      %v4594 = vpack.c.b16 %v3086, %v3082
      %v4595 = vpack.c.b16 %v3087, %v3083
      %v4596 = vpack.c.b16 %v3088, %v3084
      %v4597 = vpack.c.b16 %v3093, %v3089
      %v4598 = vpack.c.b16 %v3094, %v3090
      %v4599 = vpack.c.b16 %v3095, %v3091
      %v4600 = vpack.c.b16 %v3096, %v3092
      %v4601 = vpack.c.b16 %v3101, %v3097
      %v4602 = vpack.c.b16 %v3102, %v3098
      %v4603 = vpack.c.b16 %v3103, %v3099
      %v4604 = vpack.c.b16 %v3104, %v3100
      %v4605 = vpack.c.b16 %v3109, %v3105
      %v4606 = vpack.c.b16 %v3110, %v3106
      %v4607 = vpack.c.b16 %v3111, %v3107
      %v4608 = vpack.c.b16 %v3112, %v3108
      %v4609 = vpack.c.b16 %v3117, %v3113
      %v4610 = vpack.c.b16 %v3118, %v3114
      %v4611 = vpack.c.b16 %v3119, %v3115
      %v4612 = vpack.c.b16 %v3120, %v3116
      %v4613 = vpack.c.b16 %v3125, %v3121
      %v4614 = vpack.c.b16 %v3126, %v3122
      %v4615 = vpack.c.b16 %v3127, %v3123
      %v4616 = vpack.c.b16 %v3128, %v3124
      %v4617 = vpack.c.b16 %v3133, %v3129
      %v4618 = vpack.c.b16 %v3134, %v3130
      %v4619 = vpack.c.b16 %v3135, %v3131
      %v4620 = vpack.c.b16 %v3136, %v3132
      %v4621 = vpack.c.b16 %v3141, %v3137
      %v4622 = vpack.c.b16 %v3142, %v3138
      %v4623 = vpack.c.b16 %v3143, %v3139
      %v4624 = vpack.c.b16 %v3144, %v3140
      %v4625 = vpack.c.b16 %v3149, %v3145
      %v4626 = vpack.c.b16 %v3150, %v3146
      %v4627 = vpack.c.b16 %v3151, %v3147
      %v4628 = vpack.c.b16 %v3152, %v3148
      %v4629 = vpack.c.b16 %v3157, %v3153
      %v4630 = vpack.c.b16 %v3158, %v3154
      %v4631 = vpack.c.b16 %v3159, %v3155
      %v4632 = vpack.c.b16 %v3160, %v3156
      %v4633 = vpack.c.b16 %v3165, %v3161
      %v4634 = vpack.c.b16 %v3166, %v3162
      %v4635 = vpack.c.b16 %v3167, %v3163
      %v4636 = vpack.c.b16 %v3168, %v3164
      %v4637 = vpack.c.b16 %v3173, %v3169
      %v4638 = vpack.c.b16 %v3174, %v3170
      %v4639 = vpack.c.b16 %v3175, %v3171
      %v4640 = vpack.c.b16 %v3176, %v3172
      %v4641 = vpack.c.b16 %v3181, %v3177
      %v4642 = vpack.c.b16 %v3182, %v3178
      %v4643 = vpack.c.b16 %v3183, %v3179
      %v4644 = vpack.c.b16 %v3184, %v3180
      %v4645 = vpack.c.b16 %v3189, %v3185
      %v4646 = vpack.c.b16 %v3190, %v3186
      %v4647 = vpack.c.b16 %v3191, %v3187
      %v4648 = vpack.c.b16 %v3192, %v3188
      %v4649 = vpack.c.b16 %v3197, %v3193
      %v4650 = vpack.c.b16 %v3198, %v3194
      %v4651 = vpack.c.b16 %v3199, %v3195
      %v4652 = vpack.c.b16 %v3200, %v3196
      %v4653 = vpack.c.b16 %v3205, %v3201
      %v4654 = vpack.c.b16 %v3206, %v3202
      %v4655 = vpack.c.b16 %v3207, %v3203
      %v4656 = vpack.c.b16 %v3208, %v3204
      %v4657 = vpack.c.b16 %v3213, %v3209
      %v4658 = vpack.c.b16 %v3214, %v3210
      %v4659 = vpack.c.b16 %v3215, %v3211
      %v4660 = vpack.c.b16 %v3216, %v3212
      %v4661 = vpack.c.b16 %v3221, %v3217
      %v4662 = vpack.c.b16 %v3222, %v3218
      %v4663 = vpack.c.b16 %v3223, %v3219
      %v4664 = vpack.c.b16 %v3224, %v3220
      %v4665 = vpack.c.b16 %v3229, %v3225
      %v4666 = vpack.c.b16 %v3230, %v3226
      %v4667 = vpack.c.b16 %v3231, %v3227
      %v4668 = vpack.c.b16 %v3232, %v3228
      %v4669 = vpack.c.b16 %v3237, %v3233
      %v4670 = vpack.c.b16 %v3238, %v3234
      %v4671 = vpack.c.b16 %v3239, %v3235
      %v4672 = vpack.c.b16 %v3240, %v3236
      %v4673 = vpack.c.b16 %v3245, %v3241
      %v4674 = vpack.c.b16 %v3246, %v3242
      %v4675 = vpack.c.b16 %v3247, %v3243
      %v4676 = vpack.c.b16 %v3248, %v3244
      %v4677 = vpack.c.b16 %v3253, %v3249
      %v4678 = vpack.c.b16 %v3254, %v3250
      %v4679 = vpack.c.b16 %v3255, %v3251
      %v4680 = vpack.c.b16 %v3256, %v3252
      %v4681 = vpack.c.b16 %v3261, %v3257
      %v4682 = vpack.c.b16 %v3262, %v3258
      %v4683 = vpack.c.b16 %v3263, %v3259
      %v4684 = vpack.c.b16 %v3264, %v3260
      %v4685 = vpack.c.b16 %v3269, %v3265
      %v4686 = vpack.c.b16 %v3270, %v3266
      %v4687 = vpack.c.b16 %v3271, %v3267
      %v4688 = vpack.c.b16 %v3272, %v3268
      %v4689 = vpack.c.b16 %v3277, %v3273
      %v4690 = vpack.c.b16 %v3278, %v3274
      %v4691 = vpack.c.b16 %v3279, %v3275
      %v4692 = vpack.c.b16 %v3280, %v3276
      %v4693 = vpack.c.b16 %v3285, %v3281
      %v4694 = vpack.c.b16 %v3286, %v3282
      %v4695 = vpack.c.b16 %v3287, %v3283
      %v4696 = vpack.c.b16 %v3288, %v3284
      %v4697 = vpack.c.b16 %v3293, %v3289
      %v4698 = vpack.c.b16 %v3294, %v3290
      %v4699 = vpack.c.b16 %v3295, %v3291
      %v4700 = vpack.c.b16 %v3296, %v3292
      %v4701 = vpack.c.b16 %v3301, %v3297
      %v4702 = vpack.c.b16 %v3302, %v3298
      %v4703 = vpack.c.b16 %v3303, %v3299
      %v4704 = vpack.c.b16 %v3304, %v3300
      %v4705 = vpack.c.b16 %v3309, %v3305
      %v4706 = vpack.c.b16 %v3310, %v3306
      %v4707 = vpack.c.b16 %v3311, %v3307
      %v4708 = vpack.c.b16 %v3312, %v3308
      %v4709 = vpack.c.b16 %v3317, %v3313
      %v4710 = vpack.c.b16 %v3318, %v3314
      %v4711 = vpack.c.b16 %v3319, %v3315
      %v4712 = vpack.c.b16 %v3320, %v3316
      %v4713 = vpack.c.b16 %v3325, %v3321
      %v4714 = vpack.c.b16 %v3326, %v3322
      %v4715 = vpack.c.b16 %v3327, %v3323
      %v4716 = vpack.c.b16 %v3328, %v3324
      %v4717 = vpack.c.b16 %v3333, %v3329
      %v4718 = vpack.c.b16 %v3334, %v3330
      %v4719 = vpack.c.b16 %v3335, %v3331
      %v4720 = vpack.c.b16 %v3336, %v3332
      %v4721 = vpack.c.b16 %v3341, %v3337
      %v4722 = vpack.c.b16 %v3342, %v3338
      %v4723 = vpack.c.b16 %v3343, %v3339
      %v4724 = vpack.c.b16 %v3344, %v3340
      %v4725 = vpack.c.b16 %v3349, %v3345
      %v4726 = vpack.c.b16 %v3350, %v3346
      %v4727 = vpack.c.b16 %v3351, %v3347
      %v4728 = vpack.c.b16 %v3352, %v3348
      %v4729 = vpack.c.b16 %v3357, %v3353
      %v4730 = vpack.c.b16 %v3358, %v3354
      %v4731 = vpack.c.b16 %v3359, %v3355
      %v4732 = vpack.c.b16 %v3360, %v3356
      %v4733 = vpack.c.b16 %v3365, %v3361
      %v4734 = vpack.c.b16 %v3366, %v3362
      %v4735 = vpack.c.b16 %v3367, %v3363
      %v4736 = vpack.c.b16 %v3368, %v3364
      %v4737 = vpack.c.b16 %v3373, %v3369
      %v4738 = vpack.c.b16 %v3374, %v3370
      %v4739 = vpack.c.b16 %v3375, %v3371
      %v4740 = vpack.c.b16 %v3376, %v3372
      %v4741 = vpack.c.b16 %v3381, %v3377
      %v4742 = vpack.c.b16 %v3382, %v3378
      %v4743 = vpack.c.b16 %v3383, %v3379
      %v4744 = vpack.c.b16 %v3384, %v3380
      %v4745 = vpack.c.b16 %v3389, %v3385
      %v4746 = vpack.c.b16 %v3390, %v3386
      %v4747 = vpack.c.b16 %v3391, %v3387
      %v4748 = vpack.c.b16 %v3392, %v3388
      %v4749 = vpack.c.b16 %v3397, %v3393
      %v4750 = vpack.c.b16 %v3398, %v3394
      %v4751 = vpack.c.b16 %v3399, %v3395
      %v4752 = vpack.c.b16 %v3400, %v3396
      %v4753 = vpack.c.b16 %v3405, %v3401
      %v4754 = vpack.c.b16 %v3406, %v3402
      %v4755 = vpack.c.b16 %v3407, %v3403
      %v4756 = vpack.c.b16 %v3408, %v3404
      %v4757 = vpack.c.b16 %v3413, %v3409
      %v4758 = vpack.c.b16 %v3414, %v3410
      %v4759 = vpack.c.b16 %v3415, %v3411
      %v4760 = vpack.c.b16 %v3416, %v3412
      %v4761 = vpack.c.b16 %v3421, %v3417
      %v4762 = vpack.c.b16 %v3422, %v3418
      %v4763 = vpack.c.b16 %v3423, %v3419
      %v4764 = vpack.c.b16 %v3424, %v3420
      %v4765 = vpack.c.b16 %v3429, %v3425
      %v4766 = vpack.c.b16 %v3430, %v3426
      %v4767 = vpack.c.b16 %v3431, %v3427
      %v4768 = vpack.c.b16 %v3432, %v3428
      %v4769 = vpack.c.b16 %v3437, %v3433
      %v4770 = vpack.c.b16 %v3438, %v3434
      %v4771 = vpack.c.b16 %v3439, %v3435
      %v4772 = vpack.c.b16 %v3440, %v3436
      %v4773 = vpack.c.b16 %v3445, %v3441
      %v4774 = vpack.c.b16 %v3446, %v3442
      %v4775 = vpack.c.b16 %v3447, %v3443
      %v4776 = vpack.c.b16 %v3448, %v3444
      %v4777 = vpack.c.b16 %v3453, %v3449
      %v4778 = vpack.c.b16 %v3454, %v3450
      %v4779 = vpack.c.b16 %v3455, %v3451
      %v4780 = vpack.c.b16 %v3456, %v3452
      %v4781 = vpack.c.b16 %v3461, %v3457
      %v4782 = vpack.c.b16 %v3462, %v3458
      %v4783 = vpack.c.b16 %v3463, %v3459
      %v4784 = vpack.c.b16 %v3464, %v3460
      %v4785 = vpack.c.b16 %v3469, %v3465
      %v4786 = vpack.c.b16 %v3470, %v3466
      %v4787 = vpack.c.b16 %v3471, %v3467
      %v4788 = vpack.c.b16 %v3472, %v3468
      %v4789 = vpack.c.b16 %v3477, %v3473
      %v4790 = vpack.c.b16 %v3478, %v3474
      %v4791 = vpack.c.b16 %v3479, %v3475
      %v4792 = vpack.c.b16 %v3480, %v3476
      %v4793 = vpack.c.b16 %v3485, %v3481
      %v4794 = vpack.c.b16 %v3486, %v3482
      %v4795 = vpack.c.b16 %v3487, %v3483
      %v4796 = vpack.c.b16 %v3488, %v3484
      %v4797 = vpack.c.b16 %v3493, %v3489
      %v4798 = vpack.c.b16 %v3494, %v3490
      %v4799 = vpack.c.b16 %v3495, %v3491
      %v4800 = vpack.c.b16 %v3496, %v3492
      %v4801 = vpack.c.b16 %v3501, %v3497
      %v4802 = vpack.c.b16 %v3502, %v3498
      %v4803 = vpack.c.b16 %v3503, %v3499
      %v4804 = vpack.c.b16 %v3504, %v3500
      %v4805 = vpack.c.b16 %v3509, %v3505
      %v4806 = vpack.c.b16 %v3510, %v3506
      %v4807 = vpack.c.b16 %v3511, %v3507
      %v4808 = vpack.c.b16 %v3512, %v3508
      %v4809 = vpack.c.b16 %v3517, %v3513
      %v4810 = vpack.c.b16 %v3518, %v3514
      %v4811 = vpack.c.b16 %v3519, %v3515
      %v4812 = vpack.c.b16 %v3520, %v3516
      %v4813 = vpack.c.b16 %v3525, %v3521
      %v4814 = vpack.c.b16 %v3526, %v3522
      %v4815 = vpack.c.b16 %v3527, %v3523
      %v4816 = vpack.c.b16 %v3528, %v3524
      %v4817 = vpack.c.b16 %v3533, %v3529
      %v4818 = vpack.c.b16 %v3534, %v3530
      %v4819 = vpack.c.b16 %v3535, %v3531
      %v4820 = vpack.c.b16 %v3536, %v3532
      %v4821 = vpack.c.b16 %v3541, %v3537
      %v4822 = vpack.c.b16 %v3542, %v3538
      %v4823 = vpack.c.b16 %v3543, %v3539
      %v4824 = vpack.c.b16 %v3544, %v3540
      %v4825 = vpack.c.b16 %v3549, %v3545
      %v4826 = vpack.c.b16 %v3550, %v3546
      %v4827 = vpack.c.b16 %v3551, %v3547
      %v4828 = vpack.c.b16 %v3552, %v3548
      %v4829 = vpack.c.b16 %v3557, %v3553
      %v4830 = vpack.c.b16 %v3558, %v3554
      %v4831 = vpack.c.b16 %v3559, %v3555
      %v4832 = vpack.c.b16 %v3560, %v3556
      %v4833 = vpack.c.b16 %v3565, %v3561
      %v4834 = vpack.c.b16 %v3566, %v3562
      %v4835 = vpack.c.b16 %v3567, %v3563
      %v4836 = vpack.c.b16 %v3568, %v3564
      %v4837 = vpack.c.b16 %v3573, %v3569
      %v4838 = vpack.c.b16 %v3574, %v3570
      %v4839 = vpack.c.b16 %v3575, %v3571
      %v4840 = vpack.c.b16 %v3576, %v3572
      %v4841 = vpack.c.b16 %v3581, %v3577
      %v4842 = vpack.c.b16 %v3582, %v3578
      %v4843 = vpack.c.b16 %v3583, %v3579
      %v4844 = vpack.c.b16 %v3584, %v3580
      %v4845 = vpack.c.b16 %v3589, %v3585
      %v4846 = vpack.c.b16 %v3590, %v3586
      %v4847 = vpack.c.b16 %v3591, %v3587
      %v4848 = vpack.c.b16 %v3592, %v3588
      %v4849 = vpack.c.b16 %v3597, %v3593
      %v4850 = vpack.c.b16 %v3598, %v3594
      %v4851 = vpack.c.b16 %v3599, %v3595
      %v4852 = vpack.c.b16 %v3600, %v3596
      %v4853 = vpack.c.b16 %v3605, %v3601
      %v4854 = vpack.c.b16 %v3606, %v3602
      %v4855 = vpack.c.b16 %v3607, %v3603
      %v4856 = vpack.c.b16 %v3608, %v3604
      %v4857 = vpack.c.b16 %v3613, %v3609
      %v4858 = vpack.c.b16 %v3614, %v3610
      %v4859 = vpack.c.b16 %v3615, %v3611
      %v4860 = vpack.c.b16 %v3616, %v3612
      %v4861 = vpack.c.b16 %v3621, %v3617
      %v4862 = vpack.c.b16 %v3622, %v3618
      %v4863 = vpack.c.b16 %v3623, %v3619
      %v4864 = vpack.c.b16 %v3624, %v3620
      %v4865 = vpack.c.b16 %v3629, %v3625
      %v4866 = vpack.c.b16 %v3630, %v3626
      %v4867 = vpack.c.b16 %v3631, %v3627
      %v4868 = vpack.c.b16 %v3632, %v3628
      %v4869 = vpack.c.b16 %v3637, %v3633
      %v4870 = vpack.c.b16 %v3638, %v3634
      %v4871 = vpack.c.b16 %v3639, %v3635
      %v4872 = vpack.c.b16 %v3640, %v3636
      %v4873 = vpack.c.b16 %v3645, %v3641
      %v4874 = vpack.c.b16 %v3646, %v3642
      %v4875 = vpack.c.b16 %v3647, %v3643
      %v4876 = vpack.c.b16 %v3648, %v3644
      %v4877 = vpack.c.b16 %v3653, %v3649
      %v4878 = vpack.c.b16 %v3654, %v3650
      %v4879 = vpack.c.b16 %v3655, %v3651
      %v4880 = vpack.c.b16 %v3656, %v3652
      %v4881 = vpack.c.b16 %v3661, %v3657
      %v4882 = vpack.c.b16 %v3662, %v3658
      %v4883 = vpack.c.b16 %v3663, %v3659
      %v4884 = vpack.c.b16 %v3664, %v3660
      %v4885 = vpack.c.b16 %v3669, %v3665
      %v4886 = vpack.c.b16 %v3670, %v3666
      %v4887 = vpack.c.b16 %v3671, %v3667
      %v4888 = vpack.c.b16 %v3672, %v3668
      %v4889 = vpack.c.b16 %v3677, %v3673
      %v4890 = vpack.c.b16 %v3678, %v3674
      %v4891 = vpack.c.b16 %v3679, %v3675
      %v4892 = vpack.c.b16 %v3680, %v3676
      %v4893 = vpack.c.b16 %v3685, %v3681
      %v4894 = vpack.c.b16 %v3686, %v3682
      %v4895 = vpack.c.b16 %v3687, %v3683
      %v4896 = vpack.c.b16 %v3688, %v3684
      %v4897 = vpack.c.b16 %v3693, %v3689
      %v4898 = vpack.c.b16 %v3694, %v3690
      %v4899 = vpack.c.b16 %v3695, %v3691
      %v4900 = vpack.c.b16 %v3696, %v3692
      %v4901 = vpack.c.b16 %v3701, %v3697
      %v4902 = vpack.c.b16 %v3702, %v3698
      %v4903 = vpack.c.b16 %v3703, %v3699
      %v4904 = vpack.c.b16 %v3704, %v3700
      %v4905 = vpack.c.b16 %v3709, %v3705
      %v4906 = vpack.c.b16 %v3710, %v3706
      %v4907 = vpack.c.b16 %v3711, %v3707
      %v4908 = vpack.c.b16 %v3712, %v3708
      %v4909 = vpack.c.b16 %v3717, %v3713
      %v4910 = vpack.c.b16 %v3718, %v3714
      %v4911 = vpack.c.b16 %v3719, %v3715
      %v4912 = vpack.c.b16 %v3720, %v3716
      %v4913 = vpack.c.b16 %v3725, %v3721
      %v4914 = vpack.c.b16 %v3726, %v3722
      %v4915 = vpack.c.b16 %v3727, %v3723
      %v4916 = vpack.c.b16 %v3728, %v3724
      %v4917 = vpack.c.b16 %v3733, %v3729
      %v4918 = vpack.c.b16 %v3734, %v3730
      %v4919 = vpack.c.b16 %v3735, %v3731
      %v4920 = vpack.c.b16 %v3736, %v3732
      %v4921 = vpack.c.b16 %v3741, %v3737
      %v4922 = vpack.c.b16 %v3742, %v3738
      %v4923 = vpack.c.b16 %v3743, %v3739
      %v4924 = vpack.c.b16 %v3744, %v3740
      %v4925 = vpack.c.b16 %v3749, %v3745
      %v4926 = vpack.c.b16 %v3750, %v3746
      %v4927 = vpack.c.b16 %v3751, %v3747
      %v4928 = vpack.c.b16 %v3752, %v3748
      %v4929 = vpack.c.b16 %v3757, %v3753
      %v4930 = vpack.c.b16 %v3758, %v3754
      %v4931 = vpack.c.b16 %v3759, %v3755
      %v4932 = vpack.c.b16 %v3760, %v3756
      %v4933 = vpack.c.b16 %v3765, %v3761
      %v4934 = vpack.c.b16 %v3766, %v3762
      %v4935 = vpack.c.b16 %v3767, %v3763
      %v4936 = vpack.c.b16 %v3768, %v3764
      %v4937 = vpack.c.b16 %v3773, %v3769
      %v4938 = vpack.c.b16 %v3774, %v3770
      %v4939 = vpack.c.b16 %v3775, %v3771
      %v4940 = vpack.c.b16 %v3776, %v3772
      %v4941 = vpack.c.b16 %v3781, %v3777
      %v4942 = vpack.c.b16 %v3782, %v3778
      %v4943 = vpack.c.b16 %v3783, %v3779
      %v4944 = vpack.c.b16 %v3784, %v3780
      %v4945 = vpack.c.b16 %v3789, %v3785
      %v4946 = vpack.c.b16 %v3790, %v3786
      %v4947 = vpack.c.b16 %v3791, %v3787
      %v4948 = vpack.c.b16 %v3792, %v3788
      %v4949 = vpack.c.b16 %v3797, %v3793
      %v4950 = vpack.c.b16 %v3798, %v3794
      %v4951 = vpack.c.b16 %v3799, %v3795
      %v4952 = vpack.c.b16 %v3800, %v3796
      %v4953 = vpack.c.b16 %v3805, %v3801
      %v4954 = vpack.c.b16 %v3806, %v3802
      %v4955 = vpack.c.b16 %v3807, %v3803
      %v4956 = vpack.c.b16 %v3808, %v3804
      %v4957 = vpack.c.b16 %v3813, %v3809
      %v4958 = vpack.c.b16 %v3814, %v3810
      %v4959 = vpack.c.b16 %v3815, %v3811
      %v4960 = vpack.c.b16 %v3816, %v3812
      %v4961 = vpack.c.b16 %v3821, %v3817
      %v4962 = vpack.c.b16 %v3822, %v3818
      %v4963 = vpack.c.b16 %v3823, %v3819
      %v4964 = vpack.c.b16 %v3824, %v3820
      %v4965 = vpack.c.b16 %v3829, %v3825
      %v4966 = vpack.c.b16 %v3830, %v3826
      %v4967 = vpack.c.b16 %v3831, %v3827
      %v4968 = vpack.c.b16 %v3832, %v3828
      %v4969 = vpack.c.b16 %v3837, %v3833
      %v4970 = vpack.c.b16 %v3838, %v3834
      %v4971 = vpack.c.b16 %v3839, %v3835
      %v4972 = vpack.c.b16 %v3840, %v3836
      %v4973 = vpack.c.b16 %v3845, %v3841
      %v4974 = vpack.c.b16 %v3846, %v3842
      %v4975 = vpack.c.b16 %v3847, %v3843
      %v4976 = vpack.c.b16 %v3848, %v3844
      %v4977 = vpack.c.b16 %v3853, %v3849
      %v4978 = vpack.c.b16 %v3854, %v3850
      %v4979 = vpack.c.b16 %v3855, %v3851
      %v4980 = vpack.c.b16 %v3856, %v3852
      %v4981 = vpack.c.b16 %v3861, %v3857
      %v4982 = vpack.c.b16 %v3862, %v3858
      %v4983 = vpack.c.b16 %v3863, %v3859
      %v4984 = vpack.c.b16 %v3864, %v3860
      %v4985 = vpack.c.b16 %v3869, %v3865
      %v4986 = vpack.c.b16 %v3870, %v3866
      %v4987 = vpack.c.b16 %v3871, %v3867
      %v4988 = vpack.c.b16 %v3872, %v3868
      %v4989 = vpack.c.b16 %v3877, %v3873
      %v4990 = vpack.c.b16 %v3878, %v3874
      %v4991 = vpack.c.b16 %v3879, %v3875
      %v4992 = vpack.c.b16 %v3880, %v3876
      %v4993 = vpack.c.b16 %v3885, %v3881
      %v4994 = vpack.c.b16 %v3886, %v3882
      %v4995 = vpack.c.b16 %v3887, %v3883
      %v4996 = vpack.c.b16 %v3888, %v3884
      %v4997 = vpack.c.b16 %v3893, %v3889
      %v4998 = vpack.c.b16 %v3894, %v3890
      %v4999 = vpack.c.b16 %v3895, %v3891
      %v5000 = vpack.c.b16 %v3896, %v3892
      %v5001 = vpack.c.b16 %v3901, %v3897
      %v5002 = vpack.c.b16 %v3902, %v3898
      %v5003 = vpack.c.b16 %v3903, %v3899
      %v5004 = vpack.c.b16 %v3904, %v3900
      %v5005 = vpack.c.b16 %v3909, %v3905
      %v5006 = vpack.c.b16 %v3910, %v3906
      %v5007 = vpack.c.b16 %v3911, %v3907
      %v5008 = vpack.c.b16 %v3912, %v3908
      %v5009 = vpack.c.b16 %v3917, %v3913
      %v5010 = vpack.c.b16 %v3918, %v3914
      %v5011 = vpack.c.b16 %v3919, %v3915
      %v5012 = vpack.c.b16 %v3920, %v3916
      %v5013 = vpack.c.b16 %v3925, %v3921
      %v5014 = vpack.c.b16 %v3926, %v3922
      %v5015 = vpack.c.b16 %v3927, %v3923
      %v5016 = vpack.c.b16 %v3928, %v3924
      %v5017 = vpack.c.b16 %v3933, %v3929
      %v5018 = vpack.c.b16 %v3934, %v3930
      %v5019 = vpack.c.b16 %v3935, %v3931
      %v5020 = vpack.c.b16 %v3936, %v3932
      %v5021 = vpack.c.b16 %v3941, %v3937
      %v5022 = vpack.c.b16 %v3942, %v3938
      %v5023 = vpack.c.b16 %v3943, %v3939
      %v5024 = vpack.c.b16 %v3944, %v3940
      %v5025 = vpack.c.b16 %v3949, %v3945
      %v5026 = vpack.c.b16 %v3950, %v3946
      %v5027 = vpack.c.b16 %v3951, %v3947
      %v5028 = vpack.c.b16 %v3952, %v3948
      %v5029 = vpack.c.b16 %v3957, %v3953
      %v5030 = vpack.c.b16 %v3958, %v3954
      %v5031 = vpack.c.b16 %v3959, %v3955
      %v5032 = vpack.c.b16 %v3960, %v3956
      %v5033 = vpack.c.b16 %v3965, %v3961
      %v5034 = vpack.c.b16 %v3966, %v3962
      %v5035 = vpack.c.b16 %v3967, %v3963
      %v5036 = vpack.c.b16 %v3968, %v3964
      %v5037 = vpack.c.b16 %v3973, %v3969
      %v5038 = vpack.c.b16 %v3974, %v3970
      %v5039 = vpack.c.b16 %v3975, %v3971
      %v5040 = vpack.c.b16 %v3976, %v3972
      %v5041 = vpack.c.b16 %v3981, %v3977
      %v5042 = vpack.c.b16 %v3982, %v3978
      %v5043 = vpack.c.b16 %v3983, %v3979
      %v5044 = vpack.c.b16 %v3984, %v3980
      %v5045 = vpack.c.b16 %v3989, %v3985
      %v5046 = vpack.c.b16 %v3990, %v3986
      %v5047 = vpack.c.b16 %v3991, %v3987
      %v5048 = vpack.c.b16 %v3992, %v3988
      %v5049 = vpack.c.b16 %v3997, %v3993
      %v5050 = vpack.c.b16 %v3998, %v3994
      %v5051 = vpack.c.b16 %v3999, %v3995
      %v5052 = vpack.c.b16 %v4000, %v3996
      %v5053 = vpack.c.b16 %v4005, %v4001
      %v5054 = vpack.c.b16 %v4006, %v4002
      %v5055 = vpack.c.b16 %v4007, %v4003
      %v5056 = vpack.c.b16 %v4008, %v4004
      %v5057 = vpack.c.b16 %v4013, %v4009
      %v5058 = vpack.c.b16 %v4014, %v4010
      %v5059 = vpack.c.b16 %v4015, %v4011
      %v5060 = vpack.c.b16 %v4016, %v4012
      %v5061 = vpack.c.b16 %v4021, %v4017
      %v5062 = vpack.c.b16 %v4022, %v4018
      %v5063 = vpack.c.b16 %v4023, %v4019
      %v5064 = vpack.c.b16 %v4024, %v4020
      %v5065 = vpack.c.b16 %v4029, %v4025
      %v5066 = vpack.c.b16 %v4030, %v4026
      %v5067 = vpack.c.b16 %v4031, %v4027
      %v5068 = vpack.c.b16 %v4032, %v4028
      %v5069 = vpack.c.b16 %v4037, %v4033
      %v5070 = vpack.c.b16 %v4038, %v4034
      %v5071 = vpack.c.b16 %v4039, %v4035
      %v5072 = vpack.c.b16 %v4040, %v4036
      %v5073 = vpack.c.b16 %v4045, %v4041
      %v5074 = vpack.c.b16 %v4046, %v4042
      %v5075 = vpack.c.b16 %v4047, %v4043
      %v5076 = vpack.c.b16 %v4048, %v4044
      %v5077 = vpack.c.b16 %v4053, %v4049
      %v5078 = vpack.c.b16 %v4054, %v4050
      %v5079 = vpack.c.b16 %v4055, %v4051
      %v5080 = vpack.c.b16 %v4056, %v4052
      %v5081 = vpack.c.b16 %v4061, %v4057
      %v5082 = vpack.c.b16 %v4062, %v4058
      %v5083 = vpack.c.b16 %v4063, %v4059
      %v5084 = vpack.c.b16 %v4064, %v4060
      %v5085 = vpack.c.b16 %v4069, %v4065
      %v5086 = vpack.c.b16 %v4070, %v4066
      %v5087 = vpack.c.b16 %v4071, %v4067
      %v5088 = vpack.c.b16 %v4072, %v4068
      %v5089 = vpack.c.b16 %v4077, %v4073
      %v5090 = vpack.c.b16 %v4078, %v4074
      %v5091 = vpack.c.b16 %v4079, %v4075
      %v5092 = vpack.c.b16 %v4080, %v4076
      %v5093 = vpack.c.b16 %v4085, %v4081
      %v5094 = vpack.c.b16 %v4086, %v4082
      %v5095 = vpack.c.b16 %v4087, %v4083
      %v5096 = vpack.c.b16 %v4088, %v4084
      %v5097 = vpack.c.b16 %v4093, %v4089
      %v5098 = vpack.c.b16 %v4094, %v4090
      %v5099 = vpack.c.b16 %v4095, %v4091
      %v5100 = vpack.c.b16 %v4096, %v4092
      %v5101 = vpack.c.b16 %v4101, %v4097
      %v5102 = vpack.c.b16 %v4102, %v4098
      %v5103 = vpack.c.b16 %v4103, %v4099
      %v5104 = vpack.c.b16 %v4104, %v4100
      %v5105 = vpack.c.b16 %v4109, %v4105
      %v5106 = vpack.c.b16 %v4110, %v4106
      %v5107 = vpack.c.b16 %v4111, %v4107
      %v5108 = vpack.c.b16 %v4112, %v4108
      %v5109 = vpack.c.b16 %v4117, %v4113
      %v5110 = vpack.c.b16 %v4118, %v4114
      %v5111 = vpack.c.b16 %v4119, %v4115
      %v5112 = vpack.c.b16 %v4120, %v4116
      %v5113 = vpack.c.b16 %v4125, %v4121
      %v5114 = vpack.c.b16 %v4126, %v4122
      %v5115 = vpack.c.b16 %v4127, %v4123
      %v5116 = vpack.c.b16 %v4128, %v4124
      %v5117 = vpack.c.b16 %v4133, %v4129
      %v5118 = vpack.c.b16 %v4134, %v4130
      %v5119 = vpack.c.b16 %v4135, %v4131
      %v5120 = vpack.c.b16 %v4136, %v4132
      %v5121 = vpack.c.b16 %v4141, %v4137
      %v5122 = vpack.c.b16 %v4142, %v4138
      %v5123 = vpack.c.b16 %v4143, %v4139
      %v5124 = vpack.c.b16 %v4144, %v4140
      %v5125 = vpack.c.b16 %v4149, %v4145
      %v5126 = vpack.c.b16 %v4150, %v4146
      %v5127 = vpack.c.b16 %v4151, %v4147
      %v5128 = vpack.c.b16 %v4152, %v4148
      %v5129 = vpack.c.b16 %v4157, %v4153
      %v5130 = vpack.c.b16 %v4158, %v4154
      %v5131 = vpack.c.b16 %v4159, %v4155
      %v5132 = vpack.c.b16 %v4160, %v4156
      %v5133 = vpack.c.b16 %v4165, %v4161
      %v5134 = vpack.c.b16 %v4166, %v4162
      %v5135 = vpack.c.b16 %v4167, %v4163
      %v5136 = vpack.c.b16 %v4168, %v4164
      %v5137 = vpack.c.b16 %v4173, %v4169
      %v5138 = vpack.c.b16 %v4174, %v4170
      %v5139 = vpack.c.b16 %v4175, %v4171
      %v5140 = vpack.c.b16 %v4176, %v4172
      %v5141 = vpack.c.b16 %v4181, %v4177
      %v5142 = vpack.c.b16 %v4182, %v4178
      %v5143 = vpack.c.b16 %v4183, %v4179
      %v5144 = vpack.c.b16 %v4184, %v4180
      %v5145 = vpack.c.b16 %v4189, %v4185
      %v5146 = vpack.c.b16 %v4190, %v4186
      %v5147 = vpack.c.b16 %v4191, %v4187
      %v5148 = vpack.c.b16 %v4192, %v4188
      %v5149 = vpack.c.b16 %v4197, %v4193
      %v5150 = vpack.c.b16 %v4198, %v4194
      %v5151 = vpack.c.b16 %v4199, %v4195
      %v5152 = vpack.c.b16 %v4200, %v4196
      %v5153 = vpack.c.b16 %v4205, %v4201
      %v5154 = vpack.c.b16 %v4206, %v4202
      %v5155 = vpack.c.b16 %v4207, %v4203
      %v5156 = vpack.c.b16 %v4208, %v4204
      %v5157 = vpack.c.b16 %v4213, %v4209
      %v5158 = vpack.c.b16 %v4214, %v4210
      %v5159 = vpack.c.b16 %v4215, %v4211
      %v5160 = vpack.c.b16 %v4216, %v4212
      %v5161 = vpack.c.b16 %v4221, %v4217
      %v5162 = vpack.c.b16 %v4222, %v4218
      %v5163 = vpack.c.b16 %v4223, %v4219
      %v5164 = vpack.c.b16 %v4224, %v4220
      %v5165 = vpack.c.b16 %v4225, %v4225
      %v5166 = vpack.c.b16 %v4226, %v4226
      %v5167 = vpack.c.b16 %v4227, %v4227
      %v5168 = vpack.c.b16 %v4228, %v4228
      %vm6105 = vcmask 310272
      %v6107 = vsel %vm6105, %v1385, 0
      %vm6109 = vcmask 1042432
      %v6111 = vsel %vm6109, %v5165, 0
      %v6114 = vsel %vm6109, %v5166, 0
      %v6117 = vsel %vm6109, %v5167, 0
      %v6120 = vsel %vm6109, %v5168, 0
      %6122 = vmatprep.subr.bf16.mxu0 %v4230
      %6123 = vmatpush1.bf16.msra.mxu0 %v4229
      %6124 = vmatprep.subr.bf16.mxu0 %v4234
      %6125 = vmatpush1.bf16.msra.mxu0 %v4233
      %6126 = vmatprep.subr.bf16.mxu0 %v4238
      %6127 = vmatpush1.bf16.msra.mxu0 %v4237
      %6128 = vmatprep.subr.bf16.mxu0 %v4242
      %6129 = vmatpush1.bf16.msra.mxu0 %v4241
      %6130 = vmatprep.subr.bf16.mxu0 %v4246
      %6131 = vmatpush1.bf16.msra.mxu0 %v4245
      %6132 = vmatprep.subr.bf16.mxu0 %v4250
      %6133 = vmatpush1.bf16.msra.mxu0 %v4249
      %6134 = vmatprep.subr.bf16.mxu0 %v4254
      %6135 = vmatpush1.bf16.msra.mxu0 %v4253
      %6136 = vmatprep.subr.bf16.mxu0 %v4258
      %6137 = vmatpush1.bf16.msra.mxu0 %v4257
      %6138 = vmatprep.subr.bf16.mxu0 %v4262
      %6139 = vmatpush1.bf16.msra.mxu0 %v4261
      %6140 = vmatprep.subr.bf16.mxu0 %v4266
      %6141 = vmatpush1.bf16.msra.mxu0 %v4265
      %6142 = vmatprep.subr.bf16.mxu0 %v4270
      %6143 = vmatpush1.bf16.msra.mxu0 %v4269
      %6144 = vmatprep.subr.bf16.mxu0 %v4274
      %6145 = vmatpush1.bf16.msra.mxu0 %v4273
      %6146 = vmatprep.subr.bf16.mxu0 %v4278
      %6147 = vmatpush1.bf16.msra.mxu0 %v4277
      %6148 = vmatprep.subr.bf16.mxu0 %v4282
      %6149 = vmatpush1.bf16.msra.mxu0 %v4281
      %6150 = vmatprep.subr.bf16.mxu0 %v4286
      %6151 = vmatpush1.bf16.msra.mxu0 %v4285
      %6152 = vmatprep.subr.bf16.mxu0 %v4290
      %6153 = vmatpush1.bf16.msra.mxu0 %v4289
      %6154 = vmatprep.mubr.bf16.mxu0 %v1357
      %6155 = vmatmul.mubr.bf16.gmra.mrb[0].mxu0 %v1356
      %v6156 = vpop.f32.mrb[0].mxu0
      %v6157 = vadd.f32 0.0, %v6156
      %v6158 = vpop.f32.mrb[0].mxu0
      %v6159 = vadd.f32 0.0, %v6158
      %v6160 = vpop.f32.mrb[0].mxu0
      %v6161 = vpop.f32.mrb[0].mxu0
      %6162 = vdwg.mxu0
      %6163 = vmatprep.subr.bf16.mxu0 %v4294
      %6164 = vmatpush1.bf16.msra.mxu0 %v4293
      %6165 = vmatprep.subr.bf16.mxu0 %v4298
      %6166 = vmatpush1.bf16.msra.mxu0 %v4297
      %6167 = vmatprep.subr.bf16.mxu0 %v4302
      %6168 = vmatpush1.bf16.msra.mxu0 %v4301
      %6169 = vmatprep.subr.bf16.mxu0 %v4306
      %6170 = vmatpush1.bf16.msra.mxu0 %v4305
      %6171 = vmatprep.subr.bf16.mxu0 %v4310
      %6172 = vmatpush1.bf16.msra.mxu0 %v4309
      %6173 = vmatprep.subr.bf16.mxu0 %v4314
      %6174 = vmatpush1.bf16.msra.mxu0 %v4313
      %6175 = vmatprep.subr.bf16.mxu0 %v4318
      %6176 = vmatpush1.bf16.msra.mxu0 %v4317
      %6177 = vmatprep.subr.bf16.mxu0 %v4322
      %6178 = vmatpush1.bf16.msra.mxu0 %v4321
      %6179 = vmatprep.subr.bf16.mxu0 %v4326
      %6180 = vmatpush1.bf16.msra.mxu0 %v4325
      %6181 = vmatprep.subr.bf16.mxu0 %v4330
      %6182 = vmatpush1.bf16.msra.mxu0 %v4329
      %6183 = vmatprep.subr.bf16.mxu0 %v4334
      %6184 = vmatpush1.bf16.msra.mxu0 %v4333
      %6185 = vmatprep.subr.bf16.mxu0 %v4338
      %6186 = vmatpush1.bf16.msra.mxu0 %v4337
      %6187 = vmatprep.subr.bf16.mxu0 %v4342
      %6188 = vmatpush1.bf16.msra.mxu0 %v4341
      %6189 = vmatprep.subr.bf16.mxu0 %v4346
      %6190 = vmatpush1.bf16.msra.mxu0 %v4345
      %6191 = vmatprep.subr.bf16.mxu0 %v4350
      %6192 = vmatpush1.bf16.msra.mxu0 %v4349
      %6193 = vmatprep.subr.bf16.mxu0 %v4354
      %6194 = vmatpush1.bf16.msra.mxu0 %v4353
      %6195 = vmatprep.mubr.bf16.mxu0 %v1359
      %6196 = vmatmul.mubr.bf16.gmra.mrb[0].mxu0 %v1358
      %v6197 = vpop.f32.mrb[0].mxu0
      %v6198 = vadd.f32 %v6157, %v6197
      %v6199 = vpop.f32.mrb[0].mxu0
      %v6200 = vadd.f32 %v6159, %v6199
      %v6201 = vpop.f32.mrb[0].mxu0
      %v6202 = vpop.f32.mrb[0].mxu0
      %6203 = vdwg.mxu0
      %6204 = vmatprep.subr.bf16.mxu0 %v4358
      %6205 = vmatpush1.bf16.msra.mxu0 %v4357
      %6206 = vmatprep.subr.bf16.mxu0 %v4362
      %6207 = vmatpush1.bf16.msra.mxu0 %v4361
      %6208 = vmatprep.subr.bf16.mxu0 %v4366
      %6209 = vmatpush1.bf16.msra.mxu0 %v4365
      %6210 = vmatprep.subr.bf16.mxu0 %v4370
      %6211 = vmatpush1.bf16.msra.mxu0 %v4369
      %6212 = vmatprep.subr.bf16.mxu0 %v4374
      %6213 = vmatpush1.bf16.msra.mxu0 %v4373
      %6214 = vmatprep.subr.bf16.mxu0 %v4378
      %6215 = vmatpush1.bf16.msra.mxu0 %v4377
      %6216 = vmatprep.subr.bf16.mxu0 %v4382
      %6217 = vmatpush1.bf16.msra.mxu0 %v4381
      %6218 = vmatprep.subr.bf16.mxu0 %v4386
      %6219 = vmatpush1.bf16.msra.mxu0 %v4385
      %6220 = vmatprep.subr.bf16.mxu0 %v4390
      %6221 = vmatpush1.bf16.msra.mxu0 %v4389
      %6222 = vmatprep.subr.bf16.mxu0 %v4394
      %6223 = vmatpush1.bf16.msra.mxu0 %v4393
      %6224 = vmatprep.subr.bf16.mxu0 %v4398
      %6225 = vmatpush1.bf16.msra.mxu0 %v4397
      %6226 = vmatprep.subr.bf16.mxu0 %v4402
      %6227 = vmatpush1.bf16.msra.mxu0 %v4401
      %6228 = vmatprep.subr.bf16.mxu0 %v4406
      %6229 = vmatpush1.bf16.msra.mxu0 %v4405
      %6230 = vmatprep.subr.bf16.mxu0 %v4410
      %6231 = vmatpush1.bf16.msra.mxu0 %v4409
      %6232 = vmatprep.subr.bf16.mxu0 %v4414
      %6233 = vmatpush1.bf16.msra.mxu0 %v4413
      %6234 = vmatprep.subr.bf16.mxu0 %v4418
      %6235 = vmatpush1.bf16.msra.mxu0 %v4417
      %6236 = vmatprep.mubr.bf16.mxu0 %v1361
      %6237 = vmatmul.mubr.bf16.gmra.mrb[0].mxu0 %v1360
      %v6238 = vpop.f32.mrb[0].mxu0
      %v6239 = vadd.f32 %v6198, %v6238
      %v6240 = vpop.f32.mrb[0].mxu0
      %v6241 = vadd.f32 %v6200, %v6240
      %v6242 = vpop.f32.mrb[0].mxu0
      %v6243 = vpop.f32.mrb[0].mxu0
      %6244 = vdwg.mxu0
      %6245 = vmatprep.subr.bf16.mxu0 %v4422
      %6246 = vmatpush1.bf16.msra.mxu0 %v4421
      %6247 = vmatprep.subr.bf16.mxu0 %v4426
      %6248 = vmatpush1.bf16.msra.mxu0 %v4425
      %6249 = vmatprep.subr.bf16.mxu0 %v4430
      %6250 = vmatpush1.bf16.msra.mxu0 %v4429
      %6251 = vmatprep.subr.bf16.mxu0 %v4434
      %6252 = vmatpush1.bf16.msra.mxu0 %v4433
      %6253 = vmatprep.subr.bf16.mxu0 %v4438
      %6254 = vmatpush1.bf16.msra.mxu0 %v4437
      %6255 = vmatprep.subr.bf16.mxu0 %v4442
      %6256 = vmatpush1.bf16.msra.mxu0 %v4441
      %6257 = vmatprep.subr.bf16.mxu0 %v4446
      %6258 = vmatpush1.bf16.msra.mxu0 %v4445
      %6259 = vmatprep.subr.bf16.mxu0 %v4450
      %6260 = vmatpush1.bf16.msra.mxu0 %v4449
      %6261 = vmatprep.subr.bf16.mxu0 %v4454
      %6262 = vmatpush1.bf16.msra.mxu0 %v4453
      %6263 = vmatprep.subr.bf16.mxu0 %v4458
      %6264 = vmatpush1.bf16.msra.mxu0 %v4457
      %6265 = vmatprep.subr.bf16.mxu0 %v4462
      %6266 = vmatpush1.bf16.msra.mxu0 %v4461
      %6267 = vmatprep.subr.bf16.mxu0 %v4466
      %6268 = vmatpush1.bf16.msra.mxu0 %v4465
      %6269 = vmatprep.subr.bf16.mxu0 %v4470
      %6270 = vmatpush1.bf16.msra.mxu0 %v4469
      %6271 = vmatprep.subr.bf16.mxu0 %v4474
      %6272 = vmatpush1.bf16.msra.mxu0 %v4473
      %6273 = vmatprep.subr.bf16.mxu0 %v4478
      %6274 = vmatpush1.bf16.msra.mxu0 %v4477
      %6275 = vmatprep.subr.bf16.mxu0 %v4482
      %6276 = vmatpush1.bf16.msra.mxu0 %v4481
      %6277 = vmatprep.mubr.bf16.mxu0 %v1363
      %6278 = vmatmul.mubr.bf16.gmra.mrb[0].mxu0 %v1362
      %v6279 = vpop.f32.mrb[0].mxu0
      %v6280 = vadd.f32 %v6239, %v6279
      %v6281 = vpop.f32.mrb[0].mxu0
      %v6282 = vadd.f32 %v6241, %v6281
      %v6283 = vpop.f32.mrb[0].mxu0
      %v6284 = vpop.f32.mrb[0].mxu0
      %6285 = vdwg.mxu0
      %6286 = vmatprep.subr.bf16.mxu0 %v4486
      %6287 = vmatpush1.bf16.msra.mxu0 %v4485
      %6288 = vmatprep.subr.bf16.mxu0 %v4490
      %6289 = vmatpush1.bf16.msra.mxu0 %v4489
      %6290 = vmatprep.subr.bf16.mxu0 %v4494
      %6291 = vmatpush1.bf16.msra.mxu0 %v4493
      %6292 = vmatprep.subr.bf16.mxu0 %v4498
      %6293 = vmatpush1.bf16.msra.mxu0 %v4497
      %6294 = vmatprep.subr.bf16.mxu0 %v4502
      %6295 = vmatpush1.bf16.msra.mxu0 %v4501
      %6296 = vmatprep.subr.bf16.mxu0 %v4506
      %6297 = vmatpush1.bf16.msra.mxu0 %v4505
      %6298 = vmatprep.subr.bf16.mxu0 %v4510
      %6299 = vmatpush1.bf16.msra.mxu0 %v4509
      %6300 = vmatprep.subr.bf16.mxu0 %v4514
      %6301 = vmatpush1.bf16.msra.mxu0 %v4513
      %6302 = vmatprep.subr.bf16.mxu0 %v4518
      %6303 = vmatpush1.bf16.msra.mxu0 %v4517
      %6304 = vmatprep.subr.bf16.mxu0 %v4522
      %6305 = vmatpush1.bf16.msra.mxu0 %v4521
      %6306 = vmatprep.subr.bf16.mxu0 %v4526
      %6307 = vmatpush1.bf16.msra.mxu0 %v4525
      %6308 = vmatprep.subr.bf16.mxu0 %v4530
      %6309 = vmatpush1.bf16.msra.mxu0 %v4529
      %6310 = vmatprep.subr.bf16.mxu0 %v4534
      %6311 = vmatpush1.bf16.msra.mxu0 %v4533
      %6312 = vmatprep.subr.bf16.mxu0 %v4538
      %6313 = vmatpush1.bf16.msra.mxu0 %v4537
      %6314 = vmatprep.subr.bf16.mxu0 %v4542
      %6315 = vmatpush1.bf16.msra.mxu0 %v4541
      %6316 = vmatprep.subr.bf16.mxu0 %v4546
      %6317 = vmatpush1.bf16.msra.mxu0 %v4545
      %6318 = vmatprep.mubr.bf16.mxu0 %v1365
      %6319 = vmatmul.mubr.bf16.gmra.mrb[0].mxu0 %v1364
      %v6320 = vpop.f32.mrb[0].mxu0
      %v6321 = vadd.f32 %v6280, %v6320
      %v6322 = vpop.f32.mrb[0].mxu0
      %v6323 = vadd.f32 %v6282, %v6322
      %v6324 = vpop.f32.mrb[0].mxu0
      %v6325 = vpop.f32.mrb[0].mxu0
      %6326 = vdwg.mxu0
      %6327 = vmatprep.subr.bf16.mxu0 %v4550
      %6328 = vmatpush1.bf16.msra.mxu0 %v4549
      %6329 = vmatprep.subr.bf16.mxu0 %v4554
      %6330 = vmatpush1.bf16.msra.mxu0 %v4553
      %6331 = vmatprep.subr.bf16.mxu0 %v4558
      %6332 = vmatpush1.bf16.msra.mxu0 %v4557
      %6333 = vmatprep.subr.bf16.mxu0 %v4562
      %6334 = vmatpush1.bf16.msra.mxu0 %v4561
      %6335 = vmatprep.subr.bf16.mxu0 %v4566
      %6336 = vmatpush1.bf16.msra.mxu0 %v4565
      %6337 = vmatprep.subr.bf16.mxu0 %v4570
      %6338 = vmatpush1.bf16.msra.mxu0 %v4569
      %6339 = vmatprep.subr.bf16.mxu0 %v4574
      %6340 = vmatpush1.bf16.msra.mxu0 %v4573
      %6341 = vmatprep.subr.bf16.mxu0 %v4578
      %6342 = vmatpush1.bf16.msra.mxu0 %v4577
      %6343 = vmatprep.subr.bf16.mxu0 %v4582
      %6344 = vmatpush1.bf16.msra.mxu0 %v4581
      %6345 = vmatprep.subr.bf16.mxu0 %v4586
      %6346 = vmatpush1.bf16.msra.mxu0 %v4585
      %6347 = vmatprep.subr.bf16.mxu0 %v4590
      %6348 = vmatpush1.bf16.msra.mxu0 %v4589
      %6349 = vmatprep.subr.bf16.mxu0 %v4594
      %6350 = vmatpush1.bf16.msra.mxu0 %v4593
      %6351 = vmatprep.subr.bf16.mxu0 %v4598
      %6352 = vmatpush1.bf16.msra.mxu0 %v4597
      %6353 = vmatprep.subr.bf16.mxu0 %v4602
      %6354 = vmatpush1.bf16.msra.mxu0 %v4601
      %6355 = vmatprep.subr.bf16.mxu0 %v4606
      %6356 = vmatpush1.bf16.msra.mxu0 %v4605
      %6357 = vmatprep.subr.bf16.mxu0 %v4610
      %6358 = vmatpush1.bf16.msra.mxu0 %v4609
      %6359 = vmatprep.mubr.bf16.mxu0 %v1367
      %6360 = vmatmul.mubr.bf16.gmra.mrb[0].mxu0 %v1366
      %v6361 = vpop.f32.mrb[0].mxu0
      %v6362 = vadd.f32 %v6321, %v6361
      %v6363 = vpop.f32.mrb[0].mxu0
      %v6364 = vadd.f32 %v6323, %v6363
      %v6365 = vpop.f32.mrb[0].mxu0
      %v6366 = vpop.f32.mrb[0].mxu0
      %6367 = vdwg.mxu0
      %6368 = vmatprep.subr.bf16.mxu0 %v4614
      %6369 = vmatpush1.bf16.msra.mxu0 %v4613
      %6370 = vmatprep.subr.bf16.mxu0 %v4618
      %6371 = vmatpush1.bf16.msra.mxu0 %v4617
      %6372 = vmatprep.subr.bf16.mxu0 %v4622
      %6373 = vmatpush1.bf16.msra.mxu0 %v4621
      %6374 = vmatprep.subr.bf16.mxu0 %v4626
      %6375 = vmatpush1.bf16.msra.mxu0 %v4625
      %6376 = vmatprep.subr.bf16.mxu0 %v4630
      %6377 = vmatpush1.bf16.msra.mxu0 %v4629
      %6378 = vmatprep.subr.bf16.mxu0 %v4634
      %6379 = vmatpush1.bf16.msra.mxu0 %v4633
      %6380 = vmatprep.subr.bf16.mxu0 %v4638
      %6381 = vmatpush1.bf16.msra.mxu0 %v4637
      %6382 = vmatprep.subr.bf16.mxu0 %v4642
      %6383 = vmatpush1.bf16.msra.mxu0 %v4641
      %6384 = vmatprep.subr.bf16.mxu0 %v4646
      %6385 = vmatpush1.bf16.msra.mxu0 %v4645
      %6386 = vmatprep.subr.bf16.mxu0 %v4650
      %6387 = vmatpush1.bf16.msra.mxu0 %v4649
      %6388 = vmatprep.subr.bf16.mxu0 %v4654
      %6389 = vmatpush1.bf16.msra.mxu0 %v4653
      %6390 = vmatprep.subr.bf16.mxu0 %v4658
      %6391 = vmatpush1.bf16.msra.mxu0 %v4657
      %6392 = vmatprep.subr.bf16.mxu0 %v4662
      %6393 = vmatpush1.bf16.msra.mxu0 %v4661
      %6394 = vmatprep.subr.bf16.mxu0 %v4666
      %6395 = vmatpush1.bf16.msra.mxu0 %v4665
      %6396 = vmatprep.subr.bf16.mxu0 %v4670
      %6397 = vmatpush1.bf16.msra.mxu0 %v4669
      %6398 = vmatprep.subr.bf16.mxu0 %v4674
      %6399 = vmatpush1.bf16.msra.mxu0 %v4673
      %6400 = vmatprep.mubr.bf16.mxu0 %v1369
      %6401 = vmatmul.mubr.bf16.gmra.mrb[0].mxu0 %v1368
      %v6402 = vpop.f32.mrb[0].mxu0
      %v6403 = vadd.f32 %v6362, %v6402
      %v6404 = vpop.f32.mrb[0].mxu0
      %v6405 = vadd.f32 %v6364, %v6404
      %v6406 = vpop.f32.mrb[0].mxu0
      %v6407 = vpop.f32.mrb[0].mxu0
      %6408 = vdwg.mxu0
      %6409 = vmatprep.subr.bf16.mxu0 %v4678
      %6410 = vmatpush1.bf16.msra.mxu0 %v4677
      %6411 = vmatprep.subr.bf16.mxu0 %v4682
      %6412 = vmatpush1.bf16.msra.mxu0 %v4681
      %6413 = vmatprep.subr.bf16.mxu0 %v4686
      %6414 = vmatpush1.bf16.msra.mxu0 %v4685
      %6415 = vmatprep.subr.bf16.mxu0 %v4690
      %6416 = vmatpush1.bf16.msra.mxu0 %v4689
      %6417 = vmatprep.subr.bf16.mxu0 %v4694
      %6418 = vmatpush1.bf16.msra.mxu0 %v4693
      %6419 = vmatprep.subr.bf16.mxu0 %v4698
      %6420 = vmatpush1.bf16.msra.mxu0 %v4697
      %6421 = vmatprep.subr.bf16.mxu0 %v4702
      %6422 = vmatpush1.bf16.msra.mxu0 %v4701
      %6423 = vmatprep.subr.bf16.mxu0 %v4706
      %6424 = vmatpush1.bf16.msra.mxu0 %v4705
      %6425 = vmatprep.subr.bf16.mxu0 %v4710
      %6426 = vmatpush1.bf16.msra.mxu0 %v4709
      %6427 = vmatprep.subr.bf16.mxu0 %v4714
      %6428 = vmatpush1.bf16.msra.mxu0 %v4713
      %6429 = vmatprep.subr.bf16.mxu0 %v4718
      %6430 = vmatpush1.bf16.msra.mxu0 %v4717
      %6431 = vmatprep.subr.bf16.mxu0 %v4722
      %6432 = vmatpush1.bf16.msra.mxu0 %v4721
      %6433 = vmatprep.subr.bf16.mxu0 %v4726
      %6434 = vmatpush1.bf16.msra.mxu0 %v4725
      %6435 = vmatprep.subr.bf16.mxu0 %v4730
      %6436 = vmatpush1.bf16.msra.mxu0 %v4729
      %6437 = vmatprep.subr.bf16.mxu0 %v4734
      %6438 = vmatpush1.bf16.msra.mxu0 %v4733
      %6439 = vmatprep.subr.bf16.mxu0 %v4738
      %6440 = vmatpush1.bf16.msra.mxu0 %v4737
      %6441 = vmatprep.mubr.bf16.mxu0 %v1371
      %6442 = vmatmul.mubr.bf16.gmra.mrb[0].mxu0 %v1370
      %v6443 = vpop.f32.mrb[0].mxu0
      %v6444 = vadd.f32 %v6403, %v6443
      %v6445 = vpop.f32.mrb[0].mxu0
      %v6446 = vadd.f32 %v6405, %v6445
      %v6447 = vpop.f32.mrb[0].mxu0
      %v6448 = vpop.f32.mrb[0].mxu0
      %6449 = vdwg.mxu0
      %6450 = vmatprep.subr.bf16.mxu0 %v4742
      %6451 = vmatpush1.bf16.msra.mxu0 %v4741
      %6452 = vmatprep.subr.bf16.mxu0 %v4746
      %6453 = vmatpush1.bf16.msra.mxu0 %v4745
      %6454 = vmatprep.subr.bf16.mxu0 %v4750
      %6455 = vmatpush1.bf16.msra.mxu0 %v4749
      %6456 = vmatprep.subr.bf16.mxu0 %v4754
      %6457 = vmatpush1.bf16.msra.mxu0 %v4753
      %6458 = vmatprep.subr.bf16.mxu0 %v4758
      %6459 = vmatpush1.bf16.msra.mxu0 %v4757
      %6460 = vmatprep.subr.bf16.mxu0 %v4762
      %6461 = vmatpush1.bf16.msra.mxu0 %v4761
      %6462 = vmatprep.subr.bf16.mxu0 %v4766
      %6463 = vmatpush1.bf16.msra.mxu0 %v4765
      %6464 = vmatprep.subr.bf16.mxu0 %v4770
      %6465 = vmatpush1.bf16.msra.mxu0 %v4769
      %6466 = vmatprep.subr.bf16.mxu0 %v4774
      %6467 = vmatpush1.bf16.msra.mxu0 %v4773
      %6468 = vmatprep.subr.bf16.mxu0 %v4778
      %6469 = vmatpush1.bf16.msra.mxu0 %v4777
      %6470 = vmatprep.subr.bf16.mxu0 %v4782
      %6471 = vmatpush1.bf16.msra.mxu0 %v4781
      %6472 = vmatprep.subr.bf16.mxu0 %v4786
      %6473 = vmatpush1.bf16.msra.mxu0 %v4785
      %6474 = vmatprep.subr.bf16.mxu0 %v4790
      %6475 = vmatpush1.bf16.msra.mxu0 %v4789
      %6476 = vmatprep.subr.bf16.mxu0 %v4794
      %6477 = vmatpush1.bf16.msra.mxu0 %v4793
      %6478 = vmatprep.subr.bf16.mxu0 %v4798
      %6479 = vmatpush1.bf16.msra.mxu0 %v4797
      %6480 = vmatprep.subr.bf16.mxu0 %v4802
      %6481 = vmatpush1.bf16.msra.mxu0 %v4801
      %6482 = vmatprep.mubr.bf16.mxu0 %v1373
      %6483 = vmatmul.mubr.bf16.gmra.mrb[0].mxu0 %v1372
      %v6484 = vpop.f32.mrb[0].mxu0
      %v6485 = vadd.f32 %v6444, %v6484
      %v6486 = vpop.f32.mrb[0].mxu0
      %v6487 = vadd.f32 %v6446, %v6486
      %v6488 = vpop.f32.mrb[0].mxu0
      %v6489 = vpop.f32.mrb[0].mxu0
      %6490 = vdwg.mxu0
      %6491 = vmatprep.subr.bf16.mxu0 %v4806
      %6492 = vmatpush1.bf16.msra.mxu0 %v4805
      %6493 = vmatprep.subr.bf16.mxu0 %v4810
      %6494 = vmatpush1.bf16.msra.mxu0 %v4809
      %6495 = vmatprep.subr.bf16.mxu0 %v4814
      %6496 = vmatpush1.bf16.msra.mxu0 %v4813
      %6497 = vmatprep.subr.bf16.mxu0 %v4818
      %6498 = vmatpush1.bf16.msra.mxu0 %v4817
      %6499 = vmatprep.subr.bf16.mxu0 %v4822
      %6500 = vmatpush1.bf16.msra.mxu0 %v4821
      %6501 = vmatprep.subr.bf16.mxu0 %v4826
      %6502 = vmatpush1.bf16.msra.mxu0 %v4825
      %6503 = vmatprep.subr.bf16.mxu0 %v4830
      %6504 = vmatpush1.bf16.msra.mxu0 %v4829
      %6505 = vmatprep.subr.bf16.mxu0 %v4834
      %6506 = vmatpush1.bf16.msra.mxu0 %v4833
      %6507 = vmatprep.subr.bf16.mxu0 %v4838
      %6508 = vmatpush1.bf16.msra.mxu0 %v4837
      %6509 = vmatprep.subr.bf16.mxu0 %v4842
      %6510 = vmatpush1.bf16.msra.mxu0 %v4841
      %6511 = vmatprep.subr.bf16.mxu0 %v4846
      %6512 = vmatpush1.bf16.msra.mxu0 %v4845
      %6513 = vmatprep.subr.bf16.mxu0 %v4850
      %6514 = vmatpush1.bf16.msra.mxu0 %v4849
      %6515 = vmatprep.subr.bf16.mxu0 %v4854
      %6516 = vmatpush1.bf16.msra.mxu0 %v4853
      %6517 = vmatprep.subr.bf16.mxu0 %v4858
      %6518 = vmatpush1.bf16.msra.mxu0 %v4857
      %6519 = vmatprep.subr.bf16.mxu0 %v4862
      %6520 = vmatpush1.bf16.msra.mxu0 %v4861
      %6521 = vmatprep.subr.bf16.mxu0 %v4866
      %6522 = vmatpush1.bf16.msra.mxu0 %v4865
      %6523 = vmatprep.mubr.bf16.mxu0 %v1375
      %6524 = vmatmul.mubr.bf16.gmra.mrb[0].mxu0 %v1374
      %v6525 = vpop.f32.mrb[0].mxu0
      %v6526 = vadd.f32 %v6485, %v6525
      %v6527 = vpop.f32.mrb[0].mxu0
      %v6528 = vadd.f32 %v6487, %v6527
      %v6529 = vpop.f32.mrb[0].mxu0
      %v6530 = vpop.f32.mrb[0].mxu0
      %6531 = vdwg.mxu0
      %6532 = vmatprep.subr.bf16.mxu0 %v4870
      %6533 = vmatpush1.bf16.msra.mxu0 %v4869
      %6534 = vmatprep.subr.bf16.mxu0 %v4874
      %6535 = vmatpush1.bf16.msra.mxu0 %v4873
      %6536 = vmatprep.subr.bf16.mxu0 %v4878
      %6537 = vmatpush1.bf16.msra.mxu0 %v4877
      %6538 = vmatprep.subr.bf16.mxu0 %v4882
      %6539 = vmatpush1.bf16.msra.mxu0 %v4881
      %6540 = vmatprep.subr.bf16.mxu0 %v4886
      %6541 = vmatpush1.bf16.msra.mxu0 %v4885
      %6542 = vmatprep.subr.bf16.mxu0 %v4890
      %6543 = vmatpush1.bf16.msra.mxu0 %v4889
      %6544 = vmatprep.subr.bf16.mxu0 %v4894
      %6545 = vmatpush1.bf16.msra.mxu0 %v4893
      %6546 = vmatprep.subr.bf16.mxu0 %v4898
      %6547 = vmatpush1.bf16.msra.mxu0 %v4897
      %6548 = vmatprep.subr.bf16.mxu0 %v4902
      %6549 = vmatpush1.bf16.msra.mxu0 %v4901
      %6550 = vmatprep.subr.bf16.mxu0 %v4906
      %6551 = vmatpush1.bf16.msra.mxu0 %v4905
      %6552 = vmatprep.subr.bf16.mxu0 %v4910
      %6553 = vmatpush1.bf16.msra.mxu0 %v4909
      %6554 = vmatprep.subr.bf16.mxu0 %v4914
      %6555 = vmatpush1.bf16.msra.mxu0 %v4913
      %6556 = vmatprep.subr.bf16.mxu0 %v4918
      %6557 = vmatpush1.bf16.msra.mxu0 %v4917
      %6558 = vmatprep.subr.bf16.mxu0 %v4922
      %6559 = vmatpush1.bf16.msra.mxu0 %v4921
      %6560 = vmatprep.subr.bf16.mxu0 %v4926
      %6561 = vmatpush1.bf16.msra.mxu0 %v4925
      %6562 = vmatprep.subr.bf16.mxu0 %v4930
      %6563 = vmatpush1.bf16.msra.mxu0 %v4929
      %6564 = vmatprep.mubr.bf16.mxu0 %v1377
      %6565 = vmatmul.mubr.bf16.gmra.mrb[0].mxu0 %v1376
      %v6566 = vpop.f32.mrb[0].mxu0
      %v6567 = vadd.f32 %v6526, %v6566
      %v6568 = vpop.f32.mrb[0].mxu0
      %v6569 = vadd.f32 %v6528, %v6568
      %v6570 = vpop.f32.mrb[0].mxu0
      %v6571 = vpop.f32.mrb[0].mxu0
      %6572 = vdwg.mxu0
      %6573 = vmatprep.subr.bf16.mxu0 %v4934
      %6574 = vmatpush1.bf16.msra.mxu0 %v4933
      %6575 = vmatprep.subr.bf16.mxu0 %v4938
      %6576 = vmatpush1.bf16.msra.mxu0 %v4937
      %6577 = vmatprep.subr.bf16.mxu0 %v4942
      %6578 = vmatpush1.bf16.msra.mxu0 %v4941
      %6579 = vmatprep.subr.bf16.mxu0 %v4946
      %6580 = vmatpush1.bf16.msra.mxu0 %v4945
      %6581 = vmatprep.subr.bf16.mxu0 %v4950
      %6582 = vmatpush1.bf16.msra.mxu0 %v4949
      %6583 = vmatprep.subr.bf16.mxu0 %v4954
      %6584 = vmatpush1.bf16.msra.mxu0 %v4953
      %6585 = vmatprep.subr.bf16.mxu0 %v4958
      %6586 = vmatpush1.bf16.msra.mxu0 %v4957
      %6587 = vmatprep.subr.bf16.mxu0 %v4962
      %6588 = vmatpush1.bf16.msra.mxu0 %v4961
      %6589 = vmatprep.subr.bf16.mxu0 %v4966
      %6590 = vmatpush1.bf16.msra.mxu0 %v4965
      %6591 = vmatprep.subr.bf16.mxu0 %v4970
      %6592 = vmatpush1.bf16.msra.mxu0 %v4969
      %6593 = vmatprep.subr.bf16.mxu0 %v4974
      %6594 = vmatpush1.bf16.msra.mxu0 %v4973
      %6595 = vmatprep.subr.bf16.mxu0 %v4978
      %6596 = vmatpush1.bf16.msra.mxu0 %v4977
      %6597 = vmatprep.subr.bf16.mxu0 %v4982
      %6598 = vmatpush1.bf16.msra.mxu0 %v4981
      %6599 = vmatprep.subr.bf16.mxu0 %v4986
      %6600 = vmatpush1.bf16.msra.mxu0 %v4985
      %6601 = vmatprep.subr.bf16.mxu0 %v4990
      %6602 = vmatpush1.bf16.msra.mxu0 %v4989
      %6603 = vmatprep.subr.bf16.mxu0 %v4994
      %6604 = vmatpush1.bf16.msra.mxu0 %v4993
      %6605 = vmatprep.mubr.bf16.mxu0 %v1379
      %6606 = vmatmul.mubr.bf16.gmra.mrb[0].mxu0 %v1378
      %v6607 = vpop.f32.mrb[0].mxu0
      %v6608 = vadd.f32 %v6567, %v6607
      %v6609 = vpop.f32.mrb[0].mxu0
      %v6610 = vadd.f32 %v6569, %v6609
      %v6611 = vpop.f32.mrb[0].mxu0
      %v6612 = vpop.f32.mrb[0].mxu0
      %6613 = vdwg.mxu0
      %6614 = vmatprep.subr.bf16.mxu0 %v4998
      %6615 = vmatpush1.bf16.msra.mxu0 %v4997
      %6616 = vmatprep.subr.bf16.mxu0 %v5002
      %6617 = vmatpush1.bf16.msra.mxu0 %v5001
      %6618 = vmatprep.subr.bf16.mxu0 %v5006
      %6619 = vmatpush1.bf16.msra.mxu0 %v5005
      %6620 = vmatprep.subr.bf16.mxu0 %v5010
      %6621 = vmatpush1.bf16.msra.mxu0 %v5009
      %6622 = vmatprep.subr.bf16.mxu0 %v5014
      %6623 = vmatpush1.bf16.msra.mxu0 %v5013
      %6624 = vmatprep.subr.bf16.mxu0 %v5018
      %6625 = vmatpush1.bf16.msra.mxu0 %v5017
      %6626 = vmatprep.subr.bf16.mxu0 %v5022
      %6627 = vmatpush1.bf16.msra.mxu0 %v5021
      %6628 = vmatprep.subr.bf16.mxu0 %v5026
      %6629 = vmatpush1.bf16.msra.mxu0 %v5025
      %6630 = vmatprep.subr.bf16.mxu0 %v5030
      %6631 = vmatpush1.bf16.msra.mxu0 %v5029
      %6632 = vmatprep.subr.bf16.mxu0 %v5034
      %6633 = vmatpush1.bf16.msra.mxu0 %v5033
      %6634 = vmatprep.subr.bf16.mxu0 %v5038
      %6635 = vmatpush1.bf16.msra.mxu0 %v5037
      %6636 = vmatprep.subr.bf16.mxu0 %v5042
      %6637 = vmatpush1.bf16.msra.mxu0 %v5041
      %6638 = vmatprep.subr.bf16.mxu0 %v5046
      %6639 = vmatpush1.bf16.msra.mxu0 %v5045
      %6640 = vmatprep.subr.bf16.mxu0 %v5050
      %6641 = vmatpush1.bf16.msra.mxu0 %v5049
      %6642 = vmatprep.subr.bf16.mxu0 %v5054
      %6643 = vmatpush1.bf16.msra.mxu0 %v5053
      %6644 = vmatprep.subr.bf16.mxu0 %v5058
      %6645 = vmatpush1.bf16.msra.mxu0 %v5057
      %6646 = vmatprep.mubr.bf16.mxu0 %v1381
      %6647 = vmatmul.mubr.bf16.gmra.mrb[0].mxu0 %v1380
      %v6648 = vpop.f32.mrb[0].mxu0
      %v6649 = vadd.f32 %v6608, %v6648
      %v6650 = vpop.f32.mrb[0].mxu0
      %v6651 = vadd.f32 %v6610, %v6650
      %v6652 = vpop.f32.mrb[0].mxu0
      %v6653 = vpop.f32.mrb[0].mxu0
      %6654 = vdwg.mxu0
      %6655 = vmatprep.subr.bf16.mxu0 %v5062
      %6656 = vmatpush1.bf16.msra.mxu0 %v5061
      %6657 = vmatprep.subr.bf16.mxu0 %v5066
      %6658 = vmatpush1.bf16.msra.mxu0 %v5065
      %6659 = vmatprep.subr.bf16.mxu0 %v5070
      %6660 = vmatpush1.bf16.msra.mxu0 %v5069
      %6661 = vmatprep.subr.bf16.mxu0 %v5074
      %6662 = vmatpush1.bf16.msra.mxu0 %v5073
      %6663 = vmatprep.subr.bf16.mxu0 %v5078
      %6664 = vmatpush1.bf16.msra.mxu0 %v5077
      %6665 = vmatprep.subr.bf16.mxu0 %v5082
      %6666 = vmatpush1.bf16.msra.mxu0 %v5081
      %6667 = vmatprep.subr.bf16.mxu0 %v5086
      %6668 = vmatpush1.bf16.msra.mxu0 %v5085
      %6669 = vmatprep.subr.bf16.mxu0 %v5090
      %6670 = vmatpush1.bf16.msra.mxu0 %v5089
      %6671 = vmatprep.subr.bf16.mxu0 %v5094
      %6672 = vmatpush1.bf16.msra.mxu0 %v5093
      %6673 = vmatprep.subr.bf16.mxu0 %v5098
      %6674 = vmatpush1.bf16.msra.mxu0 %v5097
      %6675 = vmatprep.subr.bf16.mxu0 %v5102
      %6676 = vmatpush1.bf16.msra.mxu0 %v5101
      %6677 = vmatprep.subr.bf16.mxu0 %v5106
      %6678 = vmatpush1.bf16.msra.mxu0 %v5105
      %6679 = vmatprep.subr.bf16.mxu0 %v5110
      %6680 = vmatpush1.bf16.msra.mxu0 %v5109
      %6681 = vmatprep.subr.bf16.mxu0 %v5114
      %6682 = vmatpush1.bf16.msra.mxu0 %v5113
      %6683 = vmatprep.subr.bf16.mxu0 %v5118
      %6684 = vmatpush1.bf16.msra.mxu0 %v5117
      %6685 = vmatprep.subr.bf16.mxu0 %v5122
      %6686 = vmatpush1.bf16.msra.mxu0 %v5121
      %6687 = vmatprep.mubr.bf16.mxu0 %v1383
      %6688 = vmatmul.mubr.bf16.gmra.mrb[0].mxu0 %v1382
      %v6689 = vpop.f32.mrb[0].mxu0
      %v6690 = vadd.f32 %v6649, %v6689
      %v6691 = vpop.f32.mrb[0].mxu0
      %v6692 = vadd.f32 %v6651, %v6691
      %v6693 = vpop.f32.mrb[0].mxu0
      %v6694 = vpop.f32.mrb[0].mxu0
      %6695 = vdwg.mxu0
      %6696 = vmatprep.subr.bf16.mxu0 %v5126
      %6697 = vmatpush1.bf16.msra.mxu0 %v5125
      %6698 = vmatprep.subr.bf16.mxu0 %v5130
      %6699 = vmatpush1.bf16.msra.mxu0 %v5129
      %6700 = vmatprep.subr.bf16.mxu0 %v5134
      %6701 = vmatpush1.bf16.msra.mxu0 %v5133
      %6702 = vmatprep.subr.bf16.mxu0 %v5138
      %6703 = vmatpush1.bf16.msra.mxu0 %v5137
      %6704 = vmatprep.subr.bf16.mxu0 %v5142
      %6705 = vmatpush1.bf16.msra.mxu0 %v5141
      %6706 = vmatprep.subr.bf16.mxu0 %v5146
      %6707 = vmatpush1.bf16.msra.mxu0 %v5145
      %6708 = vmatprep.subr.bf16.mxu0 %v5150
      %6709 = vmatpush1.bf16.msra.mxu0 %v5149
      %6710 = vmatprep.subr.bf16.mxu0 %v5154
      %6711 = vmatpush1.bf16.msra.mxu0 %v5153
      %6712 = vmatprep.subr.bf16.mxu0 %v5158
      %6713 = vmatpush1.bf16.msra.mxu0 %v5157
      %6714 = vmatprep.subr.bf16.mxu0 %v5162
      %6715 = vmatpush1.bf16.msra.mxu0 %v5161
      %6716 = vmatprep.subr.bf16.mxu0 %v6114
      %6717 = vmatpush1.bf16.msra.mxu0 %v6111
      %6718 = vmatprep.subr.bf16.mxu0 0
      %6719 = vmatpush1.bf16.msra.mxu0 0
      %6720 = vmatprep.subr.bf16.mxu0 0
      %6721 = vmatpush1.bf16.msra.mxu0 0
      %6722 = vmatprep.subr.bf16.mxu0 0
      %6723 = vmatpush1.bf16.msra.mxu0 0
      %6724 = vmatprep.subr.bf16.mxu0 0
      %6725 = vmatpush1.bf16.msra.mxu0 0
      %6726 = vmatprep.subr.bf16.mxu0 0
      %6727 = vmatpush1.bf16.msra.mxu0 0
      %6728 = vmatprep.mubr.bf16.mxu0 %v6107
      %6729 = vmatmul.mubr.bf16.gmra.mrb[0].mxu0 %v1384
      %v6730 = vpop.f32.mrb[0].mxu0
      %v6731 = vadd.f32 %v6690, %v6730
      %v6732 = vpop.f32.mrb[0].mxu0
      %v6733 = vadd.f32 %v6692, %v6732
      %v6734 = vpop.f32.mrb[0].mxu0
      %v6735 = vpop.f32.mrb[0].mxu0
      %6736 = vdwg.mxu0
      %6737 = vmatprep.subr.bf16.mxu0 %v4232
      %6738 = vmatpush1.bf16.msra.mxu0 %v4231
      %6739 = vmatprep.subr.bf16.mxu0 %v4236
      %6740 = vmatpush1.bf16.msra.mxu0 %v4235
      %6741 = vmatprep.subr.bf16.mxu0 %v4240
      %6742 = vmatpush1.bf16.msra.mxu0 %v4239
      %6743 = vmatprep.subr.bf16.mxu0 %v4244
      %6744 = vmatpush1.bf16.msra.mxu0 %v4243
      %6745 = vmatprep.subr.bf16.mxu0 %v4248
      %6746 = vmatpush1.bf16.msra.mxu0 %v4247
      %6747 = vmatprep.subr.bf16.mxu0 %v4252
      %6748 = vmatpush1.bf16.msra.mxu0 %v4251
      %6749 = vmatprep.subr.bf16.mxu0 %v4256
      %6750 = vmatpush1.bf16.msra.mxu0 %v4255
      %6751 = vmatprep.subr.bf16.mxu0 %v4260
      %6752 = vmatpush1.bf16.msra.mxu0 %v4259
      %6753 = vmatprep.subr.bf16.mxu0 %v4264
      %6754 = vmatpush1.bf16.msra.mxu0 %v4263
      %6755 = vmatprep.subr.bf16.mxu0 %v4268
      %6756 = vmatpush1.bf16.msra.mxu0 %v4267
      %6757 = vmatprep.subr.bf16.mxu0 %v4272
      %6758 = vmatpush1.bf16.msra.mxu0 %v4271
      %6759 = vmatprep.subr.bf16.mxu0 %v4276
      %6760 = vmatpush1.bf16.msra.mxu0 %v4275
      %6761 = vmatprep.subr.bf16.mxu0 %v4280
      %6762 = vmatpush1.bf16.msra.mxu0 %v4279
      %6763 = vmatprep.subr.bf16.mxu0 %v4284
      %6764 = vmatpush1.bf16.msra.mxu0 %v4283
      %6765 = vmatprep.subr.bf16.mxu0 %v4288
      %6766 = vmatpush1.bf16.msra.mxu0 %v4287
      %6767 = vmatprep.subr.bf16.mxu0 %v4292
      %6768 = vmatpush1.bf16.msra.mxu0 %v4291
      %6769 = vmatprep.mubr.bf16.mxu0 %v1357
      %6770 = vmatmul.mubr.bf16.gmra.mrb[0].mxu0 %v1356
      %v6771 = vpop.f32.mrb[0].mxu0
      %v6772 = vadd.f32 0.0, %v6771
      %v6773 = vpop.f32.mrb[0].mxu0
      %v6774 = vadd.f32 0.0, %v6773
      %v6775 = vpop.f32.mrb[0].mxu0
      %v6776 = vpop.f32.mrb[0].mxu0
      %6777 = vdwg.mxu0
      %6778 = vmatprep.subr.bf16.mxu0 %v4296
      %6779 = vmatpush1.bf16.msra.mxu0 %v4295
      %6780 = vmatprep.subr.bf16.mxu0 %v4300
      %6781 = vmatpush1.bf16.msra.mxu0 %v4299
      %6782 = vmatprep.subr.bf16.mxu0 %v4304
      %6783 = vmatpush1.bf16.msra.mxu0 %v4303
      %6784 = vmatprep.subr.bf16.mxu0 %v4308
      %6785 = vmatpush1.bf16.msra.mxu0 %v4307
      %6786 = vmatprep.subr.bf16.mxu0 %v4312
      %6787 = vmatpush1.bf16.msra.mxu0 %v4311
      %6788 = vmatprep.subr.bf16.mxu0 %v4316
      %6789 = vmatpush1.bf16.msra.mxu0 %v4315
      %6790 = vmatprep.subr.bf16.mxu0 %v4320
      %6791 = vmatpush1.bf16.msra.mxu0 %v4319
      %6792 = vmatprep.subr.bf16.mxu0 %v4324
      %6793 = vmatpush1.bf16.msra.mxu0 %v4323
      %6794 = vmatprep.subr.bf16.mxu0 %v4328
      %6795 = vmatpush1.bf16.msra.mxu0 %v4327
      %6796 = vmatprep.subr.bf16.mxu0 %v4332
      %6797 = vmatpush1.bf16.msra.mxu0 %v4331
      %6798 = vmatprep.subr.bf16.mxu0 %v4336
      %6799 = vmatpush1.bf16.msra.mxu0 %v4335
      %6800 = vmatprep.subr.bf16.mxu0 %v4340
      %6801 = vmatpush1.bf16.msra.mxu0 %v4339
      %6802 = vmatprep.subr.bf16.mxu0 %v4344
      %6803 = vmatpush1.bf16.msra.mxu0 %v4343
      %6804 = vmatprep.subr.bf16.mxu0 %v4348
      %6805 = vmatpush1.bf16.msra.mxu0 %v4347
      %6806 = vmatprep.subr.bf16.mxu0 %v4352
      %6807 = vmatpush1.bf16.msra.mxu0 %v4351
      %6808 = vmatprep.subr.bf16.mxu0 %v4356
      %6809 = vmatpush1.bf16.msra.mxu0 %v4355
      %6810 = vmatprep.mubr.bf16.mxu0 %v1359
      %6811 = vmatmul.mubr.bf16.gmra.mrb[0].mxu0 %v1358
      %v6812 = vpop.f32.mrb[0].mxu0
      %v6813 = vadd.f32 %v6772, %v6812
      %v6814 = vpop.f32.mrb[0].mxu0
      %v6815 = vadd.f32 %v6774, %v6814
      %v6816 = vpop.f32.mrb[0].mxu0
      %v6817 = vpop.f32.mrb[0].mxu0
      %6818 = vdwg.mxu0
      %6819 = vmatprep.subr.bf16.mxu0 %v4360
      %6820 = vmatpush1.bf16.msra.mxu0 %v4359
      %6821 = vmatprep.subr.bf16.mxu0 %v4364
      %6822 = vmatpush1.bf16.msra.mxu0 %v4363
      %6823 = vmatprep.subr.bf16.mxu0 %v4368
      %6824 = vmatpush1.bf16.msra.mxu0 %v4367
      %6825 = vmatprep.subr.bf16.mxu0 %v4372
      %6826 = vmatpush1.bf16.msra.mxu0 %v4371
      %6827 = vmatprep.subr.bf16.mxu0 %v4376
      %6828 = vmatpush1.bf16.msra.mxu0 %v4375
      %6829 = vmatprep.subr.bf16.mxu0 %v4380
      %6830 = vmatpush1.bf16.msra.mxu0 %v4379
      %6831 = vmatprep.subr.bf16.mxu0 %v4384
      %6832 = vmatpush1.bf16.msra.mxu0 %v4383
      %6833 = vmatprep.subr.bf16.mxu0 %v4388
      %6834 = vmatpush1.bf16.msra.mxu0 %v4387
      %6835 = vmatprep.subr.bf16.mxu0 %v4392
      %6836 = vmatpush1.bf16.msra.mxu0 %v4391
      %6837 = vmatprep.subr.bf16.mxu0 %v4396
      %6838 = vmatpush1.bf16.msra.mxu0 %v4395
      %6839 = vmatprep.subr.bf16.mxu0 %v4400
      %6840 = vmatpush1.bf16.msra.mxu0 %v4399
      %6841 = vmatprep.subr.bf16.mxu0 %v4404
      %6842 = vmatpush1.bf16.msra.mxu0 %v4403
      %6843 = vmatprep.subr.bf16.mxu0 %v4408
      %6844 = vmatpush1.bf16.msra.mxu0 %v4407
      %6845 = vmatprep.subr.bf16.mxu0 %v4412
      %6846 = vmatpush1.bf16.msra.mxu0 %v4411
      %6847 = vmatprep.subr.bf16.mxu0 %v4416
      %6848 = vmatpush1.bf16.msra.mxu0 %v4415
      %6849 = vmatprep.subr.bf16.mxu0 %v4420
      %6850 = vmatpush1.bf16.msra.mxu0 %v4419
      %6851 = vmatprep.mubr.bf16.mxu0 %v1361
      %6852 = vmatmul.mubr.bf16.gmra.mrb[0].mxu0 %v1360
      %v6853 = vpop.f32.mrb[0].mxu0
      %v6854 = vadd.f32 %v6813, %v6853
      %v6855 = vpop.f32.mrb[0].mxu0
      %v6856 = vadd.f32 %v6815, %v6855
      %v6857 = vpop.f32.mrb[0].mxu0
      %v6858 = vpop.f32.mrb[0].mxu0
      %6859 = vdwg.mxu0
      %6860 = vmatprep.subr.bf16.mxu0 %v4424
      %6861 = vmatpush1.bf16.msra.mxu0 %v4423
      %6862 = vmatprep.subr.bf16.mxu0 %v4428
      %6863 = vmatpush1.bf16.msra.mxu0 %v4427
      %6864 = vmatprep.subr.bf16.mxu0 %v4432
      %6865 = vmatpush1.bf16.msra.mxu0 %v4431
      %6866 = vmatprep.subr.bf16.mxu0 %v4436
      %6867 = vmatpush1.bf16.msra.mxu0 %v4435
      %6868 = vmatprep.subr.bf16.mxu0 %v4440
      %6869 = vmatpush1.bf16.msra.mxu0 %v4439
      %6870 = vmatprep.subr.bf16.mxu0 %v4444
      %6871 = vmatpush1.bf16.msra.mxu0 %v4443
      %6872 = vmatprep.subr.bf16.mxu0 %v4448
      %6873 = vmatpush1.bf16.msra.mxu0 %v4447
      %6874 = vmatprep.subr.bf16.mxu0 %v4452
      %6875 = vmatpush1.bf16.msra.mxu0 %v4451
      %6876 = vmatprep.subr.bf16.mxu0 %v4456
      %6877 = vmatpush1.bf16.msra.mxu0 %v4455
      %6878 = vmatprep.subr.bf16.mxu0 %v4460
      %6879 = vmatpush1.bf16.msra.mxu0 %v4459
      %6880 = vmatprep.subr.bf16.mxu0 %v4464
      %6881 = vmatpush1.bf16.msra.mxu0 %v4463
      %6882 = vmatprep.subr.bf16.mxu0 %v4468
      %6883 = vmatpush1.bf16.msra.mxu0 %v4467
      %6884 = vmatprep.subr.bf16.mxu0 %v4472
      %6885 = vmatpush1.bf16.msra.mxu0 %v4471
      %6886 = vmatprep.subr.bf16.mxu0 %v4476
      %6887 = vmatpush1.bf16.msra.mxu0 %v4475
      %6888 = vmatprep.subr.bf16.mxu0 %v4480
      %6889 = vmatpush1.bf16.msra.mxu0 %v4479
      %6890 = vmatprep.subr.bf16.mxu0 %v4484
      %6891 = vmatpush1.bf16.msra.mxu0 %v4483
      %6892 = vmatprep.mubr.bf16.mxu0 %v1363
      %6893 = vmatmul.mubr.bf16.gmra.mrb[0].mxu0 %v1362
      %v6894 = vpop.f32.mrb[0].mxu0
      %v6895 = vadd.f32 %v6854, %v6894
      %v6896 = vpop.f32.mrb[0].mxu0
      %v6897 = vadd.f32 %v6856, %v6896
      %v6898 = vpop.f32.mrb[0].mxu0
      %v6899 = vpop.f32.mrb[0].mxu0
      %6900 = vdwg.mxu0
      %6901 = vmatprep.subr.bf16.mxu0 %v4488
      %6902 = vmatpush1.bf16.msra.mxu0 %v4487
      %6903 = vmatprep.subr.bf16.mxu0 %v4492
      %6904 = vmatpush1.bf16.msra.mxu0 %v4491
      %6905 = vmatprep.subr.bf16.mxu0 %v4496
      %6906 = vmatpush1.bf16.msra.mxu0 %v4495
      %6907 = vmatprep.subr.bf16.mxu0 %v4500
      %6908 = vmatpush1.bf16.msra.mxu0 %v4499
      %6909 = vmatprep.subr.bf16.mxu0 %v4504
      %6910 = vmatpush1.bf16.msra.mxu0 %v4503
      %6911 = vmatprep.subr.bf16.mxu0 %v4508
      %6912 = vmatpush1.bf16.msra.mxu0 %v4507
      %6913 = vmatprep.subr.bf16.mxu0 %v4512
      %6914 = vmatpush1.bf16.msra.mxu0 %v4511
      %6915 = vmatprep.subr.bf16.mxu0 %v4516
      %6916 = vmatpush1.bf16.msra.mxu0 %v4515
      %6917 = vmatprep.subr.bf16.mxu0 %v4520
      %6918 = vmatpush1.bf16.msra.mxu0 %v4519
      %6919 = vmatprep.subr.bf16.mxu0 %v4524
      %6920 = vmatpush1.bf16.msra.mxu0 %v4523
      %6921 = vmatprep.subr.bf16.mxu0 %v4528
      %6922 = vmatpush1.bf16.msra.mxu0 %v4527
      %6923 = vmatprep.subr.bf16.mxu0 %v4532
      %6924 = vmatpush1.bf16.msra.mxu0 %v4531
      %6925 = vmatprep.subr.bf16.mxu0 %v4536
      %6926 = vmatpush1.bf16.msra.mxu0 %v4535
      %6927 = vmatprep.subr.bf16.mxu0 %v4540
      %6928 = vmatpush1.bf16.msra.mxu0 %v4539
      %6929 = vmatprep.subr.bf16.mxu0 %v4544
      %6930 = vmatpush1.bf16.msra.mxu0 %v4543
      %6931 = vmatprep.subr.bf16.mxu0 %v4548
      %6932 = vmatpush1.bf16.msra.mxu0 %v4547
      %6933 = vmatprep.mubr.bf16.mxu0 %v1365
      %6934 = vmatmul.mubr.bf16.gmra.mrb[0].mxu0 %v1364
      %v6935 = vpop.f32.mrb[0].mxu0
      %v6936 = vadd.f32 %v6895, %v6935
      %v6937 = vpop.f32.mrb[0].mxu0
      %v6938 = vadd.f32 %v6897, %v6937
      %v6939 = vpop.f32.mrb[0].mxu0
      %v6940 = vpop.f32.mrb[0].mxu0
      %6941 = vdwg.mxu0
      %6942 = vmatprep.subr.bf16.mxu0 %v4552
      %6943 = vmatpush1.bf16.msra.mxu0 %v4551
      %6944 = vmatprep.subr.bf16.mxu0 %v4556
      %6945 = vmatpush1.bf16.msra.mxu0 %v4555
      %6946 = vmatprep.subr.bf16.mxu0 %v4560
      %6947 = vmatpush1.bf16.msra.mxu0 %v4559
      %6948 = vmatprep.subr.bf16.mxu0 %v4564
      %6949 = vmatpush1.bf16.msra.mxu0 %v4563
      %6950 = vmatprep.subr.bf16.mxu0 %v4568
      %6951 = vmatpush1.bf16.msra.mxu0 %v4567
      %6952 = vmatprep.subr.bf16.mxu0 %v4572
      %6953 = vmatpush1.bf16.msra.mxu0 %v4571
      %6954 = vmatprep.subr.bf16.mxu0 %v4576
      %6955 = vmatpush1.bf16.msra.mxu0 %v4575
      %6956 = vmatprep.subr.bf16.mxu0 %v4580
      %6957 = vmatpush1.bf16.msra.mxu0 %v4579
      %6958 = vmatprep.subr.bf16.mxu0 %v4584
      %6959 = vmatpush1.bf16.msra.mxu0 %v4583
      %6960 = vmatprep.subr.bf16.mxu0 %v4588
      %6961 = vmatpush1.bf16.msra.mxu0 %v4587
      %6962 = vmatprep.subr.bf16.mxu0 %v4592
      %6963 = vmatpush1.bf16.msra.mxu0 %v4591
      %6964 = vmatprep.subr.bf16.mxu0 %v4596
      %6965 = vmatpush1.bf16.msra.mxu0 %v4595
      %6966 = vmatprep.subr.bf16.mxu0 %v4600
      %6967 = vmatpush1.bf16.msra.mxu0 %v4599
      %6968 = vmatprep.subr.bf16.mxu0 %v4604
      %6969 = vmatpush1.bf16.msra.mxu0 %v4603
      %6970 = vmatprep.subr.bf16.mxu0 %v4608
      %6971 = vmatpush1.bf16.msra.mxu0 %v4607
      %6972 = vmatprep.subr.bf16.mxu0 %v4612
      %6973 = vmatpush1.bf16.msra.mxu0 %v4611
      %6974 = vmatprep.mubr.bf16.mxu0 %v1367
      %6975 = vmatmul.mubr.bf16.gmra.mrb[0].mxu0 %v1366
      %v6976 = vpop.f32.mrb[0].mxu0
      %v6977 = vadd.f32 %v6936, %v6976
      %v6978 = vpop.f32.mrb[0].mxu0
      %v6979 = vadd.f32 %v6938, %v6978
      %v6980 = vpop.f32.mrb[0].mxu0
      %v6981 = vpop.f32.mrb[0].mxu0
      %6982 = vdwg.mxu0
      %6983 = vmatprep.subr.bf16.mxu0 %v4616
      %6984 = vmatpush1.bf16.msra.mxu0 %v4615
      %6985 = vmatprep.subr.bf16.mxu0 %v4620
      %6986 = vmatpush1.bf16.msra.mxu0 %v4619
      %6987 = vmatprep.subr.bf16.mxu0 %v4624
      %6988 = vmatpush1.bf16.msra.mxu0 %v4623
      %6989 = vmatprep.subr.bf16.mxu0 %v4628
      %6990 = vmatpush1.bf16.msra.mxu0 %v4627
      %6991 = vmatprep.subr.bf16.mxu0 %v4632
      %6992 = vmatpush1.bf16.msra.mxu0 %v4631
      %6993 = vmatprep.subr.bf16.mxu0 %v4636
      %6994 = vmatpush1.bf16.msra.mxu0 %v4635
      %6995 = vmatprep.subr.bf16.mxu0 %v4640
      %6996 = vmatpush1.bf16.msra.mxu0 %v4639
      %6997 = vmatprep.subr.bf16.mxu0 %v4644
      %6998 = vmatpush1.bf16.msra.mxu0 %v4643
      %6999 = vmatprep.subr.bf16.mxu0 %v4648
      %7000 = vmatpush1.bf16.msra.mxu0 %v4647
      %7001 = vmatprep.subr.bf16.mxu0 %v4652
      %7002 = vmatpush1.bf16.msra.mxu0 %v4651
      %7003 = vmatprep.subr.bf16.mxu0 %v4656
      %7004 = vmatpush1.bf16.msra.mxu0 %v4655
      %7005 = vmatprep.subr.bf16.mxu0 %v4660
      %7006 = vmatpush1.bf16.msra.mxu0 %v4659
      %7007 = vmatprep.subr.bf16.mxu0 %v4664
      %7008 = vmatpush1.bf16.msra.mxu0 %v4663
      %7009 = vmatprep.subr.bf16.mxu0 %v4668
      %7010 = vmatpush1.bf16.msra.mxu0 %v4667
      %7011 = vmatprep.subr.bf16.mxu0 %v4672
      %7012 = vmatpush1.bf16.msra.mxu0 %v4671
      %7013 = vmatprep.subr.bf16.mxu0 %v4676
      %7014 = vmatpush1.bf16.msra.mxu0 %v4675
      %7015 = vmatprep.mubr.bf16.mxu0 %v1369
      %7016 = vmatmul.mubr.bf16.gmra.mrb[0].mxu0 %v1368
      %v7017 = vpop.f32.mrb[0].mxu0
      %v7018 = vadd.f32 %v6977, %v7017
      %v7019 = vpop.f32.mrb[0].mxu0
      %v7020 = vadd.f32 %v6979, %v7019
      %v7021 = vpop.f32.mrb[0].mxu0
      %v7022 = vpop.f32.mrb[0].mxu0
      %7023 = vdwg.mxu0
      %7024 = vmatprep.subr.bf16.mxu0 %v4680
      %7025 = vmatpush1.bf16.msra.mxu0 %v4679
      %7026 = vmatprep.subr.bf16.mxu0 %v4684
      %7027 = vmatpush1.bf16.msra.mxu0 %v4683
      %7028 = vmatprep.subr.bf16.mxu0 %v4688
      %7029 = vmatpush1.bf16.msra.mxu0 %v4687
      %7030 = vmatprep.subr.bf16.mxu0 %v4692
      %7031 = vmatpush1.bf16.msra.mxu0 %v4691
      %7032 = vmatprep.subr.bf16.mxu0 %v4696
      %7033 = vmatpush1.bf16.msra.mxu0 %v4695
      %7034 = vmatprep.subr.bf16.mxu0 %v4700
      %7035 = vmatpush1.bf16.msra.mxu0 %v4699
      %7036 = vmatprep.subr.bf16.mxu0 %v4704
      %7037 = vmatpush1.bf16.msra.mxu0 %v4703
      %7038 = vmatprep.subr.bf16.mxu0 %v4708
      %7039 = vmatpush1.bf16.msra.mxu0 %v4707
      %7040 = vmatprep.subr.bf16.mxu0 %v4712
      %7041 = vmatpush1.bf16.msra.mxu0 %v4711
      %7042 = vmatprep.subr.bf16.mxu0 %v4716
      %7043 = vmatpush1.bf16.msra.mxu0 %v4715
      %7044 = vmatprep.subr.bf16.mxu0 %v4720
      %7045 = vmatpush1.bf16.msra.mxu0 %v4719
      %7046 = vmatprep.subr.bf16.mxu0 %v4724
      %7047 = vmatpush1.bf16.msra.mxu0 %v4723
      %7048 = vmatprep.subr.bf16.mxu0 %v4728
      %7049 = vmatpush1.bf16.msra.mxu0 %v4727
      %7050 = vmatprep.subr.bf16.mxu0 %v4732
      %7051 = vmatpush1.bf16.msra.mxu0 %v4731
      %7052 = vmatprep.subr.bf16.mxu0 %v4736
      %7053 = vmatpush1.bf16.msra.mxu0 %v4735
      %7054 = vmatprep.subr.bf16.mxu0 %v4740
      %7055 = vmatpush1.bf16.msra.mxu0 %v4739
      %7056 = vmatprep.mubr.bf16.mxu0 %v1371
      %7057 = vmatmul.mubr.bf16.gmra.mrb[0].mxu0 %v1370
      %v7058 = vpop.f32.mrb[0].mxu0
      %v7059 = vadd.f32 %v7018, %v7058
      %v7060 = vpop.f32.mrb[0].mxu0
      %v7061 = vadd.f32 %v7020, %v7060
      %v7062 = vpop.f32.mrb[0].mxu0
      %v7063 = vpop.f32.mrb[0].mxu0
      %7064 = vdwg.mxu0
      %7065 = vmatprep.subr.bf16.mxu0 %v4744
      %7066 = vmatpush1.bf16.msra.mxu0 %v4743
      %7067 = vmatprep.subr.bf16.mxu0 %v4748
      %7068 = vmatpush1.bf16.msra.mxu0 %v4747
      %7069 = vmatprep.subr.bf16.mxu0 %v4752
      %7070 = vmatpush1.bf16.msra.mxu0 %v4751
      %7071 = vmatprep.subr.bf16.mxu0 %v4756
      %7072 = vmatpush1.bf16.msra.mxu0 %v4755
      %7073 = vmatprep.subr.bf16.mxu0 %v4760
      %7074 = vmatpush1.bf16.msra.mxu0 %v4759
      %7075 = vmatprep.subr.bf16.mxu0 %v4764
      %7076 = vmatpush1.bf16.msra.mxu0 %v4763
      %7077 = vmatprep.subr.bf16.mxu0 %v4768
      %7078 = vmatpush1.bf16.msra.mxu0 %v4767
      %7079 = vmatprep.subr.bf16.mxu0 %v4772
      %7080 = vmatpush1.bf16.msra.mxu0 %v4771
      %7081 = vmatprep.subr.bf16.mxu0 %v4776
      %7082 = vmatpush1.bf16.msra.mxu0 %v4775
      %7083 = vmatprep.subr.bf16.mxu0 %v4780
      %7084 = vmatpush1.bf16.msra.mxu0 %v4779
      %7085 = vmatprep.subr.bf16.mxu0 %v4784
      %7086 = vmatpush1.bf16.msra.mxu0 %v4783
      %7087 = vmatprep.subr.bf16.mxu0 %v4788
      %7088 = vmatpush1.bf16.msra.mxu0 %v4787
      %7089 = vmatprep.subr.bf16.mxu0 %v4792
      %7090 = vmatpush1.bf16.msra.mxu0 %v4791
      %7091 = vmatprep.subr.bf16.mxu0 %v4796
      %7092 = vmatpush1.bf16.msra.mxu0 %v4795
      %7093 = vmatprep.subr.bf16.mxu0 %v4800
      %7094 = vmatpush1.bf16.msra.mxu0 %v4799
      %7095 = vmatprep.subr.bf16.mxu0 %v4804
      %7096 = vmatpush1.bf16.msra.mxu0 %v4803
      %7097 = vmatprep.mubr.bf16.mxu0 %v1373
      %7098 = vmatmul.mubr.bf16.gmra.mrb[0].mxu0 %v1372
      %v7099 = vpop.f32.mrb[0].mxu0
      %v7100 = vadd.f32 %v7059, %v7099
      %v7101 = vpop.f32.mrb[0].mxu0
      %v7102 = vadd.f32 %v7061, %v7101
      %v7103 = vpop.f32.mrb[0].mxu0
      %v7104 = vpop.f32.mrb[0].mxu0
      %7105 = vdwg.mxu0
      %7106 = vmatprep.subr.bf16.mxu0 %v4808
      %7107 = vmatpush1.bf16.msra.mxu0 %v4807
      %7108 = vmatprep.subr.bf16.mxu0 %v4812
      %7109 = vmatpush1.bf16.msra.mxu0 %v4811
      %7110 = vmatprep.subr.bf16.mxu0 %v4816
      %7111 = vmatpush1.bf16.msra.mxu0 %v4815
      %7112 = vmatprep.subr.bf16.mxu0 %v4820
      %7113 = vmatpush1.bf16.msra.mxu0 %v4819
      %7114 = vmatprep.subr.bf16.mxu0 %v4824
      %7115 = vmatpush1.bf16.msra.mxu0 %v4823
      %7116 = vmatprep.subr.bf16.mxu0 %v4828
      %7117 = vmatpush1.bf16.msra.mxu0 %v4827
      %7118 = vmatprep.subr.bf16.mxu0 %v4832
      %7119 = vmatpush1.bf16.msra.mxu0 %v4831
      %7120 = vmatprep.subr.bf16.mxu0 %v4836
      %7121 = vmatpush1.bf16.msra.mxu0 %v4835
      %7122 = vmatprep.subr.bf16.mxu0 %v4840
      %7123 = vmatpush1.bf16.msra.mxu0 %v4839
      %7124 = vmatprep.subr.bf16.mxu0 %v4844
      %7125 = vmatpush1.bf16.msra.mxu0 %v4843
      %7126 = vmatprep.subr.bf16.mxu0 %v4848
      %7127 = vmatpush1.bf16.msra.mxu0 %v4847
      %7128 = vmatprep.subr.bf16.mxu0 %v4852
      %7129 = vmatpush1.bf16.msra.mxu0 %v4851
      %7130 = vmatprep.subr.bf16.mxu0 %v4856
      %7131 = vmatpush1.bf16.msra.mxu0 %v4855
      %7132 = vmatprep.subr.bf16.mxu0 %v4860
      %7133 = vmatpush1.bf16.msra.mxu0 %v4859
      %7134 = vmatprep.subr.bf16.mxu0 %v4864
      %7135 = vmatpush1.bf16.msra.mxu0 %v4863
      %7136 = vmatprep.subr.bf16.mxu0 %v4868
      %7137 = vmatpush1.bf16.msra.mxu0 %v4867
      %7138 = vmatprep.mubr.bf16.mxu0 %v1375
      %7139 = vmatmul.mubr.bf16.gmra.mrb[0].mxu0 %v1374
      %v7140 = vpop.f32.mrb[0].mxu0
      %v7141 = vadd.f32 %v7100, %v7140
      %v7142 = vpop.f32.mrb[0].mxu0
      %v7143 = vadd.f32 %v7102, %v7142
      %v7144 = vpop.f32.mrb[0].mxu0
      %v7145 = vpop.f32.mrb[0].mxu0
      %7146 = vdwg.mxu0
      %7147 = vmatprep.subr.bf16.mxu0 %v4872
      %7148 = vmatpush1.bf16.msra.mxu0 %v4871
      %7149 = vmatprep.subr.bf16.mxu0 %v4876
      %7150 = vmatpush1.bf16.msra.mxu0 %v4875
      %7151 = vmatprep.subr.bf16.mxu0 %v4880
      %7152 = vmatpush1.bf16.msra.mxu0 %v4879
      %7153 = vmatprep.subr.bf16.mxu0 %v4884
      %7154 = vmatpush1.bf16.msra.mxu0 %v4883
      %7155 = vmatprep.subr.bf16.mxu0 %v4888
      %7156 = vmatpush1.bf16.msra.mxu0 %v4887
      %7157 = vmatprep.subr.bf16.mxu0 %v4892
      %7158 = vmatpush1.bf16.msra.mxu0 %v4891
      %7159 = vmatprep.subr.bf16.mxu0 %v4896
      %7160 = vmatpush1.bf16.msra.mxu0 %v4895
      %7161 = vmatprep.subr.bf16.mxu0 %v4900
      %7162 = vmatpush1.bf16.msra.mxu0 %v4899
      %7163 = vmatprep.subr.bf16.mxu0 %v4904
      %7164 = vmatpush1.bf16.msra.mxu0 %v4903
      %7165 = vmatprep.subr.bf16.mxu0 %v4908
      %7166 = vmatpush1.bf16.msra.mxu0 %v4907
      %7167 = vmatprep.subr.bf16.mxu0 %v4912
      %7168 = vmatpush1.bf16.msra.mxu0 %v4911
      %7169 = vmatprep.subr.bf16.mxu0 %v4916
      %7170 = vmatpush1.bf16.msra.mxu0 %v4915
      %7171 = vmatprep.subr.bf16.mxu0 %v4920
      %7172 = vmatpush1.bf16.msra.mxu0 %v4919
      %7173 = vmatprep.subr.bf16.mxu0 %v4924
      %7174 = vmatpush1.bf16.msra.mxu0 %v4923
      %7175 = vmatprep.subr.bf16.mxu0 %v4928
      %7176 = vmatpush1.bf16.msra.mxu0 %v4927
      %7177 = vmatprep.subr.bf16.mxu0 %v4932
      %7178 = vmatpush1.bf16.msra.mxu0 %v4931
      %7179 = vmatprep.mubr.bf16.mxu0 %v1377
      %7180 = vmatmul.mubr.bf16.gmra.mrb[0].mxu0 %v1376
      %v7181 = vpop.f32.mrb[0].mxu0
      %v7182 = vadd.f32 %v7141, %v7181
      %v7183 = vpop.f32.mrb[0].mxu0
      %v7184 = vadd.f32 %v7143, %v7183
      %v7185 = vpop.f32.mrb[0].mxu0
      %v7186 = vpop.f32.mrb[0].mxu0
      %7187 = vdwg.mxu0
      %7188 = vmatprep.subr.bf16.mxu0 %v4936
      %7189 = vmatpush1.bf16.msra.mxu0 %v4935
      %7190 = vmatprep.subr.bf16.mxu0 %v4940
      %7191 = vmatpush1.bf16.msra.mxu0 %v4939
      %7192 = vmatprep.subr.bf16.mxu0 %v4944
      %7193 = vmatpush1.bf16.msra.mxu0 %v4943
      %7194 = vmatprep.subr.bf16.mxu0 %v4948
      %7195 = vmatpush1.bf16.msra.mxu0 %v4947
      %7196 = vmatprep.subr.bf16.mxu0 %v4952
      %7197 = vmatpush1.bf16.msra.mxu0 %v4951
      %7198 = vmatprep.subr.bf16.mxu0 %v4956
      %7199 = vmatpush1.bf16.msra.mxu0 %v4955
      %7200 = vmatprep.subr.bf16.mxu0 %v4960
      %7201 = vmatpush1.bf16.msra.mxu0 %v4959
      %7202 = vmatprep.subr.bf16.mxu0 %v4964
      %7203 = vmatpush1.bf16.msra.mxu0 %v4963
      %7204 = vmatprep.subr.bf16.mxu0 %v4968
      %7205 = vmatpush1.bf16.msra.mxu0 %v4967
      %7206 = vmatprep.subr.bf16.mxu0 %v4972
      %7207 = vmatpush1.bf16.msra.mxu0 %v4971
      %7208 = vmatprep.subr.bf16.mxu0 %v4976
      %7209 = vmatpush1.bf16.msra.mxu0 %v4975
      %7210 = vmatprep.subr.bf16.mxu0 %v4980
      %7211 = vmatpush1.bf16.msra.mxu0 %v4979
      %7212 = vmatprep.subr.bf16.mxu0 %v4984
      %7213 = vmatpush1.bf16.msra.mxu0 %v4983
      %7214 = vmatprep.subr.bf16.mxu0 %v4988
      %7215 = vmatpush1.bf16.msra.mxu0 %v4987
      %7216 = vmatprep.subr.bf16.mxu0 %v4992
      %7217 = vmatpush1.bf16.msra.mxu0 %v4991
      %7218 = vmatprep.subr.bf16.mxu0 %v4996
      %7219 = vmatpush1.bf16.msra.mxu0 %v4995
      %7220 = vmatprep.mubr.bf16.mxu0 %v1379
      %7221 = vmatmul.mubr.bf16.gmra.mrb[0].mxu0 %v1378
      %v7222 = vpop.f32.mrb[0].mxu0
      %v7223 = vadd.f32 %v7182, %v7222
      %v7224 = vpop.f32.mrb[0].mxu0
      %v7225 = vadd.f32 %v7184, %v7224
      %v7226 = vpop.f32.mrb[0].mxu0
      %v7227 = vpop.f32.mrb[0].mxu0
      %7228 = vdwg.mxu0
      %7229 = vmatprep.subr.bf16.mxu0 %v5000
      %7230 = vmatpush1.bf16.msra.mxu0 %v4999
      %7231 = vmatprep.subr.bf16.mxu0 %v5004
      %7232 = vmatpush1.bf16.msra.mxu0 %v5003
      %7233 = vmatprep.subr.bf16.mxu0 %v5008
      %7234 = vmatpush1.bf16.msra.mxu0 %v5007
      %7235 = vmatprep.subr.bf16.mxu0 %v5012
      %7236 = vmatpush1.bf16.msra.mxu0 %v5011
      %7237 = vmatprep.subr.bf16.mxu0 %v5016
      %7238 = vmatpush1.bf16.msra.mxu0 %v5015
      %7239 = vmatprep.subr.bf16.mxu0 %v5020
      %7240 = vmatpush1.bf16.msra.mxu0 %v5019
      %7241 = vmatprep.subr.bf16.mxu0 %v5024
      %7242 = vmatpush1.bf16.msra.mxu0 %v5023
      %7243 = vmatprep.subr.bf16.mxu0 %v5028
      %7244 = vmatpush1.bf16.msra.mxu0 %v5027
      %7245 = vmatprep.subr.bf16.mxu0 %v5032
      %7246 = vmatpush1.bf16.msra.mxu0 %v5031
      %7247 = vmatprep.subr.bf16.mxu0 %v5036
      %7248 = vmatpush1.bf16.msra.mxu0 %v5035
      %7249 = vmatprep.subr.bf16.mxu0 %v5040
      %7250 = vmatpush1.bf16.msra.mxu0 %v5039
      %7251 = vmatprep.subr.bf16.mxu0 %v5044
      %7252 = vmatpush1.bf16.msra.mxu0 %v5043
      %7253 = vmatprep.subr.bf16.mxu0 %v5048
      %7254 = vmatpush1.bf16.msra.mxu0 %v5047
      %7255 = vmatprep.subr.bf16.mxu0 %v5052
      %7256 = vmatpush1.bf16.msra.mxu0 %v5051
      %7257 = vmatprep.subr.bf16.mxu0 %v5056
      %7258 = vmatpush1.bf16.msra.mxu0 %v5055
      %7259 = vmatprep.subr.bf16.mxu0 %v5060
      %7260 = vmatpush1.bf16.msra.mxu0 %v5059
      %7261 = vmatprep.mubr.bf16.mxu0 %v1381
      %7262 = vmatmul.mubr.bf16.gmra.mrb[0].mxu0 %v1380
      %v7263 = vpop.f32.mrb[0].mxu0
      %v7264 = vadd.f32 %v7223, %v7263
      %v7265 = vpop.f32.mrb[0].mxu0
      %v7266 = vadd.f32 %v7225, %v7265
      %v7267 = vpop.f32.mrb[0].mxu0
      %v7268 = vpop.f32.mrb[0].mxu0
      %7269 = vdwg.mxu0
      %7270 = vmatprep.subr.bf16.mxu0 %v5064
      %7271 = vmatpush1.bf16.msra.mxu0 %v5063
      %7272 = vmatprep.subr.bf16.mxu0 %v5068
      %7273 = vmatpush1.bf16.msra.mxu0 %v5067
      %7274 = vmatprep.subr.bf16.mxu0 %v5072
      %7275 = vmatpush1.bf16.msra.mxu0 %v5071
      %7276 = vmatprep.subr.bf16.mxu0 %v5076
      %7277 = vmatpush1.bf16.msra.mxu0 %v5075
      %7278 = vmatprep.subr.bf16.mxu0 %v5080
      %7279 = vmatpush1.bf16.msra.mxu0 %v5079
      %7280 = vmatprep.subr.bf16.mxu0 %v5084
      %7281 = vmatpush1.bf16.msra.mxu0 %v5083
      %7282 = vmatprep.subr.bf16.mxu0 %v5088
      %7283 = vmatpush1.bf16.msra.mxu0 %v5087
      %7284 = vmatprep.subr.bf16.mxu0 %v5092
      %7285 = vmatpush1.bf16.msra.mxu0 %v5091
      %7286 = vmatprep.subr.bf16.mxu0 %v5096
      %7287 = vmatpush1.bf16.msra.mxu0 %v5095
      %7288 = vmatprep.subr.bf16.mxu0 %v5100
      %7289 = vmatpush1.bf16.msra.mxu0 %v5099
      %7290 = vmatprep.subr.bf16.mxu0 %v5104
      %7291 = vmatpush1.bf16.msra.mxu0 %v5103
      %7292 = vmatprep.subr.bf16.mxu0 %v5108
      %7293 = vmatpush1.bf16.msra.mxu0 %v5107
      %7294 = vmatprep.subr.bf16.mxu0 %v5112
      %7295 = vmatpush1.bf16.msra.mxu0 %v5111
      %7296 = vmatprep.subr.bf16.mxu0 %v5116
      %7297 = vmatpush1.bf16.msra.mxu0 %v5115
      %7298 = vmatprep.subr.bf16.mxu0 %v5120
      %7299 = vmatpush1.bf16.msra.mxu0 %v5119
      %7300 = vmatprep.subr.bf16.mxu0 %v5124
      %7301 = vmatpush1.bf16.msra.mxu0 %v5123
      %7302 = vmatprep.mubr.bf16.mxu0 %v1383
      %7303 = vmatmul.mubr.bf16.gmra.mrb[0].mxu0 %v1382
      %v7304 = vpop.f32.mrb[0].mxu0
      %v7305 = vadd.f32 %v7264, %v7304
      %v7306 = vpop.f32.mrb[0].mxu0
      %v7307 = vadd.f32 %v7266, %v7306
      %v7308 = vpop.f32.mrb[0].mxu0
      %v7309 = vpop.f32.mrb[0].mxu0
      %7310 = vdwg.mxu0
      %7311 = vmatprep.subr.bf16.mxu0 %v5128
      %7312 = vmatpush1.bf16.msra.mxu0 %v5127
      %7313 = vmatprep.subr.bf16.mxu0 %v5132
      %7314 = vmatpush1.bf16.msra.mxu0 %v5131
      %7315 = vmatprep.subr.bf16.mxu0 %v5136
      %7316 = vmatpush1.bf16.msra.mxu0 %v5135
      %7317 = vmatprep.subr.bf16.mxu0 %v5140
      %7318 = vmatpush1.bf16.msra.mxu0 %v5139
      %7319 = vmatprep.subr.bf16.mxu0 %v5144
      %7320 = vmatpush1.bf16.msra.mxu0 %v5143
      %7321 = vmatprep.subr.bf16.mxu0 %v5148
      %7322 = vmatpush1.bf16.msra.mxu0 %v5147
      %7323 = vmatprep.subr.bf16.mxu0 %v5152
      %7324 = vmatpush1.bf16.msra.mxu0 %v5151
      %7325 = vmatprep.subr.bf16.mxu0 %v5156
      %7326 = vmatpush1.bf16.msra.mxu0 %v5155
      %7327 = vmatprep.subr.bf16.mxu0 %v5160
      %7328 = vmatpush1.bf16.msra.mxu0 %v5159
      %7329 = vmatprep.subr.bf16.mxu0 %v5164
      %7330 = vmatpush1.bf16.msra.mxu0 %v5163
      %7331 = vmatprep.subr.bf16.mxu0 %v6120
      %7332 = vmatpush1.bf16.msra.mxu0 %v6117
      %7333 = vmatprep.subr.bf16.mxu0 0
      %7334 = vmatpush1.bf16.msra.mxu0 0
      %7335 = vmatprep.subr.bf16.mxu0 0
      %7336 = vmatpush1.bf16.msra.mxu0 0
      %7337 = vmatprep.subr.bf16.mxu0 0
      %7338 = vmatpush1.bf16.msra.mxu0 0
      %7339 = vmatprep.subr.bf16.mxu0 0
      %7340 = vmatpush1.bf16.msra.mxu0 0
      %7341 = vmatprep.subr.bf16.mxu0 0
      %7342 = vmatpush1.bf16.msra.mxu0 0
      %7343 = vmatprep.mubr.bf16.mxu0 %v6107
      %7344 = vmatmul.mubr.bf16.gmra.mrb[0].mxu0 %v1384
      %v7345 = vpop.f32.mrb[0].mxu0
      %v7346 = vadd.f32 %v7305, %v7345
      %v7347 = vpop.f32.mrb[0].mxu0
      %v7348 = vadd.f32 %v7307, %v7347
      %v7349 = vpop.f32.mrb[0].mxu0
      %v7350 = vpop.f32.mrb[0].mxu0
      %7351 = vdwg.mxu0
      %p7352 = scmp.eq.s32.totalorder %s25, 0
      // Predicated region
      $region57: #{forward.3} parent=55 // pred_check
        %p7353 = pneg %p7352
      $region58: #{forward.3} parent=55 // pred_check_branch
        %7355 = sbr.rel (%p7353) target = $region60
      $region59: #{forward.3} parent=55 // pred_region
        %7356 = vst [vmem:[#allocation2] sm:$0xff] %v6731
        %7357 = vst [vmem:[#allocation2 + $0x8] sm:$0xff] %v6733
        %7358 = vst [vmem:[#allocation2 + $0x10] sm:$0xff] %v7346
        %vm7359 = vcmask 130048
        %7360 = vst.msk [vmem:[#allocation2 + $0x18] sm:$0xff] %vm7359, %v7348
      $region60: #{forward.3} parent=55 // pred_fallthru
        _
      %p7361 = scmp.gt.s32.totalorder %s25, 0
      // Predicated region
      $region61: #{forward.3} parent=55 // pred_check
        %p7362 = pneg %p7361
      $region62: #{forward.3} parent=55 // pred_check_branch
        %7364 = sbr.rel (%p7362) target = $region64
      $region63: #{forward.3} parent=55 // pred_region
        %v7365 = vld [vmem:[#allocation2] sm:$0xff]
        %v7366 = vld [vmem:[#allocation2 + $0x8] sm:$0xff]
        %v7367 = vld [vmem:[#allocation2 + $0x10] sm:$0xff]
        %v7368 = vld [vmem:[#allocation2 + $0x18] sm:$0xff]
        %v7369 = vmax.f32 %v7365, %v6731
        %v7370 = vmax.f32 %v7366, %v6733
        %v7371 = vmax.f32 %v7367, %v7346
        %v7372 = vmax.f32 %v7368, %v7348
        %7373 = vst [vmem:[#allocation2] sm:$0xff] %v7369
        %7374 = vst [vmem:[#allocation2 + $0x8] sm:$0xff] %v7370
        %7375 = vst [vmem:[#allocation2 + $0x10] sm:$0xff] %v7371
        %vm7376 = vcmask 130048
        %7377 = vst.msk [vmem:[#allocation2 + $0x18] sm:$0xff] %vm7376, %v7372
      $region64: #{forward.3} parent=55 // pred_fallthru
        _
      %p7378 = scmp.eq.s32.totalorder %s25, 3
      // Predicated region
      $region65: #{forward.3} parent=55 // pred_check
        %p7379 = pneg %p7378
      $region66: #{forward.3} parent=55 // pred_check_branch
        %7381 = sbr.rel (%p7379) target = $region68
      $region67: #{forward.3} parent=55 // pred_region
        %v7382 = vld [vmem:[#allocation2] sm:$0xff]
        %v7383 = vld [vmem:[#allocation2 + $0x8] sm:$0xff]
        %v7384 = vld [vmem:[#allocation2 + $0x10] sm:$0xff]
        %v7385 = vld [vmem:[#allocation2 + $0x18] sm:$0xff]
        %v7386 = vld [vmem:[%s2] sm:$0xf]
        %v7388 = vlaneseq
        %v7389 = vshrl.u32 %v7388, 7
        %v7390 = vsub.s32 0, %v7389
        %v7391 = vrot.slane %v7386, %v7390
        %v7392 = vlaneseq
        %v7393 = vshrl.u32 %v7392, 7
        %v7394 = vsub.s32 1, %v7393
        %v7395 = vrot.slane %v7386, %v7394
        %v7396 = vlaneseq
        %v7397 = vshrl.u32 %v7396, 7
        %v7398 = vsub.s32 2, %v7397
        %v7399 = vrot.slane %v7386, %v7398
        %v7400 = vlaneseq
        %v7401 = vshrl.u32 %v7400, 7
        %v7402 = vsub.s32 3, %v7401
        %v7403 = vrot.slane %v7386, %v7402
        %v7408 = vadd.f32 %v7382, %v7391
        %v7409 = vadd.f32 %v7383, %v7395
        %v7410 = vadd.f32 %v7384, %v7399
        %v7411 = vadd.f32 %v7385, %v7403
        %v7412 = vmax.f32 %v7408, 0.0
        %v7413 = vmax.f32 %v7409, 0.0
        %v7414 = vmax.f32 %v7410, 0.0
        %v7415 = vmax.f32 %v7411, 0.0
        %v7416 = vpack.c.bf16 %v7412, %v7412
        %v7417 = vpack.c.bf16 %v7413, %v7413
        %v7418 = vpack.c.bf16 %v7414, %v7414
        %v7419 = vpack.c.bf16 %v7415, %v7415
        %v7420 = vld [vmem:[%s3] sm:$0xf]
        %v7421 = vld [vmem:[%s3 + $0x4] sm:$0xf]
        %v7422 = vld [vmem:[%s3 + $0x8] sm:$0xf]
        %v7423 = vld [vmem:[%s3 + $0xc] sm:$0xf]
        %v7424 = vld [vmem:[%s3 + $0x10] sm:$0xf]
        %v7425 = vld [vmem:[%s3 + $0x14] sm:$0xf]
        %v7426 = vld [vmem:[%s3 + $0x18] sm:$0xf]
        %v7427 = vld [vmem:[%s3 + $0x1c] sm:$0xf]
        %v7428 = vld [vmem:[%s3 + $0x20] sm:$0xf]
        %v7429 = vld [vmem:[%s3 + $0x24] sm:$0xf]
        %v7430 = vld [vmem:[%s3 + $0x28] sm:$0xf]
        %v7431 = vld [vmem:[%s3 + $0x2c] sm:$0xf]
        %v7432 = vld [vmem:[%s3 + $0x30] sm:$0xf]
        %v7433 = vld [vmem:[%s3 + $0x34] sm:$0xf]
        %v7434 = vld [vmem:[%s3 + $0x38] sm:$0xf]
        %v7435 = vld [vmem:[%s3 + $0x3c] sm:$0xf]
        %v7436 = vld [vmem:[%s3 + $0x40] sm:$0xf]
        %v7437 = vld [vmem:[%s3 + $0x44] sm:$0xf]
        %v7438 = vld [vmem:[%s3 + $0x48] sm:$0xf]
        %v7439 = vld [vmem:[%s3 + $0x4c] sm:$0xf]
        %v7440 = vld [vmem:[%s3 + $0x50] sm:$0xf]
        %v7441 = vld [vmem:[%s3 + $0x54] sm:$0xf]
        %v7442 = vld [vmem:[%s3 + $0x58] sm:$0xf]
        %v7443 = vld [vmem:[%s3 + $0x5c] sm:$0xf]
        %v7444 = vld [vmem:[%s3 + $0x60] sm:$0xf]
        %v7445 = vld [vmem:[%s3 + $0x64] sm:$0xf]
        %v7446 = vld [vmem:[%s3 + $0x68] sm:$0xf]
        %v7447 = vld [vmem:[%s3 + $0x6c] sm:$0xf]
        %v7448 = vld [vmem:[%s3 + $0x70] sm:$0xf]
        %v7449 = vld [vmem:[%s3 + $0x74] sm:$0xf]
        %v7450 = vld [vmem:[%s3 + $0x78] sm:$0xf]
        %v7451 = vld [vmem:[%s3 + $0x7c] sm:$0xf]
        %v7452 = vld [vmem:[%s3 + $0x80] sm:$0xf]
        %v7453 = vld [vmem:[%s3 + $0x84] sm:$0xf]
        %v7454 = vld [vmem:[%s3 + $0x88] sm:$0xf]
        %v7455 = vld [vmem:[%s3 + $0x8c] sm:$0xf]
        %v7456 = vld [vmem:[%s3 + $0x90] sm:$0xf]
        %v7457 = vld [vmem:[%s3 + $0x94] sm:$0xf]
        %v7458 = vld [vmem:[%s3 + $0x98] sm:$0xf]
        %v7459 = vld [vmem:[%s3 + $0x9c] sm:$0xf]
        %v7460 = vld [vmem:[%s3 + $0xa0] sm:$0xf]
        %v7461 = vld [vmem:[%s3 + $0xa4] sm:$0xf]
        %v7462 = vld [vmem:[%s3 + $0xa8] sm:$0xf]
        %v7463 = vld [vmem:[%s3 + $0xac] sm:$0xf]
        %v7464 = vld [vmem:[%s3 + $0xb0] sm:$0xf]
        %v7465 = vld [vmem:[%s3 + $0xb4] sm:$0xf]
        %v7466 = vld [vmem:[%s3 + $0xb8] sm:$0xf]
        %v7467 = vld [vmem:[%s3 + $0xbc] sm:$0xf]
        %v7468 = vld [vmem:[%s3 + $0xc0] sm:$0xf]
        %v7469 = vld [vmem:[%s3 + $0xc4] sm:$0xf]
        %v7470 = vld [vmem:[%s4] sm:$0x1]
        %v7472 = vlaneseq
        %v7473 = vshrl.u32 %v7472, 7
        %v7474 = vsub.s32 0, %v7473
        %v7475 = vrot.slane %v7470, %v7474
        %v7527 = vunpack.c.l.b16 %v7420
        %v7528 = vunpack.c.l.b16 %v7421
        %v7529 = vunpack.c.l.b16 %v7422
        %v7530 = vunpack.c.l.b16 %v7423
        %v7531 = vunpack.c.l.b16 %v7424
        %v7532 = vunpack.c.l.b16 %v7425
        %v7533 = vunpack.c.l.b16 %v7426
        %v7534 = vunpack.c.l.b16 %v7427
        %v7535 = vunpack.c.l.b16 %v7428
        %v7536 = vunpack.c.l.b16 %v7429
        %v7537 = vunpack.c.l.b16 %v7430
        %v7538 = vunpack.c.l.b16 %v7431
        %v7539 = vunpack.c.l.b16 %v7432
        %v7540 = vunpack.c.l.b16 %v7433
        %v7541 = vunpack.c.l.b16 %v7434
        %v7542 = vunpack.c.l.b16 %v7435
        %v7543 = vunpack.c.l.b16 %v7436
        %v7544 = vunpack.c.l.b16 %v7437
        %v7545 = vunpack.c.l.b16 %v7438
        %v7546 = vunpack.c.l.b16 %v7439
        %v7547 = vunpack.c.l.b16 %v7440
        %v7548 = vunpack.c.l.b16 %v7441
        %v7549 = vunpack.c.l.b16 %v7442
        %v7550 = vunpack.c.l.b16 %v7443
        %v7551 = vunpack.c.l.b16 %v7444
        %v7552 = vunpack.c.l.b16 %v7445
        %v7553 = vunpack.c.l.b16 %v7446
        %v7554 = vunpack.c.l.b16 %v7447
        %v7555 = vunpack.c.l.b16 %v7448
        %v7556 = vunpack.c.l.b16 %v7449
        %v7557 = vunpack.c.l.b16 %v7450
        %v7558 = vunpack.c.l.b16 %v7451
        %v7559 = vunpack.c.l.b16 %v7452
        %v7560 = vunpack.c.l.b16 %v7453
        %v7561 = vunpack.c.l.b16 %v7454
        %v7562 = vunpack.c.l.b16 %v7455
        %v7563 = vunpack.c.l.b16 %v7456
        %v7564 = vunpack.c.l.b16 %v7457
        %v7565 = vunpack.c.l.b16 %v7458
        %v7566 = vunpack.c.l.b16 %v7459
        %v7567 = vunpack.c.l.b16 %v7460
        %v7568 = vunpack.c.l.b16 %v7461
        %v7569 = vunpack.c.l.b16 %v7462
        %v7570 = vunpack.c.l.b16 %v7463
        %v7571 = vunpack.c.l.b16 %v7464
        %v7572 = vunpack.c.l.b16 %v7465
        %v7573 = vunpack.c.l.b16 %v7466
        %v7574 = vunpack.c.l.b16 %v7467
        %v7575 = vunpack.c.l.b16 %v7468
        %v7576 = vunpack.c.l.b16 %v7469
        %v7577 = vpack.c.b16 %v7528, %v7527
        %v7578 = vpack.c.b16 %v7530, %v7529
        %v7579 = vpack.c.b16 %v7532, %v7531
        %v7580 = vpack.c.b16 %v7534, %v7533
        %v7581 = vpack.c.b16 %v7536, %v7535
        %v7582 = vpack.c.b16 %v7538, %v7537
        %v7583 = vpack.c.b16 %v7540, %v7539
        %v7584 = vpack.c.b16 %v7542, %v7541
        %v7585 = vpack.c.b16 %v7544, %v7543
        %v7586 = vpack.c.b16 %v7546, %v7545
        %v7587 = vpack.c.b16 %v7548, %v7547
        %v7588 = vpack.c.b16 %v7550, %v7549
        %v7589 = vpack.c.b16 %v7552, %v7551
        %v7590 = vpack.c.b16 %v7554, %v7553
        %v7591 = vpack.c.b16 %v7556, %v7555
        %v7592 = vpack.c.b16 %v7558, %v7557
        %v7593 = vpack.c.b16 %v7560, %v7559
        %v7594 = vpack.c.b16 %v7562, %v7561
        %v7595 = vpack.c.b16 %v7564, %v7563
        %v7596 = vpack.c.b16 %v7566, %v7565
        %v7597 = vpack.c.b16 %v7568, %v7567
        %v7598 = vpack.c.b16 %v7570, %v7569
        %v7599 = vpack.c.b16 %v7572, %v7571
        %v7600 = vpack.c.b16 %v7574, %v7573
        %v7601 = vpack.c.b16 %v7576, %v7575
        %vm7627 = vcmask 130048
        %v7629 = vsel %vm7627, %v7419, 0
        %7631 = vmatprep.subr.bf16.mxu0 0
        %7632 = vmatpush1.bf16.msra.mxu0 %v7577
        %7633 = vmatprep.subr.bf16.mxu0 0
        %7634 = vmatpush1.bf16.msra.mxu0 %v7578
        %7635 = vmatprep.subr.bf16.mxu0 0
        %7636 = vmatpush1.bf16.msra.mxu0 %v7579
        %7637 = vmatprep.subr.bf16.mxu0 0
        %7638 = vmatpush1.bf16.msra.mxu0 %v7580
        %7639 = vmatprep.subr.bf16.mxu0 0
        %7640 = vmatpush1.bf16.msra.mxu0 %v7581
        %7641 = vmatprep.subr.bf16.mxu0 0
        %7642 = vmatpush1.bf16.msra.mxu0 %v7582
        %7643 = vmatprep.subr.bf16.mxu0 0
        %7644 = vmatpush1.bf16.msra.mxu0 %v7583
        %7645 = vmatprep.subr.bf16.mxu0 0
        %7646 = vmatpush1.bf16.msra.mxu0 %v7584
        %7647 = vmatprep.subr.bf16.mxu0 0
        %7648 = vmatpush1.bf16.msra.mxu0 %v7585
        %7649 = vmatprep.subr.bf16.mxu0 0
        %7650 = vmatpush1.bf16.msra.mxu0 %v7586
        %7651 = vmatprep.subr.bf16.mxu0 0
        %7652 = vmatpush1.bf16.msra.mxu0 %v7587
        %7653 = vmatprep.subr.bf16.mxu0 0
        %7654 = vmatpush1.bf16.msra.mxu0 %v7588
        %7655 = vmatprep.subr.bf16.mxu0 0
        %7656 = vmatpush1.bf16.msra.mxu0 %v7589
        %7657 = vmatprep.subr.bf16.mxu0 0
        %7658 = vmatpush1.bf16.msra.mxu0 %v7590
        %7659 = vmatprep.subr.bf16.mxu0 0
        %7660 = vmatpush1.bf16.msra.mxu0 %v7591
        %7661 = vmatprep.subr.bf16.mxu0 0
        %7662 = vmatpush1.bf16.msra.mxu0 %v7592
        %7663 = vmatprep.mubr.bf16.mxu0 %v7417
        %7664 = vmatmul.mubr.bf16.gmra.mrb[0].mxu0 %v7416
        %v7665 = vpop.f32.mrb[0].mxu0
        %v7666 = vadd.f32 %v7475, %v7665
        %v7667 = vpop.f32.mrb[0].mxu0
        %v7668 = vpop.f32.mrb[0].mxu0
        %v7669 = vpop.f32.mrb[0].mxu0
        %7670 = vdwg.mxu0
        %7671 = vmatprep.subr.bf16.mxu0 0
        %7672 = vmatpush1.bf16.msra.mxu0 %v7593
        %7673 = vmatprep.subr.bf16.mxu0 0
        %7674 = vmatpush1.bf16.msra.mxu0 %v7594
        %7675 = vmatprep.subr.bf16.mxu0 0
        %7676 = vmatpush1.bf16.msra.mxu0 %v7595
        %7677 = vmatprep.subr.bf16.mxu0 0
        %7678 = vmatpush1.bf16.msra.mxu0 %v7596
        %7679 = vmatprep.subr.bf16.mxu0 0
        %7680 = vmatpush1.bf16.msra.mxu0 %v7597
        %7681 = vmatprep.subr.bf16.mxu0 0
        %7682 = vmatpush1.bf16.msra.mxu0 %v7598
        %7683 = vmatprep.subr.bf16.mxu0 0
        %7684 = vmatpush1.bf16.msra.mxu0 %v7599
        %7685 = vmatprep.subr.bf16.mxu0 0
        %7686 = vmatpush1.bf16.msra.mxu0 %v7600
        %7687 = vmatprep.subr.bf16.mxu0 0
        %7688 = vmatpush1.bf16.msra.mxu0 %v7601
        %7689 = vmatprep.subr.bf16.mxu0 0
        %7690 = vmatpush1.bf16.msra.mxu0 0
        %7691 = vmatprep.subr.bf16.mxu0 0
        %7692 = vmatpush1.bf16.msra.mxu0 0
        %7693 = vmatprep.subr.bf16.mxu0 0
        %7694 = vmatpush1.bf16.msra.mxu0 0
        %7695 = vmatprep.subr.bf16.mxu0 0
        %7696 = vmatpush1.bf16.msra.mxu0 0
        %7697 = vmatprep.subr.bf16.mxu0 0
        %7698 = vmatpush1.bf16.msra.mxu0 0
        %7699 = vmatprep.subr.bf16.mxu0 0
        %7700 = vmatpush1.bf16.msra.mxu0 0
        %7701 = vmatprep.subr.bf16.mxu0 0
        %7702 = vmatpush1.bf16.msra.mxu0 0
        %7703 = vmatprep.mubr.bf16.mxu0 %v7629
        %7704 = vmatmul.mubr.bf16.gmra.mrb[0].mxu0 %v7418
        %v7705 = vpop.f32.mrb[0].mxu0
        %v7706 = vadd.f32 %v7666, %v7705
        %v7707 = vpop.f32.mrb[0].mxu0
        %v7708 = vpop.f32.mrb[0].mxu0
        %v7709 = vpop.f32.mrb[0].mxu0
        %7710 = vdwg.mxu0
        %v7711 = vmax.f32 %v7706, 0.0
        %v7712 = vpack.c.bf16 %v7711, %v7711
        %v7713 = vld [vmem:[%s5] sm:$0xf]
        %v7714 = vld [vmem:[%s5 + $0x4] sm:$0xf]
        %v7715 = vld [vmem:[%s5 + $0x8] sm:$0xf]
        %v7716 = vld [vmem:[%s5 + $0xc] sm:$0xf]
        %v7717 = vld [vmem:[%s5 + $0x10] sm:$0xf]
        %v7718 = vld [vmem:[%s5 + $0x14] sm:$0xf]
        %v7719 = vld [vmem:[%s5 + $0x18] sm:$0xf]
        %v7720 = vld [vmem:[%s5 + $0x1c] sm:$0xf]
        %v7721 = vld [vmem:[%s5 + $0x20] sm:$0xf]
        %v7722 = vld [vmem:[%s5 + $0x24] sm:$0xf]
        %v7723 = vld [vmem:[%s5 + $0x28] sm:$0xf]
        %v7724 = vld [vmem:[%s5 + $0x2c] sm:$0xf]
        %v7725 = vld [vmem:[%s5 + $0x30] sm:$0xf]
        %v7726 = vld [vmem:[%s5 + $0x34] sm:$0xf]
        %v7727 = vld [vmem:[%s5 + $0x38] sm:$0xf]
        %v7728 = vld [vmem:[%s6] sm:$0x1]
        %v7730 = vlaneseq
        %v7731 = vshrl.u32 %v7730, 7
        %v7732 = vsub.s32 0, %v7731
        %v7733 = vrot.slane %v7728, %v7732
        %v7750 = vunpack.c.l.b16 %v7713
        %v7751 = vunpack.c.l.b16 %v7714
        %v7752 = vunpack.c.l.b16 %v7715
        %v7753 = vunpack.c.l.b16 %v7716
        %v7754 = vunpack.c.l.b16 %v7717
        %v7755 = vunpack.c.l.b16 %v7718
        %v7756 = vunpack.c.l.b16 %v7719
        %v7757 = vunpack.c.l.b16 %v7720
        %v7758 = vunpack.c.l.b16 %v7721
        %v7759 = vunpack.c.l.b16 %v7722
        %v7760 = vunpack.c.l.b16 %v7723
        %v7761 = vunpack.c.l.b16 %v7724
        %v7762 = vunpack.c.l.b16 %v7725
        %v7763 = vunpack.c.l.b16 %v7726
        %v7764 = vunpack.c.l.b16 %v7727
        %v7765 = vpack.c.b16 %v7751, %v7750
        %v7766 = vpack.c.b16 %v7753, %v7752
        %v7767 = vpack.c.b16 %v7755, %v7754
        %v7768 = vpack.c.b16 %v7757, %v7756
        %v7769 = vpack.c.b16 %v7759, %v7758
        %v7770 = vpack.c.b16 %v7761, %v7760
        %v7771 = vpack.c.b16 %v7763, %v7762
        %v7772 = vpack.c.b16 %v7764, %v7764
        %vm7780 = vcmask 982016
        %v7782 = vsel %vm7780, %v7712, 0
        %vm7784 = vcmask 1043456
        %v7786 = vsel %vm7784, %v7772, 0
        %7788 = vmatprep.subr.bf16.mxu0 0
        %7789 = vmatpush1.bf16.msra.mxu0 %v7765
        %7790 = vmatprep.subr.bf16.mxu0 0
        %7791 = vmatpush1.bf16.msra.mxu0 %v7766
        %7792 = vmatprep.subr.bf16.mxu0 0
        %7793 = vmatpush1.bf16.msra.mxu0 %v7767
        %7794 = vmatprep.subr.bf16.mxu0 0
        %7795 = vmatpush1.bf16.msra.mxu0 %v7768
        %7796 = vmatprep.subr.bf16.mxu0 0
        %7797 = vmatpush1.bf16.msra.mxu0 %v7769
        %7798 = vmatprep.subr.bf16.mxu0 0
        %7799 = vmatpush1.bf16.msra.mxu0 %v7770
        %7800 = vmatprep.subr.bf16.mxu0 0
        %7801 = vmatpush1.bf16.msra.mxu0 %v7771
        %7802 = vmatprep.subr.bf16.mxu0 0
        %7803 = vmatpush1.bf16.msra.mxu0 %v7786
        %7804 = vmatprep.subr.bf16.mxu0 0
        %7805 = vmatpush1.bf16.msra.mxu0 0
        %7806 = vmatprep.subr.bf16.mxu0 0
        %7807 = vmatpush1.bf16.msra.mxu0 0
        %7808 = vmatprep.subr.bf16.mxu0 0
        %7809 = vmatpush1.bf16.msra.mxu0 0
        %7810 = vmatprep.subr.bf16.mxu0 0
        %7811 = vmatpush1.bf16.msra.mxu0 0
        %7812 = vmatprep.subr.bf16.mxu0 0
        %7813 = vmatpush1.bf16.msra.mxu0 0
        %7814 = vmatprep.subr.bf16.mxu0 0
        %7815 = vmatpush1.bf16.msra.mxu0 0
        %7816 = vmatprep.subr.bf16.mxu0 0
        %7817 = vmatpush1.bf16.msra.mxu0 0
        %7818 = vmatprep.subr.bf16.mxu0 0
        %7819 = vmatpush1.bf16.msra.mxu0 0
        %7820 = vmatprep.mubr.bf16.mxu0 0
        %7821 = vmatmul.mubr.bf16.gmra.mrb[0].mxu0 %v7782
        %v7822 = vpop.f32.mrb[0].mxu0
        %v7823 = vadd.f32 %v7733, %v7822
        %v7824 = vpop.f32.mrb[0].mxu0
        %v7825 = vpop.f32.mrb[0].mxu0
        %v7826 = vpop.f32.mrb[0].mxu0
        %7827 = vdwg.mxu0
        %v7828 = vmax.f32 %v7823, 0.0
        %v7829 = vpack.c.bf16 %v7828, %v7828
        %v7830 = vld [vmem:[%s7] sm:$0xf]
        %v7831 = vld [vmem:[%s7 + $0x4] sm:$0xf]
        %v7832 = vld [vmem:[%s7 + $0x8] sm:$0xf]
        %v7833 = vld [vmem:[%s7 + $0xc] sm:$0xf]
        %v7834 = vld [vmem:[%s7 + $0x10] sm:$0xf]
        %v7835 = vld [vmem:[%s7 + $0x14] sm:$0xf]
        %v7836 = vld [vmem:[%s7 + $0x18] sm:$0xf]
        %v7837 = vld [vmem:[%s7 + $0x1c] sm:$0xf]
        %v7838 = vld [vmem:[%s7 + $0x20] sm:$0xf]
        %v7839 = vld [vmem:[%s7 + $0x24] sm:$0xf]
        %v7840 = vld [vmem:[%s7 + $0x28] sm:$0x3]
        %v7841 = vld [vmem:[%s8] sm:$0x1]
        %v7843 = vlaneseq
        %v7844 = vshrl.u32 %v7843, 7
        %v7845 = vsub.s32 0, %v7844
        %v7846 = vrot.slane %v7841, %v7845
        %v7859 = vunpack.c.l.b16 %v7830
        %v7860 = vunpack.c.l.b16 %v7831
        %v7861 = vunpack.c.l.b16 %v7832
        %v7862 = vunpack.c.l.b16 %v7833
        %v7863 = vunpack.c.l.b16 %v7834
        %v7864 = vunpack.c.l.b16 %v7835
        %v7865 = vunpack.c.l.b16 %v7836
        %v7866 = vunpack.c.l.b16 %v7837
        %v7867 = vunpack.c.l.b16 %v7838
        %v7868 = vunpack.c.l.b16 %v7839
        %v7869 = vunpack.c.l.b16 %v7840
        %v7870 = vpack.c.b16 %v7860, %v7859
        %v7871 = vpack.c.b16 %v7862, %v7861
        %v7872 = vpack.c.b16 %v7864, %v7863
        %v7873 = vpack.c.b16 %v7866, %v7865
        %v7874 = vpack.c.b16 %v7868, %v7867
        %v7875 = vpack.c.b16 %v7869, %v7869
        %vm7881 = vcmask 687104
        %v7883 = vsel %vm7881, %v7829, 0
        %vm7885 = vcmask 1041408
        %v7887 = vsel %vm7885, %v7875, 0
        %7889 = vmatprep.subr.bf16.mxu0 0
        %7890 = vmatpush1.bf16.msra.mxu0 %v7870
        %7891 = vmatprep.subr.bf16.mxu0 0
        %7892 = vmatpush1.bf16.msra.mxu0 %v7871
        %7893 = vmatprep.subr.bf16.mxu0 0
        %7894 = vmatpush1.bf16.msra.mxu0 %v7872
        %7895 = vmatprep.subr.bf16.mxu0 0
        %7896 = vmatpush1.bf16.msra.mxu0 %v7873
        %7897 = vmatprep.subr.bf16.mxu0 0
        %7898 = vmatpush1.bf16.msra.mxu0 %v7874
        %7899 = vmatprep.subr.bf16.mxu0 0
        %7900 = vmatpush1.bf16.msra.mxu0 %v7887
        %7901 = vmatprep.subr.bf16.mxu0 0
        %7902 = vmatpush1.bf16.msra.mxu0 0
        %7903 = vmatprep.subr.bf16.mxu0 0
        %7904 = vmatpush1.bf16.msra.mxu0 0
        %7905 = vmatprep.subr.bf16.mxu0 0
        %7906 = vmatpush1.bf16.msra.mxu0 0
        %7907 = vmatprep.subr.bf16.mxu0 0
        %7908 = vmatpush1.bf16.msra.mxu0 0
        %7909 = vmatprep.subr.bf16.mxu0 0
        %7910 = vmatpush1.bf16.msra.mxu0 0
        %7911 = vmatprep.subr.bf16.mxu0 0
        %7912 = vmatpush1.bf16.msra.mxu0 0
        %7913 = vmatprep.subr.bf16.mxu0 0
        %7914 = vmatpush1.bf16.msra.mxu0 0
        %7915 = vmatprep.subr.bf16.mxu0 0
        %7916 = vmatpush1.bf16.msra.mxu0 0
        %7917 = vmatprep.subr.bf16.mxu0 0
        %7918 = vmatpush1.bf16.msra.mxu0 0
        %7919 = vmatprep.subr.bf16.mxu0 0
        %7920 = vmatpush1.bf16.msra.mxu0 0
        %7921 = vmatprep.mubr.bf16.mxu0 0
        %7922 = vmatmul.mubr.bf16.gmra.mrb[0].mxu0 %v7883
        %v7923 = vpop.f32.mrb[0].mxu0
        %v7924 = vadd.f32 %v7846, %v7923
        %v7925 = vpop.f32.mrb[0].mxu0
        %v7926 = vpop.f32.mrb[0].mxu0
        %v7927 = vpop.f32.mrb[0].mxu0
        %7928 = vdwg.mxu0
        %vm7929 = vcmask 23552
        %v7930 = vsel %vm7929, %v7924, -inf
        %7931 = vmax.xlane.f32.xlu0 %v7930
        %v7932 = vpop.xlane.xlu0 %7931
        %v7933 = vsub.f32 %v7924, %v7932
        %v7934 = vmul.f32 %v7933, 1.442695
        %v7935 = vpow.pop %v7934
        %v7936 = vsel %vm7929, %v7935, 0.0
        %7937 = vadd.xlane.f32.xlu0 %v7936
        %v7938 = vpop.xlane.xlu0 %7937
        %v7939 = vrcp.pop %v7938
        %v7940 = vmul.f32 %v7935, %v7939
        %7941 = vst.msk [vmem:[%s356] sm:$0xff] %vm7929, %v7940
      $region68: #{forward.3} parent=55 // pred_fallthru
        _
      %p7942 = scmp.lt.s32.totalorder %s24, 0
      %s7943 = scalar_select %p7942, %s24, 0
      %s7944 = smul.addr %s7943, 8
      %s7945 = scalar_lea.vmem %s9, %s7944
      // Predicated region
      $region69: #{forward.3} parent=55 // pred_check
        %p7946 = pneg %p246
      $region70: #{forward.3} parent=55 // pred_check_branch
        %7948 = sbr.rel (%p7946) target = $region72
      $region71: #{forward.3} parent=55 // pred_region
        _
      $region72: #{forward.3} parent=55 // pred_fallthru
        _
      // Predicated region
      $region73: #{forward.3} parent=55 // pred_check
        %p7949 = pneg %p246
      $region74: #{forward.3} parent=55 // pred_check_branch
        %7951 = sbr.rel (%p7949) target = $region76
      $region75: #{forward.3} parent=55 // pred_region
        %p7952 = scmp.lt.s32.totalorder %s24, 0
        %s7953 = scalar_select %p7952, %s24, 0
        %s7954 = smul.addr %s7953, 8
        %s7955 = scalar_lea.vmem %s9, %s7954
      $region76: #{forward.3} parent=55 // pred_fallthru
        _
    $region56: #{forward.3} parent=5 // pred_fallthru
      _
    %p7956 = scmp.le.s32.totalorder 2, %s15
    // Predicated region
    $region77: #{forward.3} parent=5 // pred_check
      %p7957 = pneg %p7956
    $region78: #{forward.3} parent=5 // pred_check_branch
      %7959 = sbr.rel (%p7957) target = $region80
    $region79: #{forward.3} parent=5 // pred_region
      %s7960 = ssub.s32 %s15, 2
    $region80: #{forward.3} parent=5 // pred_fallthru
      _
  $region6: #{forward.3} parent=0 // loop_footer
    %s19 = sadd.s32 1, %s15
  $region7: #{forward.3} parent=0 // loop_footer_branch
    %14 = sbr.rel target = $region3
  $region8: #{forward.3} parent=0 // loop_exit
    _

</llo_original>
